<compile_context>
chip_gen: v7x
topology: tpu7x:2x2x1
jax: 0.10.0
libtpu: 0.0.40
codegen_flags: <defaults>
</compile_context>

<pallas_src>
import functools

import jax
import jax.numpy as jnp
from jax.experimental import pallas as pl
from jax.experimental.pallas import tpu as pltpu


# ------------------------------ Pallas kernel --------------------------------

def _standard_unit_kernel(xp_ref, mask_ref, w1_ref, b1_ref, w2_ref, b2_ref,
                          wp_ref, o_ref, y1_ref, *, H, W, coutp):
    """Fused conv3x3+BN+ReLU -> conv3x3+BN -> (+residual) -> ReLU for one image.

    xp_ref : (1, (H+2)*(W+2), Cin)  bf16   zero-padded frame, flattened
    mask_ref: ((H*(W+2)-2), 1)      f32    1 on interior rows, 0 on frame pad
    w1_ref : (9, Cin,  Coutp)       bf16   BN1-folded conv1 taps
    w2_ref : (9, Coutp, Coutp)      bf16   BN2-folded conv2 taps
    wp_ref : (Cin, Coutp)           bf16   folded 1x1 projection OR identity
    b1_ref, b2_ref: (1, Coutp)      f32    folded biases (b2 includes proj BN)
    o_ref  : (1, H*(W+2)-2, Coutp)  f32
    y1_ref : ((H+2)*(W+2), Coutp)   bf16   VMEM scratch for the intermediate
    """
    Wp = W + 2
    R0 = Wp + 1            # flat index (in the padded frame) of pixel (0, 0)
    NR = H * Wp - 2        # contiguous row range covering every interior pixel
    shifts = [(ky - 1) * Wp + (kx - 1) for ky in range(3) for kx in range(3)]

    # ---- conv1 (3x3, s=1, p=1) + BN1 (folded) + ReLU ------------------------
    acc1 = jnp.zeros((NR, coutp), jnp.float32)
    for t, s in enumerate(shifts):
        acc1 = acc1 + jnp.dot(xp_ref[0, pl.ds(R0 + s, NR), :], w1_ref[t],
                              preferred_element_type=jnp.float32)
    y1 = jnp.maximum(acc1 + b1_ref[...], 0.0)
    # Re-zero the frame-padding rows: they are conv2's zero padding.
    y1 = y1 * mask_ref[...]
    y1_ref[...] = jnp.zeros_like(y1_ref)               # clears top/bottom pad
    y1_ref[pl.ds(R0, NR), :] = y1.astype(y1_ref.dtype)

    # ---- residual: folded 1x1 projection, or identity channel embedding -----
    acc2 = jnp.dot(xp_ref[0, pl.ds(R0, NR), :], wp_ref[...],
                   preferred_element_type=jnp.float32)

    # ---- conv2 (3x3, s=1, p=1) + BN2 (folded) + add residual + ReLU ----------
    for t, s in enumerate(shifts):
        acc2 = acc2 + jnp.dot(y1_ref[pl.ds(R0 + s, NR), :], w2_ref[t],
                              preferred_element_type=jnp.float32)
    o_ref[0] = jnp.maximum(acc2 + b2_ref[...], 0.0).astype(o_ref.dtype)


# ------------------------------- wrapper --------------------------------------

def standard_unit_forward(x_nchw, kp, stride=1):
    """Forward pass. `kp` comes from fold_params(); only stride=1 is supported."""
    if stride != 1:
        # TODO(synk): stride=2 path (conv1 s2 + depthwise 3x3 s2 p0 + BN + 1x1 + BN
        # projection) is not implemented in the Pallas kernel.
        raise NotImplementedError("only stride=1 is implemented")

    n, cin, h, w = x_nchw.shape
    coutp = kp["w1"].shape[-1]
    cout = kp["cout"]
    assert kp["w1"].shape == (9, cin, coutp)

    wp2 = w + 2
    P = (h + 2) * wp2
    NR = h * wp2 - 2

    # NCHW -> zero-padded NHWC frame, flattened to (N, (H+2)*(W+2), Cin), bf16.
    x = jnp.transpose(x_nchw, (0, 2, 3, 1))
    xp = jnp.pad(x, ((0, 0), (1, 1), (1, 1), (0, 0))).reshape(n, P, cin)
    xp = xp.astype(jnp.bfloat16)

    # Interior mask over the NR computed rows (0 on the horizontal frame pad).
    col = (jnp.arange(NR, dtype=jnp.int32) + wp2 + 1) % wp2
    mask = ((col >= 1) & (col <= w)).astype(jnp.float32)[:, None]    # (NR, 1)

    kernel = functools.partial(_standard_unit_kernel, H=h, W=w, coutp=coutp)

    out = pl.pallas_call(
        kernel,
        out_shape=jax.ShapeDtypeStruct((n, NR, coutp), jnp.float32),
        grid=(n,),
        in_specs=[
            pl.BlockSpec((1, P, cin), lambda g: (g, 0, 0)),       # xp
            pl.BlockSpec((NR, 1), lambda g: (0, 0)),              # mask
            pl.BlockSpec((9, cin, coutp), lambda g: (0, 0, 0)),   # w1
            pl.BlockSpec((1, coutp), lambda g: (0, 0)),           # b1
            pl.BlockSpec((9, coutp, coutp), lambda g: (0, 0, 0)), # w2
            pl.BlockSpec((1, coutp), lambda g: (0, 0)),           # b2 (+bp)
            pl.BlockSpec((cin, coutp), lambda g: (0, 0)),         # wp / identity
        ],
        out_specs=pl.BlockSpec((1, NR, coutp), lambda g: (g, 0, 0)),
        scratch_shapes=[pltpu.VMEM((P, coutp), jnp.bfloat16)],
        compiler_params=pltpu.CompilerParams(
            dimension_semantics=("parallel",)),
    )(xp, mask, kp["w1"], kp["b1"], kp["w2"], kp["b2"], kp["wp"])

    # Row r of the kernel output corresponds to padded-frame flat position
    # r + (W+3) = (i+1)*(W+2) + (j+1)  =>  r = i*(W+2) + j  for j in [0, W).
    out = jnp.pad(out, ((0, 0), (0, 2), (0, 0)))          # -> (N, H*(W+2), Coutp)
    out = out.reshape(n, h, wp2, coutp)[:, :, :w, :cout]  # -> (N, H, W, Cout)
    return jnp.transpose(out, (0, 3, 1, 2))               # -> NCHW


# ------------------------- parameter folding ----------------------------------

def _fold_bn(gamma, beta, mean, var, eps=1e-5):
    scale = gamma / jnp.sqrt(var + eps)
    return scale, beta - mean * scale


def fold_params(raw, cin, cout, use_projection):
    """Fold BN into conv weights/biases and lay weights out for the kernel."""
    coutp = ((cout + 127) // 128) * 128     # lane-dense output channels
    pad_o = coutp - cout

    s1, b1 = _fold_bn(*raw["bn1"])
    s2, b2 = _fold_bn(*raw["bn2"])

    # conv weights: OIHW * BN scale -> (9, Cin, Coutp), taps ordered ky*3 + kx.
    w1 = raw["w1"] * s1[:, None, None, None]
    w1 = jnp.transpose(w1, (2, 3, 1, 0)).reshape(9, cin, cout)
    w1 = jnp.pad(w1, ((0, 0), (0, 0), (0, pad_o)))

    w2 = raw["w2"] * s2[:, None, None, None]
    w2 = jnp.transpose(w2, (2, 3, 1, 0)).reshape(9, cout, cout)
    w2 = jnp.pad(w2, ((0, 0), (0, pad_o), (0, pad_o)))

    if use_projection:
        sp, bp = _fold_bn(*raw["bnp"])
        wp = raw["wp"][:, :, 0, 0].T * sp[None, :]        # (Cin, Cout), BN folded
        wp = jnp.pad(wp, ((0, 0), (0, pad_o)))
        b2c = b2 + bp                                     # biases commute past +
    else:
        # Identity residual, embedded into the padded channel space.
        wp = jnp.eye(cin, coutp, dtype=jnp.float32)
        b2c = b2

    return dict(
        w1=w1.astype(jnp.bfloat16),
        w2=w2.astype(jnp.bfloat16),
        wp=wp.astype(jnp.bfloat16),
        b1=jnp.pad(b1, (0, pad_o)).reshape(1, coutp).astype(jnp.float32),
        b2=jnp.pad(b2c, (0, pad_o)).reshape(1, coutp).astype(jnp.float32),
        cout=cout,
    )


def make_raw_params(key, cin, cout):
    ks = jax.random.split(key, 6)
    w1 = 0.1 * jax.random.normal(ks[0], (cout, cin, 3, 3), jnp.float32)
    w2 = 0.1 * jax.random.normal(ks[1], (cout, cout, 3, 3), jnp.float32)
    wp = 0.1 * jax.random.normal(ks[2], (cout, cin, 1, 1), jnp.float32)

    def bn(k, c):
        k1, k2, k3, k4 = jax.random.split(k, 4)
        gamma = 1.0 + 0.1 * jax.random.normal(k1, (c,), jnp.float32)
        beta = 0.1 * jax.random.normal(k2, (c,), jnp.float32)
        mean = 0.1 * jax.random.normal(k3, (c,), jnp.float32)
        var = jax.random.uniform(k4, (c,), jnp.float32, minval=0.5, maxval=1.5)
        return gamma, beta, mean, var

    return dict(w1=w1, w2=w2, wp=wp,
                bn1=bn(ks[3], cout), bn2=bn(ks[4], cout), bnp=bn(ks[5], cout))


# ----------------------------- reference --------------------------------------

def reference_forward(x_nchw, raw, cin, cout, stride=1):
    def conv(x, w, s, pad):
        return jax.lax.conv_general_dilated(
            x, w, (s, s), ((pad, pad), (pad, pad)),
            dimension_numbers=("NCHW", "OIHW", "NCHW"),
            precision=jax.lax.Precision.HIGHEST)

    def bn(x, p):
        gamma, beta, mean, var = p
        s = gamma / jnp.sqrt(var + 1e-5)
        b = beta - mean * s
        return x * s[None, :, None, None] + b[None, :, None, None]

    use_projection = (cin != cout) or (stride != 1)
    res = bn(conv(x_nchw, raw["wp"], stride, 0), raw["bnp"]) if use_projection else x_nchw
    y = jax.nn.relu(bn(conv(x_nchw, raw["w1"], stride, 1), raw["bn1"]))
    y = bn(conv(y, raw["w2"], 1, 1), raw["bn2"])
    return jax.nn.relu(y + res)


# -------------------------------- test -----------------------------------------

if __name__ == "__main__":
    def run_case(key, n, cin, cout, h, w):
        kx, kparam = jax.random.split(key)
        x = jax.random.normal(kx, (n, cin, h, w), jnp.float32)
        raw = make_raw_params(kparam, cin, cout)
        use_projection = (cin != cout)
        folded = fold_params(raw, cin, cout, use_projection)

        out = jax.block_until_ready(standard_unit_forward(x, folded, stride=1))
        ref = jax.block_until_ready(reference_forward(x, raw, cin, cout, stride=1))

        assert out.shape == ref.shape == (n, cout, h, w)
        max_err = float(jnp.max(jnp.abs(out - ref)))
        assert jnp.allclose(out, ref, rtol=3e-2, atol=3e-2), f"max err {max_err}"

    key = jax.random.PRNGKey(0)
    k1, k2 = jax.random.split(key)
    run_case(k1, 2, 4, 8, 16, 16)   # Cin != Cout -> 1x1-conv projection branch
    run_case(k2, 2, 8, 8, 16, 16)   # Cin == Cout -> identity residual branch
    print("KERNEL_OK")
</pallas_src>

<mosaic_0001>
module attributes {stable_mosaic.version = 11 : i64} {
  func.func @_standard_unit_kernel(%arg0: i32, %arg1: memref<1x324x4xbf16, #tpu.memory_space<vmem>>, %arg2: memref<286x1xf32, #tpu.memory_space<vmem>>, %arg3: memref<9x4x128xbf16, #tpu.memory_space<vmem>>, %arg4: memref<1x128xf32, #tpu.memory_space<vmem>>, %arg5: memref<9x128x128xbf16, #tpu.memory_space<vmem>>, %arg6: memref<1x128xf32, #tpu.memory_space<vmem>>, %arg7: memref<4x128xbf16, #tpu.memory_space<vmem>>, %arg8: memref<1x286x128xf32, #tpu.memory_space<vmem>>, %arg9: memref<324x128xbf16, #tpu.memory_space<vmem>>) attributes {dimension_semantics = [#tpu.dimension_semantics<parallel>], iteration_bounds = array<i64: 2>, scalar_prefetch = 0 : i64, scratch_operands = 1 : i64, tpu.core_type = #tpu.core_type<tc>, window_params = [{transform_indices = @transform_0, window_bounds = array<i64: 1, 324, 4>}, {pipeline_mode = #tpu.pipeline_mode<synchronous>, transform_indices = @transform_1, window_bounds = array<i64: 286, 1>}, {pipeline_mode = #tpu.pipeline_mode<synchronous>, transform_indices = @transform_2, window_bounds = array<i64: 9, 4, 128>}, {pipeline_mode = #tpu.pipeline_mode<synchronous>, transform_indices = @transform_3, window_bounds = array<i64: 1, 128>}, {pipeline_mode = #tpu.pipeline_mode<synchronous>, transform_indices = @transform_4, window_bounds = array<i64: 9, 128, 128>}, {pipeline_mode = #tpu.pipeline_mode<synchronous>, transform_indices = @transform_5, window_bounds = array<i64: 1, 128>}, {pipeline_mode = #tpu.pipeline_mode<synchronous>, transform_indices = @transform_6, window_bounds = array<i64: 4, 128>}, {transform_indices = @transform_7, window_bounds = array<i64: 1, 286, 128>}]} {
    %cst = arith.constant 0.000000e+00 : f32
    %0 = vector.broadcast %cst : f32 to vector<286x128xf32>
    %c0 = arith.constant 0 : index
    %c0_0 = arith.constant 0 : index
    %c0_1 = arith.constant 0 : index
    %1 = vector.load %arg1[%c0, %c0_0, %c0_1] : memref<1x324x4xbf16, #tpu.memory_space<vmem>>, vector<1x286x4xbf16>
    %2 = vector.shape_cast %1 : vector<1x286x4xbf16> to vector<286x4xbf16>
    %c0_2 = arith.constant 0 : index
    %c0_3 = arith.constant 0 : index
    %c0_4 = arith.constant 0 : index
    %3 = vector.load %arg3[%c0_2, %c0_3, %c0_4] : memref<9x4x128xbf16, #tpu.memory_space<vmem>>, vector<1x4x128xbf16>
    %4 = vector.shape_cast %3 : vector<1x4x128xbf16> to vector<4x128xbf16>
    %cst_5 = arith.constant dense<0.000000e+00> : vector<286x128xf32>
    %5 = tpu.matmul %2, %4, %cst_5 {dimension_numbers = #tpu.dot_dimension_numbers<[1], [0], [0], [1], [0, 0, 1, 1], [], []>} : vector<286x4xbf16>, vector<4x128xbf16>, vector<286x128xf32> -> vector<286x128xf32>
    %6 = arith.addf %0, %5 : vector<286x128xf32>
    %c0_6 = arith.constant 0 : index
    %c1 = arith.constant 1 : index
    %c0_7 = arith.constant 0 : index
    %7 = vector.load %arg1[%c0_6, %c1, %c0_7] : memref<1x324x4xbf16, #tpu.memory_space<vmem>>, vector<1x286x4xbf16>
    %8 = vector.shape_cast %7 : vector<1x286x4xbf16> to vector<286x4xbf16>
    %c1_8 = arith.constant 1 : index
    %c0_9 = arith.constant 0 : index
    %c0_10 = arith.constant 0 : index
    %9 = vector.load %arg3[%c1_8, %c0_9, %c0_10] : memref<9x4x128xbf16, #tpu.memory_space<vmem>>, vector<1x4x128xbf16>
    %10 = vector.shape_cast %9 : vector<1x4x128xbf16> to vector<4x128xbf16>
    %cst_11 = arith.constant dense<0.000000e+00> : vector<286x128xf32>
    %11 = tpu.matmul %8, %10, %cst_11 {dimension_numbers = #tpu.dot_dimension_numbers<[1], [0], [0], [1], [0, 0, 1, 1], [], []>} : vector<286x4xbf16>, vector<4x128xbf16>, vector<286x128xf32> -> vector<286x128xf32>
    %12 = arith.addf %6, %11 : vector<286x128xf32>
    %c0_12 = arith.constant 0 : index
    %c2 = arith.constant 2 : index
    %c0_13 = arith.constant 0 : index
    %13 = vector.load %arg1[%c0_12, %c2, %c0_13] : memref<1x324x4xbf16, #tpu.memory_space<vmem>>, vector<1x286x4xbf16>
    %14 = vector.shape_cast %13 : vector<1x286x4xbf16> to vector<286x4xbf16>
    %c2_14 = arith.constant 2 : index
    %c0_15 = arith.constant 0 : index
    %c0_16 = arith.constant 0 : index
    %15 = vector.load %arg3[%c2_14, %c0_15, %c0_16] : memref<9x4x128xbf16, #tpu.memory_space<vmem>>, vector<1x4x128xbf16>
    %16 = vector.shape_cast %15 : vector<1x4x128xbf16> to vector<4x128xbf16>
    %cst_17 = arith.constant dense<0.000000e+00> : vector<286x128xf32>
    %17 = tpu.matmul %14, %16, %cst_17 {dimension_numbers = #tpu.dot_dimension_numbers<[1], [0], [0], [1], [0, 0, 1, 1], [], []>} : vector<286x4xbf16>, vector<4x128xbf16>, vector<286x128xf32> -> vector<286x128xf32>
    %18 = arith.addf %12, %17 : vector<286x128xf32>
    %c0_18 = arith.constant 0 : index
    %c18 = arith.constant 18 : index
    %c0_19 = arith.constant 0 : index
    %19 = vector.load %arg1[%c0_18, %c18, %c0_19] : memref<1x324x4xbf16, #tpu.memory_space<vmem>>, vector<1x286x4xbf16>
    %20 = vector.shape_cast %19 : vector<1x286x4xbf16> to vector<286x4xbf16>
    %c3 = arith.constant 3 : index
    %c0_20 = arith.constant 0 : index
    %c0_21 = arith.constant 0 : index
    %21 = vector.load %arg3[%c3, %c0_20, %c0_21] : memref<9x4x128xbf16, #tpu.memory_space<vmem>>, vector<1x4x128xbf16>
    %22 = vector.shape_cast %21 : vector<1x4x128xbf16> to vector<4x128xbf16>
    %cst_22 = arith.constant dense<0.000000e+00> : vector<286x128xf32>
    %23 = tpu.matmul %20, %22, %cst_22 {dimension_numbers = #tpu.dot_dimension_numbers<[1], [0], [0], [1], [0, 0, 1, 1], [], []>} : vector<286x4xbf16>, vector<4x128xbf16>, vector<286x128xf32> -> vector<286x128xf32>
    %24 = arith.addf %18, %23 : vector<286x128xf32>
    %c0_23 = arith.constant 0 : index
    %c19 = arith.constant 19 : index
    %c0_24 = arith.constant 0 : index
    %25 = vector.load %arg1[%c0_23, %c19, %c0_24] : memref<1x324x4xbf16, #tpu.memory_space<vmem>>, vector<1x286x4xbf16>
    %26 = vector.shape_cast %25 : vector<1x286x4xbf16> to vector<286x4xbf16>
    %c4 = arith.constant 4 : index
    %c0_25 = arith.constant 0 : index
    %c0_26 = arith.constant 0 : index
    %27 = vector.load %arg3[%c4, %c0_25, %c0_26] : memref<9x4x128xbf16, #tpu.memory_space<vmem>>, vector<1x4x128xbf16>
    %28 = vector.shape_cast %27 : vector<1x4x128xbf16> to vector<4x128xbf16>
    %cst_27 = arith.constant dense<0.000000e+00> : vector<286x128xf32>
    %29 = tpu.matmul %26, %28, %cst_27 {dimension_numbers = #tpu.dot_dimension_numbers<[1], [0], [0], [1], [0, 0, 1, 1], [], []>} : vector<286x4xbf16>, vector<4x128xbf16>, vector<286x128xf32> -> vector<286x128xf32>
    %30 = arith.addf %24, %29 : vector<286x128xf32>
    %c0_28 = arith.constant 0 : index
    %c20 = arith.constant 20 : index
    %c0_29 = arith.constant 0 : index
    %31 = vector.load %arg1[%c0_28, %c20, %c0_29] : memref<1x324x4xbf16, #tpu.memory_space<vmem>>, vector<1x286x4xbf16>
    %32 = vector.shape_cast %31 : vector<1x286x4xbf16> to vector<286x4xbf16>
    %c5 = arith.constant 5 : index
    %c0_30 = arith.constant 0 : index
    %c0_31 = arith.constant 0 : index
    %33 = vector.load %arg3[%c5, %c0_30, %c0_31] : memref<9x4x128xbf16, #tpu.memory_space<vmem>>, vector<1x4x128xbf16>
    %34 = vector.shape_cast %33 : vector<1x4x128xbf16> to vector<4x128xbf16>
    %cst_32 = arith.constant dense<0.000000e+00> : vector<286x128xf32>
    %35 = tpu.matmul %32, %34, %cst_32 {dimension_numbers = #tpu.dot_dimension_numbers<[1], [0], [0], [1], [0, 0, 1, 1], [], []>} : vector<286x4xbf16>, vector<4x128xbf16>, vector<286x128xf32> -> vector<286x128xf32>
    %36 = arith.addf %30, %35 : vector<286x128xf32>
    %c0_33 = arith.constant 0 : index
    %c36 = arith.constant 36 : index
    %c0_34 = arith.constant 0 : index
    %37 = vector.load %arg1[%c0_33, %c36, %c0_34] : memref<1x324x4xbf16, #tpu.memory_space<vmem>>, vector<1x286x4xbf16>
    %38 = vector.shape_cast %37 : vector<1x286x4xbf16> to vector<286x4xbf16>
    %c6 = arith.constant 6 : index
    %c0_35 = arith.constant 0 : index
    %c0_36 = arith.constant 0 : index
    %39 = vector.load %arg3[%c6, %c0_35, %c0_36] : memref<9x4x128xbf16, #tpu.memory_space<vmem>>, vector<1x4x128xbf16>
    %40 = vector.shape_cast %39 : vector<1x4x128xbf16> to vector<4x128xbf16>
    %cst_37 = arith.constant dense<0.000000e+00> : vector<286x128xf32>
    %41 = tpu.matmul %38, %40, %cst_37 {dimension_numbers = #tpu.dot_dimension_numbers<[1], [0], [0], [1], [0, 0, 1, 1], [], []>} : vector<286x4xbf16>, vector<4x128xbf16>, vector<286x128xf32> -> vector<286x128xf32>
    %42 = arith.addf %36, %41 : vector<286x128xf32>
    %c0_38 = arith.constant 0 : index
    %c37 = arith.constant 37 : index
    %c0_39 = arith.constant 0 : index
    %43 = vector.load %arg1[%c0_38, %c37, %c0_39] : memref<1x324x4xbf16, #tpu.memory_space<vmem>>, vector<1x286x4xbf16>
    %44 = vector.shape_cast %43 : vector<1x286x4xbf16> to vector<286x4xbf16>
    %c7 = arith.constant 7 : index
    %c0_40 = arith.constant 0 : index
    %c0_41 = arith.constant 0 : index
    %45 = vector.load %arg3[%c7, %c0_40, %c0_41] : memref<9x4x128xbf16, #tpu.memory_space<vmem>>, vector<1x4x128xbf16>
    %46 = vector.shape_cast %45 : vector<1x4x128xbf16> to vector<4x128xbf16>
    %cst_42 = arith.constant dense<0.000000e+00> : vector<286x128xf32>
    %47 = tpu.matmul %44, %46, %cst_42 {dimension_numbers = #tpu.dot_dimension_numbers<[1], [0], [0], [1], [0, 0, 1, 1], [], []>} : vector<286x4xbf16>, vector<4x128xbf16>, vector<286x128xf32> -> vector<286x128xf32>
    %48 = arith.addf %42, %47 : vector<286x128xf32>
    %c0_43 = arith.constant 0 : index
    %c38 = arith.constant 38 : index
    %c0_44 = arith.constant 0 : index
    %49 = vector.load %arg1[%c0_43, %c38, %c0_44] : memref<1x324x4xbf16, #tpu.memory_space<vmem>>, vector<1x286x4xbf16>
    %50 = vector.shape_cast %49 : vector<1x286x4xbf16> to vector<286x4xbf16>
    %c8 = arith.constant 8 : index
    %c0_45 = arith.constant 0 : index
    %c0_46 = arith.constant 0 : index
    %51 = vector.load %arg3[%c8, %c0_45, %c0_46] : memref<9x4x128xbf16, #tpu.memory_space<vmem>>, vector<1x4x128xbf16>
    %52 = vector.shape_cast %51 : vector<1x4x128xbf16> to vector<4x128xbf16>
    %cst_47 = arith.constant dense<0.000000e+00> : vector<286x128xf32>
    %53 = tpu.matmul %50, %52, %cst_47 {dimension_numbers = #tpu.dot_dimension_numbers<[1], [0], [0], [1], [0, 0, 1, 1], [], []>} : vector<286x4xbf16>, vector<4x128xbf16>, vector<286x128xf32> -> vector<286x128xf32>
    %54 = arith.addf %48, %53 : vector<286x128xf32>
    %c0_48 = arith.constant 0 : index
    %c0_49 = arith.constant 0 : index
    %55 = vector.load %arg4[%c0_48, %c0_49] : memref<1x128xf32, #tpu.memory_space<vmem>>, vector<1x128xf32>
    %56 = vector.broadcast %55 : vector<1x128xf32> to vector<286x128xf32>
    %57 = arith.addf %54, %56 : vector<286x128xf32>
    %cst_50 = arith.constant 0.000000e+00 : f32
    %58 = vector.broadcast %cst_50 : f32 to vector<286x128xf32>
    %59 = arith.maximumf %57, %58 : vector<286x128xf32>
    %c0_51 = arith.constant 0 : index
    %c0_52 = arith.constant 0 : index
    %60 = vector.load %arg2[%c0_51, %c0_52] : memref<286x1xf32, #tpu.memory_space<vmem>>, vector<286x1xf32>
    %61 = vector.broadcast %60 : vector<286x1xf32> to vector<286x128xf32>
    %62 = arith.mulf %59, %61 : vector<286x128xf32>
    %cst_53 = arith.constant 0.000000e+00 : bf16
    %63 = vector.broadcast %cst_53 : bf16 to vector<324x128xbf16>
    %c0_54 = arith.constant 0 : index
    %c0_55 = arith.constant 0 : index
    %64 = vector.load %arg9[%c0_54, %c0_55] : memref<324x128xbf16, #tpu.memory_space<vmem>>, vector<324x128xbf16>
    tpu.vector_store %arg9[%c0_54, %c0_55], %63 {strides = array<i32>} : memref<324x128xbf16, #tpu.memory_space<vmem>>, vector<324x128xbf16>,
    %65 = arith.truncf %62 : vector<286x128xf32> to vector<286x128xbf16>
    %c19_56 = arith.constant 19 : index
    %c0_57 = arith.constant 0 : index
    %66 = vector.load %arg9[%c19_56, %c0_57] : memref<324x128xbf16, #tpu.memory_space<vmem>>, vector<286x128xbf16>
    tpu.vector_store %arg9[%c19_56, %c0_57], %65 {strides = array<i32>} : memref<324x128xbf16, #tpu.memory_space<vmem>>, vector<286x128xbf16>,
    %c0_58 = arith.constant 0 : index
    %c19_59 = arith.constant 19 : index
    %c0_60 = arith.constant 0 : index
    %67 = vector.load %arg1[%c0_58, %c19_59, %c0_60] : memref<1x324x4xbf16, #tpu.memory_space<vmem>>, vector<1x286x4xbf16>
    %68 = vector.shape_cast %67 : vector<1x286x4xbf16> to vector<286x4xbf16>
    %c0_61 = arith.constant 0 : index
    %c0_62 = arith.constant 0 : index
    %69 = vector.load %arg7[%c0_61, %c0_62] : memref<4x128xbf16, #tpu.memory_space<vmem>>, vector<4x128xbf16>
    %cst_63 = arith.constant dense<0.000000e+00> : vector<286x128xf32>
    %70 = tpu.matmul %68, %69, %cst_63 {dimension_numbers = #tpu.dot_dimension_numbers<[1], [0], [0], [1], [0, 0, 1, 1], [], []>} : vector<286x4xbf16>, vector<4x128xbf16>, vector<286x128xf32> -> vector<286x128xf32>
    %c0_64 = arith.constant 0 : index
    %c0_65 = arith.constant 0 : index
    %71 = vector.load %arg9[%c0_64, %c0_65] : memref<324x128xbf16, #tpu.memory_space<vmem>>, vector<286x128xbf16>
    %c0_66 = arith.constant 0 : index
    %c0_67 = arith.constant 0 : index
    %c0_68 = arith.constant 0 : index
    %72 = vector.load %arg5[%c0_66, %c0_67, %c0_68] : memref<9x128x128xbf16, #tpu.memory_space<vmem>>, vector<1x128x128xbf16>
    %73 = vector.shape_cast %72 : vector<1x128x128xbf16> to vector<128x128xbf16>
    %cst_69 = arith.constant dense<0.000000e+00> : vector<286x128xf32>
    %74 = tpu.matmul %71, %73, %cst_69 {dimension_numbers = #tpu.dot_dimension_numbers<[1], [0], [0], [1], [0, 0, 1, 1], [], []>} : vector<286x128xbf16>, vector<128x128xbf16>, vector<286x128xf32> -> vector<286x128xf32>
    %75 = arith.addf %70, %74 : vector<286x128xf32>
    %c1_70 = arith.constant 1 : index
    %c0_71 = arith.constant 0 : index
    %76 = vector.load %arg9[%c1_70, %c0_71] : memref<324x128xbf16, #tpu.memory_space<vmem>>, vector<286x128xbf16>
    %c1_72 = arith.constant 1 : index
    %c0_73 = arith.constant 0 : index
    %c0_74 = arith.constant 0 : index
    %77 = vector.load %arg5[%c1_72, %c0_73, %c0_74] : memref<9x128x128xbf16, #tpu.memory_space<vmem>>, vector<1x128x128xbf16>
    %78 = vector.shape_cast %77 : vector<1x128x128xbf16> to vector<128x128xbf16>
    %cst_75 = arith.constant dense<0.000000e+00> : vector<286x128xf32>
    %79 = tpu.matmul %76, %78, %cst_75 {dimension_numbers = #tpu.dot_dimension_numbers<[1], [0], [0], [1], [0, 0, 1, 1], [], []>} : vector<286x128xbf16>, vector<128x128xbf16>, vector<286x128xf32> -> vector<286x128xf32>
    %80 = arith.addf %75, %79 : vector<286x128xf32>
    %c2_76 = arith.constant 2 : index
    %c0_77 = arith.constant 0 : index
    %81 = vector.load %arg9[%c2_76, %c0_77] : memref<324x128xbf16, #tpu.memory_space<vmem>>, vector<286x128xbf16>
    %c2_78 = arith.constant 2 : index
    %c0_79 = arith.constant 0 : index
    %c0_80 = arith.constant 0 : index
    %82 = vector.load %arg5[%c2_78, %c0_79, %c0_80] : memref<9x128x128xbf16, #tpu.memory_space<vmem>>, vector<1x128x128xbf16>
    %83 = vector.shape_cast %82 : vector<1x128x128xbf16> to vector<128x128xbf16>
    %cst_81 = arith.constant dense<0.000000e+00> : vector<286x128xf32>
    %84 = tpu.matmul %81, %83, %cst_81 {dimension_numbers = #tpu.dot_dimension_numbers<[1], [0], [0], [1], [0, 0, 1, 1], [], []>} : vector<286x128xbf16>, vector<128x128xbf16>, vector<286x128xf32> -> vector<286x128xf32>
    %85 = arith.addf %80, %84 : vector<286x128xf32>
    %c18_82 = arith.constant 18 : index
    %c0_83 = arith.constant 0 : index
    %86 = vector.load %arg9[%c18_82, %c0_83] : memref<324x128xbf16, #tpu.memory_space<vmem>>, vector<286x128xbf16>
    %c3_84 = arith.constant 3 : index
    %c0_85 = arith.constant 0 : index
    %c0_86 = arith.constant 0 : index
    %87 = vector.load %arg5[%c3_84, %c0_85, %c0_86] : memref<9x128x128xbf16, #tpu.memory_space<vmem>>, vector<1x128x128xbf16>
    %88 = vector.shape_cast %87 : vector<1x128x128xbf16> to vector<128x128xbf16>
    %cst_87 = arith.constant dense<0.000000e+00> : vector<286x128xf32>
    %89 = tpu.matmul %86, %88, %cst_87 {dimension_numbers = #tpu.dot_dimension_numbers<[1], [0], [0], [1], [0, 0, 1, 1], [], []>} : vector<286x128xbf16>, vector<128x128xbf16>, vector<286x128xf32> -> vector<286x128xf32>
    %90 = arith.addf %85, %89 : vector<286x128xf32>
    %c19_88 = arith.constant 19 : index
    %c0_89 = arith.constant 0 : index
    %91 = vector.load %arg9[%c19_88, %c0_89] : memref<324x128xbf16, #tpu.memory_space<vmem>>, vector<286x128xbf16>
    %c4_90 = arith.constant 4 : index
    %c0_91 = arith.constant 0 : index
    %c0_92 = arith.constant 0 : index
    %92 = vector.load %arg5[%c4_90, %c0_91, %c0_92] : memref<9x128x128xbf16, #tpu.memory_space<vmem>>, vector<1x128x128xbf16>
    %93 = vector.shape_cast %92 : vector<1x128x128xbf16> to vector<128x128xbf16>
    %cst_93 = arith.constant dense<0.000000e+00> : vector<286x128xf32>
    %94 = tpu.matmul %91, %93, %cst_93 {dimension_numbers = #tpu.dot_dimension_numbers<[1], [0], [0], [1], [0, 0, 1, 1], [], []>} : vector<286x128xbf16>, vector<128x128xbf16>, vector<286x128xf32> -> vector<286x128xf32>
    %95 = arith.addf %90, %94 : vector<286x128xf32>
    %c20_94 = arith.constant 20 : index
    %c0_95 = arith.constant 0 : index
    %96 = vector.load %arg9[%c20_94, %c0_95] : memref<324x128xbf16, #tpu.memory_space<vmem>>, vector<286x128xbf16>
    %c5_96 = arith.constant 5 : index
    %c0_97 = arith.constant 0 : index
    %c0_98 = arith.constant 0 : index
    %97 = vector.load %arg5[%c5_96, %c0_97, %c0_98] : memref<9x128x128xbf16, #tpu.memory_space<vmem>>, vector<1x128x128xbf16>
    %98 = vector.shape_cast %97 : vector<1x128x128xbf16> to vector<128x128xbf16>
    %cst_99 = arith.constant dense<0.000000e+00> : vector<286x128xf32>
    %99 = tpu.matmul %96, %98, %cst_99 {dimension_numbers = #tpu.dot_dimension_numbers<[1], [0], [0], [1], [0, 0, 1, 1], [], []>} : vector<286x128xbf16>, vector<128x128xbf16>, vector<286x128xf32> -> vector<286x128xf32>
    %100 = arith.addf %95, %99 : vector<286x128xf32>
    %c36_100 = arith.constant 36 : index
    %c0_101 = arith.constant 0 : index
    %101 = vector.load %arg9[%c36_100, %c0_101] : memref<324x128xbf16, #tpu.memory_space<vmem>>, vector<286x128xbf16>
    %c6_102 = arith.constant 6 : index
    %c0_103 = arith.constant 0 : index
    %c0_104 = arith.constant 0 : index
    %102 = vector.load %arg5[%c6_102, %c0_103, %c0_104] : memref<9x128x128xbf16, #tpu.memory_space<vmem>>, vector<1x128x128xbf16>
    %103 = vector.shape_cast %102 : vector<1x128x128xbf16> to vector<128x128xbf16>
    %cst_105 = arith.constant dense<0.000000e+00> : vector<286x128xf32>
    %104 = tpu.matmul %101, %103, %cst_105 {dimension_numbers = #tpu.dot_dimension_numbers<[1], [0], [0], [1], [0, 0, 1, 1], [], []>} : vector<286x128xbf16>, vector<128x128xbf16>, vector<286x128xf32> -> vector<286x128xf32>
    %105 = arith.addf %100, %104 : vector<286x128xf32>
    %c37_106 = arith.constant 37 : index
    %c0_107 = arith.constant 0 : index
    %106 = vector.load %arg9[%c37_106, %c0_107] : memref<324x128xbf16, #tpu.memory_space<vmem>>, vector<286x128xbf16>
    %c7_108 = arith.constant 7 : index
    %c0_109 = arith.constant 0 : index
    %c0_110 = arith.constant 0 : index
    %107 = vector.load %arg5[%c7_108, %c0_109, %c0_110] : memref<9x128x128xbf16, #tpu.memory_space<vmem>>, vector<1x128x128xbf16>
    %108 = vector.shape_cast %107 : vector<1x128x128xbf16> to vector<128x128xbf16>
    %cst_111 = arith.constant dense<0.000000e+00> : vector<286x128xf32>
    %109 = tpu.matmul %106, %108, %cst_111 {dimension_numbers = #tpu.dot_dimension_numbers<[1], [0], [0], [1], [0, 0, 1, 1], [], []>} : vector<286x128xbf16>, vector<128x128xbf16>, vector<286x128xf32> -> vector<286x128xf32>
    %110 = arith.addf %105, %109 : vector<286x128xf32>
    %c38_112 = arith.constant 38 : index
    %c0_113 = arith.constant 0 : index
    %111 = vector.load %arg9[%c38_112, %c0_113] : memref<324x128xbf16, #tpu.memory_space<vmem>>, vector<286x128xbf16>
    %c8_114 = arith.constant 8 : index
    %c0_115 = arith.constant 0 : index
    %c0_116 = arith.constant 0 : index
    %112 = vector.load %arg5[%c8_114, %c0_115, %c0_116] : memref<9x128x128xbf16, #tpu.memory_space<vmem>>, vector<1x128x128xbf16>
    %113 = vector.shape_cast %112 : vector<1x128x128xbf16> to vector<128x128xbf16>
    %cst_117 = arith.constant dense<0.000000e+00> : vector<286x128xf32>
    %114 = tpu.matmul %111, %113, %cst_117 {dimension_numbers = #tpu.dot_dimension_numbers<[1], [0], [0], [1], [0, 0, 1, 1], [], []>} : vector<286x128xbf16>, vector<128x128xbf16>, vector<286x128xf32> -> vector<286x128xf32>
    %115 = arith.addf %110, %114 : vector<286x128xf32>
    %c0_118 = arith.constant 0 : index
    %c0_119 = arith.constant 0 : index
    %116 = vector.load %arg6[%c0_118, %c0_119] : memref<1x128xf32, #tpu.memory_space<vmem>>, vector<1x128xf32>
    %117 = vector.broadcast %116 : vector<1x128xf32> to vector<286x128xf32>
    %118 = arith.addf %115, %117 : vector<286x128xf32>
    %cst_120 = arith.constant 0.000000e+00 : f32
    %119 = vector.broadcast %cst_120 : f32 to vector<286x128xf32>
    %120 = arith.maximumf %118, %119 : vector<286x128xf32>
    %c0_121 = arith.constant 0 : index
    %c0_122 = arith.constant 0 : index
    %c0_123 = arith.constant 0 : index
    %121 = vector.load %arg8[%c0_121, %c0_122, %c0_123] : memref<1x286x128xf32, #tpu.memory_space<vmem>>, vector<1x286x128xf32>
    %122 = vector.shape_cast %121 : vector<1x286x128xf32> to vector<286x128xf32>
    %123 = vector.shape_cast %120 : vector<286x128xf32> to vector<1x286x128xf32>
    tpu.vector_store %arg8[%c0_121, %c0_122, %c0_123], %123 {strides = array<i32>} : memref<1x286x128xf32, #tpu.memory_space<vmem>>, vector<1x286x128xf32>,
    return
  }
  func.func @transform_0(%arg0: i32) -> (i32, i32, i32) {
    %c0_i32 = arith.constant 0 : i32
    %c0_i32_0 = arith.constant 0 : i32
    %c0_i32_1 = arith.constant 0 : i32
    return %arg0, %c0_i32, %c0_i32_0 : i32, i32, i32
  }
  func.func @transform_1(%arg0: i32) -> (i32, i32) {
    %c0_i32 = arith.constant 0 : i32
    %c0_i32_0 = arith.constant 0 : i32
    %c0_i32_1 = arith.constant 0 : i32
    return %c0_i32, %c0_i32_0 : i32, i32
  }
  func.func @transform_2(%arg0: i32) -> (i32, i32, i32) {
    %c0_i32 = arith.constant 0 : i32
    %c0_i32_0 = arith.constant 0 : i32
    %c0_i32_1 = arith.constant 0 : i32
    %c0_i32_2 = arith.constant 0 : i32
    return %c0_i32, %c0_i32_0, %c0_i32_1 : i32, i32, i32
  }
  func.func @transform_3(%arg0: i32) -> (i32, i32) {
    %c0_i32 = arith.constant 0 : i32
    %c0_i32_0 = arith.constant 0 : i32
    %c0_i32_1 = arith.constant 0 : i32
    return %c0_i32, %c0_i32_0 : i32, i32
  }
  func.func @transform_4(%arg0: i32) -> (i32, i32, i32) {
    %c0_i32 = arith.constant 0 : i32
    %c0_i32_0 = arith.constant 0 : i32
    %c0_i32_1 = arith.constant 0 : i32
    %c0_i32_2 = arith.constant 0 : i32
    return %c0_i32, %c0_i32_0, %c0_i32_1 : i32, i32, i32
  }
  func.func @transform_5(%arg0: i32) -> (i32, i32) {
    %c0_i32 = arith.constant 0 : i32
    %c0_i32_0 = arith.constant 0 : i32
    %c0_i32_1 = arith.constant 0 : i32
    return %c0_i32, %c0_i32_0 : i32, i32
  }
  func.func @transform_6(%arg0: i32) -> (i32, i32) {
    %c0_i32 = arith.constant 0 : i32
    %c0_i32_0 = arith.constant 0 : i32
    %c0_i32_1 = arith.constant 0 : i32
    return %c0_i32, %c0_i32_0 : i32, i32
  }
  func.func @transform_7(%arg0: i32) -> (i32, i32, i32) {
    %c0_i32 = arith.constant 0 : i32
    %c0_i32_0 = arith.constant 0 : i32
    %c0_i32_1 = arith.constant 0 : i32
    return %arg0, %c0_i32, %c0_i32_0 : i32, i32, i32
  }
}

</mosaic_0001>

<llo_original>
// kernel: tpu_custom_call.1
$region0: #{tpu_custom_call.1}
  #allocation0 [shape = 'u32[]', space=smem, size = 0x4, offset = 0x4, fixed_abs, tag = 'smem constant byte address 0x4 - core index']
  #allocation1 [shape = 'u32[144,128]{1,0:T(1,128)}', space=vmem, size = 0x12000, scoped, tag = 'internal scratch']
  #allocation2 [shape = 'bf16[324,128]{1,0:T(8,128)(2,1)}', space=vmem, size = 0x14800, scoped, tag = 'scratch operand']
  %s0 = inlined_call_operand.vmem [shape: bf16[2,324,4], index: 0, kind: input, shape index: {}]
  %s1 = inlined_call_operand.vmem [shape: f32[286,1], index: 1, kind: input, shape index: {}]
  %s2 = inlined_call_operand.vmem [shape: bf16[9,4,128], index: 2, kind: input, shape index: {}]
  %s3 = inlined_call_operand.vmem [shape: f32[1,128], index: 3, kind: input, shape index: {}]
  %s4 = inlined_call_operand.vmem [shape: bf16[9,128,128], index: 4, kind: input, shape index: {}]
  %s5 = inlined_call_operand.vmem [shape: f32[1,128], index: 5, kind: input, shape index: {}]
  %s6 = inlined_call_operand.vmem [shape: bf16[4,128], index: 6, kind: input, shape index: {}]
  %s7 = inlined_call_operand.vmem [shape: f32[2,286,128], index: 7, kind: output, shape index: {}]
  %s8 = sld [smem:[#allocation0]]
  $region61: #{tpu_custom_call.1} parent=0
    _
  %s10 = ssub.s32 1, %s8
  %s11 = scalar_select 0, %s10, %s8
  loop: start=0, step=1, limit=4
  $region2: #{tpu_custom_call.1} parent=0 // loop_pre_header
    _
  $region3: #{tpu_custom_call.1} parent=0 // loop_header
    %s13 = sphi 0, %s17
    %p14 = scmp.ge.s32.totalorder %s13, 4
    %s23 = sphi 0, %s25
    %s26 = sphi 0, %s23
    %s27 = sphi 0, %s26
    %s43 = sphi 0, %s27
    %s47 = sphi 0, %s47
    %s49 = sphi 0, %s47
    %s50 = sphi 0, %s49
    %s64 = sphi 0, %s50
    %s68 = sphi 0, %s68
    %s70 = sphi 0, %s68
    %s71 = sphi 0, %s70
    %s85 = sphi 0, %s71
    %s89 = sphi 0, %s89
    %s91 = sphi 0, %s89
    %s92 = sphi 0, %s91
    %s106 = sphi 0, %s92
    %s110 = sphi 0, %s110
    %s112 = sphi 0, %s110
    %s113 = sphi 0, %s112
    %s127 = sphi 0, %s113
    %s131 = sphi 0, %s131
    %s133 = sphi 0, %s131
    %s134 = sphi 0, %s133
    %s148 = sphi 0, %s134
    %s152 = sphi 0, %s152
    %s154 = sphi 0, %s152
    %s155 = sphi 0, %s154
    %s169 = sphi 0, %s155
    %s175 = sphi 0, %s177
    %s178 = sphi 0, %s175
    %s179 = sphi 0, %s178
    %s195 = sphi 0, %s179
  $region4: #{tpu_custom_call.1} parent=0 // loop_header_branch
    %16 = sbr.rel (%p14) target = $region8
  $region5: #{tpu_custom_call.1} parent=0 // loop_body
    %s18 = ssub.s32 %s13, 1
    %s19 = ssub.s32 %s13, 2
    %s20 = sadd.s32 %s13, 1
    %s21 = ssub.s32 %s13, %s20
    %p22 = scmp.eq.s32.totalorder %s21, 0
    %s24 = sadd.s32 %s23, 1
    %s25 = scalar_select %p22, %s23, %s24
    %p28 = pneg %p22
    %p29 = scmp.eq.s32.totalorder %s13, 1
    %p30 = por %p28, %p29
    %p31 = scmp.ne.s32.totalorder %s23, %s26
    %p32 = scmp.eq.s32.totalorder %s13, 0
    %p33 = por %p31, %p32
    %p34 = scmp.ne.s32.totalorder %s23, %s26
    %p35 = scmp.eq.s32.totalorder %s18, 1
    %p36 = por %p34, %p35
    %p37 = scmp.ne.s32.totalorder %s26, %s27
    %p38 = scmp.eq.s32.totalorder %s18, 0
    %p39 = por %p37, %p38
    %p40 = scmp.ne.s32.totalorder %s26, %s27
    %p41 = scmp.eq.s32.totalorder %s19, 1
    %p42 = por %p40, %p41
    %p44 = scmp.ne.s32.totalorder %s27, %s43
    %p45 = scmp.eq.s32.totalorder %s19, 0
    %p46 = por %p44, %p45
    %s48 = sadd.s32 %s47, 1
    %p51 = scmp.eq.s32.totalorder %s13, 1
    %p52 = scmp.ne.s32.totalorder %s47, %s49
    %p53 = scmp.eq.s32.totalorder %s13, 0
    %p54 = por %p52, %p53
    %p55 = scmp.ne.s32.totalorder %s47, %s49
    %p56 = scmp.eq.s32.totalorder %s18, 1
    %p57 = por %p55, %p56
    %p58 = scmp.ne.s32.totalorder %s49, %s50
    %p59 = scmp.eq.s32.totalorder %s18, 0
    %p60 = por %p58, %p59
    %p61 = scmp.ne.s32.totalorder %s49, %s50
    %p62 = scmp.eq.s32.totalorder %s19, 1
    %p63 = por %p61, %p62
    %p65 = scmp.ne.s32.totalorder %s50, %s64
    %p66 = scmp.eq.s32.totalorder %s19, 0
    %p67 = por %p65, %p66
    %s69 = sadd.s32 %s68, 1
    %p72 = scmp.eq.s32.totalorder %s13, 1
    %p73 = scmp.ne.s32.totalorder %s68, %s70
    %p74 = scmp.eq.s32.totalorder %s13, 0
    %p75 = por %p73, %p74
    %p76 = scmp.ne.s32.totalorder %s68, %s70
    %p77 = scmp.eq.s32.totalorder %s18, 1
    %p78 = por %p76, %p77
    %p79 = scmp.ne.s32.totalorder %s70, %s71
    %p80 = scmp.eq.s32.totalorder %s18, 0
    %p81 = por %p79, %p80
    %p82 = scmp.ne.s32.totalorder %s70, %s71
    %p83 = scmp.eq.s32.totalorder %s19, 1
    %p84 = por %p82, %p83
    %p86 = scmp.ne.s32.totalorder %s71, %s85
    %p87 = scmp.eq.s32.totalorder %s19, 0
    %p88 = por %p86, %p87
    %s90 = sadd.s32 %s89, 1
    %p93 = scmp.eq.s32.totalorder %s13, 1
    %p94 = scmp.ne.s32.totalorder %s89, %s91
    %p95 = scmp.eq.s32.totalorder %s13, 0
    %p96 = por %p94, %p95
    %p97 = scmp.ne.s32.totalorder %s89, %s91
    %p98 = scmp.eq.s32.totalorder %s18, 1
    %p99 = por %p97, %p98
    %p100 = scmp.ne.s32.totalorder %s91, %s92
    %p101 = scmp.eq.s32.totalorder %s18, 0
    %p102 = por %p100, %p101
    %p103 = scmp.ne.s32.totalorder %s91, %s92
    %p104 = scmp.eq.s32.totalorder %s19, 1
    %p105 = por %p103, %p104
    %p107 = scmp.ne.s32.totalorder %s92, %s106
    %p108 = scmp.eq.s32.totalorder %s19, 0
    %p109 = por %p107, %p108
    %s111 = sadd.s32 %s110, 1
    %p114 = scmp.eq.s32.totalorder %s13, 1
    %p115 = scmp.ne.s32.totalorder %s110, %s112
    %p116 = scmp.eq.s32.totalorder %s13, 0
    %p117 = por %p115, %p116
    %p118 = scmp.ne.s32.totalorder %s110, %s112
    %p119 = scmp.eq.s32.totalorder %s18, 1
    %p120 = por %p118, %p119
    %p121 = scmp.ne.s32.totalorder %s112, %s113
    %p122 = scmp.eq.s32.totalorder %s18, 0
    %p123 = por %p121, %p122
    %p124 = scmp.ne.s32.totalorder %s112, %s113
    %p125 = scmp.eq.s32.totalorder %s19, 1
    %p126 = por %p124, %p125
    %p128 = scmp.ne.s32.totalorder %s113, %s127
    %p129 = scmp.eq.s32.totalorder %s19, 0
    %p130 = por %p128, %p129
    %s132 = sadd.s32 %s131, 1
    %p135 = scmp.eq.s32.totalorder %s13, 1
    %p136 = scmp.ne.s32.totalorder %s131, %s133
    %p137 = scmp.eq.s32.totalorder %s13, 0
    %p138 = por %p136, %p137
    %p139 = scmp.ne.s32.totalorder %s131, %s133
    %p140 = scmp.eq.s32.totalorder %s18, 1
    %p141 = por %p139, %p140
    %p142 = scmp.ne.s32.totalorder %s133, %s134
    %p143 = scmp.eq.s32.totalorder %s18, 0
    %p144 = por %p142, %p143
    %p145 = scmp.ne.s32.totalorder %s133, %s134
    %p146 = scmp.eq.s32.totalorder %s19, 1
    %p147 = por %p145, %p146
    %p149 = scmp.ne.s32.totalorder %s134, %s148
    %p150 = scmp.eq.s32.totalorder %s19, 0
    %p151 = por %p149, %p150
    %s153 = sadd.s32 %s152, 1
    %p156 = scmp.eq.s32.totalorder %s13, 1
    %p157 = scmp.ne.s32.totalorder %s152, %s154
    %p158 = scmp.eq.s32.totalorder %s13, 0
    %p159 = por %p157, %p158
    %p160 = scmp.ne.s32.totalorder %s152, %s154
    %p161 = scmp.eq.s32.totalorder %s18, 1
    %p162 = por %p160, %p161
    %p163 = scmp.ne.s32.totalorder %s154, %s155
    %p164 = scmp.eq.s32.totalorder %s18, 0
    %p165 = por %p163, %p164
    %p166 = scmp.ne.s32.totalorder %s154, %s155
    %p167 = scmp.eq.s32.totalorder %s19, 1
    %p168 = por %p166, %p167
    %p170 = scmp.ne.s32.totalorder %s155, %s169
    %p171 = scmp.eq.s32.totalorder %s19, 0
    %p172 = por %p170, %p171
    %s173 = ssub.s32 %s13, %s20
    %p174 = scmp.eq.s32.totalorder %s173, 0
    %s176 = sadd.s32 %s175, 1
    %s177 = scalar_select %p174, %s175, %s176
    %p180 = pneg %p174
    %p181 = scmp.eq.s32.totalorder %s13, 1
    %p182 = por %p180, %p181
    %p183 = scmp.ne.s32.totalorder %s175, %s178
    %p184 = scmp.eq.s32.totalorder %s13, 0
    %p185 = por %p183, %p184
    %p186 = scmp.ne.s32.totalorder %s175, %s178
    %p187 = scmp.eq.s32.totalorder %s18, 1
    %p188 = por %p186, %p187
    %p189 = scmp.ne.s32.totalorder %s178, %s179
    %p190 = scmp.eq.s32.totalorder %s18, 0
    %p191 = por %p189, %p190
    %p192 = scmp.ne.s32.totalorder %s178, %s179
    %p193 = scmp.eq.s32.totalorder %s19, 1
    %p194 = por %p192, %p193
    %p196 = scmp.ne.s32.totalorder %s179, %s195
    %p197 = scmp.eq.s32.totalorder %s19, 0
    %p198 = por %p196, %p197
    %p199 = scmp.le.s32.totalorder 1, %s13
    %p200 = scmp.lt.s32.totalorder %s13, 3
    %p201 = pnand %p199, %p200
    %p202 = pneg %p201
    // Predicated region
    $region9: #{tpu_custom_call.1} parent=5 // pred_check
      _
    $region10: #{tpu_custom_call.1} parent=5 // pred_check_branch
      %204 = sbr.rel (%p201) target = $region12
    $region11: #{tpu_custom_call.1} parent=5 // pred_region
      %s205 = ssub.s32 %s13, 1
      // Predicated region
      $region13: #{tpu_custom_call.1} parent=11 // pred_check
        %p206 = pneg %p60
      $region14: #{tpu_custom_call.1} parent=11 // pred_check_branch
        %208 = sbr.rel (%p206) target = $region16
      $region15: #{tpu_custom_call.1} parent=11 // pred_region
        _
      $region16: #{tpu_custom_call.1} parent=11 // pred_fallthru
        _
      // Predicated region
      $region17: #{tpu_custom_call.1} parent=11 // pred_check
        %p209 = pneg %p81
      $region18: #{tpu_custom_call.1} parent=11 // pred_check_branch
        %211 = sbr.rel (%p209) target = $region20
      $region19: #{tpu_custom_call.1} parent=11 // pred_region
        _
      $region20: #{tpu_custom_call.1} parent=11 // pred_fallthru
        _
      // Predicated region
      $region21: #{tpu_custom_call.1} parent=11 // pred_check
        %p212 = pneg %p102
      $region22: #{tpu_custom_call.1} parent=11 // pred_check_branch
        %214 = sbr.rel (%p212) target = $region24
      $region23: #{tpu_custom_call.1} parent=11 // pred_region
        _
      $region24: #{tpu_custom_call.1} parent=11 // pred_fallthru
        _
      // Predicated region
      $region25: #{tpu_custom_call.1} parent=11 // pred_check
        %p215 = pneg %p123
      $region26: #{tpu_custom_call.1} parent=11 // pred_check_branch
        %217 = sbr.rel (%p215) target = $region28
      $region27: #{tpu_custom_call.1} parent=11 // pred_region
        _
      $region28: #{tpu_custom_call.1} parent=11 // pred_fallthru
        _
      // Predicated region
      $region29: #{tpu_custom_call.1} parent=11 // pred_check
        %p218 = pneg %p144
      $region30: #{tpu_custom_call.1} parent=11 // pred_check_branch
        %220 = sbr.rel (%p218) target = $region32
      $region31: #{tpu_custom_call.1} parent=11 // pred_region
        _
      $region32: #{tpu_custom_call.1} parent=11 // pred_fallthru
        _
      // Predicated region
      $region33: #{tpu_custom_call.1} parent=11 // pred_check
        %p221 = pneg %p165
      $region34: #{tpu_custom_call.1} parent=11 // pred_check_branch
        %223 = sbr.rel (%p221) target = $region36
      $region35: #{tpu_custom_call.1} parent=11 // pred_region
        _
      $region36: #{tpu_custom_call.1} parent=11 // pred_fallthru
        _
    $region12: #{tpu_custom_call.1} parent=5 // pred_fallthru
      _
    %p224 = scmp.lt.s32.totalorder %s13, 2
    // Predicated region
    $region37: #{tpu_custom_call.1} parent=5 // pred_check
      %p225 = pneg %p224
    $region38: #{tpu_custom_call.1} parent=5 // pred_check_branch
      %227 = sbr.rel (%p225) target = $region40
    $region39: #{tpu_custom_call.1} parent=5 // pred_region
      // Predicated region
      $region41: #{tpu_custom_call.1} parent=39 // pred_check
        %p228 = pneg %p33
      $region42: #{tpu_custom_call.1} parent=39 // pred_check_branch
        %230 = sbr.rel (%p228) target = $region44
      $region43: #{tpu_custom_call.1} parent=39 // pred_region
        %p231 = scmp.lt.s32.totalorder %s13, 1
        %s232 = scalar_select %p231, %s13, 1
        %s233 = smul.addr %s232, 41
        %s234 = smul.addr %s233, 4
        %s235 = scalar_lea.vmem %s0, %s234
      $region44: #{tpu_custom_call.1} parent=39 // pred_fallthru
        _
    $region40: #{tpu_custom_call.1} parent=5 // pred_fallthru
      _
    %p236 = scmp.le.s32.totalorder 1, %s13
    %p237 = scmp.lt.s32.totalorder %s13, 3
    %p238 = pnand %p236, %p237
    %p239 = pneg %p238
    // Predicated region
    $region45: #{tpu_custom_call.1} parent=5 // pred_check
      _
    $region46: #{tpu_custom_call.1} parent=5 // pred_check_branch
      %241 = sbr.rel (%p238) target = $region48
    $region47: #{tpu_custom_call.1} parent=5 // pred_region
      %s242 = ssub.s32 %s13, 1
      %p243 = scmp.lt.s32.totalorder %s18, 1
      %s244 = scalar_select %p243, %s18, 1
      %s245 = smul.addr %s244, 41
      %s246 = smul.addr %s245, 4
      %s247 = scalar_lea.vmem %s0, %s246
      %p248 = pneg %p39
      %p249 = pneg %p36
      %p250 = pneg %p60
      %p251 = pneg %p57
      %p252 = pneg %p81
      %p253 = pneg %p78
      %p254 = pneg %p102
      %p255 = pneg %p99
      %p256 = pneg %p123
      %p257 = pneg %p120
      %p258 = pneg %p144
      %p259 = pneg %p141
      %p260 = pneg %p165
      %p261 = pneg %p162
      %p262 = pneg %p191
      %p263 = pneg %p188
      %p264 = scmp.lt.s32.totalorder %s18, 1
      %s265 = scalar_select %p264, %s18, 1
      %s266 = smul.addr %s265, 36
      %s267 = smul.addr %s266, 8
      %s268 = scalar_lea.vmem %s7, %s267
      %p269 = scmp.lt.s32.totalorder %s18, 1
      %s270 = scalar_select %p269, %s18, 1
      %s271 = smul.addr %s270, 41
      %s272 = smul.addr %s271, 4
      %s273 = scalar_lea.vmem %s0, %s272
      %p274 = scmp.lt.s32.totalorder %s18, 1
      %s275 = scalar_select %p274, %s18, 1
      %s276 = smul.addr %s275, 36
      %s277 = smul.addr %s276, 8
      %s278 = scalar_lea.vmem %s7, %s277
      %v280 = vld [vmem:[%s273] sm:$0xf]
      %v281 = vld [vmem:[%s273 + $0x4] sm:$0xf]
      %v282 = vld [vmem:[%s273 + $0x8] sm:$0xf]
      %v283 = vld [vmem:[%s273 + $0xc] sm:$0xf]
      %v284 = vld [vmem:[%s273 + $0x10] sm:$0xf]
      %v285 = vld [vmem:[%s273 + $0x14] sm:$0xf]
      %v286 = vld [vmem:[%s273 + $0x18] sm:$0xf]
      %v287 = vld [vmem:[%s273 + $0x1c] sm:$0xf]
      %v288 = vld [vmem:[%s273 + $0x20] sm:$0xf]
      %v289 = vld [vmem:[%s273 + $0x24] sm:$0xf]
      %v290 = vld [vmem:[%s273 + $0x28] sm:$0xf]
      %v291 = vld [vmem:[%s273 + $0x2c] sm:$0xf]
      %v292 = vld [vmem:[%s273 + $0x30] sm:$0xf]
      %v293 = vld [vmem:[%s273 + $0x34] sm:$0xf]
      %v294 = vld [vmem:[%s273 + $0x38] sm:$0xf]
      %v295 = vld [vmem:[%s273 + $0x3c] sm:$0xf]
      %v296 = vld [vmem:[%s273 + $0x40] sm:$0xf]
      %v297 = vld [vmem:[%s273 + $0x44] sm:$0xf]
      %v298 = vld [vmem:[%s273 + $0x48] sm:$0xf]
      %v299 = vld [vmem:[%s273 + $0x4c] sm:$0xf]
      %v300 = vld [vmem:[%s273 + $0x50] sm:$0xf]
      %v301 = vld [vmem:[%s273 + $0x54] sm:$0xf]
      %v302 = vld [vmem:[%s273 + $0x58] sm:$0xf]
      %v303 = vld [vmem:[%s273 + $0x5c] sm:$0xf]
      %v304 = vld [vmem:[%s273 + $0x60] sm:$0xf]
      %v305 = vld [vmem:[%s273 + $0x64] sm:$0xf]
      %v306 = vld [vmem:[%s273 + $0x68] sm:$0xf]
      %v307 = vld [vmem:[%s273 + $0x6c] sm:$0xf]
      %v308 = vld [vmem:[%s273 + $0x70] sm:$0xf]
      %v309 = vld [vmem:[%s273 + $0x74] sm:$0xf]
      %v310 = vld [vmem:[%s273 + $0x78] sm:$0xf]
      %v311 = vld [vmem:[%s273 + $0x7c] sm:$0xf]
      %v312 = vld [vmem:[%s273 + $0x80] sm:$0xf]
      %v313 = vld [vmem:[%s273 + $0x84] sm:$0xf]
      %v314 = vld [vmem:[%s273 + $0x88] sm:$0xf]
      %v315 = vld [vmem:[%s273 + $0x8c] sm:$0x7]
      %v316 = vld [vmem:[%s2] sm:$0x3]
      %v317 = vld [vmem:[%s273 + $0x8c] sm:$0xf]
      %s318 = scalar_lea.vmem %s2, 2
      %v319 = vld [vmem:[%s318] sm:$0x3]
      %v356 = vunpack.c.l.b16 %v280
      %v357 = vunpack.c.l.b16 %v281
      %v358 = vunpack.c.l.b16 %v282
      %v359 = vunpack.c.l.b16 %v283
      %v360 = vunpack.c.l.b16 %v284
      %v361 = vunpack.c.l.b16 %v285
      %v362 = vunpack.c.l.b16 %v286
      %v363 = vunpack.c.l.b16 %v287
      %v364 = vunpack.c.l.b16 %v288
      %v365 = vunpack.c.l.b16 %v289
      %v366 = vunpack.c.l.b16 %v290
      %v367 = vunpack.c.l.b16 %v291
      %v368 = vunpack.c.l.b16 %v292
      %v369 = vunpack.c.l.b16 %v293
      %v370 = vunpack.c.l.b16 %v294
      %v371 = vunpack.c.l.b16 %v295
      %v372 = vunpack.c.l.b16 %v296
      %v373 = vunpack.c.l.b16 %v297
      %v374 = vunpack.c.l.b16 %v298
      %v375 = vunpack.c.l.b16 %v299
      %v376 = vunpack.c.l.b16 %v300
      %v377 = vunpack.c.l.b16 %v301
      %v378 = vunpack.c.l.b16 %v302
      %v379 = vunpack.c.l.b16 %v303
      %v380 = vunpack.c.l.b16 %v304
      %v381 = vunpack.c.l.b16 %v305
      %v382 = vunpack.c.l.b16 %v306
      %v383 = vunpack.c.l.b16 %v307
      %v384 = vunpack.c.l.b16 %v308
      %v385 = vunpack.c.l.b16 %v309
      %v386 = vunpack.c.l.b16 %v310
      %v387 = vunpack.c.l.b16 %v311
      %v388 = vunpack.c.l.b16 %v312
      %v389 = vunpack.c.l.b16 %v313
      %v390 = vunpack.c.l.b16 %v314
      %v391 = vunpack.c.l.b16 %v317
      %v392 = vpack.c.b16 %v357, %v356
      %v393 = vpack.c.b16 %v359, %v358
      %v394 = vpack.c.b16 %v361, %v360
      %v395 = vpack.c.b16 %v363, %v362
      %v396 = vpack.c.b16 %v365, %v364
      %v397 = vpack.c.b16 %v367, %v366
      %v398 = vpack.c.b16 %v369, %v368
      %v399 = vpack.c.b16 %v371, %v370
      %v400 = vpack.c.b16 %v373, %v372
      %v401 = vpack.c.b16 %v375, %v374
      %v402 = vpack.c.b16 %v377, %v376
      %v403 = vpack.c.b16 %v379, %v378
      %v404 = vpack.c.b16 %v381, %v380
      %v405 = vpack.c.b16 %v383, %v382
      %v406 = vpack.c.b16 %v385, %v384
      %v407 = vpack.c.b16 %v387, %v386
      %v408 = vpack.c.b16 %v389, %v388
      %v409 = vpack.c.b16 %v391, %v390
      %vm410 = vsmask.f32 7424
      %v412 = vshrl.u32 %v392, 16
      %v414 = vshll.u32 %v392, 16
      %v416 = vrot.slane %v414, 1
      %v417 = vor.u32 %v412, %v416
      %v419 = vshll.u32 %v393, 16
      %v421 = vrot.slane %v419, 1
      %v422 = vsel %vm410, %v417, %v421
      %v423 = vshrl.u32 %v393, 16
      %v425 = vor.u32 %v423, %v421
      %v427 = vshll.u32 %v394, 16
      %v429 = vrot.slane %v427, 1
      %v430 = vsel %vm410, %v425, %v429
      %v431 = vshrl.u32 %v394, 16
      %v433 = vor.u32 %v431, %v429
      %v435 = vshll.u32 %v395, 16
      %v437 = vrot.slane %v435, 1
      %v438 = vsel %vm410, %v433, %v437
      %v439 = vshrl.u32 %v395, 16
      %v441 = vor.u32 %v439, %v437
      %v443 = vshll.u32 %v396, 16
      %v445 = vrot.slane %v443, 1
      %v446 = vsel %vm410, %v441, %v445
      %v447 = vshrl.u32 %v396, 16
      %v449 = vor.u32 %v447, %v445
      %v451 = vshll.u32 %v397, 16
      %v453 = vrot.slane %v451, 1
      %v454 = vsel %vm410, %v449, %v453
      %v455 = vshrl.u32 %v397, 16
      %v457 = vor.u32 %v455, %v453
      %v459 = vshll.u32 %v398, 16
      %v461 = vrot.slane %v459, 1
      %v462 = vsel %vm410, %v457, %v461
      %v463 = vshrl.u32 %v398, 16
      %v465 = vor.u32 %v463, %v461
      %v467 = vshll.u32 %v399, 16
      %v469 = vrot.slane %v467, 1
      %v470 = vsel %vm410, %v465, %v469
      %v471 = vshrl.u32 %v399, 16
      %v473 = vor.u32 %v471, %v469
      %v475 = vshll.u32 %v400, 16
      %v477 = vrot.slane %v475, 1
      %v478 = vsel %vm410, %v473, %v477
      %v479 = vshrl.u32 %v400, 16
      %v481 = vor.u32 %v479, %v477
      %v483 = vshll.u32 %v401, 16
      %v485 = vrot.slane %v483, 1
      %v486 = vsel %vm410, %v481, %v485
      %v487 = vshrl.u32 %v401, 16
      %v489 = vor.u32 %v487, %v485
      %v491 = vshll.u32 %v402, 16
      %v493 = vrot.slane %v491, 1
      %v494 = vsel %vm410, %v489, %v493
      %v495 = vshrl.u32 %v402, 16
      %v497 = vor.u32 %v495, %v493
      %v499 = vshll.u32 %v403, 16
      %v501 = vrot.slane %v499, 1
      %v502 = vsel %vm410, %v497, %v501
      %v503 = vshrl.u32 %v403, 16
      %v505 = vor.u32 %v503, %v501
      %v507 = vshll.u32 %v404, 16
      %v509 = vrot.slane %v507, 1
      %v510 = vsel %vm410, %v505, %v509
      %v511 = vshrl.u32 %v404, 16
      %v513 = vor.u32 %v511, %v509
      %v515 = vshll.u32 %v405, 16
      %v517 = vrot.slane %v515, 1
      %v518 = vsel %vm410, %v513, %v517
      %v519 = vshrl.u32 %v405, 16
      %v521 = vor.u32 %v519, %v517
      %v523 = vshll.u32 %v406, 16
      %v525 = vrot.slane %v523, 1
      %v526 = vsel %vm410, %v521, %v525
      %v527 = vshrl.u32 %v406, 16
      %v529 = vor.u32 %v527, %v525
      %v531 = vshll.u32 %v407, 16
      %v533 = vrot.slane %v531, 1
      %v534 = vsel %vm410, %v529, %v533
      %v535 = vshrl.u32 %v407, 16
      %v537 = vor.u32 %v535, %v533
      %v539 = vshll.u32 %v408, 16
      %v541 = vrot.slane %v539, 1
      %v542 = vsel %vm410, %v537, %v541
      %v543 = vshrl.u32 %v408, 16
      %v545 = vor.u32 %v543, %v541
      %v547 = vshll.u32 %v409, 16
      %v549 = vrot.slane %v547, 1
      %v550 = vsel %vm410, %v545, %v549
      %v551 = vshrl.u32 %v409, 16
      %v553 = vor.u32 %v551, %v549
      %vm554 = vcmask 31744
      %v556 = vsel %vm554, %v422, 0
      %v559 = vsel %vm554, %v430, 0
      %v562 = vsel %vm554, %v438, 0
      %v565 = vsel %vm554, %v446, 0
      %v568 = vsel %vm554, %v454, 0
      %v571 = vsel %vm554, %v462, 0
      %v574 = vsel %vm554, %v470, 0
      %v577 = vsel %vm554, %v478, 0
      %v580 = vsel %vm554, %v486, 0
      %v583 = vsel %vm554, %v494, 0
      %v586 = vsel %vm554, %v502, 0
      %v589 = vsel %vm554, %v510, 0
      %v592 = vsel %vm554, %v518, 0
      %v595 = vsel %vm554, %v526, 0
      %v598 = vsel %vm554, %v534, 0
      %v601 = vsel %vm554, %v542, 0
      %v604 = vsel %vm554, %v550, 0
      %v607 = vsel %vm554, %v553, 0
      %vm609 = vcmask 1041408
      %v611 = vsel %vm609, %v319, 0
      %613 = vmatprep.subr.bf16.mxu0 0
      %614 = vmatpush1.bf16.msra.mxu0 %v611
      %615 = vmatprep.subr.bf16.mxu0 0
      %616 = vmatpush1.bf16.msra.mxu0 0
      %617 = vmatprep.subr.bf16.mxu0 0
      %618 = vmatpush1.bf16.msra.mxu0 0
      %619 = vmatprep.subr.bf16.mxu0 0
      %620 = vmatpush1.bf16.msra.mxu0 0
      %621 = vmatprep.subr.bf16.mxu0 0
      %622 = vmatpush1.bf16.msra.mxu0 0
      %623 = vmatprep.subr.bf16.mxu0 0
      %624 = vmatpush1.bf16.msra.mxu0 0
      %625 = vmatprep.subr.bf16.mxu0 0
      %626 = vmatpush1.bf16.msra.mxu0 0
      %627 = vmatprep.subr.bf16.mxu0 0
      %628 = vmatpush1.bf16.msra.mxu0 0
      %629 = vmatprep.subr.bf16.mxu0 0
      %630 = vmatpush1.bf16.msra.mxu0 0
      %631 = vmatprep.subr.bf16.mxu0 0
      %632 = vmatpush1.bf16.msra.mxu0 0
      %633 = vmatprep.subr.bf16.mxu0 0
      %634 = vmatpush1.bf16.msra.mxu0 0
      %635 = vmatprep.subr.bf16.mxu0 0
      %636 = vmatpush1.bf16.msra.mxu0 0
      %637 = vmatprep.subr.bf16.mxu0 0
      %638 = vmatpush1.bf16.msra.mxu0 0
      %639 = vmatprep.subr.bf16.mxu0 0
      %640 = vmatpush1.bf16.msra.mxu0 0
      %641 = vmatprep.subr.bf16.mxu0 0
      %642 = vmatpush1.bf16.msra.mxu0 0
      %643 = vmatprep.subr.bf16.mxu0 0
      %644 = vmatpush1.bf16.msra.mxu0 0
      %645 = vmatprep.mubr.bf16.mxu0 0
      %646 = vmatmul.mubr.bf16.gmra.mrb[0].mxu0 %v556
      %v647 = vpop.f32.mrb[0].mxu0
      %v648 = vadd.f32 0.0, %v647
      %v649 = vpop.f32.mrb[0].mxu0
      %v650 = vpop.f32.mrb[0].mxu0
      %v651 = vadd.f32 0.0, %v650
      %v652 = vpop.f32.mrb[0].mxu0
      %653 = vmatprep.mubr.bf16.mxu0 0
      %654 = vmatmul.mubr.bf16.gmra.mrb[0].mxu0 %v559
      %v655 = vpop.f32.mrb[0].mxu0
      %v656 = vadd.f32 0.0, %v655
      %v657 = vpop.f32.mrb[0].mxu0
      %v658 = vpop.f32.mrb[0].mxu0
      %v659 = vadd.f32 0.0, %v658
      %v660 = vpop.f32.mrb[0].mxu0
      %661 = vmatprep.mubr.bf16.mxu0 0
      %662 = vmatmul.mubr.bf16.gmra.mrb[0].mxu0 %v562
      %v663 = vpop.f32.mrb[0].mxu0
      %v664 = vadd.f32 0.0, %v663
      %v665 = vpop.f32.mrb[0].mxu0
      %v666 = vpop.f32.mrb[0].mxu0
      %v667 = vadd.f32 0.0, %v666
      %v668 = vpop.f32.mrb[0].mxu0
      %669 = vmatprep.mubr.bf16.mxu0 0
      %670 = vmatmul.mubr.bf16.gmra.mrb[0].mxu0 %v565
      %v671 = vpop.f32.mrb[0].mxu0
      %v672 = vadd.f32 0.0, %v671
      %v673 = vpop.f32.mrb[0].mxu0
      %v674 = vpop.f32.mrb[0].mxu0
      %v675 = vadd.f32 0.0, %v674
      %v676 = vpop.f32.mrb[0].mxu0
      %677 = vmatprep.mubr.bf16.mxu0 0
      %678 = vmatmul.mubr.bf16.gmra.mrb[0].mxu0 %v568
      %v679 = vpop.f32.mrb[0].mxu0
      %v680 = vadd.f32 0.0, %v679
      %v681 = vpop.f32.mrb[0].mxu0
      %v682 = vpop.f32.mrb[0].mxu0
      %v683 = vadd.f32 0.0, %v682
      %v684 = vpop.f32.mrb[0].mxu0
      %685 = vmatprep.mubr.bf16.mxu0 0
      %686 = vmatmul.mubr.bf16.gmra.mrb[0].mxu0 %v571
      %v687 = vpop.f32.mrb[0].mxu0
      %v688 = vadd.f32 0.0, %v687
      %v689 = vpop.f32.mrb[0].mxu0
      %v690 = vpop.f32.mrb[0].mxu0
      %v691 = vadd.f32 0.0, %v690
      %v692 = vpop.f32.mrb[0].mxu0
      %693 = vmatprep.mubr.bf16.mxu0 0
      %694 = vmatmul.mubr.bf16.gmra.mrb[0].mxu0 %v574
      %v695 = vpop.f32.mrb[0].mxu0
      %v696 = vadd.f32 0.0, %v695
      %v697 = vpop.f32.mrb[0].mxu0
      %v698 = vpop.f32.mrb[0].mxu0
      %v699 = vadd.f32 0.0, %v698
      %v700 = vpop.f32.mrb[0].mxu0
      %701 = vmatprep.mubr.bf16.mxu0 0
      %702 = vmatmul.mubr.bf16.gmra.mrb[0].mxu0 %v577
      %v703 = vpop.f32.mrb[0].mxu0
      %v704 = vadd.f32 0.0, %v703
      %v705 = vpop.f32.mrb[0].mxu0
      %v706 = vpop.f32.mrb[0].mxu0
      %v707 = vadd.f32 0.0, %v706
      %v708 = vpop.f32.mrb[0].mxu0
      %709 = vmatprep.mubr.bf16.mxu0 0
      %710 = vmatmul.mubr.bf16.gmra.mrb[0].mxu0 %v580
      %v711 = vpop.f32.mrb[0].mxu0
      %v712 = vadd.f32 0.0, %v711
      %v713 = vpop.f32.mrb[0].mxu0
      %v714 = vpop.f32.mrb[0].mxu0
      %v715 = vadd.f32 0.0, %v714
      %v716 = vpop.f32.mrb[0].mxu0
      %717 = vmatprep.mubr.bf16.mxu0 0
      %718 = vmatmul.mubr.bf16.gmra.mrb[0].mxu0 %v583
      %v719 = vpop.f32.mrb[0].mxu0
      %v720 = vadd.f32 0.0, %v719
      %v721 = vpop.f32.mrb[0].mxu0
      %v722 = vpop.f32.mrb[0].mxu0
      %v723 = vadd.f32 0.0, %v722
      %v724 = vpop.f32.mrb[0].mxu0
      %725 = vmatprep.mubr.bf16.mxu0 0
      %726 = vmatmul.mubr.bf16.gmra.mrb[0].mxu0 %v586
      %v727 = vpop.f32.mrb[0].mxu0
      %v728 = vadd.f32 0.0, %v727
      %v729 = vpop.f32.mrb[0].mxu0
      %v730 = vpop.f32.mrb[0].mxu0
      %v731 = vadd.f32 0.0, %v730
      %v732 = vpop.f32.mrb[0].mxu0
      %733 = vmatprep.mubr.bf16.mxu0 0
      %734 = vmatmul.mubr.bf16.gmra.mrb[0].mxu0 %v589
      %v735 = vpop.f32.mrb[0].mxu0
      %v736 = vadd.f32 0.0, %v735
      %v737 = vpop.f32.mrb[0].mxu0
      %v738 = vpop.f32.mrb[0].mxu0
      %v739 = vadd.f32 0.0, %v738
      %v740 = vpop.f32.mrb[0].mxu0
      %741 = vmatprep.mubr.bf16.mxu0 0
      %742 = vmatmul.mubr.bf16.gmra.mrb[0].mxu0 %v592
      %v743 = vpop.f32.mrb[0].mxu0
      %v744 = vadd.f32 0.0, %v743
      %v745 = vpop.f32.mrb[0].mxu0
      %v746 = vpop.f32.mrb[0].mxu0
      %v747 = vadd.f32 0.0, %v746
      %v748 = vpop.f32.mrb[0].mxu0
      %749 = vmatprep.mubr.bf16.mxu0 0
      %750 = vmatmul.mubr.bf16.gmra.mrb[0].mxu0 %v595
      %v751 = vpop.f32.mrb[0].mxu0
      %v752 = vadd.f32 0.0, %v751
      %v753 = vpop.f32.mrb[0].mxu0
      %v754 = vpop.f32.mrb[0].mxu0
      %v755 = vadd.f32 0.0, %v754
      %v756 = vpop.f32.mrb[0].mxu0
      %757 = vmatprep.mubr.bf16.mxu0 0
      %758 = vmatmul.mubr.bf16.gmra.mrb[0].mxu0 %v598
      %v759 = vpop.f32.mrb[0].mxu0
      %v760 = vadd.f32 0.0, %v759
      %v761 = vpop.f32.mrb[0].mxu0
      %v762 = vpop.f32.mrb[0].mxu0
      %v763 = vadd.f32 0.0, %v762
      %v764 = vpop.f32.mrb[0].mxu0
      %765 = vmatprep.mubr.bf16.mxu0 0
      %766 = vmatmul.mubr.bf16.gmra.mrb[0].mxu0 %v601
      %v767 = vpop.f32.mrb[0].mxu0
      %v768 = vadd.f32 0.0, %v767
      %v769 = vpop.f32.mrb[0].mxu0
      %v770 = vpop.f32.mrb[0].mxu0
      %v771 = vadd.f32 0.0, %v770
      %v772 = vpop.f32.mrb[0].mxu0
      %773 = vmatprep.mubr.bf16.mxu0 0
      %774 = vmatmul.mubr.bf16.gmra.mrb[0].mxu0 %v604
      %v775 = vpop.f32.mrb[0].mxu0
      %v776 = vadd.f32 0.0, %v775
      %v777 = vpop.f32.mrb[0].mxu0
      %v778 = vpop.f32.mrb[0].mxu0
      %v779 = vadd.f32 0.0, %v778
      %v780 = vpop.f32.mrb[0].mxu0
      %781 = vmatprep.mubr.bf16.mxu0 0
      %782 = vmatmul.mubr.bf16.gmra.mrb[0].mxu0 %v607
      %v783 = vpop.f32.mrb[0].mxu0
      %v784 = vadd.f32 0.0, %v783
      %v785 = vpop.f32.mrb[0].mxu0
      %v786 = vpop.f32.mrb[0].mxu0
      %v787 = vadd.f32 0.0, %v786
      %v788 = vpop.f32.mrb[0].mxu0
      %789 = vdwg.mxu0
      %v791 = vunpack.c.l.b16 %v315
      %v792 = vpack.c.b16 %v791, %v390
      %v793 = vsel %vm554, %v392, 0
      %v795 = vsel %vm554, %v393, 0
      %v797 = vsel %vm554, %v394, 0
      %v799 = vsel %vm554, %v395, 0
      %v801 = vsel %vm554, %v396, 0
      %v803 = vsel %vm554, %v397, 0
      %v805 = vsel %vm554, %v398, 0
      %v807 = vsel %vm554, %v399, 0
      %v809 = vsel %vm554, %v400, 0
      %v811 = vsel %vm554, %v401, 0
      %v813 = vsel %vm554, %v402, 0
      %v815 = vsel %vm554, %v403, 0
      %v817 = vsel %vm554, %v404, 0
      %v819 = vsel %vm554, %v405, 0
      %v821 = vsel %vm554, %v406, 0
      %v823 = vsel %vm554, %v407, 0
      %v825 = vsel %vm554, %v408, 0
      %v828 = vsel %vm554, %v792, 0
      %v831 = vsel %vm609, %v316, 0
      %833 = vmatprep.subr.bf16.mxu0 0
      %834 = vmatpush1.bf16.msra.mxu0 %v831
      %835 = vmatprep.subr.bf16.mxu0 0
      %836 = vmatpush1.bf16.msra.mxu0 0
      %837 = vmatprep.subr.bf16.mxu0 0
      %838 = vmatpush1.bf16.msra.mxu0 0
      %839 = vmatprep.subr.bf16.mxu0 0
      %840 = vmatpush1.bf16.msra.mxu0 0
      %841 = vmatprep.subr.bf16.mxu0 0
      %842 = vmatpush1.bf16.msra.mxu0 0
      %843 = vmatprep.subr.bf16.mxu0 0
      %844 = vmatpush1.bf16.msra.mxu0 0
      %845 = vmatprep.subr.bf16.mxu0 0
      %846 = vmatpush1.bf16.msra.mxu0 0
      %847 = vmatprep.subr.bf16.mxu0 0
      %848 = vmatpush1.bf16.msra.mxu0 0
      %849 = vmatprep.subr.bf16.mxu0 0
      %850 = vmatpush1.bf16.msra.mxu0 0
      %851 = vmatprep.subr.bf16.mxu0 0
      %852 = vmatpush1.bf16.msra.mxu0 0
      %853 = vmatprep.subr.bf16.mxu0 0
      %854 = vmatpush1.bf16.msra.mxu0 0
      %855 = vmatprep.subr.bf16.mxu0 0
      %856 = vmatpush1.bf16.msra.mxu0 0
      %857 = vmatprep.subr.bf16.mxu0 0
      %858 = vmatpush1.bf16.msra.mxu0 0
      %859 = vmatprep.subr.bf16.mxu0 0
      %860 = vmatpush1.bf16.msra.mxu0 0
      %861 = vmatprep.subr.bf16.mxu0 0
      %862 = vmatpush1.bf16.msra.mxu0 0
      %863 = vmatprep.subr.bf16.mxu0 0
      %864 = vmatpush1.bf16.msra.mxu0 0
      %865 = vmatprep.mubr.bf16.mxu0 0
      %866 = vmatmul.mubr.bf16.gmra.mrb[0].mxu0 %v793
      %v867 = vpop.f32.mrb[0].mxu0
      %v868 = vadd.f32 %v648, %v867
      %v869 = vpop.f32.mrb[0].mxu0
      %v870 = vpop.f32.mrb[0].mxu0
      %v871 = vadd.f32 %v651, %v870
      %v872 = vpop.f32.mrb[0].mxu0
      %873 = vmatprep.mubr.bf16.mxu0 0
      %874 = vmatmul.mubr.bf16.gmra.mrb[0].mxu0 %v795
      %v875 = vpop.f32.mrb[0].mxu0
      %v876 = vadd.f32 %v656, %v875
      %v877 = vpop.f32.mrb[0].mxu0
      %v878 = vpop.f32.mrb[0].mxu0
      %v879 = vadd.f32 %v659, %v878
      %v880 = vpop.f32.mrb[0].mxu0
      %881 = vmatprep.mubr.bf16.mxu0 0
      %882 = vmatmul.mubr.bf16.gmra.mrb[0].mxu0 %v797
      %v883 = vpop.f32.mrb[0].mxu0
      %v884 = vadd.f32 %v664, %v883
      %v885 = vpop.f32.mrb[0].mxu0
      %v886 = vpop.f32.mrb[0].mxu0
      %v887 = vadd.f32 %v667, %v886
      %v888 = vpop.f32.mrb[0].mxu0
      %889 = vmatprep.mubr.bf16.mxu0 0
      %890 = vmatmul.mubr.bf16.gmra.mrb[0].mxu0 %v799
      %v891 = vpop.f32.mrb[0].mxu0
      %v892 = vadd.f32 %v672, %v891
      %v893 = vpop.f32.mrb[0].mxu0
      %v894 = vpop.f32.mrb[0].mxu0
      %v895 = vadd.f32 %v675, %v894
      %v896 = vpop.f32.mrb[0].mxu0
      %897 = vmatprep.mubr.bf16.mxu0 0
      %898 = vmatmul.mubr.bf16.gmra.mrb[0].mxu0 %v801
      %v899 = vpop.f32.mrb[0].mxu0
      %v900 = vadd.f32 %v680, %v899
      %v901 = vpop.f32.mrb[0].mxu0
      %v902 = vpop.f32.mrb[0].mxu0
      %v903 = vadd.f32 %v683, %v902
      %v904 = vpop.f32.mrb[0].mxu0
      %905 = vmatprep.mubr.bf16.mxu0 0
      %906 = vmatmul.mubr.bf16.gmra.mrb[0].mxu0 %v803
      %v907 = vpop.f32.mrb[0].mxu0
      %v908 = vadd.f32 %v688, %v907
      %v909 = vpop.f32.mrb[0].mxu0
      %v910 = vpop.f32.mrb[0].mxu0
      %v911 = vadd.f32 %v691, %v910
      %v912 = vpop.f32.mrb[0].mxu0
      %913 = vmatprep.mubr.bf16.mxu0 0
      %914 = vmatmul.mubr.bf16.gmra.mrb[0].mxu0 %v805
      %v915 = vpop.f32.mrb[0].mxu0
      %v916 = vadd.f32 %v696, %v915
      %v917 = vpop.f32.mrb[0].mxu0
      %v918 = vpop.f32.mrb[0].mxu0
      %v919 = vadd.f32 %v699, %v918
      %v920 = vpop.f32.mrb[0].mxu0
      %921 = vmatprep.mubr.bf16.mxu0 0
      %922 = vmatmul.mubr.bf16.gmra.mrb[0].mxu0 %v807
      %v923 = vpop.f32.mrb[0].mxu0
      %v924 = vadd.f32 %v704, %v923
      %v925 = vpop.f32.mrb[0].mxu0
      %v926 = vpop.f32.mrb[0].mxu0
      %v927 = vadd.f32 %v707, %v926
      %v928 = vpop.f32.mrb[0].mxu0
      %929 = vmatprep.mubr.bf16.mxu0 0
      %930 = vmatmul.mubr.bf16.gmra.mrb[0].mxu0 %v809
      %v931 = vpop.f32.mrb[0].mxu0
      %v932 = vadd.f32 %v712, %v931
      %v933 = vpop.f32.mrb[0].mxu0
      %v934 = vpop.f32.mrb[0].mxu0
      %v935 = vadd.f32 %v715, %v934
      %v936 = vpop.f32.mrb[0].mxu0
      %937 = vmatprep.mubr.bf16.mxu0 0
      %938 = vmatmul.mubr.bf16.gmra.mrb[0].mxu0 %v811
      %v939 = vpop.f32.mrb[0].mxu0
      %v940 = vadd.f32 %v720, %v939
      %v941 = vpop.f32.mrb[0].mxu0
      %v942 = vpop.f32.mrb[0].mxu0
      %v943 = vadd.f32 %v723, %v942
      %v944 = vpop.f32.mrb[0].mxu0
      %945 = vmatprep.mubr.bf16.mxu0 0
      %946 = vmatmul.mubr.bf16.gmra.mrb[0].mxu0 %v813
      %v947 = vpop.f32.mrb[0].mxu0
      %v948 = vadd.f32 %v728, %v947
      %v949 = vpop.f32.mrb[0].mxu0
      %v950 = vpop.f32.mrb[0].mxu0
      %v951 = vadd.f32 %v731, %v950
      %v952 = vpop.f32.mrb[0].mxu0
      %953 = vmatprep.mubr.bf16.mxu0 0
      %954 = vmatmul.mubr.bf16.gmra.mrb[0].mxu0 %v815
      %v955 = vpop.f32.mrb[0].mxu0
      %v956 = vadd.f32 %v736, %v955
      %v957 = vpop.f32.mrb[0].mxu0
      %v958 = vpop.f32.mrb[0].mxu0
      %v959 = vadd.f32 %v739, %v958
      %v960 = vpop.f32.mrb[0].mxu0
      %961 = vmatprep.mubr.bf16.mxu0 0
      %962 = vmatmul.mubr.bf16.gmra.mrb[0].mxu0 %v817
      %v963 = vpop.f32.mrb[0].mxu0
      %v964 = vadd.f32 %v744, %v963
      %v965 = vpop.f32.mrb[0].mxu0
      %v966 = vpop.f32.mrb[0].mxu0
      %v967 = vadd.f32 %v747, %v966
      %v968 = vpop.f32.mrb[0].mxu0
      %969 = vmatprep.mubr.bf16.mxu0 0
      %970 = vmatmul.mubr.bf16.gmra.mrb[0].mxu0 %v819
      %v971 = vpop.f32.mrb[0].mxu0
      %v972 = vadd.f32 %v752, %v971
      %v973 = vpop.f32.mrb[0].mxu0
      %v974 = vpop.f32.mrb[0].mxu0
      %v975 = vadd.f32 %v755, %v974
      %v976 = vpop.f32.mrb[0].mxu0
      %977 = vmatprep.mubr.bf16.mxu0 0
      %978 = vmatmul.mubr.bf16.gmra.mrb[0].mxu0 %v821
      %v979 = vpop.f32.mrb[0].mxu0
      %v980 = vadd.f32 %v760, %v979
      %v981 = vpop.f32.mrb[0].mxu0
      %v982 = vpop.f32.mrb[0].mxu0
      %v983 = vadd.f32 %v763, %v982
      %v984 = vpop.f32.mrb[0].mxu0
      %985 = vmatprep.mubr.bf16.mxu0 0
      %986 = vmatmul.mubr.bf16.gmra.mrb[0].mxu0 %v823
      %v987 = vpop.f32.mrb[0].mxu0
      %v988 = vadd.f32 %v768, %v987
      %v989 = vpop.f32.mrb[0].mxu0
      %v990 = vpop.f32.mrb[0].mxu0
      %v991 = vadd.f32 %v771, %v990
      %v992 = vpop.f32.mrb[0].mxu0
      %993 = vmatprep.mubr.bf16.mxu0 0
      %994 = vmatmul.mubr.bf16.gmra.mrb[0].mxu0 %v825
      %v995 = vpop.f32.mrb[0].mxu0
      %v996 = vadd.f32 %v776, %v995
      %v997 = vpop.f32.mrb[0].mxu0
      %v998 = vpop.f32.mrb[0].mxu0
      %v999 = vadd.f32 %v779, %v998
      %v1000 = vpop.f32.mrb[0].mxu0
      %1001 = vmatprep.mubr.bf16.mxu0 0
      %1002 = vmatmul.mubr.bf16.gmra.mrb[0].mxu0 %v828
      %v1003 = vpop.f32.mrb[0].mxu0
      %v1004 = vadd.f32 %v784, %v1003
      %v1005 = vpop.f32.mrb[0].mxu0
      %v1006 = vpop.f32.mrb[0].mxu0
      %v1007 = vadd.f32 %v787, %v1006
      %v1008 = vpop.f32.mrb[0].mxu0
      %1009 = vdwg.mxu0
      %v1010 = vld [vmem:[%s273] sm:$0xe]
      %s1011 = scalar_lea.vmem %s2, 4
      %v1012 = vld [vmem:[%s1011] sm:$0x3]
      %v1014 = vunpack.c.l.b16 %v1010
      %v1015 = vpack.c.b16 %v357, %v1014
      %vm1016 = vcmask 1046528
      %v1017 = vrot.slane %v1015, 1
      %v1018 = vrot.slane %v393, 1
      %v1019 = vsel %vm1016, %v1017, %v1018
      %v1020 = vrot.slane %v394, 1
      %v1021 = vsel %vm1016, %v1018, %v1020
      %v1022 = vrot.slane %v395, 1
      %v1023 = vsel %vm1016, %v1020, %v1022
      %v1024 = vrot.slane %v396, 1
      %v1025 = vsel %vm1016, %v1022, %v1024
      %v1026 = vrot.slane %v397, 1
      %v1027 = vsel %vm1016, %v1024, %v1026
      %v1028 = vrot.slane %v398, 1
      %v1029 = vsel %vm1016, %v1026, %v1028
      %v1030 = vrot.slane %v399, 1
      %v1031 = vsel %vm1016, %v1028, %v1030
      %v1032 = vrot.slane %v400, 1
      %v1033 = vsel %vm1016, %v1030, %v1032
      %v1034 = vrot.slane %v401, 1
      %v1035 = vsel %vm1016, %v1032, %v1034
      %v1036 = vrot.slane %v402, 1
      %v1037 = vsel %vm1016, %v1034, %v1036
      %v1038 = vrot.slane %v403, 1
      %v1039 = vsel %vm1016, %v1036, %v1038
      %v1040 = vrot.slane %v404, 1
      %v1041 = vsel %vm1016, %v1038, %v1040
      %v1042 = vrot.slane %v405, 1
      %v1043 = vsel %vm1016, %v1040, %v1042
      %v1044 = vrot.slane %v406, 1
      %v1045 = vsel %vm1016, %v1042, %v1044
      %v1046 = vrot.slane %v407, 1
      %v1047 = vsel %vm1016, %v1044, %v1046
      %v1048 = vrot.slane %v408, 1
      %v1049 = vsel %vm1016, %v1046, %v1048
      %v1050 = vrot.slane %v409, 1
      %v1051 = vsel %vm1016, %v1048, %v1050
      %v1053 = vsel %vm554, %v1019, 0
      %v1056 = vsel %vm554, %v1021, 0
      %v1059 = vsel %vm554, %v1023, 0
      %v1062 = vsel %vm554, %v1025, 0
      %v1065 = vsel %vm554, %v1027, 0
      %v1068 = vsel %vm554, %v1029, 0
      %v1071 = vsel %vm554, %v1031, 0
      %v1074 = vsel %vm554, %v1033, 0
      %v1077 = vsel %vm554, %v1035, 0
      %v1080 = vsel %vm554, %v1037, 0
      %v1083 = vsel %vm554, %v1039, 0
      %v1086 = vsel %vm554, %v1041, 0
      %v1089 = vsel %vm554, %v1043, 0
      %v1092 = vsel %vm554, %v1045, 0
      %v1095 = vsel %vm554, %v1047, 0
      %v1098 = vsel %vm554, %v1049, 0
      %v1101 = vsel %vm554, %v1051, 0
      %v1104 = vsel %vm554, %v1050, 0
      %v1107 = vsel %vm609, %v1012, 0
      %1109 = vmatprep.subr.bf16.mxu0 0
      %1110 = vmatpush1.bf16.msra.mxu0 %v1107
      %1111 = vmatprep.subr.bf16.mxu0 0
      %1112 = vmatpush1.bf16.msra.mxu0 0
      %1113 = vmatprep.subr.bf16.mxu0 0
      %1114 = vmatpush1.bf16.msra.mxu0 0
      %1115 = vmatprep.subr.bf16.mxu0 0
      %1116 = vmatpush1.bf16.msra.mxu0 0
      %1117 = vmatprep.subr.bf16.mxu0 0
      %1118 = vmatpush1.bf16.msra.mxu0 0
      %1119 = vmatprep.subr.bf16.mxu0 0
      %1120 = vmatpush1.bf16.msra.mxu0 0
      %1121 = vmatprep.subr.bf16.mxu0 0
      %1122 = vmatpush1.bf16.msra.mxu0 0
      %1123 = vmatprep.subr.bf16.mxu0 0
      %1124 = vmatpush1.bf16.msra.mxu0 0
      %1125 = vmatprep.subr.bf16.mxu0 0
      %1126 = vmatpush1.bf16.msra.mxu0 0
      %1127 = vmatprep.subr.bf16.mxu0 0
      %1128 = vmatpush1.bf16.msra.mxu0 0
      %1129 = vmatprep.subr.bf16.mxu0 0
      %1130 = vmatpush1.bf16.msra.mxu0 0
      %1131 = vmatprep.subr.bf16.mxu0 0
      %1132 = vmatpush1.bf16.msra.mxu0 0
      %1133 = vmatprep.subr.bf16.mxu0 0
      %1134 = vmatpush1.bf16.msra.mxu0 0
      %1135 = vmatprep.subr.bf16.mxu0 0
      %1136 = vmatpush1.bf16.msra.mxu0 0
      %1137 = vmatprep.subr.bf16.mxu0 0
      %1138 = vmatpush1.bf16.msra.mxu0 0
      %1139 = vmatprep.subr.bf16.mxu0 0
      %1140 = vmatpush1.bf16.msra.mxu0 0
      %1141 = vmatprep.mubr.bf16.mxu0 0
      %1142 = vmatmul.mubr.bf16.gmra.mrb[0].mxu0 %v1053
      %v1143 = vpop.f32.mrb[0].mxu0
      %v1144 = vadd.f32 0.0, %v1143
      %v1145 = vpop.f32.mrb[0].mxu0
      %v1146 = vpop.f32.mrb[0].mxu0
      %v1147 = vadd.f32 0.0, %v1146
      %v1148 = vpop.f32.mrb[0].mxu0
      %1149 = vmatprep.mubr.bf16.mxu0 0
      %1150 = vmatmul.mubr.bf16.gmra.mrb[0].mxu0 %v1056
      %v1151 = vpop.f32.mrb[0].mxu0
      %v1152 = vadd.f32 0.0, %v1151
      %v1153 = vpop.f32.mrb[0].mxu0
      %v1154 = vpop.f32.mrb[0].mxu0
      %v1155 = vadd.f32 0.0, %v1154
      %v1156 = vpop.f32.mrb[0].mxu0
      %1157 = vmatprep.mubr.bf16.mxu0 0
      %1158 = vmatmul.mubr.bf16.gmra.mrb[0].mxu0 %v1059
      %v1159 = vpop.f32.mrb[0].mxu0
      %v1160 = vadd.f32 0.0, %v1159
      %v1161 = vpop.f32.mrb[0].mxu0
      %v1162 = vpop.f32.mrb[0].mxu0
      %v1163 = vadd.f32 0.0, %v1162
      %v1164 = vpop.f32.mrb[0].mxu0
      %1165 = vmatprep.mubr.bf16.mxu0 0
      %1166 = vmatmul.mubr.bf16.gmra.mrb[0].mxu0 %v1062
      %v1167 = vpop.f32.mrb[0].mxu0
      %v1168 = vadd.f32 0.0, %v1167
      %v1169 = vpop.f32.mrb[0].mxu0
      %v1170 = vpop.f32.mrb[0].mxu0
      %v1171 = vadd.f32 0.0, %v1170
      %v1172 = vpop.f32.mrb[0].mxu0
      %1173 = vmatprep.mubr.bf16.mxu0 0
      %1174 = vmatmul.mubr.bf16.gmra.mrb[0].mxu0 %v1065
      %v1175 = vpop.f32.mrb[0].mxu0
      %v1176 = vadd.f32 0.0, %v1175
      %v1177 = vpop.f32.mrb[0].mxu0
      %v1178 = vpop.f32.mrb[0].mxu0
      %v1179 = vadd.f32 0.0, %v1178
      %v1180 = vpop.f32.mrb[0].mxu0
      %1181 = vmatprep.mubr.bf16.mxu0 0
      %1182 = vmatmul.mubr.bf16.gmra.mrb[0].mxu0 %v1068
      %v1183 = vpop.f32.mrb[0].mxu0
      %v1184 = vadd.f32 0.0, %v1183
      %v1185 = vpop.f32.mrb[0].mxu0
      %v1186 = vpop.f32.mrb[0].mxu0
      %v1187 = vadd.f32 0.0, %v1186
      %v1188 = vpop.f32.mrb[0].mxu0
      %1189 = vmatprep.mubr.bf16.mxu0 0
      %1190 = vmatmul.mubr.bf16.gmra.mrb[0].mxu0 %v1071
      %v1191 = vpop.f32.mrb[0].mxu0
      %v1192 = vadd.f32 0.0, %v1191
      %v1193 = vpop.f32.mrb[0].mxu0
      %v1194 = vpop.f32.mrb[0].mxu0
      %v1195 = vadd.f32 0.0, %v1194
      %v1196 = vpop.f32.mrb[0].mxu0
      %1197 = vmatprep.mubr.bf16.mxu0 0
      %1198 = vmatmul.mubr.bf16.gmra.mrb[0].mxu0 %v1074
      %v1199 = vpop.f32.mrb[0].mxu0
      %v1200 = vadd.f32 0.0, %v1199
      %v1201 = vpop.f32.mrb[0].mxu0
      %v1202 = vpop.f32.mrb[0].mxu0
      %v1203 = vadd.f32 0.0, %v1202
      %v1204 = vpop.f32.mrb[0].mxu0
      %1205 = vmatprep.mubr.bf16.mxu0 0
      %1206 = vmatmul.mubr.bf16.gmra.mrb[0].mxu0 %v1077
      %v1207 = vpop.f32.mrb[0].mxu0
      %v1208 = vadd.f32 0.0, %v1207
      %v1209 = vpop.f32.mrb[0].mxu0
      %v1210 = vpop.f32.mrb[0].mxu0
      %v1211 = vadd.f32 0.0, %v1210
      %v1212 = vpop.f32.mrb[0].mxu0
      %1213 = vmatprep.mubr.bf16.mxu0 0
      %1214 = vmatmul.mubr.bf16.gmra.mrb[0].mxu0 %v1080
      %v1215 = vpop.f32.mrb[0].mxu0
      %v1216 = vadd.f32 0.0, %v1215
      %v1217 = vpop.f32.mrb[0].mxu0
      %v1218 = vpop.f32.mrb[0].mxu0
      %v1219 = vadd.f32 0.0, %v1218
      %v1220 = vpop.f32.mrb[0].mxu0
      %1221 = vmatprep.mubr.bf16.mxu0 0
      %1222 = vmatmul.mubr.bf16.gmra.mrb[0].mxu0 %v1083
      %v1223 = vpop.f32.mrb[0].mxu0
      %v1224 = vadd.f32 0.0, %v1223
      %v1225 = vpop.f32.mrb[0].mxu0
      %v1226 = vpop.f32.mrb[0].mxu0
      %v1227 = vadd.f32 0.0, %v1226
      %v1228 = vpop.f32.mrb[0].mxu0
      %1229 = vmatprep.mubr.bf16.mxu0 0
      %1230 = vmatmul.mubr.bf16.gmra.mrb[0].mxu0 %v1086
      %v1231 = vpop.f32.mrb[0].mxu0
      %v1232 = vadd.f32 0.0, %v1231
      %v1233 = vpop.f32.mrb[0].mxu0
      %v1234 = vpop.f32.mrb[0].mxu0
      %v1235 = vadd.f32 0.0, %v1234
      %v1236 = vpop.f32.mrb[0].mxu0
      %1237 = vmatprep.mubr.bf16.mxu0 0
      %1238 = vmatmul.mubr.bf16.gmra.mrb[0].mxu0 %v1089
      %v1239 = vpop.f32.mrb[0].mxu0
      %v1240 = vadd.f32 0.0, %v1239
      %v1241 = vpop.f32.mrb[0].mxu0
      %v1242 = vpop.f32.mrb[0].mxu0
      %v1243 = vadd.f32 0.0, %v1242
      %v1244 = vpop.f32.mrb[0].mxu0
      %1245 = vmatprep.mubr.bf16.mxu0 0
      %1246 = vmatmul.mubr.bf16.gmra.mrb[0].mxu0 %v1092
      %v1247 = vpop.f32.mrb[0].mxu0
      %v1248 = vadd.f32 0.0, %v1247
      %v1249 = vpop.f32.mrb[0].mxu0
      %v1250 = vpop.f32.mrb[0].mxu0
      %v1251 = vadd.f32 0.0, %v1250
      %v1252 = vpop.f32.mrb[0].mxu0
      %1253 = vmatprep.mubr.bf16.mxu0 0
      %1254 = vmatmul.mubr.bf16.gmra.mrb[0].mxu0 %v1095
      %v1255 = vpop.f32.mrb[0].mxu0
      %v1256 = vadd.f32 0.0, %v1255
      %v1257 = vpop.f32.mrb[0].mxu0
      %v1258 = vpop.f32.mrb[0].mxu0
      %v1259 = vadd.f32 0.0, %v1258
      %v1260 = vpop.f32.mrb[0].mxu0
      %1261 = vmatprep.mubr.bf16.mxu0 0
      %1262 = vmatmul.mubr.bf16.gmra.mrb[0].mxu0 %v1098
      %v1263 = vpop.f32.mrb[0].mxu0
      %v1264 = vadd.f32 0.0, %v1263
      %v1265 = vpop.f32.mrb[0].mxu0
      %v1266 = vpop.f32.mrb[0].mxu0
      %v1267 = vadd.f32 0.0, %v1266
      %v1268 = vpop.f32.mrb[0].mxu0
      %1269 = vmatprep.mubr.bf16.mxu0 0
      %1270 = vmatmul.mubr.bf16.gmra.mrb[0].mxu0 %v1101
      %v1271 = vpop.f32.mrb[0].mxu0
      %v1272 = vadd.f32 0.0, %v1271
      %v1273 = vpop.f32.mrb[0].mxu0
      %v1274 = vpop.f32.mrb[0].mxu0
      %v1275 = vadd.f32 0.0, %v1274
      %v1276 = vpop.f32.mrb[0].mxu0
      %1277 = vmatprep.mubr.bf16.mxu0 0
      %1278 = vmatmul.mubr.bf16.gmra.mrb[0].mxu0 %v1104
      %v1279 = vpop.f32.mrb[0].mxu0
      %v1280 = vadd.f32 0.0, %v1279
      %v1281 = vpop.f32.mrb[0].mxu0
      %v1282 = vpop.f32.mrb[0].mxu0
      %v1283 = vadd.f32 0.0, %v1282
      %v1284 = vpop.f32.mrb[0].mxu0
      %1285 = vdwg.mxu0
      %v1286 = vadd.f32 %v868, %v1144
      %v1287 = vadd.f32 %v871, %v1147
      %v1288 = vadd.f32 %v876, %v1152
      %v1289 = vadd.f32 %v879, %v1155
      %v1290 = vadd.f32 %v884, %v1160
      %v1291 = vadd.f32 %v887, %v1163
      %v1292 = vadd.f32 %v892, %v1168
      %v1293 = vadd.f32 %v895, %v1171
      %v1294 = vadd.f32 %v900, %v1176
      %v1295 = vadd.f32 %v903, %v1179
      %v1296 = vadd.f32 %v908, %v1184
      %v1297 = vadd.f32 %v911, %v1187
      %v1298 = vadd.f32 %v916, %v1192
      %v1299 = vadd.f32 %v919, %v1195
      %v1300 = vadd.f32 %v924, %v1200
      %v1301 = vadd.f32 %v927, %v1203
      %v1302 = vadd.f32 %v932, %v1208
      %v1303 = vadd.f32 %v935, %v1211
      %v1304 = vadd.f32 %v940, %v1216
      %v1305 = vadd.f32 %v943, %v1219
      %v1306 = vadd.f32 %v948, %v1224
      %v1307 = vadd.f32 %v951, %v1227
      %v1308 = vadd.f32 %v956, %v1232
      %v1309 = vadd.f32 %v959, %v1235
      %v1310 = vadd.f32 %v964, %v1240
      %v1311 = vadd.f32 %v967, %v1243
      %v1312 = vadd.f32 %v972, %v1248
      %v1313 = vadd.f32 %v975, %v1251
      %v1314 = vadd.f32 %v980, %v1256
      %v1315 = vadd.f32 %v983, %v1259
      %v1316 = vadd.f32 %v988, %v1264
      %v1317 = vadd.f32 %v991, %v1267
      %v1318 = vadd.f32 %v996, %v1272
      %v1319 = vadd.f32 %v999, %v1275
      %v1320 = vadd.f32 %v1004, %v1280
      %v1321 = vadd.f32 %v1007, %v1283
      %v1322 = vld [vmem:[%s273 + $0x8] sm:$0xe]
      %v1323 = vld [vmem:[%s273 + $0xc] sm:$0xf]
      %v1324 = vld [vmem:[%s273 + $0x10] sm:$0xf]
      %v1325 = vld [vmem:[%s273 + $0x14] sm:$0xf]
      %v1326 = vld [vmem:[%s273 + $0x18] sm:$0xf]
      %v1327 = vld [vmem:[%s273 + $0x1c] sm:$0xf]
      %v1328 = vld [vmem:[%s273 + $0x20] sm:$0xf]
      %v1329 = vld [vmem:[%s273 + $0x24] sm:$0xf]
      %v1330 = vld [vmem:[%s273 + $0x28] sm:$0xf]
      %v1331 = vld [vmem:[%s273 + $0x2c] sm:$0xf]
      %v1332 = vld [vmem:[%s273 + $0x30] sm:$0xf]
      %v1333 = vld [vmem:[%s273 + $0x34] sm:$0xf]
      %v1334 = vld [vmem:[%s273 + $0x38] sm:$0xf]
      %v1335 = vld [vmem:[%s273 + $0x3c] sm:$0xf]
      %v1336 = vld [vmem:[%s273 + $0x40] sm:$0xf]
      %v1337 = vld [vmem:[%s273 + $0x44] sm:$0xf]
      %v1338 = vld [vmem:[%s273 + $0x48] sm:$0xf]
      %v1339 = vld [vmem:[%s273 + $0x4c] sm:$0xf]
      %v1340 = vld [vmem:[%s273 + $0x50] sm:$0xf]
      %v1341 = vld [vmem:[%s273 + $0x54] sm:$0xf]
      %v1342 = vld [vmem:[%s273 + $0x58] sm:$0xf]
      %v1343 = vld [vmem:[%s273 + $0x5c] sm:$0xf]
      %v1344 = vld [vmem:[%s273 + $0x60] sm:$0xf]
      %v1345 = vld [vmem:[%s273 + $0x64] sm:$0xf]
      %v1346 = vld [vmem:[%s273 + $0x68] sm:$0xf]
      %v1347 = vld [vmem:[%s273 + $0x6c] sm:$0xf]
      %v1348 = vld [vmem:[%s273 + $0x70] sm:$0xf]
      %v1349 = vld [vmem:[%s273 + $0x74] sm:$0xf]
      %v1350 = vld [vmem:[%s273 + $0x78] sm:$0xf]
      %v1351 = vld [vmem:[%s273 + $0x7c] sm:$0xf]
      %v1352 = vld [vmem:[%s273 + $0x80] sm:$0xf]
      %v1353 = vld [vmem:[%s273 + $0x84] sm:$0xf]
      %v1354 = vld [vmem:[%s273 + $0x88] sm:$0xf]
      %v1355 = vld [vmem:[%s273 + $0x8c] sm:$0xf]
      %v1356 = vld [vmem:[%s273 + $0x90] sm:$0xf]
      %v1357 = vld [vmem:[%s273 + $0x94] sm:$0xf]
      %s1358 = scalar_lea.vmem %s2, 6
      %v1359 = vld [vmem:[%s1358] sm:$0x3]
      %v1396 = vunpack.c.l.b16 %v1322
      %v1397 = vunpack.c.l.b16 %v1323
      %v1398 = vunpack.c.l.b16 %v1324
      %v1399 = vunpack.c.l.b16 %v1325
      %v1400 = vunpack.c.l.b16 %v1326
      %v1401 = vunpack.c.l.b16 %v1327
      %v1402 = vunpack.c.l.b16 %v1328
      %v1403 = vunpack.c.l.b16 %v1329
      %v1404 = vunpack.c.l.b16 %v1330
      %v1405 = vunpack.c.l.b16 %v1331
      %v1406 = vunpack.c.l.b16 %v1332
      %v1407 = vunpack.c.l.b16 %v1333
      %v1408 = vunpack.c.l.b16 %v1334
      %v1409 = vunpack.c.l.b16 %v1335
      %v1410 = vunpack.c.l.b16 %v1336
      %v1411 = vunpack.c.l.b16 %v1337
      %v1412 = vunpack.c.l.b16 %v1338
      %v1413 = vunpack.c.l.b16 %v1339
      %v1414 = vunpack.c.l.b16 %v1340
      %v1415 = vunpack.c.l.b16 %v1341
      %v1416 = vunpack.c.l.b16 %v1342
      %v1417 = vunpack.c.l.b16 %v1343
      %v1418 = vunpack.c.l.b16 %v1344
      %v1419 = vunpack.c.l.b16 %v1345
      %v1420 = vunpack.c.l.b16 %v1346
      %v1421 = vunpack.c.l.b16 %v1347
      %v1422 = vunpack.c.l.b16 %v1348
      %v1423 = vunpack.c.l.b16 %v1349
      %v1424 = vunpack.c.l.b16 %v1350
      %v1425 = vunpack.c.l.b16 %v1351
      %v1426 = vunpack.c.l.b16 %v1352
      %v1427 = vunpack.c.l.b16 %v1353
      %v1428 = vunpack.c.l.b16 %v1354
      %v1429 = vunpack.c.l.b16 %v1355
      %v1430 = vunpack.c.l.b16 %v1356
      %v1431 = vunpack.c.l.b16 %v1357
      %v1432 = vpack.c.b16 %v1397, %v1396
      %v1433 = vpack.c.b16 %v1399, %v1398
      %v1434 = vpack.c.b16 %v1401, %v1400
      %v1435 = vpack.c.b16 %v1403, %v1402
      %v1436 = vpack.c.b16 %v1405, %v1404
      %v1437 = vpack.c.b16 %v1407, %v1406
      %v1438 = vpack.c.b16 %v1409, %v1408
      %v1439 = vpack.c.b16 %v1411, %v1410
      %v1440 = vpack.c.b16 %v1413, %v1412
      %v1441 = vpack.c.b16 %v1415, %v1414
      %v1442 = vpack.c.b16 %v1417, %v1416
      %v1443 = vpack.c.b16 %v1419, %v1418
      %v1444 = vpack.c.b16 %v1421, %v1420
      %v1445 = vpack.c.b16 %v1423, %v1422
      %v1446 = vpack.c.b16 %v1425, %v1424
      %v1447 = vpack.c.b16 %v1427, %v1426
      %v1448 = vpack.c.b16 %v1429, %v1428
      %v1449 = vpack.c.b16 %v1431, %v1430
      %v1450 = vrot.slane %v1432, 1
      %v1451 = vrot.slane %v1433, 1
      %v1452 = vsel %vm1016, %v1450, %v1451
      %v1453 = vrot.slane %v1434, 1
      %v1454 = vsel %vm1016, %v1451, %v1453
      %v1455 = vrot.slane %v1435, 1
      %v1456 = vsel %vm1016, %v1453, %v1455
      %v1457 = vrot.slane %v1436, 1
      %v1458 = vsel %vm1016, %v1455, %v1457
      %v1459 = vrot.slane %v1437, 1
      %v1460 = vsel %vm1016, %v1457, %v1459
      %v1461 = vrot.slane %v1438, 1
      %v1462 = vsel %vm1016, %v1459, %v1461
      %v1463 = vrot.slane %v1439, 1
      %v1464 = vsel %vm1016, %v1461, %v1463
      %v1465 = vrot.slane %v1440, 1
      %v1466 = vsel %vm1016, %v1463, %v1465
      %v1467 = vrot.slane %v1441, 1
      %v1468 = vsel %vm1016, %v1465, %v1467
      %v1469 = vrot.slane %v1442, 1
      %v1470 = vsel %vm1016, %v1467, %v1469
      %v1471 = vrot.slane %v1443, 1
      %v1472 = vsel %vm1016, %v1469, %v1471
      %v1473 = vrot.slane %v1444, 1
      %v1474 = vsel %vm1016, %v1471, %v1473
      %v1475 = vrot.slane %v1445, 1
      %v1476 = vsel %vm1016, %v1473, %v1475
      %v1477 = vrot.slane %v1446, 1
      %v1478 = vsel %vm1016, %v1475, %v1477
      %v1479 = vrot.slane %v1447, 1
      %v1480 = vsel %vm1016, %v1477, %v1479
      %v1481 = vrot.slane %v1448, 1
      %v1482 = vsel %vm1016, %v1479, %v1481
      %v1483 = vrot.slane %v1449, 1
      %v1484 = vsel %vm1016, %v1481, %v1483
      %v1486 = vsel %vm554, %v1452, 0
      %v1489 = vsel %vm554, %v1454, 0
      %v1492 = vsel %vm554, %v1456, 0
      %v1495 = vsel %vm554, %v1458, 0
      %v1498 = vsel %vm554, %v1460, 0
      %v1501 = vsel %vm554, %v1462, 0
      %v1504 = vsel %vm554, %v1464, 0
      %v1507 = vsel %vm554, %v1466, 0
      %v1510 = vsel %vm554, %v1468, 0
      %v1513 = vsel %vm554, %v1470, 0
      %v1516 = vsel %vm554, %v1472, 0
      %v1519 = vsel %vm554, %v1474, 0
      %v1522 = vsel %vm554, %v1476, 0
      %v1525 = vsel %vm554, %v1478, 0
      %v1528 = vsel %vm554, %v1480, 0
      %v1531 = vsel %vm554, %v1482, 0
      %v1534 = vsel %vm554, %v1484, 0
      %v1537 = vsel %vm554, %v1483, 0
      %v1540 = vsel %vm609, %v1359, 0
      %1542 = vmatprep.subr.bf16.mxu0 0
      %1543 = vmatpush1.bf16.msra.mxu0 %v1540
      %1544 = vmatprep.subr.bf16.mxu0 0
      %1545 = vmatpush1.bf16.msra.mxu0 0
      %1546 = vmatprep.subr.bf16.mxu0 0
      %1547 = vmatpush1.bf16.msra.mxu0 0
      %1548 = vmatprep.subr.bf16.mxu0 0
      %1549 = vmatpush1.bf16.msra.mxu0 0
      %1550 = vmatprep.subr.bf16.mxu0 0
      %1551 = vmatpush1.bf16.msra.mxu0 0
      %1552 = vmatprep.subr.bf16.mxu0 0
      %1553 = vmatpush1.bf16.msra.mxu0 0
      %1554 = vmatprep.subr.bf16.mxu0 0
      %1555 = vmatpush1.bf16.msra.mxu0 0
      %1556 = vmatprep.subr.bf16.mxu0 0
      %1557 = vmatpush1.bf16.msra.mxu0 0
      %1558 = vmatprep.subr.bf16.mxu0 0
      %1559 = vmatpush1.bf16.msra.mxu0 0
      %1560 = vmatprep.subr.bf16.mxu0 0
      %1561 = vmatpush1.bf16.msra.mxu0 0
      %1562 = vmatprep.subr.bf16.mxu0 0
      %1563 = vmatpush1.bf16.msra.mxu0 0
      %1564 = vmatprep.subr.bf16.mxu0 0
      %1565 = vmatpush1.bf16.msra.mxu0 0
      %1566 = vmatprep.subr.bf16.mxu0 0
      %1567 = vmatpush1.bf16.msra.mxu0 0
      %1568 = vmatprep.subr.bf16.mxu0 0
      %1569 = vmatpush1.bf16.msra.mxu0 0
      %1570 = vmatprep.subr.bf16.mxu0 0
      %1571 = vmatpush1.bf16.msra.mxu0 0
      %1572 = vmatprep.subr.bf16.mxu0 0
      %1573 = vmatpush1.bf16.msra.mxu0 0
      %1574 = vmatprep.mubr.bf16.mxu0 0
      %1575 = vmatmul.mubr.bf16.gmra.mrb[0].mxu0 %v1486
      %v1576 = vpop.f32.mrb[0].mxu0
      %v1577 = vadd.f32 0.0, %v1576
      %v1578 = vpop.f32.mrb[0].mxu0
      %v1579 = vpop.f32.mrb[0].mxu0
      %v1580 = vadd.f32 0.0, %v1579
      %v1581 = vpop.f32.mrb[0].mxu0
      %1582 = vmatprep.mubr.bf16.mxu0 0
      %1583 = vmatmul.mubr.bf16.gmra.mrb[0].mxu0 %v1489
      %v1584 = vpop.f32.mrb[0].mxu0
      %v1585 = vadd.f32 0.0, %v1584
      %v1586 = vpop.f32.mrb[0].mxu0
      %v1587 = vpop.f32.mrb[0].mxu0
      %v1588 = vadd.f32 0.0, %v1587
      %v1589 = vpop.f32.mrb[0].mxu0
      %1590 = vmatprep.mubr.bf16.mxu0 0
      %1591 = vmatmul.mubr.bf16.gmra.mrb[0].mxu0 %v1492
      %v1592 = vpop.f32.mrb[0].mxu0
      %v1593 = vadd.f32 0.0, %v1592
      %v1594 = vpop.f32.mrb[0].mxu0
      %v1595 = vpop.f32.mrb[0].mxu0
      %v1596 = vadd.f32 0.0, %v1595
      %v1597 = vpop.f32.mrb[0].mxu0
      %1598 = vmatprep.mubr.bf16.mxu0 0
      %1599 = vmatmul.mubr.bf16.gmra.mrb[0].mxu0 %v1495
      %v1600 = vpop.f32.mrb[0].mxu0
      %v1601 = vadd.f32 0.0, %v1600
      %v1602 = vpop.f32.mrb[0].mxu0
      %v1603 = vpop.f32.mrb[0].mxu0
      %v1604 = vadd.f32 0.0, %v1603
      %v1605 = vpop.f32.mrb[0].mxu0
      %1606 = vmatprep.mubr.bf16.mxu0 0
      %1607 = vmatmul.mubr.bf16.gmra.mrb[0].mxu0 %v1498
      %v1608 = vpop.f32.mrb[0].mxu0
      %v1609 = vadd.f32 0.0, %v1608
      %v1610 = vpop.f32.mrb[0].mxu0
      %v1611 = vpop.f32.mrb[0].mxu0
      %v1612 = vadd.f32 0.0, %v1611
      %v1613 = vpop.f32.mrb[0].mxu0
      %1614 = vmatprep.mubr.bf16.mxu0 0
      %1615 = vmatmul.mubr.bf16.gmra.mrb[0].mxu0 %v1501
      %v1616 = vpop.f32.mrb[0].mxu0
      %v1617 = vadd.f32 0.0, %v1616
      %v1618 = vpop.f32.mrb[0].mxu0
      %v1619 = vpop.f32.mrb[0].mxu0
      %v1620 = vadd.f32 0.0, %v1619
      %v1621 = vpop.f32.mrb[0].mxu0
      %1622 = vmatprep.mubr.bf16.mxu0 0
      %1623 = vmatmul.mubr.bf16.gmra.mrb[0].mxu0 %v1504
      %v1624 = vpop.f32.mrb[0].mxu0
      %v1625 = vadd.f32 0.0, %v1624
      %v1626 = vpop.f32.mrb[0].mxu0
      %v1627 = vpop.f32.mrb[0].mxu0
      %v1628 = vadd.f32 0.0, %v1627
      %v1629 = vpop.f32.mrb[0].mxu0
      %1630 = vmatprep.mubr.bf16.mxu0 0
      %1631 = vmatmul.mubr.bf16.gmra.mrb[0].mxu0 %v1507
      %v1632 = vpop.f32.mrb[0].mxu0
      %v1633 = vadd.f32 0.0, %v1632
      %v1634 = vpop.f32.mrb[0].mxu0
      %v1635 = vpop.f32.mrb[0].mxu0
      %v1636 = vadd.f32 0.0, %v1635
      %v1637 = vpop.f32.mrb[0].mxu0
      %1638 = vmatprep.mubr.bf16.mxu0 0
      %1639 = vmatmul.mubr.bf16.gmra.mrb[0].mxu0 %v1510
      %v1640 = vpop.f32.mrb[0].mxu0
      %v1641 = vadd.f32 0.0, %v1640
      %v1642 = vpop.f32.mrb[0].mxu0
      %v1643 = vpop.f32.mrb[0].mxu0
      %v1644 = vadd.f32 0.0, %v1643
      %v1645 = vpop.f32.mrb[0].mxu0
      %1646 = vmatprep.mubr.bf16.mxu0 0
      %1647 = vmatmul.mubr.bf16.gmra.mrb[0].mxu0 %v1513
      %v1648 = vpop.f32.mrb[0].mxu0
      %v1649 = vadd.f32 0.0, %v1648
      %v1650 = vpop.f32.mrb[0].mxu0
      %v1651 = vpop.f32.mrb[0].mxu0
      %v1652 = vadd.f32 0.0, %v1651
      %v1653 = vpop.f32.mrb[0].mxu0
      %1654 = vmatprep.mubr.bf16.mxu0 0
      %1655 = vmatmul.mubr.bf16.gmra.mrb[0].mxu0 %v1516
      %v1656 = vpop.f32.mrb[0].mxu0
      %v1657 = vadd.f32 0.0, %v1656
      %v1658 = vpop.f32.mrb[0].mxu0
      %v1659 = vpop.f32.mrb[0].mxu0
      %v1660 = vadd.f32 0.0, %v1659
      %v1661 = vpop.f32.mrb[0].mxu0
      %1662 = vmatprep.mubr.bf16.mxu0 0
      %1663 = vmatmul.mubr.bf16.gmra.mrb[0].mxu0 %v1519
      %v1664 = vpop.f32.mrb[0].mxu0
      %v1665 = vadd.f32 0.0, %v1664
      %v1666 = vpop.f32.mrb[0].mxu0
      %v1667 = vpop.f32.mrb[0].mxu0
      %v1668 = vadd.f32 0.0, %v1667
      %v1669 = vpop.f32.mrb[0].mxu0
      %1670 = vmatprep.mubr.bf16.mxu0 0
      %1671 = vmatmul.mubr.bf16.gmra.mrb[0].mxu0 %v1522
      %v1672 = vpop.f32.mrb[0].mxu0
      %v1673 = vadd.f32 0.0, %v1672
      %v1674 = vpop.f32.mrb[0].mxu0
      %v1675 = vpop.f32.mrb[0].mxu0
      %v1676 = vadd.f32 0.0, %v1675
      %v1677 = vpop.f32.mrb[0].mxu0
      %1678 = vmatprep.mubr.bf16.mxu0 0
      %1679 = vmatmul.mubr.bf16.gmra.mrb[0].mxu0 %v1525
      %v1680 = vpop.f32.mrb[0].mxu0
      %v1681 = vadd.f32 0.0, %v1680
      %v1682 = vpop.f32.mrb[0].mxu0
      %v1683 = vpop.f32.mrb[0].mxu0
      %v1684 = vadd.f32 0.0, %v1683
      %v1685 = vpop.f32.mrb[0].mxu0
      %1686 = vmatprep.mubr.bf16.mxu0 0
      %1687 = vmatmul.mubr.bf16.gmra.mrb[0].mxu0 %v1528
      %v1688 = vpop.f32.mrb[0].mxu0
      %v1689 = vadd.f32 0.0, %v1688
      %v1690 = vpop.f32.mrb[0].mxu0
      %v1691 = vpop.f32.mrb[0].mxu0
      %v1692 = vadd.f32 0.0, %v1691
      %v1693 = vpop.f32.mrb[0].mxu0
      %1694 = vmatprep.mubr.bf16.mxu0 0
      %1695 = vmatmul.mubr.bf16.gmra.mrb[0].mxu0 %v1531
      %v1696 = vpop.f32.mrb[0].mxu0
      %v1697 = vadd.f32 0.0, %v1696
      %v1698 = vpop.f32.mrb[0].mxu0
      %v1699 = vpop.f32.mrb[0].mxu0
      %v1700 = vadd.f32 0.0, %v1699
      %v1701 = vpop.f32.mrb[0].mxu0
      %1702 = vmatprep.mubr.bf16.mxu0 0
      %1703 = vmatmul.mubr.bf16.gmra.mrb[0].mxu0 %v1534
      %v1704 = vpop.f32.mrb[0].mxu0
      %v1705 = vadd.f32 0.0, %v1704
      %v1706 = vpop.f32.mrb[0].mxu0
      %v1707 = vpop.f32.mrb[0].mxu0
      %v1708 = vadd.f32 0.0, %v1707
      %v1709 = vpop.f32.mrb[0].mxu0
      %1710 = vmatprep.mubr.bf16.mxu0 0
      %1711 = vmatmul.mubr.bf16.gmra.mrb[0].mxu0 %v1537
      %v1712 = vpop.f32.mrb[0].mxu0
      %v1713 = vadd.f32 0.0, %v1712
      %v1714 = vpop.f32.mrb[0].mxu0
      %v1715 = vpop.f32.mrb[0].mxu0
      %v1716 = vadd.f32 0.0, %v1715
      %v1717 = vpop.f32.mrb[0].mxu0
      %1718 = vdwg.mxu0
      %v1719 = vadd.f32 %v1286, %v1577
      %v1720 = vadd.f32 %v1287, %v1580
      %v1721 = vadd.f32 %v1288, %v1585
      %v1722 = vadd.f32 %v1289, %v1588
      %v1723 = vadd.f32 %v1290, %v1593
      %v1724 = vadd.f32 %v1291, %v1596
      %v1725 = vadd.f32 %v1292, %v1601
      %v1726 = vadd.f32 %v1293, %v1604
      %v1727 = vadd.f32 %v1294, %v1609
      %v1728 = vadd.f32 %v1295, %v1612
      %v1729 = vadd.f32 %v1296, %v1617
      %v1730 = vadd.f32 %v1297, %v1620
      %v1731 = vadd.f32 %v1298, %v1625
      %v1732 = vadd.f32 %v1299, %v1628
      %v1733 = vadd.f32 %v1300, %v1633
      %v1734 = vadd.f32 %v1301, %v1636
      %v1735 = vadd.f32 %v1302, %v1641
      %v1736 = vadd.f32 %v1303, %v1644
      %v1737 = vadd.f32 %v1304, %v1649
      %v1738 = vadd.f32 %v1305, %v1652
      %v1739 = vadd.f32 %v1306, %v1657
      %v1740 = vadd.f32 %v1307, %v1660
      %v1741 = vadd.f32 %v1308, %v1665
      %v1742 = vadd.f32 %v1309, %v1668
      %v1743 = vadd.f32 %v1310, %v1673
      %v1744 = vadd.f32 %v1311, %v1676
      %v1745 = vadd.f32 %v1312, %v1681
      %v1746 = vadd.f32 %v1313, %v1684
      %v1747 = vadd.f32 %v1314, %v1689
      %v1748 = vadd.f32 %v1315, %v1692
      %v1749 = vadd.f32 %v1316, %v1697
      %v1750 = vadd.f32 %v1317, %v1700
      %v1751 = vadd.f32 %v1318, %v1705
      %v1752 = vadd.f32 %v1319, %v1708
      %v1753 = vadd.f32 %v1320, %v1713
      %v1754 = vadd.f32 %v1321, %v1716
      %v1755 = vld [vmem:[%s273 + $0x8] sm:$0xe]
      %v1756 = vld [vmem:[%s273 + $0xc] sm:$0xf]
      %v1757 = vld [vmem:[%s273 + $0x10] sm:$0xf]
      %v1758 = vld [vmem:[%s273 + $0x14] sm:$0xf]
      %v1759 = vld [vmem:[%s273 + $0x18] sm:$0xf]
      %v1760 = vld [vmem:[%s273 + $0x1c] sm:$0xf]
      %v1761 = vld [vmem:[%s273 + $0x20] sm:$0xf]
      %v1762 = vld [vmem:[%s273 + $0x24] sm:$0xf]
      %v1763 = vld [vmem:[%s273 + $0x28] sm:$0xf]
      %v1764 = vld [vmem:[%s273 + $0x2c] sm:$0xf]
      %v1765 = vld [vmem:[%s273 + $0x30] sm:$0xf]
      %v1766 = vld [vmem:[%s273 + $0x34] sm:$0xf]
      %v1767 = vld [vmem:[%s273 + $0x38] sm:$0xf]
      %v1768 = vld [vmem:[%s273 + $0x3c] sm:$0xf]
      %v1769 = vld [vmem:[%s273 + $0x40] sm:$0xf]
      %v1770 = vld [vmem:[%s273 + $0x44] sm:$0xf]
      %v1771 = vld [vmem:[%s273 + $0x48] sm:$0xf]
      %v1772 = vld [vmem:[%s273 + $0x4c] sm:$0xf]
      %v1773 = vld [vmem:[%s273 + $0x50] sm:$0xf]
      %v1774 = vld [vmem:[%s273 + $0x54] sm:$0xf]
      %v1775 = vld [vmem:[%s273 + $0x58] sm:$0xf]
      %v1776 = vld [vmem:[%s273 + $0x5c] sm:$0xf]
      %v1777 = vld [vmem:[%s273 + $0x60] sm:$0xf]
      %v1778 = vld [vmem:[%s273 + $0x64] sm:$0xf]
      %v1779 = vld [vmem:[%s273 + $0x68] sm:$0xf]
      %v1780 = vld [vmem:[%s273 + $0x6c] sm:$0xf]
      %v1781 = vld [vmem:[%s273 + $0x70] sm:$0xf]
      %v1782 = vld [vmem:[%s273 + $0x74] sm:$0xf]
      %v1783 = vld [vmem:[%s273 + $0x78] sm:$0xf]
      %v1784 = vld [vmem:[%s273 + $0x7c] sm:$0xf]
      %v1785 = vld [vmem:[%s273 + $0x80] sm:$0xf]
      %v1786 = vld [vmem:[%s273 + $0x84] sm:$0xf]
      %v1787 = vld [vmem:[%s273 + $0x88] sm:$0xf]
      %v1788 = vld [vmem:[%s273 + $0x8c] sm:$0xf]
      %v1789 = vld [vmem:[%s273 + $0x90] sm:$0xf]
      %v1790 = vld [vmem:[%s273 + $0x94] sm:$0xf]
      %v1791 = vld [vmem:[%s273 + $0x98] sm:$0x1]
      %s1792 = scalar_lea.vmem %s2, 8
      %v1793 = vld [vmem:[%s1792] sm:$0x3]
      %v1831 = vunpack.c.l.b16 %v1755
      %v1832 = vunpack.c.l.b16 %v1756
      %v1833 = vunpack.c.l.b16 %v1757
      %v1834 = vunpack.c.l.b16 %v1758
      %v1835 = vunpack.c.l.b16 %v1759
      %v1836 = vunpack.c.l.b16 %v1760
      %v1837 = vunpack.c.l.b16 %v1761
      %v1838 = vunpack.c.l.b16 %v1762
      %v1839 = vunpack.c.l.b16 %v1763
      %v1840 = vunpack.c.l.b16 %v1764
      %v1841 = vunpack.c.l.b16 %v1765
      %v1842 = vunpack.c.l.b16 %v1766
      %v1843 = vunpack.c.l.b16 %v1767
      %v1844 = vunpack.c.l.b16 %v1768
      %v1845 = vunpack.c.l.b16 %v1769
      %v1846 = vunpack.c.l.b16 %v1770
      %v1847 = vunpack.c.l.b16 %v1771
      %v1848 = vunpack.c.l.b16 %v1772
      %v1849 = vunpack.c.l.b16 %v1773
      %v1850 = vunpack.c.l.b16 %v1774
      %v1851 = vunpack.c.l.b16 %v1775
      %v1852 = vunpack.c.l.b16 %v1776
      %v1853 = vunpack.c.l.b16 %v1777
      %v1854 = vunpack.c.l.b16 %v1778
      %v1855 = vunpack.c.l.b16 %v1779
      %v1856 = vunpack.c.l.b16 %v1780
      %v1857 = vunpack.c.l.b16 %v1781
      %v1858 = vunpack.c.l.b16 %v1782
      %v1859 = vunpack.c.l.b16 %v1783
      %v1860 = vunpack.c.l.b16 %v1784
      %v1861 = vunpack.c.l.b16 %v1785
      %v1862 = vunpack.c.l.b16 %v1786
      %v1863 = vunpack.c.l.b16 %v1787
      %v1864 = vunpack.c.l.b16 %v1788
      %v1865 = vunpack.c.l.b16 %v1789
      %v1866 = vunpack.c.l.b16 %v1790
      %v1867 = vunpack.c.l.b16 %v1791
      %v1868 = vpack.c.b16 %v1832, %v1831
      %v1869 = vpack.c.b16 %v1834, %v1833
      %v1870 = vpack.c.b16 %v1836, %v1835
      %v1871 = vpack.c.b16 %v1838, %v1837
      %v1872 = vpack.c.b16 %v1840, %v1839
      %v1873 = vpack.c.b16 %v1842, %v1841
      %v1874 = vpack.c.b16 %v1844, %v1843
      %v1875 = vpack.c.b16 %v1846, %v1845
      %v1876 = vpack.c.b16 %v1848, %v1847
      %v1877 = vpack.c.b16 %v1850, %v1849
      %v1878 = vpack.c.b16 %v1852, %v1851
      %v1879 = vpack.c.b16 %v1854, %v1853
      %v1880 = vpack.c.b16 %v1856, %v1855
      %v1881 = vpack.c.b16 %v1858, %v1857
      %v1882 = vpack.c.b16 %v1860, %v1859
      %v1883 = vpack.c.b16 %v1862, %v1861
      %v1884 = vpack.c.b16 %v1864, %v1863
      %v1885 = vpack.c.b16 %v1866, %v1865
      %v1886 = vpack.c.b16 %v1867, %v1867
      %vm1887 = vsmask.f32 6400
      %v1889 = vshrl.u32 %v1868, 16
      %v1891 = vrot.slane %v1889, 1
      %v1892 = vshll.u32 %v1868, 16
      %v1894 = vrot.slane %v1892, 2
      %v1895 = vor.u32 %v1891, %v1894
      %v1897 = vshrl.u32 %v1869, 16
      %v1899 = vrot.slane %v1897, 1
      %v1900 = vshll.u32 %v1869, 16
      %v1902 = vrot.slane %v1900, 2
      %v1903 = vor.u32 %v1899, %v1902
      %v1904 = vsel %vm1887, %v1895, %v1903
      %v1906 = vshrl.u32 %v1870, 16
      %v1908 = vrot.slane %v1906, 1
      %v1909 = vshll.u32 %v1870, 16
      %v1911 = vrot.slane %v1909, 2
      %v1912 = vor.u32 %v1908, %v1911
      %v1913 = vsel %vm1887, %v1903, %v1912
      %v1915 = vshrl.u32 %v1871, 16
      %v1917 = vrot.slane %v1915, 1
      %v1918 = vshll.u32 %v1871, 16
      %v1920 = vrot.slane %v1918, 2
      %v1921 = vor.u32 %v1917, %v1920
      %v1922 = vsel %vm1887, %v1912, %v1921
      %v1924 = vshrl.u32 %v1872, 16
      %v1926 = vrot.slane %v1924, 1
      %v1927 = vshll.u32 %v1872, 16
      %v1929 = vrot.slane %v1927, 2
      %v1930 = vor.u32 %v1926, %v1929
      %v1931 = vsel %vm1887, %v1921, %v1930
      %v1933 = vshrl.u32 %v1873, 16
      %v1935 = vrot.slane %v1933, 1
      %v1936 = vshll.u32 %v1873, 16
      %v1938 = vrot.slane %v1936, 2
      %v1939 = vor.u32 %v1935, %v1938
      %v1940 = vsel %vm1887, %v1930, %v1939
      %v1942 = vshrl.u32 %v1874, 16
      %v1944 = vrot.slane %v1942, 1
      %v1945 = vshll.u32 %v1874, 16
      %v1947 = vrot.slane %v1945, 2
      %v1948 = vor.u32 %v1944, %v1947
      %v1949 = vsel %vm1887, %v1939, %v1948
      %v1951 = vshrl.u32 %v1875, 16
      %v1953 = vrot.slane %v1951, 1
      %v1954 = vshll.u32 %v1875, 16
      %v1956 = vrot.slane %v1954, 2
      %v1957 = vor.u32 %v1953, %v1956
      %v1958 = vsel %vm1887, %v1948, %v1957
      %v1960 = vshrl.u32 %v1876, 16
      %v1962 = vrot.slane %v1960, 1
      %v1963 = vshll.u32 %v1876, 16
      %v1965 = vrot.slane %v1963, 2
      %v1966 = vor.u32 %v1962, %v1965
      %v1967 = vsel %vm1887, %v1957, %v1966
      %v1969 = vshrl.u32 %v1877, 16
      %v1971 = vrot.slane %v1969, 1
      %v1972 = vshll.u32 %v1877, 16
      %v1974 = vrot.slane %v1972, 2
      %v1975 = vor.u32 %v1971, %v1974
      %v1976 = vsel %vm1887, %v1966, %v1975
      %v1978 = vshrl.u32 %v1878, 16
      %v1980 = vrot.slane %v1978, 1
      %v1981 = vshll.u32 %v1878, 16
      %v1983 = vrot.slane %v1981, 2
      %v1984 = vor.u32 %v1980, %v1983
      %v1985 = vsel %vm1887, %v1975, %v1984
      %v1987 = vshrl.u32 %v1879, 16
      %v1989 = vrot.slane %v1987, 1
      %v1990 = vshll.u32 %v1879, 16
      %v1992 = vrot.slane %v1990, 2
      %v1993 = vor.u32 %v1989, %v1992
      %v1994 = vsel %vm1887, %v1984, %v1993
      %v1996 = vshrl.u32 %v1880, 16
      %v1998 = vrot.slane %v1996, 1
      %v1999 = vshll.u32 %v1880, 16
      %v2001 = vrot.slane %v1999, 2
      %v2002 = vor.u32 %v1998, %v2001
      %v2003 = vsel %vm1887, %v1993, %v2002
      %v2005 = vshrl.u32 %v1881, 16
      %v2007 = vrot.slane %v2005, 1
      %v2008 = vshll.u32 %v1881, 16
      %v2010 = vrot.slane %v2008, 2
      %v2011 = vor.u32 %v2007, %v2010
      %v2012 = vsel %vm1887, %v2002, %v2011
      %v2014 = vshrl.u32 %v1882, 16
      %v2016 = vrot.slane %v2014, 1
      %v2017 = vshll.u32 %v1882, 16
      %v2019 = vrot.slane %v2017, 2
      %v2020 = vor.u32 %v2016, %v2019
      %v2021 = vsel %vm1887, %v2011, %v2020
      %v2023 = vshrl.u32 %v1883, 16
      %v2025 = vrot.slane %v2023, 1
      %v2026 = vshll.u32 %v1883, 16
      %v2028 = vrot.slane %v2026, 2
      %v2029 = vor.u32 %v2025, %v2028
      %v2030 = vsel %vm1887, %v2020, %v2029
      %v2032 = vshrl.u32 %v1884, 16
      %v2034 = vrot.slane %v2032, 1
      %v2035 = vshll.u32 %v1884, 16
      %v2037 = vrot.slane %v2035, 2
      %v2038 = vor.u32 %v2034, %v2037
      %v2039 = vsel %vm1887, %v2029, %v2038
      %v2041 = vshrl.u32 %v1885, 16
      %v2043 = vrot.slane %v2041, 1
      %v2044 = vshll.u32 %v1885, 16
      %v2046 = vrot.slane %v2044, 2
      %v2047 = vor.u32 %v2043, %v2046
      %v2048 = vsel %vm1887, %v2038, %v2047
      %v2050 = vshll.u32 %v1886, 16
      %v2052 = vrot.slane %v2050, 2
      %v2053 = vsel %vm1887, %v2047, %v2052
      %v2055 = vsel %vm554, %v1904, 0
      %v2058 = vsel %vm554, %v1913, 0
      %v2061 = vsel %vm554, %v1922, 0
      %v2064 = vsel %vm554, %v1931, 0
      %v2067 = vsel %vm554, %v1940, 0
      %v2070 = vsel %vm554, %v1949, 0
      %v2073 = vsel %vm554, %v1958, 0
      %v2076 = vsel %vm554, %v1967, 0
      %v2079 = vsel %vm554, %v1976, 0
      %v2082 = vsel %vm554, %v1985, 0
      %v2085 = vsel %vm554, %v1994, 0
      %v2088 = vsel %vm554, %v2003, 0
      %v2091 = vsel %vm554, %v2012, 0
      %v2094 = vsel %vm554, %v2021, 0
      %v2097 = vsel %vm554, %v2030, 0
      %v2100 = vsel %vm554, %v2039, 0
      %v2103 = vsel %vm554, %v2048, 0
      %v2106 = vsel %vm554, %v2053, 0
      %v2109 = vsel %vm609, %v1793, 0
      %2111 = vmatprep.subr.bf16.mxu0 0
      %2112 = vmatpush1.bf16.msra.mxu0 %v2109
      %2113 = vmatprep.subr.bf16.mxu0 0
      %2114 = vmatpush1.bf16.msra.mxu0 0
      %2115 = vmatprep.subr.bf16.mxu0 0
      %2116 = vmatpush1.bf16.msra.mxu0 0
      %2117 = vmatprep.subr.bf16.mxu0 0
      %2118 = vmatpush1.bf16.msra.mxu0 0
      %2119 = vmatprep.subr.bf16.mxu0 0
      %2120 = vmatpush1.bf16.msra.mxu0 0
      %2121 = vmatprep.subr.bf16.mxu0 0
      %2122 = vmatpush1.bf16.msra.mxu0 0
      %2123 = vmatprep.subr.bf16.mxu0 0
      %2124 = vmatpush1.bf16.msra.mxu0 0
      %2125 = vmatprep.subr.bf16.mxu0 0
      %2126 = vmatpush1.bf16.msra.mxu0 0
      %2127 = vmatprep.subr.bf16.mxu0 0
      %2128 = vmatpush1.bf16.msra.mxu0 0
      %2129 = vmatprep.subr.bf16.mxu0 0
      %2130 = vmatpush1.bf16.msra.mxu0 0
      %2131 = vmatprep.subr.bf16.mxu0 0
      %2132 = vmatpush1.bf16.msra.mxu0 0
      %2133 = vmatprep.subr.bf16.mxu0 0
      %2134 = vmatpush1.bf16.msra.mxu0 0
      %2135 = vmatprep.subr.bf16.mxu0 0
      %2136 = vmatpush1.bf16.msra.mxu0 0
      %2137 = vmatprep.subr.bf16.mxu0 0
      %2138 = vmatpush1.bf16.msra.mxu0 0
      %2139 = vmatprep.subr.bf16.mxu0 0
      %2140 = vmatpush1.bf16.msra.mxu0 0
      %2141 = vmatprep.subr.bf16.mxu0 0
      %2142 = vmatpush1.bf16.msra.mxu0 0
      %2143 = vmatprep.mubr.bf16.mxu0 0
      %2144 = vmatmul.mubr.bf16.gmra.mrb[0].mxu0 %v2055
      %v2145 = vpop.f32.mrb[0].mxu0
      %v2146 = vadd.f32 0.0, %v2145
      %v2147 = vpop.f32.mrb[0].mxu0
      %v2148 = vpop.f32.mrb[0].mxu0
      %v2149 = vadd.f32 0.0, %v2148
      %v2150 = vpop.f32.mrb[0].mxu0
      %2151 = vmatprep.mubr.bf16.mxu0 0
      %2152 = vmatmul.mubr.bf16.gmra.mrb[0].mxu0 %v2058
      %v2153 = vpop.f32.mrb[0].mxu0
      %v2154 = vadd.f32 0.0, %v2153
      %v2155 = vpop.f32.mrb[0].mxu0
      %v2156 = vpop.f32.mrb[0].mxu0
      %v2157 = vadd.f32 0.0, %v2156
      %v2158 = vpop.f32.mrb[0].mxu0
      %2159 = vmatprep.mubr.bf16.mxu0 0
      %2160 = vmatmul.mubr.bf16.gmra.mrb[0].mxu0 %v2061
      %v2161 = vpop.f32.mrb[0].mxu0
      %v2162 = vadd.f32 0.0, %v2161
      %v2163 = vpop.f32.mrb[0].mxu0
      %v2164 = vpop.f32.mrb[0].mxu0
      %v2165 = vadd.f32 0.0, %v2164
      %v2166 = vpop.f32.mrb[0].mxu0
      %2167 = vmatprep.mubr.bf16.mxu0 0
      %2168 = vmatmul.mubr.bf16.gmra.mrb[0].mxu0 %v2064
      %v2169 = vpop.f32.mrb[0].mxu0
      %v2170 = vadd.f32 0.0, %v2169
      %v2171 = vpop.f32.mrb[0].mxu0
      %v2172 = vpop.f32.mrb[0].mxu0
      %v2173 = vadd.f32 0.0, %v2172
      %v2174 = vpop.f32.mrb[0].mxu0
      %2175 = vmatprep.mubr.bf16.mxu0 0
      %2176 = vmatmul.mubr.bf16.gmra.mrb[0].mxu0 %v2067
      %v2177 = vpop.f32.mrb[0].mxu0
      %v2178 = vadd.f32 0.0, %v2177
      %v2179 = vpop.f32.mrb[0].mxu0
      %v2180 = vpop.f32.mrb[0].mxu0
      %v2181 = vadd.f32 0.0, %v2180
      %v2182 = vpop.f32.mrb[0].mxu0
      %2183 = vmatprep.mubr.bf16.mxu0 0
      %2184 = vmatmul.mubr.bf16.gmra.mrb[0].mxu0 %v2070
      %v2185 = vpop.f32.mrb[0].mxu0
      %v2186 = vadd.f32 0.0, %v2185
      %v2187 = vpop.f32.mrb[0].mxu0
      %v2188 = vpop.f32.mrb[0].mxu0
      %v2189 = vadd.f32 0.0, %v2188
      %v2190 = vpop.f32.mrb[0].mxu0
      %2191 = vmatprep.mubr.bf16.mxu0 0
      %2192 = vmatmul.mubr.bf16.gmra.mrb[0].mxu0 %v2073
      %v2193 = vpop.f32.mrb[0].mxu0
      %v2194 = vadd.f32 0.0, %v2193
      %v2195 = vpop.f32.mrb[0].mxu0
      %v2196 = vpop.f32.mrb[0].mxu0
      %v2197 = vadd.f32 0.0, %v2196
      %v2198 = vpop.f32.mrb[0].mxu0
      %2199 = vmatprep.mubr.bf16.mxu0 0
      %2200 = vmatmul.mubr.bf16.gmra.mrb[0].mxu0 %v2076
      %v2201 = vpop.f32.mrb[0].mxu0
      %v2202 = vadd.f32 0.0, %v2201
      %v2203 = vpop.f32.mrb[0].mxu0
      %v2204 = vpop.f32.mrb[0].mxu0
      %v2205 = vadd.f32 0.0, %v2204
      %v2206 = vpop.f32.mrb[0].mxu0
      %2207 = vmatprep.mubr.bf16.mxu0 0
      %2208 = vmatmul.mubr.bf16.gmra.mrb[0].mxu0 %v2079
      %v2209 = vpop.f32.mrb[0].mxu0
      %v2210 = vadd.f32 0.0, %v2209
      %v2211 = vpop.f32.mrb[0].mxu0
      %v2212 = vpop.f32.mrb[0].mxu0
      %v2213 = vadd.f32 0.0, %v2212
      %v2214 = vpop.f32.mrb[0].mxu0
      %2215 = vmatprep.mubr.bf16.mxu0 0
      %2216 = vmatmul.mubr.bf16.gmra.mrb[0].mxu0 %v2082
      %v2217 = vpop.f32.mrb[0].mxu0
      %v2218 = vadd.f32 0.0, %v2217
      %v2219 = vpop.f32.mrb[0].mxu0
      %v2220 = vpop.f32.mrb[0].mxu0
      %v2221 = vadd.f32 0.0, %v2220
      %v2222 = vpop.f32.mrb[0].mxu0
      %2223 = vmatprep.mubr.bf16.mxu0 0
      %2224 = vmatmul.mubr.bf16.gmra.mrb[0].mxu0 %v2085
      %v2225 = vpop.f32.mrb[0].mxu0
      %v2226 = vadd.f32 0.0, %v2225
      %v2227 = vpop.f32.mrb[0].mxu0
      %v2228 = vpop.f32.mrb[0].mxu0
      %v2229 = vadd.f32 0.0, %v2228
      %v2230 = vpop.f32.mrb[0].mxu0
      %2231 = vmatprep.mubr.bf16.mxu0 0
      %2232 = vmatmul.mubr.bf16.gmra.mrb[0].mxu0 %v2088
      %v2233 = vpop.f32.mrb[0].mxu0
      %v2234 = vadd.f32 0.0, %v2233
      %v2235 = vpop.f32.mrb[0].mxu0
      %v2236 = vpop.f32.mrb[0].mxu0
      %v2237 = vadd.f32 0.0, %v2236
      %v2238 = vpop.f32.mrb[0].mxu0
      %2239 = vmatprep.mubr.bf16.mxu0 0
      %2240 = vmatmul.mubr.bf16.gmra.mrb[0].mxu0 %v2091
      %v2241 = vpop.f32.mrb[0].mxu0
      %v2242 = vadd.f32 0.0, %v2241
      %v2243 = vpop.f32.mrb[0].mxu0
      %v2244 = vpop.f32.mrb[0].mxu0
      %v2245 = vadd.f32 0.0, %v2244
      %v2246 = vpop.f32.mrb[0].mxu0
      %2247 = vmatprep.mubr.bf16.mxu0 0
      %2248 = vmatmul.mubr.bf16.gmra.mrb[0].mxu0 %v2094
      %v2249 = vpop.f32.mrb[0].mxu0
      %v2250 = vadd.f32 0.0, %v2249
      %v2251 = vpop.f32.mrb[0].mxu0
      %v2252 = vpop.f32.mrb[0].mxu0
      %v2253 = vadd.f32 0.0, %v2252
      %v2254 = vpop.f32.mrb[0].mxu0
      %2255 = vmatprep.mubr.bf16.mxu0 0
      %2256 = vmatmul.mubr.bf16.gmra.mrb[0].mxu0 %v2097
      %v2257 = vpop.f32.mrb[0].mxu0
      %v2258 = vadd.f32 0.0, %v2257
      %v2259 = vpop.f32.mrb[0].mxu0
      %v2260 = vpop.f32.mrb[0].mxu0
      %v2261 = vadd.f32 0.0, %v2260
      %v2262 = vpop.f32.mrb[0].mxu0
      %2263 = vmatprep.mubr.bf16.mxu0 0
      %2264 = vmatmul.mubr.bf16.gmra.mrb[0].mxu0 %v2100
      %v2265 = vpop.f32.mrb[0].mxu0
      %v2266 = vadd.f32 0.0, %v2265
      %v2267 = vpop.f32.mrb[0].mxu0
      %v2268 = vpop.f32.mrb[0].mxu0
      %v2269 = vadd.f32 0.0, %v2268
      %v2270 = vpop.f32.mrb[0].mxu0
      %2271 = vmatprep.mubr.bf16.mxu0 0
      %2272 = vmatmul.mubr.bf16.gmra.mrb[0].mxu0 %v2103
      %v2273 = vpop.f32.mrb[0].mxu0
      %v2274 = vadd.f32 0.0, %v2273
      %v2275 = vpop.f32.mrb[0].mxu0
      %v2276 = vpop.f32.mrb[0].mxu0
      %v2277 = vadd.f32 0.0, %v2276
      %v2278 = vpop.f32.mrb[0].mxu0
      %2279 = vmatprep.mubr.bf16.mxu0 0
      %2280 = vmatmul.mubr.bf16.gmra.mrb[0].mxu0 %v2106
      %v2281 = vpop.f32.mrb[0].mxu0
      %v2282 = vadd.f32 0.0, %v2281
      %v2283 = vpop.f32.mrb[0].mxu0
      %v2284 = vpop.f32.mrb[0].mxu0
      %v2285 = vadd.f32 0.0, %v2284
      %v2286 = vpop.f32.mrb[0].mxu0
      %2287 = vdwg.mxu0
      %v2288 = vadd.f32 %v1719, %v2146
      %v2289 = vadd.f32 %v1720, %v2149
      %v2290 = vadd.f32 %v1721, %v2154
      %v2291 = vadd.f32 %v1722, %v2157
      %v2292 = vadd.f32 %v1723, %v2162
      %v2293 = vadd.f32 %v1724, %v2165
      %v2294 = vadd.f32 %v1725, %v2170
      %v2295 = vadd.f32 %v1726, %v2173
      %v2296 = vadd.f32 %v1727, %v2178
      %v2297 = vadd.f32 %v1728, %v2181
      %v2298 = vadd.f32 %v1729, %v2186
      %v2299 = vadd.f32 %v1730, %v2189
      %v2300 = vadd.f32 %v1731, %v2194
      %v2301 = vadd.f32 %v1732, %v2197
      %v2302 = vadd.f32 %v1733, %v2202
      %v2303 = vadd.f32 %v1734, %v2205
      %v2304 = vadd.f32 %v1735, %v2210
      %v2305 = vadd.f32 %v1736, %v2213
      %v2306 = vadd.f32 %v1737, %v2218
      %v2307 = vadd.f32 %v1738, %v2221
      %v2308 = vadd.f32 %v1739, %v2226
      %v2309 = vadd.f32 %v1740, %v2229
      %v2310 = vadd.f32 %v1741, %v2234
      %v2311 = vadd.f32 %v1742, %v2237
      %v2312 = vadd.f32 %v1743, %v2242
      %v2313 = vadd.f32 %v1744, %v2245
      %v2314 = vadd.f32 %v1745, %v2250
      %v2315 = vadd.f32 %v1746, %v2253
      %v2316 = vadd.f32 %v1747, %v2258
      %v2317 = vadd.f32 %v1748, %v2261
      %v2318 = vadd.f32 %v1749, %v2266
      %v2319 = vadd.f32 %v1750, %v2269
      %v2320 = vadd.f32 %v1751, %v2274
      %v2321 = vadd.f32 %v1752, %v2277
      %v2322 = vadd.f32 %v1753, %v2282
      %v2323 = vadd.f32 %v1754, %v2285
      %v2324 = vld [vmem:[%s273 + $0x8] sm:$0xc]
      %s2325 = scalar_lea.vmem %s2, 10
      %v2326 = vld [vmem:[%s2325] sm:$0x3]
      %v2328 = vunpack.c.l.b16 %v2324
      %v2329 = vpack.c.b16 %v1832, %v2328
      %vm2330 = vcmask 1045504
      %v2331 = vrot.slane %v2329, 2
      %v2332 = vrot.slane %v1869, 2
      %v2333 = vsel %vm2330, %v2331, %v2332
      %v2334 = vrot.slane %v1870, 2
      %v2335 = vsel %vm2330, %v2332, %v2334
      %v2336 = vrot.slane %v1871, 2
      %v2337 = vsel %vm2330, %v2334, %v2336
      %v2338 = vrot.slane %v1872, 2
      %v2339 = vsel %vm2330, %v2336, %v2338
      %v2340 = vrot.slane %v1873, 2
      %v2341 = vsel %vm2330, %v2338, %v2340
      %v2342 = vrot.slane %v1874, 2
      %v2343 = vsel %vm2330, %v2340, %v2342
      %v2344 = vrot.slane %v1875, 2
      %v2345 = vsel %vm2330, %v2342, %v2344
      %v2346 = vrot.slane %v1876, 2
      %v2347 = vsel %vm2330, %v2344, %v2346
      %v2348 = vrot.slane %v1877, 2
      %v2349 = vsel %vm2330, %v2346, %v2348
      %v2350 = vrot.slane %v1878, 2
      %v2351 = vsel %vm2330, %v2348, %v2350
      %v2352 = vrot.slane %v1879, 2
      %v2353 = vsel %vm2330, %v2350, %v2352
      %v2354 = vrot.slane %v1880, 2
      %v2355 = vsel %vm2330, %v2352, %v2354
      %v2356 = vrot.slane %v1881, 2
      %v2357 = vsel %vm2330, %v2354, %v2356
      %v2358 = vrot.slane %v1882, 2
      %v2359 = vsel %vm2330, %v2356, %v2358
      %v2360 = vrot.slane %v1883, 2
      %v2361 = vsel %vm2330, %v2358, %v2360
      %v2362 = vrot.slane %v1884, 2
      %v2363 = vsel %vm2330, %v2360, %v2362
      %v2364 = vrot.slane %v1885, 2
      %v2365 = vsel %vm2330, %v2362, %v2364
      %v2366 = vrot.slane %v1886, 2
      %v2367 = vsel %vm2330, %v2364, %v2366
      %v2369 = vsel %vm554, %v2333, 0
      %v2372 = vsel %vm554, %v2335, 0
      %v2375 = vsel %vm554, %v2337, 0
      %v2378 = vsel %vm554, %v2339, 0
      %v2381 = vsel %vm554, %v2341, 0
      %v2384 = vsel %vm554, %v2343, 0
      %v2387 = vsel %vm554, %v2345, 0
      %v2390 = vsel %vm554, %v2347, 0
      %v2393 = vsel %vm554, %v2349, 0
      %v2396 = vsel %vm554, %v2351, 0
      %v2399 = vsel %vm554, %v2353, 0
      %v2402 = vsel %vm554, %v2355, 0
      %v2405 = vsel %vm554, %v2357, 0
      %v2408 = vsel %vm554, %v2359, 0
      %v2411 = vsel %vm554, %v2361, 0
      %v2414 = vsel %vm554, %v2363, 0
      %v2417 = vsel %vm554, %v2365, 0
      %v2420 = vsel %vm554, %v2367, 0
      %v2423 = vsel %vm609, %v2326, 0
      %2425 = vmatprep.subr.bf16.mxu0 0
      %2426 = vmatpush1.bf16.msra.mxu0 %v2423
      %2427 = vmatprep.subr.bf16.mxu0 0
      %2428 = vmatpush1.bf16.msra.mxu0 0
      %2429 = vmatprep.subr.bf16.mxu0 0
      %2430 = vmatpush1.bf16.msra.mxu0 0
      %2431 = vmatprep.subr.bf16.mxu0 0
      %2432 = vmatpush1.bf16.msra.mxu0 0
      %2433 = vmatprep.subr.bf16.mxu0 0
      %2434 = vmatpush1.bf16.msra.mxu0 0
      %2435 = vmatprep.subr.bf16.mxu0 0
      %2436 = vmatpush1.bf16.msra.mxu0 0
      %2437 = vmatprep.subr.bf16.mxu0 0
      %2438 = vmatpush1.bf16.msra.mxu0 0
      %2439 = vmatprep.subr.bf16.mxu0 0
      %2440 = vmatpush1.bf16.msra.mxu0 0
      %2441 = vmatprep.subr.bf16.mxu0 0
      %2442 = vmatpush1.bf16.msra.mxu0 0
      %2443 = vmatprep.subr.bf16.mxu0 0
      %2444 = vmatpush1.bf16.msra.mxu0 0
      %2445 = vmatprep.subr.bf16.mxu0 0
      %2446 = vmatpush1.bf16.msra.mxu0 0
      %2447 = vmatprep.subr.bf16.mxu0 0
      %2448 = vmatpush1.bf16.msra.mxu0 0
      %2449 = vmatprep.subr.bf16.mxu0 0
      %2450 = vmatpush1.bf16.msra.mxu0 0
      %2451 = vmatprep.subr.bf16.mxu0 0
      %2452 = vmatpush1.bf16.msra.mxu0 0
      %2453 = vmatprep.subr.bf16.mxu0 0
      %2454 = vmatpush1.bf16.msra.mxu0 0
      %2455 = vmatprep.subr.bf16.mxu0 0
      %2456 = vmatpush1.bf16.msra.mxu0 0
      %2457 = vmatprep.mubr.bf16.mxu0 0
      %2458 = vmatmul.mubr.bf16.gmra.mrb[0].mxu0 %v2369
      %v2459 = vpop.f32.mrb[0].mxu0
      %v2460 = vadd.f32 0.0, %v2459
      %v2461 = vpop.f32.mrb[0].mxu0
      %v2462 = vpop.f32.mrb[0].mxu0
      %v2463 = vadd.f32 0.0, %v2462
      %v2464 = vpop.f32.mrb[0].mxu0
      %2465 = vmatprep.mubr.bf16.mxu0 0
      %2466 = vmatmul.mubr.bf16.gmra.mrb[0].mxu0 %v2372
      %v2467 = vpop.f32.mrb[0].mxu0
      %v2468 = vadd.f32 0.0, %v2467
      %v2469 = vpop.f32.mrb[0].mxu0
      %v2470 = vpop.f32.mrb[0].mxu0
      %v2471 = vadd.f32 0.0, %v2470
      %v2472 = vpop.f32.mrb[0].mxu0
      %2473 = vmatprep.mubr.bf16.mxu0 0
      %2474 = vmatmul.mubr.bf16.gmra.mrb[0].mxu0 %v2375
      %v2475 = vpop.f32.mrb[0].mxu0
      %v2476 = vadd.f32 0.0, %v2475
      %v2477 = vpop.f32.mrb[0].mxu0
      %v2478 = vpop.f32.mrb[0].mxu0
      %v2479 = vadd.f32 0.0, %v2478
      %v2480 = vpop.f32.mrb[0].mxu0
      %2481 = vmatprep.mubr.bf16.mxu0 0
      %2482 = vmatmul.mubr.bf16.gmra.mrb[0].mxu0 %v2378
      %v2483 = vpop.f32.mrb[0].mxu0
      %v2484 = vadd.f32 0.0, %v2483
      %v2485 = vpop.f32.mrb[0].mxu0
      %v2486 = vpop.f32.mrb[0].mxu0
      %v2487 = vadd.f32 0.0, %v2486
      %v2488 = vpop.f32.mrb[0].mxu0
      %2489 = vmatprep.mubr.bf16.mxu0 0
      %2490 = vmatmul.mubr.bf16.gmra.mrb[0].mxu0 %v2381
      %v2491 = vpop.f32.mrb[0].mxu0
      %v2492 = vadd.f32 0.0, %v2491
      %v2493 = vpop.f32.mrb[0].mxu0
      %v2494 = vpop.f32.mrb[0].mxu0
      %v2495 = vadd.f32 0.0, %v2494
      %v2496 = vpop.f32.mrb[0].mxu0
      %2497 = vmatprep.mubr.bf16.mxu0 0
      %2498 = vmatmul.mubr.bf16.gmra.mrb[0].mxu0 %v2384
      %v2499 = vpop.f32.mrb[0].mxu0
      %v2500 = vadd.f32 0.0, %v2499
      %v2501 = vpop.f32.mrb[0].mxu0
      %v2502 = vpop.f32.mrb[0].mxu0
      %v2503 = vadd.f32 0.0, %v2502
      %v2504 = vpop.f32.mrb[0].mxu0
      %2505 = vmatprep.mubr.bf16.mxu0 0
      %2506 = vmatmul.mubr.bf16.gmra.mrb[0].mxu0 %v2387
      %v2507 = vpop.f32.mrb[0].mxu0
      %v2508 = vadd.f32 0.0, %v2507
      %v2509 = vpop.f32.mrb[0].mxu0
      %v2510 = vpop.f32.mrb[0].mxu0
      %v2511 = vadd.f32 0.0, %v2510
      %v2512 = vpop.f32.mrb[0].mxu0
      %2513 = vmatprep.mubr.bf16.mxu0 0
      %2514 = vmatmul.mubr.bf16.gmra.mrb[0].mxu0 %v2390
      %v2515 = vpop.f32.mrb[0].mxu0
      %v2516 = vadd.f32 0.0, %v2515
      %v2517 = vpop.f32.mrb[0].mxu0
      %v2518 = vpop.f32.mrb[0].mxu0
      %v2519 = vadd.f32 0.0, %v2518
      %v2520 = vpop.f32.mrb[0].mxu0
      %2521 = vmatprep.mubr.bf16.mxu0 0
      %2522 = vmatmul.mubr.bf16.gmra.mrb[0].mxu0 %v2393
      %v2523 = vpop.f32.mrb[0].mxu0
      %v2524 = vadd.f32 0.0, %v2523
      %v2525 = vpop.f32.mrb[0].mxu0
      %v2526 = vpop.f32.mrb[0].mxu0
      %v2527 = vadd.f32 0.0, %v2526
      %v2528 = vpop.f32.mrb[0].mxu0
      %2529 = vmatprep.mubr.bf16.mxu0 0
      %2530 = vmatmul.mubr.bf16.gmra.mrb[0].mxu0 %v2396
      %v2531 = vpop.f32.mrb[0].mxu0
      %v2532 = vadd.f32 0.0, %v2531
      %v2533 = vpop.f32.mrb[0].mxu0
      %v2534 = vpop.f32.mrb[0].mxu0
      %v2535 = vadd.f32 0.0, %v2534
      %v2536 = vpop.f32.mrb[0].mxu0
      %2537 = vmatprep.mubr.bf16.mxu0 0
      %2538 = vmatmul.mubr.bf16.gmra.mrb[0].mxu0 %v2399
      %v2539 = vpop.f32.mrb[0].mxu0
      %v2540 = vadd.f32 0.0, %v2539
      %v2541 = vpop.f32.mrb[0].mxu0
      %v2542 = vpop.f32.mrb[0].mxu0
      %v2543 = vadd.f32 0.0, %v2542
      %v2544 = vpop.f32.mrb[0].mxu0
      %2545 = vmatprep.mubr.bf16.mxu0 0
      %2546 = vmatmul.mubr.bf16.gmra.mrb[0].mxu0 %v2402
      %v2547 = vpop.f32.mrb[0].mxu0
      %v2548 = vadd.f32 0.0, %v2547
      %v2549 = vpop.f32.mrb[0].mxu0
      %v2550 = vpop.f32.mrb[0].mxu0
      %v2551 = vadd.f32 0.0, %v2550
      %v2552 = vpop.f32.mrb[0].mxu0
      %2553 = vmatprep.mubr.bf16.mxu0 0
      %2554 = vmatmul.mubr.bf16.gmra.mrb[0].mxu0 %v2405
      %v2555 = vpop.f32.mrb[0].mxu0
      %v2556 = vadd.f32 0.0, %v2555
      %v2557 = vpop.f32.mrb[0].mxu0
      %v2558 = vpop.f32.mrb[0].mxu0
      %v2559 = vadd.f32 0.0, %v2558
      %v2560 = vpop.f32.mrb[0].mxu0
      %2561 = vmatprep.mubr.bf16.mxu0 0
      %2562 = vmatmul.mubr.bf16.gmra.mrb[0].mxu0 %v2408
      %v2563 = vpop.f32.mrb[0].mxu0
      %v2564 = vadd.f32 0.0, %v2563
      %v2565 = vpop.f32.mrb[0].mxu0
      %v2566 = vpop.f32.mrb[0].mxu0
      %v2567 = vadd.f32 0.0, %v2566
      %v2568 = vpop.f32.mrb[0].mxu0
      %2569 = vmatprep.mubr.bf16.mxu0 0
      %2570 = vmatmul.mubr.bf16.gmra.mrb[0].mxu0 %v2411
      %v2571 = vpop.f32.mrb[0].mxu0
      %v2572 = vadd.f32 0.0, %v2571
      %v2573 = vpop.f32.mrb[0].mxu0
      %v2574 = vpop.f32.mrb[0].mxu0
      %v2575 = vadd.f32 0.0, %v2574
      %v2576 = vpop.f32.mrb[0].mxu0
      %2577 = vmatprep.mubr.bf16.mxu0 0
      %2578 = vmatmul.mubr.bf16.gmra.mrb[0].mxu0 %v2414
      %v2579 = vpop.f32.mrb[0].mxu0
      %v2580 = vadd.f32 0.0, %v2579
      %v2581 = vpop.f32.mrb[0].mxu0
      %v2582 = vpop.f32.mrb[0].mxu0
      %v2583 = vadd.f32 0.0, %v2582
      %v2584 = vpop.f32.mrb[0].mxu0
      %2585 = vmatprep.mubr.bf16.mxu0 0
      %2586 = vmatmul.mubr.bf16.gmra.mrb[0].mxu0 %v2417
      %v2587 = vpop.f32.mrb[0].mxu0
      %v2588 = vadd.f32 0.0, %v2587
      %v2589 = vpop.f32.mrb[0].mxu0
      %v2590 = vpop.f32.mrb[0].mxu0
      %v2591 = vadd.f32 0.0, %v2590
      %v2592 = vpop.f32.mrb[0].mxu0
      %2593 = vmatprep.mubr.bf16.mxu0 0
      %2594 = vmatmul.mubr.bf16.gmra.mrb[0].mxu0 %v2420
      %v2595 = vpop.f32.mrb[0].mxu0
      %v2596 = vadd.f32 0.0, %v2595
      %v2597 = vpop.f32.mrb[0].mxu0
      %v2598 = vpop.f32.mrb[0].mxu0
      %v2599 = vadd.f32 0.0, %v2598
      %v2600 = vpop.f32.mrb[0].mxu0
      %2601 = vdwg.mxu0
      %v2602 = vadd.f32 %v2288, %v2460
      %v2603 = vadd.f32 %v2289, %v2463
      %v2604 = vadd.f32 %v2290, %v2468
      %v2605 = vadd.f32 %v2291, %v2471
      %v2606 = vadd.f32 %v2292, %v2476
      %v2607 = vadd.f32 %v2293, %v2479
      %v2608 = vadd.f32 %v2294, %v2484
      %v2609 = vadd.f32 %v2295, %v2487
      %v2610 = vadd.f32 %v2296, %v2492
      %v2611 = vadd.f32 %v2297, %v2495
      %v2612 = vadd.f32 %v2298, %v2500
      %v2613 = vadd.f32 %v2299, %v2503
      %v2614 = vadd.f32 %v2300, %v2508
      %v2615 = vadd.f32 %v2301, %v2511
      %v2616 = vadd.f32 %v2302, %v2516
      %v2617 = vadd.f32 %v2303, %v2519
      %v2618 = vadd.f32 %v2304, %v2524
      %v2619 = vadd.f32 %v2305, %v2527
      %v2620 = vadd.f32 %v2306, %v2532
      %v2621 = vadd.f32 %v2307, %v2535
      %v2622 = vadd.f32 %v2308, %v2540
      %v2623 = vadd.f32 %v2309, %v2543
      %v2624 = vadd.f32 %v2310, %v2548
      %v2625 = vadd.f32 %v2311, %v2551
      %v2626 = vadd.f32 %v2312, %v2556
      %v2627 = vadd.f32 %v2313, %v2559
      %v2628 = vadd.f32 %v2314, %v2564
      %v2629 = vadd.f32 %v2315, %v2567
      %v2630 = vadd.f32 %v2316, %v2572
      %v2631 = vadd.f32 %v2317, %v2575
      %v2632 = vadd.f32 %v2318, %v2580
      %v2633 = vadd.f32 %v2319, %v2583
      %v2634 = vadd.f32 %v2320, %v2588
      %v2635 = vadd.f32 %v2321, %v2591
      %v2636 = vadd.f32 %v2322, %v2596
      %v2637 = vadd.f32 %v2323, %v2599
      %v2638 = vld [vmem:[%s273 + $0x10] sm:$0xc]
      %v2639 = vld [vmem:[%s273 + $0x14] sm:$0xf]
      %v2640 = vld [vmem:[%s273 + $0x18] sm:$0xf]
      %v2641 = vld [vmem:[%s273 + $0x1c] sm:$0xf]
      %v2642 = vld [vmem:[%s273 + $0x20] sm:$0xf]
      %v2643 = vld [vmem:[%s273 + $0x24] sm:$0xf]
      %v2644 = vld [vmem:[%s273 + $0x28] sm:$0xf]
      %v2645 = vld [vmem:[%s273 + $0x2c] sm:$0xf]
      %v2646 = vld [vmem:[%s273 + $0x30] sm:$0xf]
      %v2647 = vld [vmem:[%s273 + $0x34] sm:$0xf]
      %v2648 = vld [vmem:[%s273 + $0x38] sm:$0xf]
      %v2649 = vld [vmem:[%s273 + $0x3c] sm:$0xf]
      %v2650 = vld [vmem:[%s273 + $0x40] sm:$0xf]
      %v2651 = vld [vmem:[%s273 + $0x44] sm:$0xf]
      %v2652 = vld [vmem:[%s273 + $0x48] sm:$0xf]
      %v2653 = vld [vmem:[%s273 + $0x4c] sm:$0xf]
      %v2654 = vld [vmem:[%s273 + $0x50] sm:$0xf]
      %v2655 = vld [vmem:[%s273 + $0x54] sm:$0xf]
      %v2656 = vld [vmem:[%s273 + $0x58] sm:$0xf]
      %v2657 = vld [vmem:[%s273 + $0x5c] sm:$0xf]
      %v2658 = vld [vmem:[%s273 + $0x60] sm:$0xf]
      %v2659 = vld [vmem:[%s273 + $0x64] sm:$0xf]
      %v2660 = vld [vmem:[%s273 + $0x68] sm:$0xf]
      %v2661 = vld [vmem:[%s273 + $0x6c] sm:$0xf]
      %v2662 = vld [vmem:[%s273 + $0x70] sm:$0xf]
      %v2663 = vld [vmem:[%s273 + $0x74] sm:$0xf]
      %v2664 = vld [vmem:[%s273 + $0x78] sm:$0xf]
      %v2665 = vld [vmem:[%s273 + $0x7c] sm:$0xf]
      %v2666 = vld [vmem:[%s273 + $0x80] sm:$0xf]
      %v2667 = vld [vmem:[%s273 + $0x84] sm:$0xf]
      %v2668 = vld [vmem:[%s273 + $0x88] sm:$0xf]
      %v2669 = vld [vmem:[%s273 + $0x8c] sm:$0xf]
      %v2670 = vld [vmem:[%s273 + $0x90] sm:$0xf]
      %v2671 = vld [vmem:[%s273 + $0x94] sm:$0xf]
      %v2672 = vld [vmem:[%s273 + $0x98] sm:$0xf]
      %v2673 = vld [vmem:[%s273 + $0x9c] sm:$0xf]
      %v2674 = vld [vmem:[%s273 + $0xa0] sm:$0x1]
      %s2675 = scalar_lea.vmem %s2, 12
      %v2676 = vld [vmem:[%s2675] sm:$0x3]
      %v2714 = vunpack.c.l.b16 %v2638
      %v2715 = vunpack.c.l.b16 %v2639
      %v2716 = vunpack.c.l.b16 %v2640
      %v2717 = vunpack.c.l.b16 %v2641
      %v2718 = vunpack.c.l.b16 %v2642
      %v2719 = vunpack.c.l.b16 %v2643
      %v2720 = vunpack.c.l.b16 %v2644
      %v2721 = vunpack.c.l.b16 %v2645
      %v2722 = vunpack.c.l.b16 %v2646
      %v2723 = vunpack.c.l.b16 %v2647
      %v2724 = vunpack.c.l.b16 %v2648
      %v2725 = vunpack.c.l.b16 %v2649
      %v2726 = vunpack.c.l.b16 %v2650
      %v2727 = vunpack.c.l.b16 %v2651
      %v2728 = vunpack.c.l.b16 %v2652
      %v2729 = vunpack.c.l.b16 %v2653
      %v2730 = vunpack.c.l.b16 %v2654
      %v2731 = vunpack.c.l.b16 %v2655
      %v2732 = vunpack.c.l.b16 %v2656
      %v2733 = vunpack.c.l.b16 %v2657
      %v2734 = vunpack.c.l.b16 %v2658
      %v2735 = vunpack.c.l.b16 %v2659
      %v2736 = vunpack.c.l.b16 %v2660
      %v2737 = vunpack.c.l.b16 %v2661
      %v2738 = vunpack.c.l.b16 %v2662
      %v2739 = vunpack.c.l.b16 %v2663
      %v2740 = vunpack.c.l.b16 %v2664
      %v2741 = vunpack.c.l.b16 %v2665
      %v2742 = vunpack.c.l.b16 %v2666
      %v2743 = vunpack.c.l.b16 %v2667
      %v2744 = vunpack.c.l.b16 %v2668
      %v2745 = vunpack.c.l.b16 %v2669
      %v2746 = vunpack.c.l.b16 %v2670
      %v2747 = vunpack.c.l.b16 %v2671
      %v2748 = vunpack.c.l.b16 %v2672
      %v2749 = vunpack.c.l.b16 %v2673
      %v2750 = vunpack.c.l.b16 %v2674
      %v2751 = vpack.c.b16 %v2715, %v2714
      %v2752 = vpack.c.b16 %v2717, %v2716
      %v2753 = vpack.c.b16 %v2719, %v2718
      %v2754 = vpack.c.b16 %v2721, %v2720
      %v2755 = vpack.c.b16 %v2723, %v2722
      %v2756 = vpack.c.b16 %v2725, %v2724
      %v2757 = vpack.c.b16 %v2727, %v2726
      %v2758 = vpack.c.b16 %v2729, %v2728
      %v2759 = vpack.c.b16 %v2731, %v2730
      %v2760 = vpack.c.b16 %v2733, %v2732
      %v2761 = vpack.c.b16 %v2735, %v2734
      %v2762 = vpack.c.b16 %v2737, %v2736
      %v2763 = vpack.c.b16 %v2739, %v2738
      %v2764 = vpack.c.b16 %v2741, %v2740
      %v2765 = vpack.c.b16 %v2743, %v2742
      %v2766 = vpack.c.b16 %v2745, %v2744
      %v2767 = vpack.c.b16 %v2747, %v2746
      %v2768 = vpack.c.b16 %v2749, %v2748
      %v2769 = vpack.c.b16 %v2750, %v2750
      %v2770 = vrot.slane %v2751, 2
      %v2771 = vrot.slane %v2752, 2
      %v2772 = vsel %vm2330, %v2770, %v2771
      %v2773 = vrot.slane %v2753, 2
      %v2774 = vsel %vm2330, %v2771, %v2773
      %v2775 = vrot.slane %v2754, 2
      %v2776 = vsel %vm2330, %v2773, %v2775
      %v2777 = vrot.slane %v2755, 2
      %v2778 = vsel %vm2330, %v2775, %v2777
      %v2779 = vrot.slane %v2756, 2
      %v2780 = vsel %vm2330, %v2777, %v2779
      %v2781 = vrot.slane %v2757, 2
      %v2782 = vsel %vm2330, %v2779, %v2781
      %v2783 = vrot.slane %v2758, 2
      %v2784 = vsel %vm2330, %v2781, %v2783
      %v2785 = vrot.slane %v2759, 2
      %v2786 = vsel %vm2330, %v2783, %v2785
      %v2787 = vrot.slane %v2760, 2
      %v2788 = vsel %vm2330, %v2785, %v2787
      %v2789 = vrot.slane %v2761, 2
      %v2790 = vsel %vm2330, %v2787, %v2789
      %v2791 = vrot.slane %v2762, 2
      %v2792 = vsel %vm2330, %v2789, %v2791
      %v2793 = vrot.slane %v2763, 2
      %v2794 = vsel %vm2330, %v2791, %v2793
      %v2795 = vrot.slane %v2764, 2
      %v2796 = vsel %vm2330, %v2793, %v2795
      %v2797 = vrot.slane %v2765, 2
      %v2798 = vsel %vm2330, %v2795, %v2797
      %v2799 = vrot.slane %v2766, 2
      %v2800 = vsel %vm2330, %v2797, %v2799
      %v2801 = vrot.slane %v2767, 2
      %v2802 = vsel %vm2330, %v2799, %v2801
      %v2803 = vrot.slane %v2768, 2
      %v2804 = vsel %vm2330, %v2801, %v2803
      %v2805 = vrot.slane %v2769, 2
      %v2806 = vsel %vm2330, %v2803, %v2805
      %v2808 = vsel %vm554, %v2772, 0
      %v2811 = vsel %vm554, %v2774, 0
      %v2814 = vsel %vm554, %v2776, 0
      %v2817 = vsel %vm554, %v2778, 0
      %v2820 = vsel %vm554, %v2780, 0
      %v2823 = vsel %vm554, %v2782, 0
      %v2826 = vsel %vm554, %v2784, 0
      %v2829 = vsel %vm554, %v2786, 0
      %v2832 = vsel %vm554, %v2788, 0
      %v2835 = vsel %vm554, %v2790, 0
      %v2838 = vsel %vm554, %v2792, 0
      %v2841 = vsel %vm554, %v2794, 0
      %v2844 = vsel %vm554, %v2796, 0
      %v2847 = vsel %vm554, %v2798, 0
      %v2850 = vsel %vm554, %v2800, 0
      %v2853 = vsel %vm554, %v2802, 0
      %v2856 = vsel %vm554, %v2804, 0
      %v2859 = vsel %vm554, %v2806, 0
      %v2862 = vsel %vm609, %v2676, 0
      %2864 = vmatprep.subr.bf16.mxu0 0
      %2865 = vmatpush1.bf16.msra.mxu0 %v2862
      %2866 = vmatprep.subr.bf16.mxu0 0
      %2867 = vmatpush1.bf16.msra.mxu0 0
      %2868 = vmatprep.subr.bf16.mxu0 0
      %2869 = vmatpush1.bf16.msra.mxu0 0
      %2870 = vmatprep.subr.bf16.mxu0 0
      %2871 = vmatpush1.bf16.msra.mxu0 0
      %2872 = vmatprep.subr.bf16.mxu0 0
      %2873 = vmatpush1.bf16.msra.mxu0 0
      %2874 = vmatprep.subr.bf16.mxu0 0
      %2875 = vmatpush1.bf16.msra.mxu0 0
      %2876 = vmatprep.subr.bf16.mxu0 0
      %2877 = vmatpush1.bf16.msra.mxu0 0
      %2878 = vmatprep.subr.bf16.mxu0 0
      %2879 = vmatpush1.bf16.msra.mxu0 0
      %2880 = vmatprep.subr.bf16.mxu0 0
      %2881 = vmatpush1.bf16.msra.mxu0 0
      %2882 = vmatprep.subr.bf16.mxu0 0
      %2883 = vmatpush1.bf16.msra.mxu0 0
      %2884 = vmatprep.subr.bf16.mxu0 0
      %2885 = vmatpush1.bf16.msra.mxu0 0
      %2886 = vmatprep.subr.bf16.mxu0 0
      %2887 = vmatpush1.bf16.msra.mxu0 0
      %2888 = vmatprep.subr.bf16.mxu0 0
      %2889 = vmatpush1.bf16.msra.mxu0 0
      %2890 = vmatprep.subr.bf16.mxu0 0
      %2891 = vmatpush1.bf16.msra.mxu0 0
      %2892 = vmatprep.subr.bf16.mxu0 0
      %2893 = vmatpush1.bf16.msra.mxu0 0
      %2894 = vmatprep.subr.bf16.mxu0 0
      %2895 = vmatpush1.bf16.msra.mxu0 0
      %2896 = vmatprep.mubr.bf16.mxu0 0
      %2897 = vmatmul.mubr.bf16.gmra.mrb[0].mxu0 %v2808
      %v2898 = vpop.f32.mrb[0].mxu0
      %v2899 = vadd.f32 0.0, %v2898
      %v2900 = vpop.f32.mrb[0].mxu0
      %v2901 = vpop.f32.mrb[0].mxu0
      %v2902 = vadd.f32 0.0, %v2901
      %v2903 = vpop.f32.mrb[0].mxu0
      %2904 = vmatprep.mubr.bf16.mxu0 0
      %2905 = vmatmul.mubr.bf16.gmra.mrb[0].mxu0 %v2811
      %v2906 = vpop.f32.mrb[0].mxu0
      %v2907 = vadd.f32 0.0, %v2906
      %v2908 = vpop.f32.mrb[0].mxu0
      %v2909 = vpop.f32.mrb[0].mxu0
      %v2910 = vadd.f32 0.0, %v2909
      %v2911 = vpop.f32.mrb[0].mxu0
      %2912 = vmatprep.mubr.bf16.mxu0 0
      %2913 = vmatmul.mubr.bf16.gmra.mrb[0].mxu0 %v2814
      %v2914 = vpop.f32.mrb[0].mxu0
      %v2915 = vadd.f32 0.0, %v2914
      %v2916 = vpop.f32.mrb[0].mxu0
      %v2917 = vpop.f32.mrb[0].mxu0
      %v2918 = vadd.f32 0.0, %v2917
      %v2919 = vpop.f32.mrb[0].mxu0
      %2920 = vmatprep.mubr.bf16.mxu0 0
      %2921 = vmatmul.mubr.bf16.gmra.mrb[0].mxu0 %v2817
      %v2922 = vpop.f32.mrb[0].mxu0
      %v2923 = vadd.f32 0.0, %v2922
      %v2924 = vpop.f32.mrb[0].mxu0
      %v2925 = vpop.f32.mrb[0].mxu0
      %v2926 = vadd.f32 0.0, %v2925
      %v2927 = vpop.f32.mrb[0].mxu0
      %2928 = vmatprep.mubr.bf16.mxu0 0
      %2929 = vmatmul.mubr.bf16.gmra.mrb[0].mxu0 %v2820
      %v2930 = vpop.f32.mrb[0].mxu0
      %v2931 = vadd.f32 0.0, %v2930
      %v2932 = vpop.f32.mrb[0].mxu0
      %v2933 = vpop.f32.mrb[0].mxu0
      %v2934 = vadd.f32 0.0, %v2933
      %v2935 = vpop.f32.mrb[0].mxu0
      %2936 = vmatprep.mubr.bf16.mxu0 0
      %2937 = vmatmul.mubr.bf16.gmra.mrb[0].mxu0 %v2823
      %v2938 = vpop.f32.mrb[0].mxu0
      %v2939 = vadd.f32 0.0, %v2938
      %v2940 = vpop.f32.mrb[0].mxu0
      %v2941 = vpop.f32.mrb[0].mxu0
      %v2942 = vadd.f32 0.0, %v2941
      %v2943 = vpop.f32.mrb[0].mxu0
      %2944 = vmatprep.mubr.bf16.mxu0 0
      %2945 = vmatmul.mubr.bf16.gmra.mrb[0].mxu0 %v2826
      %v2946 = vpop.f32.mrb[0].mxu0
      %v2947 = vadd.f32 0.0, %v2946
      %v2948 = vpop.f32.mrb[0].mxu0
      %v2949 = vpop.f32.mrb[0].mxu0
      %v2950 = vadd.f32 0.0, %v2949
      %v2951 = vpop.f32.mrb[0].mxu0
      %2952 = vmatprep.mubr.bf16.mxu0 0
      %2953 = vmatmul.mubr.bf16.gmra.mrb[0].mxu0 %v2829
      %v2954 = vpop.f32.mrb[0].mxu0
      %v2955 = vadd.f32 0.0, %v2954
      %v2956 = vpop.f32.mrb[0].mxu0
      %v2957 = vpop.f32.mrb[0].mxu0
      %v2958 = vadd.f32 0.0, %v2957
      %v2959 = vpop.f32.mrb[0].mxu0
      %2960 = vmatprep.mubr.bf16.mxu0 0
      %2961 = vmatmul.mubr.bf16.gmra.mrb[0].mxu0 %v2832
      %v2962 = vpop.f32.mrb[0].mxu0
      %v2963 = vadd.f32 0.0, %v2962
      %v2964 = vpop.f32.mrb[0].mxu0
      %v2965 = vpop.f32.mrb[0].mxu0
      %v2966 = vadd.f32 0.0, %v2965
      %v2967 = vpop.f32.mrb[0].mxu0
      %2968 = vmatprep.mubr.bf16.mxu0 0
      %2969 = vmatmul.mubr.bf16.gmra.mrb[0].mxu0 %v2835
      %v2970 = vpop.f32.mrb[0].mxu0
      %v2971 = vadd.f32 0.0, %v2970
      %v2972 = vpop.f32.mrb[0].mxu0
      %v2973 = vpop.f32.mrb[0].mxu0
      %v2974 = vadd.f32 0.0, %v2973
      %v2975 = vpop.f32.mrb[0].mxu0
      %2976 = vmatprep.mubr.bf16.mxu0 0
      %2977 = vmatmul.mubr.bf16.gmra.mrb[0].mxu0 %v2838
      %v2978 = vpop.f32.mrb[0].mxu0
      %v2979 = vadd.f32 0.0, %v2978
      %v2980 = vpop.f32.mrb[0].mxu0
      %v2981 = vpop.f32.mrb[0].mxu0
      %v2982 = vadd.f32 0.0, %v2981
      %v2983 = vpop.f32.mrb[0].mxu0
      %2984 = vmatprep.mubr.bf16.mxu0 0
      %2985 = vmatmul.mubr.bf16.gmra.mrb[0].mxu0 %v2841
      %v2986 = vpop.f32.mrb[0].mxu0
      %v2987 = vadd.f32 0.0, %v2986
      %v2988 = vpop.f32.mrb[0].mxu0
      %v2989 = vpop.f32.mrb[0].mxu0
      %v2990 = vadd.f32 0.0, %v2989
      %v2991 = vpop.f32.mrb[0].mxu0
      %2992 = vmatprep.mubr.bf16.mxu0 0
      %2993 = vmatmul.mubr.bf16.gmra.mrb[0].mxu0 %v2844
      %v2994 = vpop.f32.mrb[0].mxu0
      %v2995 = vadd.f32 0.0, %v2994
      %v2996 = vpop.f32.mrb[0].mxu0
      %v2997 = vpop.f32.mrb[0].mxu0
      %v2998 = vadd.f32 0.0, %v2997
      %v2999 = vpop.f32.mrb[0].mxu0
      %3000 = vmatprep.mubr.bf16.mxu0 0
      %3001 = vmatmul.mubr.bf16.gmra.mrb[0].mxu0 %v2847
      %v3002 = vpop.f32.mrb[0].mxu0
      %v3003 = vadd.f32 0.0, %v3002
      %v3004 = vpop.f32.mrb[0].mxu0
      %v3005 = vpop.f32.mrb[0].mxu0
      %v3006 = vadd.f32 0.0, %v3005
      %v3007 = vpop.f32.mrb[0].mxu0
      %3008 = vmatprep.mubr.bf16.mxu0 0
      %3009 = vmatmul.mubr.bf16.gmra.mrb[0].mxu0 %v2850
      %v3010 = vpop.f32.mrb[0].mxu0
      %v3011 = vadd.f32 0.0, %v3010
      %v3012 = vpop.f32.mrb[0].mxu0
      %v3013 = vpop.f32.mrb[0].mxu0
      %v3014 = vadd.f32 0.0, %v3013
      %v3015 = vpop.f32.mrb[0].mxu0
      %3016 = vmatprep.mubr.bf16.mxu0 0
      %3017 = vmatmul.mubr.bf16.gmra.mrb[0].mxu0 %v2853
      %v3018 = vpop.f32.mrb[0].mxu0
      %v3019 = vadd.f32 0.0, %v3018
      %v3020 = vpop.f32.mrb[0].mxu0
      %v3021 = vpop.f32.mrb[0].mxu0
      %v3022 = vadd.f32 0.0, %v3021
      %v3023 = vpop.f32.mrb[0].mxu0
      %3024 = vmatprep.mubr.bf16.mxu0 0
      %3025 = vmatmul.mubr.bf16.gmra.mrb[0].mxu0 %v2856
      %v3026 = vpop.f32.mrb[0].mxu0
      %v3027 = vadd.f32 0.0, %v3026
      %v3028 = vpop.f32.mrb[0].mxu0
      %v3029 = vpop.f32.mrb[0].mxu0
      %v3030 = vadd.f32 0.0, %v3029
      %v3031 = vpop.f32.mrb[0].mxu0
      %3032 = vmatprep.mubr.bf16.mxu0 0
      %3033 = vmatmul.mubr.bf16.gmra.mrb[0].mxu0 %v2859
      %v3034 = vpop.f32.mrb[0].mxu0
      %v3035 = vadd.f32 0.0, %v3034
      %v3036 = vpop.f32.mrb[0].mxu0
      %v3037 = vpop.f32.mrb[0].mxu0
      %v3038 = vadd.f32 0.0, %v3037
      %v3039 = vpop.f32.mrb[0].mxu0
      %3040 = vdwg.mxu0
      %v3041 = vadd.f32 %v2602, %v2899
      %v3042 = vadd.f32 %v2603, %v2902
      %v3043 = vadd.f32 %v2604, %v2907
      %v3044 = vadd.f32 %v2605, %v2910
      %v3045 = vadd.f32 %v2606, %v2915
      %v3046 = vadd.f32 %v2607, %v2918
      %v3047 = vadd.f32 %v2608, %v2923
      %v3048 = vadd.f32 %v2609, %v2926
      %v3049 = vadd.f32 %v2610, %v2931
      %v3050 = vadd.f32 %v2611, %v2934
      %v3051 = vadd.f32 %v2612, %v2939
      %v3052 = vadd.f32 %v2613, %v2942
      %v3053 = vadd.f32 %v2614, %v2947
      %v3054 = vadd.f32 %v2615, %v2950
      %v3055 = vadd.f32 %v2616, %v2955
      %v3056 = vadd.f32 %v2617, %v2958
      %v3057 = vadd.f32 %v2618, %v2963
      %v3058 = vadd.f32 %v2619, %v2966
      %v3059 = vadd.f32 %v2620, %v2971
      %v3060 = vadd.f32 %v2621, %v2974
      %v3061 = vadd.f32 %v2622, %v2979
      %v3062 = vadd.f32 %v2623, %v2982
      %v3063 = vadd.f32 %v2624, %v2987
      %v3064 = vadd.f32 %v2625, %v2990
      %v3065 = vadd.f32 %v2626, %v2995
      %v3066 = vadd.f32 %v2627, %v2998
      %v3067 = vadd.f32 %v2628, %v3003
      %v3068 = vadd.f32 %v2629, %v3006
      %v3069 = vadd.f32 %v2630, %v3011
      %v3070 = vadd.f32 %v2631, %v3014
      %v3071 = vadd.f32 %v2632, %v3019
      %v3072 = vadd.f32 %v2633, %v3022
      %v3073 = vadd.f32 %v2634, %v3027
      %v3074 = vadd.f32 %v2635, %v3030
      %v3075 = vadd.f32 %v2636, %v3035
      %v3076 = vadd.f32 %v2637, %v3038
      %v3077 = vld [vmem:[%s273 + $0xa0] sm:$0x3]
      %s3078 = scalar_lea.vmem %s2, 14
      %v3079 = vld [vmem:[%s3078] sm:$0x3]
      %v3081 = vunpack.c.l.b16 %v3077
      %v3082 = vpack.c.b16 %v3081, %v3081
      %vm3083 = vsmask.f32 5376
      %v3085 = vshrl.u32 %v2751, 16
      %v3087 = vrot.slane %v3085, 2
      %v3088 = vshll.u32 %v2751, 16
      %v3090 = vrot.slane %v3088, 3
      %v3091 = vor.u32 %v3087, %v3090
      %v3093 = vshrl.u32 %v2752, 16
      %v3095 = vrot.slane %v3093, 2
      %v3096 = vshll.u32 %v2752, 16
      %v3098 = vrot.slane %v3096, 3
      %v3099 = vor.u32 %v3095, %v3098
      %v3100 = vsel %vm3083, %v3091, %v3099
      %v3102 = vshrl.u32 %v2753, 16
      %v3104 = vrot.slane %v3102, 2
      %v3105 = vshll.u32 %v2753, 16
      %v3107 = vrot.slane %v3105, 3
      %v3108 = vor.u32 %v3104, %v3107
      %v3109 = vsel %vm3083, %v3099, %v3108
      %v3111 = vshrl.u32 %v2754, 16
      %v3113 = vrot.slane %v3111, 2
      %v3114 = vshll.u32 %v2754, 16
      %v3116 = vrot.slane %v3114, 3
      %v3117 = vor.u32 %v3113, %v3116
      %v3118 = vsel %vm3083, %v3108, %v3117
      %v3120 = vshrl.u32 %v2755, 16
      %v3122 = vrot.slane %v3120, 2
      %v3123 = vshll.u32 %v2755, 16
      %v3125 = vrot.slane %v3123, 3
      %v3126 = vor.u32 %v3122, %v3125
      %v3127 = vsel %vm3083, %v3117, %v3126
      %v3129 = vshrl.u32 %v2756, 16
      %v3131 = vrot.slane %v3129, 2
      %v3132 = vshll.u32 %v2756, 16
      %v3134 = vrot.slane %v3132, 3
      %v3135 = vor.u32 %v3131, %v3134
      %v3136 = vsel %vm3083, %v3126, %v3135
      %v3138 = vshrl.u32 %v2757, 16
      %v3140 = vrot.slane %v3138, 2
      %v3141 = vshll.u32 %v2757, 16
      %v3143 = vrot.slane %v3141, 3
      %v3144 = vor.u32 %v3140, %v3143
      %v3145 = vsel %vm3083, %v3135, %v3144
      %v3147 = vshrl.u32 %v2758, 16
      %v3149 = vrot.slane %v3147, 2
      %v3150 = vshll.u32 %v2758, 16
      %v3152 = vrot.slane %v3150, 3
      %v3153 = vor.u32 %v3149, %v3152
      %v3154 = vsel %vm3083, %v3144, %v3153
      %v3156 = vshrl.u32 %v2759, 16
      %v3158 = vrot.slane %v3156, 2
      %v3159 = vshll.u32 %v2759, 16
      %v3161 = vrot.slane %v3159, 3
      %v3162 = vor.u32 %v3158, %v3161
      %v3163 = vsel %vm3083, %v3153, %v3162
      %v3165 = vshrl.u32 %v2760, 16
      %v3167 = vrot.slane %v3165, 2
      %v3168 = vshll.u32 %v2760, 16
      %v3170 = vrot.slane %v3168, 3
      %v3171 = vor.u32 %v3167, %v3170
      %v3172 = vsel %vm3083, %v3162, %v3171
      %v3174 = vshrl.u32 %v2761, 16
      %v3176 = vrot.slane %v3174, 2
      %v3177 = vshll.u32 %v2761, 16
      %v3179 = vrot.slane %v3177, 3
      %v3180 = vor.u32 %v3176, %v3179
      %v3181 = vsel %vm3083, %v3171, %v3180
      %v3183 = vshrl.u32 %v2762, 16
      %v3185 = vrot.slane %v3183, 2
      %v3186 = vshll.u32 %v2762, 16
      %v3188 = vrot.slane %v3186, 3
      %v3189 = vor.u32 %v3185, %v3188
      %v3190 = vsel %vm3083, %v3180, %v3189
      %v3192 = vshrl.u32 %v2763, 16
      %v3194 = vrot.slane %v3192, 2
      %v3195 = vshll.u32 %v2763, 16
      %v3197 = vrot.slane %v3195, 3
      %v3198 = vor.u32 %v3194, %v3197
      %v3199 = vsel %vm3083, %v3189, %v3198
      %v3201 = vshrl.u32 %v2764, 16
      %v3203 = vrot.slane %v3201, 2
      %v3204 = vshll.u32 %v2764, 16
      %v3206 = vrot.slane %v3204, 3
      %v3207 = vor.u32 %v3203, %v3206
      %v3208 = vsel %vm3083, %v3198, %v3207
      %v3210 = vshrl.u32 %v2765, 16
      %v3212 = vrot.slane %v3210, 2
      %v3213 = vshll.u32 %v2765, 16
      %v3215 = vrot.slane %v3213, 3
      %v3216 = vor.u32 %v3212, %v3215
      %v3217 = vsel %vm3083, %v3207, %v3216
      %v3219 = vshrl.u32 %v2766, 16
      %v3221 = vrot.slane %v3219, 2
      %v3222 = vshll.u32 %v2766, 16
      %v3224 = vrot.slane %v3222, 3
      %v3225 = vor.u32 %v3221, %v3224
      %v3226 = vsel %vm3083, %v3216, %v3225
      %v3228 = vshrl.u32 %v2767, 16
      %v3230 = vrot.slane %v3228, 2
      %v3231 = vshll.u32 %v2767, 16
      %v3233 = vrot.slane %v3231, 3
      %v3234 = vor.u32 %v3230, %v3233
      %v3235 = vsel %vm3083, %v3225, %v3234
      %v3237 = vshrl.u32 %v2768, 16
      %v3239 = vrot.slane %v3237, 2
      %v3240 = vshll.u32 %v2768, 16
      %v3242 = vrot.slane %v3240, 3
      %v3243 = vor.u32 %v3239, %v3242
      %v3244 = vsel %vm3083, %v3234, %v3243
      %v3246 = vshrl.u32 %v3082, 16
      %v3248 = vrot.slane %v3246, 2
      %v3249 = vshll.u32 %v3082, 16
      %v3251 = vrot.slane %v3249, 3
      %v3252 = vor.u32 %v3248, %v3251
      %v3253 = vsel %vm3083, %v3243, %v3252
      %v3255 = vsel %vm554, %v3100, 0
      %v3258 = vsel %vm554, %v3109, 0
      %v3261 = vsel %vm554, %v3118, 0
      %v3264 = vsel %vm554, %v3127, 0
      %v3267 = vsel %vm554, %v3136, 0
      %v3270 = vsel %vm554, %v3145, 0
      %v3273 = vsel %vm554, %v3154, 0
      %v3276 = vsel %vm554, %v3163, 0
      %v3279 = vsel %vm554, %v3172, 0
      %v3282 = vsel %vm554, %v3181, 0
      %v3285 = vsel %vm554, %v3190, 0
      %v3288 = vsel %vm554, %v3199, 0
      %v3291 = vsel %vm554, %v3208, 0
      %v3294 = vsel %vm554, %v3217, 0
      %v3297 = vsel %vm554, %v3226, 0
      %v3300 = vsel %vm554, %v3235, 0
      %v3303 = vsel %vm554, %v3244, 0
      %v3306 = vsel %vm554, %v3253, 0
      %v3309 = vsel %vm609, %v3079, 0
      %3311 = vmatprep.subr.bf16.mxu0 0
      %3312 = vmatpush1.bf16.msra.mxu0 %v3309
      %3313 = vmatprep.subr.bf16.mxu0 0
      %3314 = vmatpush1.bf16.msra.mxu0 0
      %3315 = vmatprep.subr.bf16.mxu0 0
      %3316 = vmatpush1.bf16.msra.mxu0 0
      %3317 = vmatprep.subr.bf16.mxu0 0
      %3318 = vmatpush1.bf16.msra.mxu0 0
      %3319 = vmatprep.subr.bf16.mxu0 0
      %3320 = vmatpush1.bf16.msra.mxu0 0
      %3321 = vmatprep.subr.bf16.mxu0 0
      %3322 = vmatpush1.bf16.msra.mxu0 0
      %3323 = vmatprep.subr.bf16.mxu0 0
      %3324 = vmatpush1.bf16.msra.mxu0 0
      %3325 = vmatprep.subr.bf16.mxu0 0
      %3326 = vmatpush1.bf16.msra.mxu0 0
      %3327 = vmatprep.subr.bf16.mxu0 0
      %3328 = vmatpush1.bf16.msra.mxu0 0
      %3329 = vmatprep.subr.bf16.mxu0 0
      %3330 = vmatpush1.bf16.msra.mxu0 0
      %3331 = vmatprep.subr.bf16.mxu0 0
      %3332 = vmatpush1.bf16.msra.mxu0 0
      %3333 = vmatprep.subr.bf16.mxu0 0
      %3334 = vmatpush1.bf16.msra.mxu0 0
      %3335 = vmatprep.subr.bf16.mxu0 0
      %3336 = vmatpush1.bf16.msra.mxu0 0
      %3337 = vmatprep.subr.bf16.mxu0 0
      %3338 = vmatpush1.bf16.msra.mxu0 0
      %3339 = vmatprep.subr.bf16.mxu0 0
      %3340 = vmatpush1.bf16.msra.mxu0 0
      %3341 = vmatprep.subr.bf16.mxu0 0
      %3342 = vmatpush1.bf16.msra.mxu0 0
      %3343 = vmatprep.mubr.bf16.mxu0 0
      %3344 = vmatmul.mubr.bf16.gmra.mrb[0].mxu0 %v3255
      %v3345 = vpop.f32.mrb[0].mxu0
      %v3346 = vadd.f32 0.0, %v3345
      %v3347 = vpop.f32.mrb[0].mxu0
      %v3348 = vpop.f32.mrb[0].mxu0
      %v3349 = vadd.f32 0.0, %v3348
      %v3350 = vpop.f32.mrb[0].mxu0
      %3351 = vmatprep.mubr.bf16.mxu0 0
      %3352 = vmatmul.mubr.bf16.gmra.mrb[0].mxu0 %v3258
      %v3353 = vpop.f32.mrb[0].mxu0
      %v3354 = vadd.f32 0.0, %v3353
      %v3355 = vpop.f32.mrb[0].mxu0
      %v3356 = vpop.f32.mrb[0].mxu0
      %v3357 = vadd.f32 0.0, %v3356
      %v3358 = vpop.f32.mrb[0].mxu0
      %3359 = vmatprep.mubr.bf16.mxu0 0
      %3360 = vmatmul.mubr.bf16.gmra.mrb[0].mxu0 %v3261
      %v3361 = vpop.f32.mrb[0].mxu0
      %v3362 = vadd.f32 0.0, %v3361
      %v3363 = vpop.f32.mrb[0].mxu0
      %v3364 = vpop.f32.mrb[0].mxu0
      %v3365 = vadd.f32 0.0, %v3364
      %v3366 = vpop.f32.mrb[0].mxu0
      %3367 = vmatprep.mubr.bf16.mxu0 0
      %3368 = vmatmul.mubr.bf16.gmra.mrb[0].mxu0 %v3264
      %v3369 = vpop.f32.mrb[0].mxu0
      %v3370 = vadd.f32 0.0, %v3369
      %v3371 = vpop.f32.mrb[0].mxu0
      %v3372 = vpop.f32.mrb[0].mxu0
      %v3373 = vadd.f32 0.0, %v3372
      %v3374 = vpop.f32.mrb[0].mxu0
      %3375 = vmatprep.mubr.bf16.mxu0 0
      %3376 = vmatmul.mubr.bf16.gmra.mrb[0].mxu0 %v3267
      %v3377 = vpop.f32.mrb[0].mxu0
      %v3378 = vadd.f32 0.0, %v3377
      %v3379 = vpop.f32.mrb[0].mxu0
      %v3380 = vpop.f32.mrb[0].mxu0
      %v3381 = vadd.f32 0.0, %v3380
      %v3382 = vpop.f32.mrb[0].mxu0
      %3383 = vmatprep.mubr.bf16.mxu0 0
      %3384 = vmatmul.mubr.bf16.gmra.mrb[0].mxu0 %v3270
      %v3385 = vpop.f32.mrb[0].mxu0
      %v3386 = vadd.f32 0.0, %v3385
      %v3387 = vpop.f32.mrb[0].mxu0
      %v3388 = vpop.f32.mrb[0].mxu0
      %v3389 = vadd.f32 0.0, %v3388
      %v3390 = vpop.f32.mrb[0].mxu0
      %3391 = vmatprep.mubr.bf16.mxu0 0
      %3392 = vmatmul.mubr.bf16.gmra.mrb[0].mxu0 %v3273
      %v3393 = vpop.f32.mrb[0].mxu0
      %v3394 = vadd.f32 0.0, %v3393
      %v3395 = vpop.f32.mrb[0].mxu0
      %v3396 = vpop.f32.mrb[0].mxu0
      %v3397 = vadd.f32 0.0, %v3396
      %v3398 = vpop.f32.mrb[0].mxu0
      %3399 = vmatprep.mubr.bf16.mxu0 0
      %3400 = vmatmul.mubr.bf16.gmra.mrb[0].mxu0 %v3276
      %v3401 = vpop.f32.mrb[0].mxu0
      %v3402 = vadd.f32 0.0, %v3401
      %v3403 = vpop.f32.mrb[0].mxu0
      %v3404 = vpop.f32.mrb[0].mxu0
      %v3405 = vadd.f32 0.0, %v3404
      %v3406 = vpop.f32.mrb[0].mxu0
      %3407 = vmatprep.mubr.bf16.mxu0 0
      %3408 = vmatmul.mubr.bf16.gmra.mrb[0].mxu0 %v3279
      %v3409 = vpop.f32.mrb[0].mxu0
      %v3410 = vadd.f32 0.0, %v3409
      %v3411 = vpop.f32.mrb[0].mxu0
      %v3412 = vpop.f32.mrb[0].mxu0
      %v3413 = vadd.f32 0.0, %v3412
      %v3414 = vpop.f32.mrb[0].mxu0
      %3415 = vmatprep.mubr.bf16.mxu0 0
      %3416 = vmatmul.mubr.bf16.gmra.mrb[0].mxu0 %v3282
      %v3417 = vpop.f32.mrb[0].mxu0
      %v3418 = vadd.f32 0.0, %v3417
      %v3419 = vpop.f32.mrb[0].mxu0
      %v3420 = vpop.f32.mrb[0].mxu0
      %v3421 = vadd.f32 0.0, %v3420
      %v3422 = vpop.f32.mrb[0].mxu0
      %3423 = vmatprep.mubr.bf16.mxu0 0
      %3424 = vmatmul.mubr.bf16.gmra.mrb[0].mxu0 %v3285
      %v3425 = vpop.f32.mrb[0].mxu0
      %v3426 = vadd.f32 0.0, %v3425
      %v3427 = vpop.f32.mrb[0].mxu0
      %v3428 = vpop.f32.mrb[0].mxu0
      %v3429 = vadd.f32 0.0, %v3428
      %v3430 = vpop.f32.mrb[0].mxu0
      %3431 = vmatprep.mubr.bf16.mxu0 0
      %3432 = vmatmul.mubr.bf16.gmra.mrb[0].mxu0 %v3288
      %v3433 = vpop.f32.mrb[0].mxu0
      %v3434 = vadd.f32 0.0, %v3433
      %v3435 = vpop.f32.mrb[0].mxu0
      %v3436 = vpop.f32.mrb[0].mxu0
      %v3437 = vadd.f32 0.0, %v3436
      %v3438 = vpop.f32.mrb[0].mxu0
      %3439 = vmatprep.mubr.bf16.mxu0 0
      %3440 = vmatmul.mubr.bf16.gmra.mrb[0].mxu0 %v3291
      %v3441 = vpop.f32.mrb[0].mxu0
      %v3442 = vadd.f32 0.0, %v3441
      %v3443 = vpop.f32.mrb[0].mxu0
      %v3444 = vpop.f32.mrb[0].mxu0
      %v3445 = vadd.f32 0.0, %v3444
      %v3446 = vpop.f32.mrb[0].mxu0
      %3447 = vmatprep.mubr.bf16.mxu0 0
      %3448 = vmatmul.mubr.bf16.gmra.mrb[0].mxu0 %v3294
      %v3449 = vpop.f32.mrb[0].mxu0
      %v3450 = vadd.f32 0.0, %v3449
      %v3451 = vpop.f32.mrb[0].mxu0
      %v3452 = vpop.f32.mrb[0].mxu0
      %v3453 = vadd.f32 0.0, %v3452
      %v3454 = vpop.f32.mrb[0].mxu0
      %3455 = vmatprep.mubr.bf16.mxu0 0
      %3456 = vmatmul.mubr.bf16.gmra.mrb[0].mxu0 %v3297
      %v3457 = vpop.f32.mrb[0].mxu0
      %v3458 = vadd.f32 0.0, %v3457
      %v3459 = vpop.f32.mrb[0].mxu0
      %v3460 = vpop.f32.mrb[0].mxu0
      %v3461 = vadd.f32 0.0, %v3460
      %v3462 = vpop.f32.mrb[0].mxu0
      %3463 = vmatprep.mubr.bf16.mxu0 0
      %3464 = vmatmul.mubr.bf16.gmra.mrb[0].mxu0 %v3300
      %v3465 = vpop.f32.mrb[0].mxu0
      %v3466 = vadd.f32 0.0, %v3465
      %v3467 = vpop.f32.mrb[0].mxu0
      %v3468 = vpop.f32.mrb[0].mxu0
      %v3469 = vadd.f32 0.0, %v3468
      %v3470 = vpop.f32.mrb[0].mxu0
      %3471 = vmatprep.mubr.bf16.mxu0 0
      %3472 = vmatmul.mubr.bf16.gmra.mrb[0].mxu0 %v3303
      %v3473 = vpop.f32.mrb[0].mxu0
      %v3474 = vadd.f32 0.0, %v3473
      %v3475 = vpop.f32.mrb[0].mxu0
      %v3476 = vpop.f32.mrb[0].mxu0
      %v3477 = vadd.f32 0.0, %v3476
      %v3478 = vpop.f32.mrb[0].mxu0
      %3479 = vmatprep.mubr.bf16.mxu0 0
      %3480 = vmatmul.mubr.bf16.gmra.mrb[0].mxu0 %v3306
      %v3481 = vpop.f32.mrb[0].mxu0
      %v3482 = vadd.f32 0.0, %v3481
      %v3483 = vpop.f32.mrb[0].mxu0
      %v3484 = vpop.f32.mrb[0].mxu0
      %v3485 = vadd.f32 0.0, %v3484
      %v3486 = vpop.f32.mrb[0].mxu0
      %3487 = vdwg.mxu0
      %v3488 = vadd.f32 %v3041, %v3346
      %v3489 = vadd.f32 %v3042, %v3349
      %v3490 = vadd.f32 %v3043, %v3354
      %v3491 = vadd.f32 %v3044, %v3357
      %v3492 = vadd.f32 %v3045, %v3362
      %v3493 = vadd.f32 %v3046, %v3365
      %v3494 = vadd.f32 %v3047, %v3370
      %v3495 = vadd.f32 %v3048, %v3373
      %v3496 = vadd.f32 %v3049, %v3378
      %v3497 = vadd.f32 %v3050, %v3381
      %v3498 = vadd.f32 %v3051, %v3386
      %v3499 = vadd.f32 %v3052, %v3389
      %v3500 = vadd.f32 %v3053, %v3394
      %v3501 = vadd.f32 %v3054, %v3397
      %v3502 = vadd.f32 %v3055, %v3402
      %v3503 = vadd.f32 %v3056, %v3405
      %v3504 = vadd.f32 %v3057, %v3410
      %v3505 = vadd.f32 %v3058, %v3413
      %v3506 = vadd.f32 %v3059, %v3418
      %v3507 = vadd.f32 %v3060, %v3421
      %v3508 = vadd.f32 %v3061, %v3426
      %v3509 = vadd.f32 %v3062, %v3429
      %v3510 = vadd.f32 %v3063, %v3434
      %v3511 = vadd.f32 %v3064, %v3437
      %v3512 = vadd.f32 %v3065, %v3442
      %v3513 = vadd.f32 %v3066, %v3445
      %v3514 = vadd.f32 %v3067, %v3450
      %v3515 = vadd.f32 %v3068, %v3453
      %v3516 = vadd.f32 %v3069, %v3458
      %v3517 = vadd.f32 %v3070, %v3461
      %v3518 = vadd.f32 %v3071, %v3466
      %v3519 = vadd.f32 %v3072, %v3469
      %v3520 = vadd.f32 %v3073, %v3474
      %v3521 = vadd.f32 %v3074, %v3477
      %v3522 = vadd.f32 %v3075, %v3482
      %v3523 = vadd.f32 %v3076, %v3485
      %v3524 = vld [vmem:[%s273 + $0x10] sm:$0x8]
      %s3525 = scalar_lea.vmem %s2, 16
      %v3526 = vld [vmem:[%s3525] sm:$0x3]
      %v3528 = vunpack.c.l.b16 %v3524
      %v3529 = vpack.c.b16 %v2715, %v3528
      %vm3530 = vcmask 1044480
      %v3531 = vrot.slane %v3529, 3
      %v3532 = vrot.slane %v2752, 3
      %v3533 = vsel %vm3530, %v3531, %v3532
      %v3534 = vrot.slane %v2753, 3
      %v3535 = vsel %vm3530, %v3532, %v3534
      %v3536 = vrot.slane %v2754, 3
      %v3537 = vsel %vm3530, %v3534, %v3536
      %v3538 = vrot.slane %v2755, 3
      %v3539 = vsel %vm3530, %v3536, %v3538
      %v3540 = vrot.slane %v2756, 3
      %v3541 = vsel %vm3530, %v3538, %v3540
      %v3542 = vrot.slane %v2757, 3
      %v3543 = vsel %vm3530, %v3540, %v3542
      %v3544 = vrot.slane %v2758, 3
      %v3545 = vsel %vm3530, %v3542, %v3544
      %v3546 = vrot.slane %v2759, 3
      %v3547 = vsel %vm3530, %v3544, %v3546
      %v3548 = vrot.slane %v2760, 3
      %v3549 = vsel %vm3530, %v3546, %v3548
      %v3550 = vrot.slane %v2761, 3
      %v3551 = vsel %vm3530, %v3548, %v3550
      %v3552 = vrot.slane %v2762, 3
      %v3553 = vsel %vm3530, %v3550, %v3552
      %v3554 = vrot.slane %v2763, 3
      %v3555 = vsel %vm3530, %v3552, %v3554
      %v3556 = vrot.slane %v2764, 3
      %v3557 = vsel %vm3530, %v3554, %v3556
      %v3558 = vrot.slane %v2765, 3
      %v3559 = vsel %vm3530, %v3556, %v3558
      %v3560 = vrot.slane %v2766, 3
      %v3561 = vsel %vm3530, %v3558, %v3560
      %v3562 = vrot.slane %v2767, 3
      %v3563 = vsel %vm3530, %v3560, %v3562
      %v3564 = vrot.slane %v2768, 3
      %v3565 = vsel %vm3530, %v3562, %v3564
      %v3566 = vrot.slane %v3082, 3
      %v3567 = vsel %vm3530, %v3564, %v3566
      %v3569 = vsel %vm554, %v3533, 0
      %v3572 = vsel %vm554, %v3535, 0
      %v3575 = vsel %vm554, %v3537, 0
      %v3578 = vsel %vm554, %v3539, 0
      %v3581 = vsel %vm554, %v3541, 0
      %v3584 = vsel %vm554, %v3543, 0
      %v3587 = vsel %vm554, %v3545, 0
      %v3590 = vsel %vm554, %v3547, 0
      %v3593 = vsel %vm554, %v3549, 0
      %v3596 = vsel %vm554, %v3551, 0
      %v3599 = vsel %vm554, %v3553, 0
      %v3602 = vsel %vm554, %v3555, 0
      %v3605 = vsel %vm554, %v3557, 0
      %v3608 = vsel %vm554, %v3559, 0
      %v3611 = vsel %vm554, %v3561, 0
      %v3614 = vsel %vm554, %v3563, 0
      %v3617 = vsel %vm554, %v3565, 0
      %v3620 = vsel %vm554, %v3567, 0
      %v3623 = vsel %vm609, %v3526, 0
      %3625 = vmatprep.subr.bf16.mxu0 0
      %3626 = vmatpush1.bf16.msra.mxu0 %v3623
      %3627 = vmatprep.subr.bf16.mxu0 0
      %3628 = vmatpush1.bf16.msra.mxu0 0
      %3629 = vmatprep.subr.bf16.mxu0 0
      %3630 = vmatpush1.bf16.msra.mxu0 0
      %3631 = vmatprep.subr.bf16.mxu0 0
      %3632 = vmatpush1.bf16.msra.mxu0 0
      %3633 = vmatprep.subr.bf16.mxu0 0
      %3634 = vmatpush1.bf16.msra.mxu0 0
      %3635 = vmatprep.subr.bf16.mxu0 0
      %3636 = vmatpush1.bf16.msra.mxu0 0
      %3637 = vmatprep.subr.bf16.mxu0 0
      %3638 = vmatpush1.bf16.msra.mxu0 0
      %3639 = vmatprep.subr.bf16.mxu0 0
      %3640 = vmatpush1.bf16.msra.mxu0 0
      %3641 = vmatprep.subr.bf16.mxu0 0
      %3642 = vmatpush1.bf16.msra.mxu0 0
      %3643 = vmatprep.subr.bf16.mxu0 0
      %3644 = vmatpush1.bf16.msra.mxu0 0
      %3645 = vmatprep.subr.bf16.mxu0 0
      %3646 = vmatpush1.bf16.msra.mxu0 0
      %3647 = vmatprep.subr.bf16.mxu0 0
      %3648 = vmatpush1.bf16.msra.mxu0 0
      %3649 = vmatprep.subr.bf16.mxu0 0
      %3650 = vmatpush1.bf16.msra.mxu0 0
      %3651 = vmatprep.subr.bf16.mxu0 0
      %3652 = vmatpush1.bf16.msra.mxu0 0
      %3653 = vmatprep.subr.bf16.mxu0 0
      %3654 = vmatpush1.bf16.msra.mxu0 0
      %3655 = vmatprep.subr.bf16.mxu0 0
      %3656 = vmatpush1.bf16.msra.mxu0 0
      %3657 = vmatprep.mubr.bf16.mxu0 0
      %3658 = vmatmul.mubr.bf16.gmra.mrb[0].mxu0 %v3569
      %v3659 = vpop.f32.mrb[0].mxu0
      %v3660 = vadd.f32 0.0, %v3659
      %v3661 = vpop.f32.mrb[0].mxu0
      %v3662 = vpop.f32.mrb[0].mxu0
      %v3663 = vadd.f32 0.0, %v3662
      %v3664 = vpop.f32.mrb[0].mxu0
      %3665 = vmatprep.mubr.bf16.mxu0 0
      %3666 = vmatmul.mubr.bf16.gmra.mrb[0].mxu0 %v3572
      %v3667 = vpop.f32.mrb[0].mxu0
      %v3668 = vadd.f32 0.0, %v3667
      %v3669 = vpop.f32.mrb[0].mxu0
      %v3670 = vpop.f32.mrb[0].mxu0
      %v3671 = vadd.f32 0.0, %v3670
      %v3672 = vpop.f32.mrb[0].mxu0
      %3673 = vmatprep.mubr.bf16.mxu0 0
      %3674 = vmatmul.mubr.bf16.gmra.mrb[0].mxu0 %v3575
      %v3675 = vpop.f32.mrb[0].mxu0
      %v3676 = vadd.f32 0.0, %v3675
      %v3677 = vpop.f32.mrb[0].mxu0
      %v3678 = vpop.f32.mrb[0].mxu0
      %v3679 = vadd.f32 0.0, %v3678
      %v3680 = vpop.f32.mrb[0].mxu0
      %3681 = vmatprep.mubr.bf16.mxu0 0
      %3682 = vmatmul.mubr.bf16.gmra.mrb[0].mxu0 %v3578
      %v3683 = vpop.f32.mrb[0].mxu0
      %v3684 = vadd.f32 0.0, %v3683
      %v3685 = vpop.f32.mrb[0].mxu0
      %v3686 = vpop.f32.mrb[0].mxu0
      %v3687 = vadd.f32 0.0, %v3686
      %v3688 = vpop.f32.mrb[0].mxu0
      %3689 = vmatprep.mubr.bf16.mxu0 0
      %3690 = vmatmul.mubr.bf16.gmra.mrb[0].mxu0 %v3581
      %v3691 = vpop.f32.mrb[0].mxu0
      %v3692 = vadd.f32 0.0, %v3691
      %v3693 = vpop.f32.mrb[0].mxu0
      %v3694 = vpop.f32.mrb[0].mxu0
      %v3695 = vadd.f32 0.0, %v3694
      %v3696 = vpop.f32.mrb[0].mxu0
      %3697 = vmatprep.mubr.bf16.mxu0 0
      %3698 = vmatmul.mubr.bf16.gmra.mrb[0].mxu0 %v3584
      %v3699 = vpop.f32.mrb[0].mxu0
      %v3700 = vadd.f32 0.0, %v3699
      %v3701 = vpop.f32.mrb[0].mxu0
      %v3702 = vpop.f32.mrb[0].mxu0
      %v3703 = vadd.f32 0.0, %v3702
      %v3704 = vpop.f32.mrb[0].mxu0
      %3705 = vmatprep.mubr.bf16.mxu0 0
      %3706 = vmatmul.mubr.bf16.gmra.mrb[0].mxu0 %v3587
      %v3707 = vpop.f32.mrb[0].mxu0
      %v3708 = vadd.f32 0.0, %v3707
      %v3709 = vpop.f32.mrb[0].mxu0
      %v3710 = vpop.f32.mrb[0].mxu0
      %v3711 = vadd.f32 0.0, %v3710
      %v3712 = vpop.f32.mrb[0].mxu0
      %3713 = vmatprep.mubr.bf16.mxu0 0
      %3714 = vmatmul.mubr.bf16.gmra.mrb[0].mxu0 %v3590
      %v3715 = vpop.f32.mrb[0].mxu0
      %v3716 = vadd.f32 0.0, %v3715
      %v3717 = vpop.f32.mrb[0].mxu0
      %v3718 = vpop.f32.mrb[0].mxu0
      %v3719 = vadd.f32 0.0, %v3718
      %v3720 = vpop.f32.mrb[0].mxu0
      %3721 = vmatprep.mubr.bf16.mxu0 0
      %3722 = vmatmul.mubr.bf16.gmra.mrb[0].mxu0 %v3593
      %v3723 = vpop.f32.mrb[0].mxu0
      %v3724 = vadd.f32 0.0, %v3723
      %v3725 = vpop.f32.mrb[0].mxu0
      %v3726 = vpop.f32.mrb[0].mxu0
      %v3727 = vadd.f32 0.0, %v3726
      %v3728 = vpop.f32.mrb[0].mxu0
      %3729 = vmatprep.mubr.bf16.mxu0 0
      %3730 = vmatmul.mubr.bf16.gmra.mrb[0].mxu0 %v3596
      %v3731 = vpop.f32.mrb[0].mxu0
      %v3732 = vadd.f32 0.0, %v3731
      %v3733 = vpop.f32.mrb[0].mxu0
      %v3734 = vpop.f32.mrb[0].mxu0
      %v3735 = vadd.f32 0.0, %v3734
      %v3736 = vpop.f32.mrb[0].mxu0
      %3737 = vmatprep.mubr.bf16.mxu0 0
      %3738 = vmatmul.mubr.bf16.gmra.mrb[0].mxu0 %v3599
      %v3739 = vpop.f32.mrb[0].mxu0
      %v3740 = vadd.f32 0.0, %v3739
      %v3741 = vpop.f32.mrb[0].mxu0
      %v3742 = vpop.f32.mrb[0].mxu0
      %v3743 = vadd.f32 0.0, %v3742
      %v3744 = vpop.f32.mrb[0].mxu0
      %3745 = vmatprep.mubr.bf16.mxu0 0
      %3746 = vmatmul.mubr.bf16.gmra.mrb[0].mxu0 %v3602
      %v3747 = vpop.f32.mrb[0].mxu0
      %v3748 = vadd.f32 0.0, %v3747
      %v3749 = vpop.f32.mrb[0].mxu0
      %v3750 = vpop.f32.mrb[0].mxu0
      %v3751 = vadd.f32 0.0, %v3750
      %v3752 = vpop.f32.mrb[0].mxu0
      %3753 = vmatprep.mubr.bf16.mxu0 0
      %3754 = vmatmul.mubr.bf16.gmra.mrb[0].mxu0 %v3605
      %v3755 = vpop.f32.mrb[0].mxu0
      %v3756 = vadd.f32 0.0, %v3755
      %v3757 = vpop.f32.mrb[0].mxu0
      %v3758 = vpop.f32.mrb[0].mxu0
      %v3759 = vadd.f32 0.0, %v3758
      %v3760 = vpop.f32.mrb[0].mxu0
      %3761 = vmatprep.mubr.bf16.mxu0 0
      %3762 = vmatmul.mubr.bf16.gmra.mrb[0].mxu0 %v3608
      %v3763 = vpop.f32.mrb[0].mxu0
      %v3764 = vadd.f32 0.0, %v3763
      %v3765 = vpop.f32.mrb[0].mxu0
      %v3766 = vpop.f32.mrb[0].mxu0
      %v3767 = vadd.f32 0.0, %v3766
      %v3768 = vpop.f32.mrb[0].mxu0
      %3769 = vmatprep.mubr.bf16.mxu0 0
      %3770 = vmatmul.mubr.bf16.gmra.mrb[0].mxu0 %v3611
      %v3771 = vpop.f32.mrb[0].mxu0
      %v3772 = vadd.f32 0.0, %v3771
      %v3773 = vpop.f32.mrb[0].mxu0
      %v3774 = vpop.f32.mrb[0].mxu0
      %v3775 = vadd.f32 0.0, %v3774
      %v3776 = vpop.f32.mrb[0].mxu0
      %3777 = vmatprep.mubr.bf16.mxu0 0
      %3778 = vmatmul.mubr.bf16.gmra.mrb[0].mxu0 %v3614
      %v3779 = vpop.f32.mrb[0].mxu0
      %v3780 = vadd.f32 0.0, %v3779
      %v3781 = vpop.f32.mrb[0].mxu0
      %v3782 = vpop.f32.mrb[0].mxu0
      %v3783 = vadd.f32 0.0, %v3782
      %v3784 = vpop.f32.mrb[0].mxu0
      %3785 = vmatprep.mubr.bf16.mxu0 0
      %3786 = vmatmul.mubr.bf16.gmra.mrb[0].mxu0 %v3617
      %v3787 = vpop.f32.mrb[0].mxu0
      %v3788 = vadd.f32 0.0, %v3787
      %v3789 = vpop.f32.mrb[0].mxu0
      %v3790 = vpop.f32.mrb[0].mxu0
      %v3791 = vadd.f32 0.0, %v3790
      %v3792 = vpop.f32.mrb[0].mxu0
      %3793 = vmatprep.mubr.bf16.mxu0 0
      %3794 = vmatmul.mubr.bf16.gmra.mrb[0].mxu0 %v3620
      %v3795 = vpop.f32.mrb[0].mxu0
      %v3796 = vadd.f32 0.0, %v3795
      %v3797 = vpop.f32.mrb[0].mxu0
      %v3798 = vpop.f32.mrb[0].mxu0
      %v3799 = vadd.f32 0.0, %v3798
      %v3800 = vpop.f32.mrb[0].mxu0
      %3801 = vdwg.mxu0
      %v3802 = vadd.f32 %v3488, %v3660
      %v3803 = vadd.f32 %v3489, %v3663
      %v3804 = vadd.f32 %v3490, %v3668
      %v3805 = vadd.f32 %v3491, %v3671
      %v3806 = vadd.f32 %v3492, %v3676
      %v3807 = vadd.f32 %v3493, %v3679
      %v3808 = vadd.f32 %v3494, %v3684
      %v3809 = vadd.f32 %v3495, %v3687
      %v3810 = vadd.f32 %v3496, %v3692
      %v3811 = vadd.f32 %v3497, %v3695
      %v3812 = vadd.f32 %v3498, %v3700
      %v3813 = vadd.f32 %v3499, %v3703
      %v3814 = vadd.f32 %v3500, %v3708
      %v3815 = vadd.f32 %v3501, %v3711
      %v3816 = vadd.f32 %v3502, %v3716
      %v3817 = vadd.f32 %v3503, %v3719
      %v3818 = vadd.f32 %v3504, %v3724
      %v3819 = vadd.f32 %v3505, %v3727
      %v3820 = vadd.f32 %v3506, %v3732
      %v3821 = vadd.f32 %v3507, %v3735
      %v3822 = vadd.f32 %v3508, %v3740
      %v3823 = vadd.f32 %v3509, %v3743
      %v3824 = vadd.f32 %v3510, %v3748
      %v3825 = vadd.f32 %v3511, %v3751
      %v3826 = vadd.f32 %v3512, %v3756
      %v3827 = vadd.f32 %v3513, %v3759
      %v3828 = vadd.f32 %v3514, %v3764
      %v3829 = vadd.f32 %v3515, %v3767
      %v3830 = vadd.f32 %v3516, %v3772
      %v3831 = vadd.f32 %v3517, %v3775
      %v3832 = vadd.f32 %v3518, %v3780
      %v3833 = vadd.f32 %v3519, %v3783
      %v3834 = vadd.f32 %v3520, %v3788
      %v3835 = vadd.f32 %v3521, %v3791
      %v3836 = vadd.f32 %v3522, %v3796
      %v3837 = vadd.f32 %v3523, %v3799
      %v3838 = vld [vmem:[%s3] sm:$0x1]
      %v3840 = vlaneseq
      %v3841 = vshrl.u32 %v3840, 7
      %v3842 = vsub.s32 0, %v3841
      %v3843 = vrot.slane %v3838, %v3842
      %v3845 = vadd.f32 %v3802, %v3843
      %v3846 = vadd.f32 %v3803, %v3843
      %v3847 = vadd.f32 %v3804, %v3843
      %v3848 = vadd.f32 %v3805, %v3843
      %v3849 = vadd.f32 %v3806, %v3843
      %v3850 = vadd.f32 %v3807, %v3843
      %v3851 = vadd.f32 %v3808, %v3843
      %v3852 = vadd.f32 %v3809, %v3843
      %v3853 = vadd.f32 %v3810, %v3843
      %v3854 = vadd.f32 %v3811, %v3843
      %v3855 = vadd.f32 %v3812, %v3843
      %v3856 = vadd.f32 %v3813, %v3843
      %v3857 = vadd.f32 %v3814, %v3843
      %v3858 = vadd.f32 %v3815, %v3843
      %v3859 = vadd.f32 %v3816, %v3843
      %v3860 = vadd.f32 %v3817, %v3843
      %v3861 = vadd.f32 %v3818, %v3843
      %v3862 = vadd.f32 %v3819, %v3843
      %v3863 = vadd.f32 %v3820, %v3843
      %v3864 = vadd.f32 %v3821, %v3843
      %v3865 = vadd.f32 %v3822, %v3843
      %v3866 = vadd.f32 %v3823, %v3843
      %v3867 = vadd.f32 %v3824, %v3843
      %v3868 = vadd.f32 %v3825, %v3843
      %v3869 = vadd.f32 %v3826, %v3843
      %v3870 = vadd.f32 %v3827, %v3843
      %v3871 = vadd.f32 %v3828, %v3843
      %v3872 = vadd.f32 %v3829, %v3843
      %v3873 = vadd.f32 %v3830, %v3843
      %v3874 = vadd.f32 %v3831, %v3843
      %v3875 = vadd.f32 %v3832, %v3843
      %v3876 = vadd.f32 %v3833, %v3843
      %v3877 = vadd.f32 %v3834, %v3843
      %v3878 = vadd.f32 %v3835, %v3843
      %v3879 = vadd.f32 %v3836, %v3843
      %v3880 = vadd.f32 %v3837, %v3843
      %v3881 = vmax.f32 %v3845, 0.0
      %v3882 = vmax.f32 %v3846, 0.0
      %v3883 = vmax.f32 %v3847, 0.0
      %v3884 = vmax.f32 %v3848, 0.0
      %v3885 = vmax.f32 %v3849, 0.0
      %v3886 = vmax.f32 %v3850, 0.0
      %v3887 = vmax.f32 %v3851, 0.0
      %v3888 = vmax.f32 %v3852, 0.0
      %v3889 = vmax.f32 %v3853, 0.0
      %v3890 = vmax.f32 %v3854, 0.0
      %v3891 = vmax.f32 %v3855, 0.0
      %v3892 = vmax.f32 %v3856, 0.0
      %v3893 = vmax.f32 %v3857, 0.0
      %v3894 = vmax.f32 %v3858, 0.0
      %v3895 = vmax.f32 %v3859, 0.0
      %v3896 = vmax.f32 %v3860, 0.0
      %v3897 = vmax.f32 %v3861, 0.0
      %v3898 = vmax.f32 %v3862, 0.0
      %v3899 = vmax.f32 %v3863, 0.0
      %v3900 = vmax.f32 %v3864, 0.0
      %v3901 = vmax.f32 %v3865, 0.0
      %v3902 = vmax.f32 %v3866, 0.0
      %v3903 = vmax.f32 %v3867, 0.0
      %v3904 = vmax.f32 %v3868, 0.0
      %v3905 = vmax.f32 %v3869, 0.0
      %v3906 = vmax.f32 %v3870, 0.0
      %v3907 = vmax.f32 %v3871, 0.0
      %v3908 = vmax.f32 %v3872, 0.0
      %v3909 = vmax.f32 %v3873, 0.0
      %v3910 = vmax.f32 %v3874, 0.0
      %v3911 = vmax.f32 %v3875, 0.0
      %v3912 = vmax.f32 %v3876, 0.0
      %v3913 = vmax.f32 %v3877, 0.0
      %v3914 = vmax.f32 %v3878, 0.0
      %v3915 = vmax.f32 %v3879, 0.0
      %v3916 = vmax.f32 %v3880, 0.0
      %v3917 = vld [vmem:[%s1] sm:$0xff]
      %v3918 = vld [vmem:[%s1 + $0x8] sm:$0xff]
      %v3919 = vld [vmem:[%s1 + $0x10] sm:$0xff]
      %v3920 = vld [vmem:[%s1 + $0x18] sm:$0xff]
      %v3921 = vld [vmem:[%s1 + $0x20] sm:$0xff]
      %v3922 = vld [vmem:[%s1 + $0x28] sm:$0xff]
      %v3923 = vld [vmem:[%s1 + $0x30] sm:$0xff]
      %v3924 = vld [vmem:[%s1 + $0x38] sm:$0xff]
      %v3925 = vld [vmem:[%s1 + $0x40] sm:$0xff]
      %v3926 = vld [vmem:[%s1 + $0x48] sm:$0xff]
      %v3927 = vld [vmem:[%s1 + $0x50] sm:$0xff]
      %v3928 = vld [vmem:[%s1 + $0x58] sm:$0xff]
      %v3929 = vld [vmem:[%s1 + $0x60] sm:$0xff]
      %v3930 = vld [vmem:[%s1 + $0x68] sm:$0xff]
      %v3931 = vld [vmem:[%s1 + $0x70] sm:$0xff]
      %v3932 = vld [vmem:[%s1 + $0x78] sm:$0xff]
      %v3933 = vld [vmem:[%s1 + $0x80] sm:$0xff]
      %v3934 = vld [vmem:[%s1 + $0x88] sm:$0xff]
      %v3935 = vld [vmem:[%s1 + $0x90] sm:$0xff]
      %v3936 = vld [vmem:[%s1 + $0x98] sm:$0xff]
      %v3937 = vld [vmem:[%s1 + $0xa0] sm:$0xff]
      %v3938 = vld [vmem:[%s1 + $0xa8] sm:$0xff]
      %v3939 = vld [vmem:[%s1 + $0xb0] sm:$0xff]
      %v3940 = vld [vmem:[%s1 + $0xb8] sm:$0xff]
      %v3941 = vld [vmem:[%s1 + $0xc0] sm:$0xff]
      %v3942 = vld [vmem:[%s1 + $0xc8] sm:$0xff]
      %v3943 = vld [vmem:[%s1 + $0xd0] sm:$0xff]
      %v3944 = vld [vmem:[%s1 + $0xd8] sm:$0xff]
      %v3945 = vld [vmem:[%s1 + $0xe0] sm:$0xff]
      %v3946 = vld [vmem:[%s1 + $0xe8] sm:$0xff]
      %v3947 = vld [vmem:[%s1 + $0xf0] sm:$0xff]
      %v3948 = vld [vmem:[%s1 + $0xf8] sm:$0xff]
      %v3949 = vld [vmem:[%s1 + $0x100] sm:$0xff]
      %v3950 = vld [vmem:[%s1 + $0x108] sm:$0xff]
      %v3951 = vld [vmem:[%s1 + $0x110] sm:$0xff]
      %v3952 = vld [vmem:[%s1 + $0x118] sm:$0x3f]
      %3954 = vset.pattern.permute.xlu0 0
      %3955 = vperm.xlu0 %3954, %v3917
      %v3956 = vpop.permute.xlu0 %3955
      %3959 = vset.pattern.permute.xlu0 0
      %3960 = vperm.xlu0 %3959, %v3918
      %v3961 = vpop.permute.xlu0 %3960
      %3964 = vset.pattern.permute.xlu0 0
      %3965 = vperm.xlu0 %3964, %v3919
      %v3966 = vpop.permute.xlu0 %3965
      %3969 = vset.pattern.permute.xlu0 0
      %3970 = vperm.xlu0 %3969, %v3920
      %v3971 = vpop.permute.xlu0 %3970
      %3974 = vset.pattern.permute.xlu0 0
      %3975 = vperm.xlu0 %3974, %v3921
      %v3976 = vpop.permute.xlu0 %3975
      %3979 = vset.pattern.permute.xlu0 0
      %3980 = vperm.xlu0 %3979, %v3922
      %v3981 = vpop.permute.xlu0 %3980
      %3984 = vset.pattern.permute.xlu0 0
      %3985 = vperm.xlu0 %3984, %v3923
      %v3986 = vpop.permute.xlu0 %3985
      %3989 = vset.pattern.permute.xlu0 0
      %3990 = vperm.xlu0 %3989, %v3924
      %v3991 = vpop.permute.xlu0 %3990
      %3994 = vset.pattern.permute.xlu0 0
      %3995 = vperm.xlu0 %3994, %v3925
      %v3996 = vpop.permute.xlu0 %3995
      %3999 = vset.pattern.permute.xlu0 0
      %4000 = vperm.xlu0 %3999, %v3926
      %v4001 = vpop.permute.xlu0 %4000
      %4004 = vset.pattern.permute.xlu0 0
      %4005 = vperm.xlu0 %4004, %v3927
      %v4006 = vpop.permute.xlu0 %4005
      %4009 = vset.pattern.permute.xlu0 0
      %4010 = vperm.xlu0 %4009, %v3928
      %v4011 = vpop.permute.xlu0 %4010
      %4014 = vset.pattern.permute.xlu0 0
      %4015 = vperm.xlu0 %4014, %v3929
      %v4016 = vpop.permute.xlu0 %4015
      %4019 = vset.pattern.permute.xlu0 0
      %4020 = vperm.xlu0 %4019, %v3930
      %v4021 = vpop.permute.xlu0 %4020
      %4024 = vset.pattern.permute.xlu0 0
      %4025 = vperm.xlu0 %4024, %v3931
      %v4026 = vpop.permute.xlu0 %4025
      %4029 = vset.pattern.permute.xlu0 0
      %4030 = vperm.xlu0 %4029, %v3932
      %v4031 = vpop.permute.xlu0 %4030
      %4034 = vset.pattern.permute.xlu0 0
      %4035 = vperm.xlu0 %4034, %v3933
      %v4036 = vpop.permute.xlu0 %4035
      %4039 = vset.pattern.permute.xlu0 0
      %4040 = vperm.xlu0 %4039, %v3934
      %v4041 = vpop.permute.xlu0 %4040
      %4044 = vset.pattern.permute.xlu0 0
      %4045 = vperm.xlu0 %4044, %v3935
      %v4046 = vpop.permute.xlu0 %4045
      %4049 = vset.pattern.permute.xlu0 0
      %4050 = vperm.xlu0 %4049, %v3936
      %v4051 = vpop.permute.xlu0 %4050
      %4054 = vset.pattern.permute.xlu0 0
      %4055 = vperm.xlu0 %4054, %v3937
      %v4056 = vpop.permute.xlu0 %4055
      %4059 = vset.pattern.permute.xlu0 0
      %4060 = vperm.xlu0 %4059, %v3938
      %v4061 = vpop.permute.xlu0 %4060
      %4064 = vset.pattern.permute.xlu0 0
      %4065 = vperm.xlu0 %4064, %v3939
      %v4066 = vpop.permute.xlu0 %4065
      %4069 = vset.pattern.permute.xlu0 0
      %4070 = vperm.xlu0 %4069, %v3940
      %v4071 = vpop.permute.xlu0 %4070
      %4074 = vset.pattern.permute.xlu0 0
      %4075 = vperm.xlu0 %4074, %v3941
      %v4076 = vpop.permute.xlu0 %4075
      %4079 = vset.pattern.permute.xlu0 0
      %4080 = vperm.xlu0 %4079, %v3942
      %v4081 = vpop.permute.xlu0 %4080
      %4084 = vset.pattern.permute.xlu0 0
      %4085 = vperm.xlu0 %4084, %v3943
      %v4086 = vpop.permute.xlu0 %4085
      %4089 = vset.pattern.permute.xlu0 0
      %4090 = vperm.xlu0 %4089, %v3944
      %v4091 = vpop.permute.xlu0 %4090
      %4094 = vset.pattern.permute.xlu0 0
      %4095 = vperm.xlu0 %4094, %v3945
      %v4096 = vpop.permute.xlu0 %4095
      %4099 = vset.pattern.permute.xlu0 0
      %4100 = vperm.xlu0 %4099, %v3946
      %v4101 = vpop.permute.xlu0 %4100
      %4104 = vset.pattern.permute.xlu0 0
      %4105 = vperm.xlu0 %4104, %v3947
      %v4106 = vpop.permute.xlu0 %4105
      %4109 = vset.pattern.permute.xlu0 0
      %4110 = vperm.xlu0 %4109, %v3948
      %v4111 = vpop.permute.xlu0 %4110
      %4114 = vset.pattern.permute.xlu0 0
      %4115 = vperm.xlu0 %4114, %v3949
      %v4116 = vpop.permute.xlu0 %4115
      %4119 = vset.pattern.permute.xlu0 0
      %4120 = vperm.xlu0 %4119, %v3950
      %v4121 = vpop.permute.xlu0 %4120
      %4124 = vset.pattern.permute.xlu0 0
      %4125 = vperm.xlu0 %4124, %v3951
      %v4126 = vpop.permute.xlu0 %4125
      %4129 = vset.pattern.permute.xlu0 0
      %4130 = vperm.xlu0 %4129, %v3952
      %v4131 = vpop.permute.xlu0 %4130
      %v4133 = vmul.f32 %v3881, %v3956
      %v4134 = vmul.f32 %v3882, %v3961
      %v4135 = vmul.f32 %v3883, %v3966
      %v4136 = vmul.f32 %v3884, %v3971
      %v4137 = vmul.f32 %v3885, %v3976
      %v4138 = vmul.f32 %v3886, %v3981
      %v4139 = vmul.f32 %v3887, %v3986
      %v4140 = vmul.f32 %v3888, %v3991
      %v4141 = vmul.f32 %v3889, %v3996
      %v4142 = vmul.f32 %v3890, %v4001
      %v4143 = vmul.f32 %v3891, %v4006
      %v4144 = vmul.f32 %v3892, %v4011
      %v4145 = vmul.f32 %v3893, %v4016
      %v4146 = vmul.f32 %v3894, %v4021
      %v4147 = vmul.f32 %v3895, %v4026
      %v4148 = vmul.f32 %v3896, %v4031
      %v4149 = vmul.f32 %v3897, %v4036
      %v4150 = vmul.f32 %v3898, %v4041
      %v4151 = vmul.f32 %v3899, %v4046
      %v4152 = vmul.f32 %v3900, %v4051
      %v4153 = vmul.f32 %v3901, %v4056
      %v4154 = vmul.f32 %v3902, %v4061
      %v4155 = vmul.f32 %v3903, %v4066
      %v4156 = vmul.f32 %v3904, %v4071
      %v4157 = vmul.f32 %v3905, %v4076
      %v4158 = vmul.f32 %v3906, %v4081
      %v4159 = vmul.f32 %v3907, %v4086
      %v4160 = vmul.f32 %v3908, %v4091
      %v4161 = vmul.f32 %v3909, %v4096
      %v4162 = vmul.f32 %v3910, %v4101
      %v4163 = vmul.f32 %v3911, %v4106
      %v4164 = vmul.f32 %v3912, %v4111
      %v4165 = vmul.f32 %v3913, %v4116
      %v4166 = vmul.f32 %v3914, %v4121
      %v4167 = vmul.f32 %v3915, %v4126
      %v4168 = vmul.f32 %v3916, %v4131
      %4169 = vst [vmem:[#allocation2] sm:$0xf] 0
      %4170 = vst [vmem:[#allocation2 + $0x4] sm:$0xf] 0
      %4171 = vst [vmem:[#allocation2 + $0x8] sm:$0xf] 0
      %4172 = vst [vmem:[#allocation2 + $0xc] sm:$0xf] 0
      %4173 = vst [vmem:[#allocation2 + $0x10] sm:$0xf] 0
      %4174 = vst [vmem:[#allocation2 + $0x14] sm:$0xf] 0
      %4175 = vst [vmem:[#allocation2 + $0x18] sm:$0xf] 0
      %4176 = vst [vmem:[#allocation2 + $0x1c] sm:$0xf] 0
      %4177 = vst [vmem:[#allocation2 + $0x20] sm:$0xf] 0
      %4178 = vst [vmem:[#allocation2 + $0x24] sm:$0xf] 0
      %4179 = vst [vmem:[#allocation2 + $0x28] sm:$0xf] 0
      %4180 = vst [vmem:[#allocation2 + $0x2c] sm:$0xf] 0
      %4181 = vst [vmem:[#allocation2 + $0x30] sm:$0xf] 0
      %4182 = vst [vmem:[#allocation2 + $0x34] sm:$0xf] 0
      %4183 = vst [vmem:[#allocation2 + $0x38] sm:$0xf] 0
      %4184 = vst [vmem:[#allocation2 + $0x3c] sm:$0xf] 0
      %4185 = vst [vmem:[#allocation2 + $0x40] sm:$0xf] 0
      %4186 = vst [vmem:[#allocation2 + $0x44] sm:$0xf] 0
      %4187 = vst [vmem:[#allocation2 + $0x48] sm:$0xf] 0
      %4188 = vst [vmem:[#allocation2 + $0x4c] sm:$0xf] 0
      %4189 = vst [vmem:[#allocation2 + $0x50] sm:$0xf] 0
      %4190 = vst [vmem:[#allocation2 + $0x54] sm:$0xf] 0
      %4191 = vst [vmem:[#allocation2 + $0x58] sm:$0xf] 0
      %4192 = vst [vmem:[#allocation2 + $0x5c] sm:$0xf] 0
      %4193 = vst [vmem:[#allocation2 + $0x60] sm:$0xf] 0
      %4194 = vst [vmem:[#allocation2 + $0x64] sm:$0xf] 0
      %4195 = vst [vmem:[#allocation2 + $0x68] sm:$0xf] 0
      %4196 = vst [vmem:[#allocation2 + $0x6c] sm:$0xf] 0
      %4197 = vst [vmem:[#allocation2 + $0x70] sm:$0xf] 0
      %4198 = vst [vmem:[#allocation2 + $0x74] sm:$0xf] 0
      %4199 = vst [vmem:[#allocation2 + $0x78] sm:$0xf] 0
      %4200 = vst [vmem:[#allocation2 + $0x7c] sm:$0xf] 0
      %4201 = vst [vmem:[#allocation2 + $0x80] sm:$0xf] 0
      %4202 = vst [vmem:[#allocation2 + $0x84] sm:$0xf] 0
      %4203 = vst [vmem:[#allocation2 + $0x88] sm:$0xf] 0
      %4204 = vst [vmem:[#allocation2 + $0x8c] sm:$0xf] 0
      %4205 = vst [vmem:[#allocation2 + $0x90] sm:$0xf] 0
      %4206 = vst [vmem:[#allocation2 + $0x94] sm:$0xf] 0
      %4207 = vst [vmem:[#allocation2 + $0x98] sm:$0xf] 0
      %4208 = vst [vmem:[#allocation2 + $0x9c] sm:$0xf] 0
      %4209 = vst [vmem:[#allocation2 + $0xa0] sm:$0x3] 0
      %v4210 = vpack.c.bf16 %v4134, %v4133
      %v4211 = vpack.c.bf16 %v4136, %v4135
      %v4212 = vpack.c.bf16 %v4138, %v4137
      %v4213 = vpack.c.bf16 %v4140, %v4139
      %v4214 = vpack.c.bf16 %v4142, %v4141
      %v4215 = vpack.c.bf16 %v4144, %v4143
      %v4216 = vpack.c.bf16 %v4146, %v4145
      %v4217 = vpack.c.bf16 %v4148, %v4147
      %v4218 = vpack.c.bf16 %v4150, %v4149
      %v4219 = vpack.c.bf16 %v4152, %v4151
      %v4220 = vpack.c.bf16 %v4154, %v4153
      %v4221 = vpack.c.bf16 %v4156, %v4155
      %v4222 = vpack.c.bf16 %v4158, %v4157
      %v4223 = vpack.c.bf16 %v4160, %v4159
      %v4224 = vpack.c.bf16 %v4162, %v4161
      %v4225 = vpack.c.bf16 %v4164, %v4163
      %v4226 = vpack.c.bf16 %v4166, %v4165
      %v4227 = vpack.c.bf16 %v4168, %v4167
      %v4246 = vunpack.c.l.b16 %v4210
      %v4247 = vunpack.c.h.b16 %v4210
      %v4248 = vunpack.c.l.b16 %v4211
      %v4249 = vunpack.c.h.b16 %v4211
      %v4250 = vunpack.c.l.b16 %v4212
      %v4251 = vunpack.c.h.b16 %v4212
      %v4252 = vunpack.c.l.b16 %v4213
      %v4253 = vunpack.c.h.b16 %v4213
      %v4254 = vunpack.c.l.b16 %v4214
      %v4255 = vunpack.c.h.b16 %v4214
      %v4256 = vunpack.c.l.b16 %v4215
      %v4257 = vunpack.c.h.b16 %v4215
      %v4258 = vunpack.c.l.b16 %v4216
      %v4259 = vunpack.c.h.b16 %v4216
      %v4260 = vunpack.c.l.b16 %v4217
      %v4261 = vunpack.c.h.b16 %v4217
      %v4262 = vunpack.c.l.b16 %v4218
      %v4263 = vunpack.c.h.b16 %v4218
      %v4264 = vunpack.c.l.b16 %v4219
      %v4265 = vunpack.c.h.b16 %v4219
      %v4266 = vunpack.c.l.b16 %v4220
      %v4267 = vunpack.c.h.b16 %v4220
      %v4268 = vunpack.c.l.b16 %v4221
      %v4269 = vunpack.c.h.b16 %v4221
      %v4270 = vunpack.c.l.b16 %v4222
      %v4271 = vunpack.c.h.b16 %v4222
      %v4272 = vunpack.c.l.b16 %v4223
      %v4273 = vunpack.c.h.b16 %v4223
      %v4274 = vunpack.c.l.b16 %v4224
      %v4275 = vunpack.c.h.b16 %v4224
      %v4276 = vunpack.c.l.b16 %v4225
      %v4277 = vunpack.c.h.b16 %v4225
      %v4278 = vunpack.c.l.b16 %v4226
      %v4279 = vunpack.c.h.b16 %v4226
      %v4280 = vunpack.c.l.b16 %v4227
      %v4281 = vunpack.c.h.b16 %v4227
      %v4282 = vpack.c.b16 %v4246, %v4246
      %v4283 = vpack.c.b16 %v4247, %v4247
      %v4284 = vpack.c.b16 %v4248, %v4248
      %v4285 = vpack.c.b16 %v4249, %v4249
      %v4286 = vpack.c.b16 %v4250, %v4250
      %v4287 = vpack.c.b16 %v4251, %v4251
      %v4288 = vpack.c.b16 %v4252, %v4252
      %v4289 = vpack.c.b16 %v4253, %v4253
      %v4290 = vpack.c.b16 %v4254, %v4254
      %v4291 = vpack.c.b16 %v4255, %v4255
      %v4292 = vpack.c.b16 %v4256, %v4256
      %v4293 = vpack.c.b16 %v4257, %v4257
      %v4294 = vpack.c.b16 %v4258, %v4258
      %v4295 = vpack.c.b16 %v4259, %v4259
      %v4296 = vpack.c.b16 %v4260, %v4260
      %v4297 = vpack.c.b16 %v4261, %v4261
      %v4298 = vpack.c.b16 %v4262, %v4262
      %v4299 = vpack.c.b16 %v4263, %v4263
      %v4300 = vpack.c.b16 %v4264, %v4264
      %v4301 = vpack.c.b16 %v4265, %v4265
      %v4302 = vpack.c.b16 %v4266, %v4266
      %v4303 = vpack.c.b16 %v4267, %v4267
      %v4304 = vpack.c.b16 %v4268, %v4268
      %v4305 = vpack.c.b16 %v4269, %v4269
      %v4306 = vpack.c.b16 %v4270, %v4270
      %v4307 = vpack.c.b16 %v4271, %v4271
      %v4308 = vpack.c.b16 %v4272, %v4272
      %v4309 = vpack.c.b16 %v4273, %v4273
      %v4310 = vpack.c.b16 %v4274, %v4274
      %v4311 = vpack.c.b16 %v4275, %v4275
      %v4312 = vpack.c.b16 %v4276, %v4276
      %v4313 = vpack.c.b16 %v4277, %v4277
      %v4314 = vpack.c.b16 %v4278, %v4278
      %v4315 = vpack.c.b16 %v4279, %v4279
      %v4316 = vpack.c.b16 %v4280, %v4280
      %v4317 = vpack.c.b16 %v4281, %v4281
      %vm4318 = vsmask.f32 1280
      %vm4319 = vsmask.f32 5392
      %vm4320 = vmor %vm4318, %vm4319
      %v4322 = vshrl.u32 %v4282, 16
      %v4324 = vrot.slane %v4322, 6
      %v4325 = vshll.u32 %v4282, 16
      %v4327 = vrot.slane %v4325, 7
      %v4328 = vor.u32 %v4324, %v4327
      %v4329 = vrot.slane %v4328, 4
      %v4331 = vshrl.u32 %v4283, 16
      %v4333 = vrot.slane %v4331, 6
      %v4334 = vshll.u32 %v4283, 16
      %v4336 = vrot.slane %v4334, 7
      %v4337 = vor.u32 %v4333, %v4336
      %v4338 = vsel %vm4320, %v4329, %v4337
      %v4339 = vrot.slane %v4337, 4
      %v4341 = vshrl.u32 %v4284, 16
      %v4343 = vrot.slane %v4341, 6
      %v4344 = vshll.u32 %v4284, 16
      %v4346 = vrot.slane %v4344, 7
      %v4347 = vor.u32 %v4343, %v4346
      %v4348 = vsel %vm4320, %v4339, %v4347
      %v4349 = vrot.slane %v4347, 4
      %v4351 = vshrl.u32 %v4285, 16
      %v4353 = vrot.slane %v4351, 6
      %v4354 = vshll.u32 %v4285, 16
      %v4356 = vrot.slane %v4354, 7
      %v4357 = vor.u32 %v4353, %v4356
      %v4358 = vsel %vm4320, %v4349, %v4357
      %v4359 = vrot.slane %v4357, 4
      %v4361 = vshrl.u32 %v4286, 16
      %v4363 = vrot.slane %v4361, 6
      %v4364 = vshll.u32 %v4286, 16
      %v4366 = vrot.slane %v4364, 7
      %v4367 = vor.u32 %v4363, %v4366
      %v4368 = vsel %vm4320, %v4359, %v4367
      %v4369 = vrot.slane %v4367, 4
      %v4371 = vshrl.u32 %v4287, 16
      %v4373 = vrot.slane %v4371, 6
      %v4374 = vshll.u32 %v4287, 16
      %v4376 = vrot.slane %v4374, 7
      %v4377 = vor.u32 %v4373, %v4376
      %v4378 = vsel %vm4320, %v4369, %v4377
      %v4379 = vrot.slane %v4377, 4
      %v4381 = vshrl.u32 %v4288, 16
      %v4383 = vrot.slane %v4381, 6
      %v4384 = vshll.u32 %v4288, 16
      %v4386 = vrot.slane %v4384, 7
      %v4387 = vor.u32 %v4383, %v4386
      %v4388 = vsel %vm4320, %v4379, %v4387
      %v4389 = vrot.slane %v4387, 4
      %v4391 = vshrl.u32 %v4289, 16
      %v4393 = vrot.slane %v4391, 6
      %v4394 = vshll.u32 %v4289, 16
      %v4396 = vrot.slane %v4394, 7
      %v4397 = vor.u32 %v4393, %v4396
      %v4398 = vsel %vm4320, %v4389, %v4397
      %v4399 = vrot.slane %v4397, 4
      %v4401 = vshrl.u32 %v4290, 16
      %v4403 = vrot.slane %v4401, 6
      %v4404 = vshll.u32 %v4290, 16
      %v4406 = vrot.slane %v4404, 7
      %v4407 = vor.u32 %v4403, %v4406
      %v4408 = vsel %vm4320, %v4399, %v4407
      %v4409 = vrot.slane %v4407, 4
      %v4411 = vshrl.u32 %v4291, 16
      %v4413 = vrot.slane %v4411, 6
      %v4414 = vshll.u32 %v4291, 16
      %v4416 = vrot.slane %v4414, 7
      %v4417 = vor.u32 %v4413, %v4416
      %v4418 = vsel %vm4320, %v4409, %v4417
      %v4419 = vrot.slane %v4417, 4
      %v4421 = vshrl.u32 %v4292, 16
      %v4423 = vrot.slane %v4421, 6
      %v4424 = vshll.u32 %v4292, 16
      %v4426 = vrot.slane %v4424, 7
      %v4427 = vor.u32 %v4423, %v4426
      %v4428 = vsel %vm4320, %v4419, %v4427
      %v4429 = vrot.slane %v4427, 4
      %v4431 = vshrl.u32 %v4293, 16
      %v4433 = vrot.slane %v4431, 6
      %v4434 = vshll.u32 %v4293, 16
      %v4436 = vrot.slane %v4434, 7
      %v4437 = vor.u32 %v4433, %v4436
      %v4438 = vsel %vm4320, %v4429, %v4437
      %v4439 = vrot.slane %v4437, 4
      %v4441 = vshrl.u32 %v4294, 16
      %v4443 = vrot.slane %v4441, 6
      %v4444 = vshll.u32 %v4294, 16
      %v4446 = vrot.slane %v4444, 7
      %v4447 = vor.u32 %v4443, %v4446
      %v4448 = vsel %vm4320, %v4439, %v4447
      %v4449 = vrot.slane %v4447, 4
      %v4451 = vshrl.u32 %v4295, 16
      %v4453 = vrot.slane %v4451, 6
      %v4454 = vshll.u32 %v4295, 16
      %v4456 = vrot.slane %v4454, 7
      %v4457 = vor.u32 %v4453, %v4456
      %v4458 = vsel %vm4320, %v4449, %v4457
      %v4459 = vrot.slane %v4457, 4
      %v4461 = vshrl.u32 %v4296, 16
      %v4463 = vrot.slane %v4461, 6
      %v4464 = vshll.u32 %v4296, 16
      %v4466 = vrot.slane %v4464, 7
      %v4467 = vor.u32 %v4463, %v4466
      %v4468 = vsel %vm4320, %v4459, %v4467
      %v4469 = vrot.slane %v4467, 4
      %v4471 = vshrl.u32 %v4297, 16
      %v4473 = vrot.slane %v4471, 6
      %v4474 = vshll.u32 %v4297, 16
      %v4476 = vrot.slane %v4474, 7
      %v4477 = vor.u32 %v4473, %v4476
      %v4478 = vsel %vm4320, %v4469, %v4477
      %v4479 = vrot.slane %v4477, 4
      %v4481 = vshrl.u32 %v4298, 16
      %v4483 = vrot.slane %v4481, 6
      %v4484 = vshll.u32 %v4298, 16
      %v4486 = vrot.slane %v4484, 7
      %v4487 = vor.u32 %v4483, %v4486
      %v4488 = vsel %vm4320, %v4479, %v4487
      %v4489 = vrot.slane %v4487, 4
      %v4491 = vshrl.u32 %v4299, 16
      %v4493 = vrot.slane %v4491, 6
      %v4494 = vshll.u32 %v4299, 16
      %v4496 = vrot.slane %v4494, 7
      %v4497 = vor.u32 %v4493, %v4496
      %v4498 = vsel %vm4320, %v4489, %v4497
      %v4499 = vrot.slane %v4497, 4
      %v4501 = vshrl.u32 %v4300, 16
      %v4503 = vrot.slane %v4501, 6
      %v4504 = vshll.u32 %v4300, 16
      %v4506 = vrot.slane %v4504, 7
      %v4507 = vor.u32 %v4503, %v4506
      %v4508 = vsel %vm4320, %v4499, %v4507
      %v4509 = vrot.slane %v4507, 4
      %v4511 = vshrl.u32 %v4301, 16
      %v4513 = vrot.slane %v4511, 6
      %v4514 = vshll.u32 %v4301, 16
      %v4516 = vrot.slane %v4514, 7
      %v4517 = vor.u32 %v4513, %v4516
      %v4518 = vsel %vm4320, %v4509, %v4517
      %v4519 = vrot.slane %v4517, 4
      %v4521 = vshrl.u32 %v4302, 16
      %v4523 = vrot.slane %v4521, 6
      %v4524 = vshll.u32 %v4302, 16
      %v4526 = vrot.slane %v4524, 7
      %v4527 = vor.u32 %v4523, %v4526
      %v4528 = vsel %vm4320, %v4519, %v4527
      %v4529 = vrot.slane %v4527, 4
      %v4531 = vshrl.u32 %v4303, 16
      %v4533 = vrot.slane %v4531, 6
      %v4534 = vshll.u32 %v4303, 16
      %v4536 = vrot.slane %v4534, 7
      %v4537 = vor.u32 %v4533, %v4536
      %v4538 = vsel %vm4320, %v4529, %v4537
      %v4539 = vrot.slane %v4537, 4
      %v4541 = vshrl.u32 %v4304, 16
      %v4543 = vrot.slane %v4541, 6
      %v4544 = vshll.u32 %v4304, 16
      %v4546 = vrot.slane %v4544, 7
      %v4547 = vor.u32 %v4543, %v4546
      %v4548 = vsel %vm4320, %v4539, %v4547
      %v4549 = vrot.slane %v4547, 4
      %v4551 = vshrl.u32 %v4305, 16
      %v4553 = vrot.slane %v4551, 6
      %v4554 = vshll.u32 %v4305, 16
      %v4556 = vrot.slane %v4554, 7
      %v4557 = vor.u32 %v4553, %v4556
      %v4558 = vsel %vm4320, %v4549, %v4557
      %v4559 = vrot.slane %v4557, 4
      %v4561 = vshrl.u32 %v4306, 16
      %v4563 = vrot.slane %v4561, 6
      %v4564 = vshll.u32 %v4306, 16
      %v4566 = vrot.slane %v4564, 7
      %v4567 = vor.u32 %v4563, %v4566
      %v4568 = vsel %vm4320, %v4559, %v4567
      %v4569 = vrot.slane %v4567, 4
      %v4571 = vshrl.u32 %v4307, 16
      %v4573 = vrot.slane %v4571, 6
      %v4574 = vshll.u32 %v4307, 16
      %v4576 = vrot.slane %v4574, 7
      %v4577 = vor.u32 %v4573, %v4576
      %v4578 = vsel %vm4320, %v4569, %v4577
      %v4579 = vrot.slane %v4577, 4
      %v4581 = vshrl.u32 %v4308, 16
      %v4583 = vrot.slane %v4581, 6
      %v4584 = vshll.u32 %v4308, 16
      %v4586 = vrot.slane %v4584, 7
      %v4587 = vor.u32 %v4583, %v4586
      %v4588 = vsel %vm4320, %v4579, %v4587
      %v4589 = vrot.slane %v4587, 4
      %v4591 = vshrl.u32 %v4309, 16
      %v4593 = vrot.slane %v4591, 6
      %v4594 = vshll.u32 %v4309, 16
      %v4596 = vrot.slane %v4594, 7
      %v4597 = vor.u32 %v4593, %v4596
      %v4598 = vsel %vm4320, %v4589, %v4597
      %v4599 = vrot.slane %v4597, 4
      %v4601 = vshrl.u32 %v4310, 16
      %v4603 = vrot.slane %v4601, 6
      %v4604 = vshll.u32 %v4310, 16
      %v4606 = vrot.slane %v4604, 7
      %v4607 = vor.u32 %v4603, %v4606
      %v4608 = vsel %vm4320, %v4599, %v4607
      %v4609 = vrot.slane %v4607, 4
      %v4611 = vshrl.u32 %v4311, 16
      %v4613 = vrot.slane %v4611, 6
      %v4614 = vshll.u32 %v4311, 16
      %v4616 = vrot.slane %v4614, 7
      %v4617 = vor.u32 %v4613, %v4616
      %v4618 = vsel %vm4320, %v4609, %v4617
      %v4619 = vrot.slane %v4617, 4
      %v4621 = vshrl.u32 %v4312, 16
      %v4623 = vrot.slane %v4621, 6
      %v4624 = vshll.u32 %v4312, 16
      %v4626 = vrot.slane %v4624, 7
      %v4627 = vor.u32 %v4623, %v4626
      %v4628 = vsel %vm4320, %v4619, %v4627
      %v4629 = vrot.slane %v4627, 4
      %v4631 = vshrl.u32 %v4313, 16
      %v4633 = vrot.slane %v4631, 6
      %v4634 = vshll.u32 %v4313, 16
      %v4636 = vrot.slane %v4634, 7
      %v4637 = vor.u32 %v4633, %v4636
      %v4638 = vsel %vm4320, %v4629, %v4637
      %v4639 = vrot.slane %v4637, 4
      %v4641 = vshrl.u32 %v4314, 16
      %v4643 = vrot.slane %v4641, 6
      %v4644 = vshll.u32 %v4314, 16
      %v4646 = vrot.slane %v4644, 7
      %v4647 = vor.u32 %v4643, %v4646
      %v4648 = vsel %vm4320, %v4639, %v4647
      %v4649 = vrot.slane %v4647, 4
      %v4651 = vshrl.u32 %v4315, 16
      %v4653 = vrot.slane %v4651, 6
      %v4654 = vshll.u32 %v4315, 16
      %v4656 = vrot.slane %v4654, 7
      %v4657 = vor.u32 %v4653, %v4656
      %v4658 = vsel %vm4320, %v4649, %v4657
      %v4659 = vrot.slane %v4657, 4
      %v4661 = vshrl.u32 %v4316, 16
      %v4663 = vrot.slane %v4661, 6
      %v4664 = vshll.u32 %v4316, 16
      %v4666 = vrot.slane %v4664, 7
      %v4667 = vor.u32 %v4663, %v4666
      %v4668 = vsel %vm4320, %v4659, %v4667
      %v4669 = vrot.slane %v4667, 4
      %v4671 = vshrl.u32 %v4317, 16
      %v4673 = vrot.slane %v4671, 6
      %v4674 = vshll.u32 %v4317, 16
      %v4676 = vrot.slane %v4674, 7
      %v4677 = vor.u32 %v4673, %v4676
      %v4678 = vsel %vm4320, %v4669, %v4677
      %v4679 = vrot.slane %v4673, 4
      %vm4717 = vcmask 1043457
      %vm4718 = vsmask.f32 7942
      %vm4719 = vmand %vm4717, %vm4718
      %v4720 = vld [vmem:[#allocation2 + $0x8] sm:$0xe]
      %v4721 = vsel %vm4719, %v4328, %v4720
      %4722 = vst [vmem:[#allocation2 + $0x8] sm:$0xe] %v4721
      %4723 = vst [vmem:[#allocation2 + $0xc] sm:$0xf] %v4338
      %4724 = vst [vmem:[#allocation2 + $0x10] sm:$0xf] %v4348
      %4725 = vst [vmem:[#allocation2 + $0x14] sm:$0xf] %v4358
      %4726 = vst [vmem:[#allocation2 + $0x18] sm:$0xf] %v4368
      %4727 = vst [vmem:[#allocation2 + $0x1c] sm:$0xf] %v4378
      %4728 = vst [vmem:[#allocation2 + $0x20] sm:$0xf] %v4388
      %4729 = vst [vmem:[#allocation2 + $0x24] sm:$0xf] %v4398
      %4730 = vst [vmem:[#allocation2 + $0x28] sm:$0xf] %v4408
      %4731 = vst [vmem:[#allocation2 + $0x2c] sm:$0xf] %v4418
      %4732 = vst [vmem:[#allocation2 + $0x30] sm:$0xf] %v4428
      %4733 = vst [vmem:[#allocation2 + $0x34] sm:$0xf] %v4438
      %4734 = vst [vmem:[#allocation2 + $0x38] sm:$0xf] %v4448
      %4735 = vst [vmem:[#allocation2 + $0x3c] sm:$0xf] %v4458
      %4736 = vst [vmem:[#allocation2 + $0x40] sm:$0xf] %v4468
      %4737 = vst [vmem:[#allocation2 + $0x44] sm:$0xf] %v4478
      %4738 = vst [vmem:[#allocation2 + $0x48] sm:$0xf] %v4488
      %4739 = vst [vmem:[#allocation2 + $0x4c] sm:$0xf] %v4498
      %4740 = vst [vmem:[#allocation2 + $0x50] sm:$0xf] %v4508
      %4741 = vst [vmem:[#allocation2 + $0x54] sm:$0xf] %v4518
      %4742 = vst [vmem:[#allocation2 + $0x58] sm:$0xf] %v4528
      %4743 = vst [vmem:[#allocation2 + $0x5c] sm:$0xf] %v4538
      %4744 = vst [vmem:[#allocation2 + $0x60] sm:$0xf] %v4548
      %4745 = vst [vmem:[#allocation2 + $0x64] sm:$0xf] %v4558
      %4746 = vst [vmem:[#allocation2 + $0x68] sm:$0xf] %v4568
      %4747 = vst [vmem:[#allocation2 + $0x6c] sm:$0xf] %v4578
      %4748 = vst [vmem:[#allocation2 + $0x70] sm:$0xf] %v4588
      %4749 = vst [vmem:[#allocation2 + $0x74] sm:$0xf] %v4598
      %4750 = vst [vmem:[#allocation2 + $0x78] sm:$0xf] %v4608
      %4751 = vst [vmem:[#allocation2 + $0x7c] sm:$0xf] %v4618
      %4752 = vst [vmem:[#allocation2 + $0x80] sm:$0xf] %v4628
      %4753 = vst [vmem:[#allocation2 + $0x84] sm:$0xf] %v4638
      %4754 = vst [vmem:[#allocation2 + $0x88] sm:$0xf] %v4648
      %4755 = vst [vmem:[#allocation2 + $0x8c] sm:$0xf] %v4658
      %4756 = vst [vmem:[#allocation2 + $0x90] sm:$0xf] %v4668
      %4757 = vst [vmem:[#allocation2 + $0x94] sm:$0xf] %v4678
      %vm4758 = vcmask 1040384
      %vm4759 = vsmask.f32 256
      %vm4760 = vmand %vm4758, %vm4759
      %v4761 = vld [vmem:[#allocation2 + $0x98] sm:$0x1]
      %v4762 = vsel %vm4760, %v4679, %v4761
      %4763 = vst [vmem:[#allocation2 + $0x98] sm:$0x1] %v4762
      %v4764 = vld [vmem:[%s273 + $0x8] sm:$0xe]
      %v4765 = vld [vmem:[%s273 + $0xc] sm:$0xf]
      %v4766 = vld [vmem:[%s273 + $0x10] sm:$0xf]
      %v4767 = vld [vmem:[%s273 + $0x14] sm:$0xf]
      %v4768 = vld [vmem:[%s273 + $0x18] sm:$0xf]
      %v4769 = vld [vmem:[%s273 + $0x1c] sm:$0xf]
      %v4770 = vld [vmem:[%s273 + $0x20] sm:$0xf]
      %v4771 = vld [vmem:[%s273 + $0x24] sm:$0xf]
      %v4772 = vld [vmem:[%s273 + $0x28] sm:$0xf]
      %v4773 = vld [vmem:[%s273 + $0x2c] sm:$0xf]
      %v4774 = vld [vmem:[%s273 + $0x30] sm:$0xf]
      %v4775 = vld [vmem:[%s273 + $0x34] sm:$0xf]
      %v4776 = vld [vmem:[%s273 + $0x38] sm:$0xf]
      %v4777 = vld [vmem:[%s273 + $0x3c] sm:$0xf]
      %v4778 = vld [vmem:[%s273 + $0x40] sm:$0xf]
      %v4779 = vld [vmem:[%s273 + $0x44] sm:$0xf]
      %v4780 = vld [vmem:[%s273 + $0x48] sm:$0xf]
      %v4781 = vld [vmem:[%s273 + $0x4c] sm:$0xf]
      %v4782 = vld [vmem:[%s273 + $0x50] sm:$0xf]
      %v4783 = vld [vmem:[%s273 + $0x54] sm:$0xf]
      %v4784 = vld [vmem:[%s273 + $0x58] sm:$0xf]
      %v4785 = vld [vmem:[%s273 + $0x5c] sm:$0xf]
      %v4786 = vld [vmem:[%s273 + $0x60] sm:$0xf]
      %v4787 = vld [vmem:[%s273 + $0x64] sm:$0xf]
      %v4788 = vld [vmem:[%s273 + $0x68] sm:$0xf]
      %v4789 = vld [vmem:[%s273 + $0x6c] sm:$0xf]
      %v4790 = vld [vmem:[%s273 + $0x70] sm:$0xf]
      %v4791 = vld [vmem:[%s273 + $0x74] sm:$0xf]
      %v4792 = vld [vmem:[%s273 + $0x78] sm:$0xf]
      %v4793 = vld [vmem:[%s273 + $0x7c] sm:$0xf]
      %v4794 = vld [vmem:[%s273 + $0x80] sm:$0xf]
      %v4795 = vld [vmem:[%s273 + $0x84] sm:$0xf]
      %v4796 = vld [vmem:[%s273 + $0x88] sm:$0xf]
      %v4797 = vld [vmem:[%s273 + $0x8c] sm:$0xf]
      %v4798 = vld [vmem:[%s273 + $0x90] sm:$0xf]
      %v4799 = vld [vmem:[%s273 + $0x94] sm:$0xf]
      %v4800 = vld [vmem:[%s273 + $0x98] sm:$0x1]
      %v4801 = vld [vmem:[%s6] sm:$0x3]
      %v4802 = vld [vmem:[#allocation2] sm:$0xf]
      %v4803 = vld [vmem:[#allocation2 + $0x4] sm:$0xf]
      %v4804 = vld [vmem:[#allocation2 + $0x8] sm:$0xf]
      %v4805 = vld [vmem:[#allocation2 + $0xc] sm:$0xf]
      %v4806 = vld [vmem:[#allocation2 + $0x10] sm:$0xf]
      %v4807 = vld [vmem:[#allocation2 + $0x14] sm:$0xf]
      %v4808 = vld [vmem:[#allocation2 + $0x18] sm:$0xf]
      %v4809 = vld [vmem:[#allocation2 + $0x1c] sm:$0xf]
      %v4810 = vld [vmem:[#allocation2 + $0x20] sm:$0xf]
      %v4811 = vld [vmem:[#allocation2 + $0x24] sm:$0xf]
      %v4812 = vld [vmem:[#allocation2 + $0x28] sm:$0xf]
      %v4813 = vld [vmem:[#allocation2 + $0x2c] sm:$0xf]
      %v4814 = vld [vmem:[#allocation2 + $0x30] sm:$0xf]
      %v4815 = vld [vmem:[#allocation2 + $0x34] sm:$0xf]
      %v4816 = vld [vmem:[#allocation2 + $0x38] sm:$0xf]
      %v4817 = vld [vmem:[#allocation2 + $0x3c] sm:$0xf]
      %v4818 = vld [vmem:[#allocation2 + $0x40] sm:$0xf]
      %v4819 = vld [vmem:[#allocation2 + $0x44] sm:$0xf]
      %v4820 = vld [vmem:[#allocation2 + $0x48] sm:$0xf]
      %v4821 = vld [vmem:[#allocation2 + $0x4c] sm:$0xf]
      %v4822 = vld [vmem:[#allocation2 + $0x50] sm:$0xf]
      %v4823 = vld [vmem:[#allocation2 + $0x54] sm:$0xf]
      %v4824 = vld [vmem:[#allocation2 + $0x58] sm:$0xf]
      %v4825 = vld [vmem:[#allocation2 + $0x5c] sm:$0xf]
      %v4826 = vld [vmem:[#allocation2 + $0x60] sm:$0xf]
      %v4827 = vld [vmem:[#allocation2 + $0x64] sm:$0xf]
      %v4828 = vld [vmem:[#allocation2 + $0x68] sm:$0xf]
      %v4829 = vld [vmem:[#allocation2 + $0x6c] sm:$0xf]
      %v4830 = vld [vmem:[#allocation2 + $0x70] sm:$0xf]
      %v4831 = vld [vmem:[#allocation2 + $0x74] sm:$0xf]
      %v4832 = vld [vmem:[#allocation2 + $0x78] sm:$0xf]
      %v4833 = vld [vmem:[#allocation2 + $0x7c] sm:$0xf]
      %v4834 = vld [vmem:[#allocation2 + $0x80] sm:$0xf]
      %v4835 = vld [vmem:[#allocation2 + $0x84] sm:$0xf]
      %v4836 = vld [vmem:[#allocation2 + $0x88] sm:$0xf]
      %v4837 = vld [vmem:[#allocation2 + $0x8c] sm:$0x7]
      %v4838 = vld [vmem:[%s4] sm:$0xf]
      %v4839 = vld [vmem:[%s4 + $0x4] sm:$0xf]
      %v4840 = vld [vmem:[%s4 + $0x8] sm:$0xf]
      %v4841 = vld [vmem:[%s4 + $0xc] sm:$0xf]
      %v4842 = vld [vmem:[%s4 + $0x10] sm:$0xf]
      %v4843 = vld [vmem:[%s4 + $0x14] sm:$0xf]
      %v4844 = vld [vmem:[%s4 + $0x18] sm:$0xf]
      %v4845 = vld [vmem:[%s4 + $0x1c] sm:$0xf]
      %v4846 = vld [vmem:[%s4 + $0x20] sm:$0xf]
      %v4847 = vld [vmem:[%s4 + $0x24] sm:$0xf]
      %v4848 = vld [vmem:[%s4 + $0x28] sm:$0xf]
      %v4849 = vld [vmem:[%s4 + $0x2c] sm:$0xf]
      %v4850 = vld [vmem:[%s4 + $0x30] sm:$0xf]
      %v4851 = vld [vmem:[%s4 + $0x34] sm:$0xf]
      %v4852 = vld [vmem:[%s4 + $0x38] sm:$0xf]
      %v4853 = vld [vmem:[%s4 + $0x3c] sm:$0xf]
      %v4890 = vunpack.c.l.b16 %v4802
      %v4891 = vunpack.c.l.b16 %v4803
      %v4892 = vunpack.c.l.b16 %v4804
      %v4893 = vunpack.c.l.b16 %v4805
      %v4894 = vunpack.c.l.b16 %v4806
      %v4895 = vunpack.c.l.b16 %v4807
      %v4896 = vunpack.c.l.b16 %v4808
      %v4897 = vunpack.c.l.b16 %v4809
      %v4898 = vunpack.c.l.b16 %v4810
      %v4899 = vunpack.c.l.b16 %v4811
      %v4900 = vunpack.c.l.b16 %v4812
      %v4901 = vunpack.c.l.b16 %v4813
      %v4902 = vunpack.c.l.b16 %v4814
      %v4903 = vunpack.c.l.b16 %v4815
      %v4904 = vunpack.c.l.b16 %v4816
      %v4905 = vunpack.c.l.b16 %v4817
      %v4906 = vunpack.c.l.b16 %v4818
      %v4907 = vunpack.c.l.b16 %v4819
      %v4908 = vunpack.c.l.b16 %v4820
      %v4909 = vunpack.c.l.b16 %v4821
      %v4910 = vunpack.c.l.b16 %v4822
      %v4911 = vunpack.c.l.b16 %v4823
      %v4912 = vunpack.c.l.b16 %v4824
      %v4913 = vunpack.c.l.b16 %v4825
      %v4914 = vunpack.c.l.b16 %v4826
      %v4915 = vunpack.c.l.b16 %v4827
      %v4916 = vunpack.c.l.b16 %v4828
      %v4917 = vunpack.c.l.b16 %v4829
      %v4918 = vunpack.c.l.b16 %v4830
      %v4919 = vunpack.c.l.b16 %v4831
      %v4920 = vunpack.c.l.b16 %v4832
      %v4921 = vunpack.c.l.b16 %v4833
      %v4922 = vunpack.c.l.b16 %v4834
      %v4923 = vunpack.c.l.b16 %v4835
      %v4924 = vunpack.c.l.b16 %v4836
      %v4925 = vunpack.c.l.b16 %v4837
      %v4926 = vpack.c.b16 %v4891, %v4890
      %v4927 = vpack.c.b16 %v4893, %v4892
      %v4928 = vpack.c.b16 %v4895, %v4894
      %v4929 = vpack.c.b16 %v4897, %v4896
      %v4930 = vpack.c.b16 %v4899, %v4898
      %v4931 = vpack.c.b16 %v4901, %v4900
      %v4932 = vpack.c.b16 %v4903, %v4902
      %v4933 = vpack.c.b16 %v4905, %v4904
      %v4934 = vpack.c.b16 %v4907, %v4906
      %v4935 = vpack.c.b16 %v4909, %v4908
      %v4936 = vpack.c.b16 %v4911, %v4910
      %v4937 = vpack.c.b16 %v4913, %v4912
      %v4938 = vpack.c.b16 %v4915, %v4914
      %v4939 = vpack.c.b16 %v4917, %v4916
      %v4940 = vpack.c.b16 %v4919, %v4918
      %v4941 = vpack.c.b16 %v4921, %v4920
      %v4942 = vpack.c.b16 %v4923, %v4922
      %v4943 = vpack.c.b16 %v4925, %v4924
      %v4978 = vunpack.c.l.b16 %v4838
      %v4979 = vunpack.c.l.b16 %v4839
      %v4980 = vunpack.c.l.b16 %v4840
      %v4981 = vunpack.c.l.b16 %v4841
      %v4982 = vunpack.c.l.b16 %v4842
      %v4983 = vunpack.c.l.b16 %v4843
      %v4984 = vunpack.c.l.b16 %v4844
      %v4985 = vunpack.c.l.b16 %v4845
      %v4986 = vunpack.c.l.b16 %v4846
      %v4987 = vunpack.c.l.b16 %v4847
      %v4988 = vunpack.c.l.b16 %v4848
      %v4989 = vunpack.c.l.b16 %v4849
      %v4990 = vunpack.c.l.b16 %v4850
      %v4991 = vunpack.c.l.b16 %v4851
      %v4992 = vunpack.c.l.b16 %v4852
      %v4993 = vunpack.c.l.b16 %v4853
      %v4994 = vpack.c.b16 %v4979, %v4978
      %v4995 = vpack.c.b16 %v4981, %v4980
      %v4996 = vpack.c.b16 %v4983, %v4982
      %v4997 = vpack.c.b16 %v4985, %v4984
      %v4998 = vpack.c.b16 %v4987, %v4986
      %v4999 = vpack.c.b16 %v4989, %v4988
      %v5000 = vpack.c.b16 %v4991, %v4990
      %v5001 = vpack.c.b16 %v4993, %v4992
      %5010 = vmatprep.subr.bf16.mxu0 0
      %5011 = vmatpush1.bf16.msra.mxu0 %v4994
      %5012 = vmatprep.subr.bf16.mxu0 0
      %5013 = vmatpush1.bf16.msra.mxu0 %v4995
      %5014 = vmatprep.subr.bf16.mxu0 0
      %5015 = vmatpush1.bf16.msra.mxu0 %v4996
      %5016 = vmatprep.subr.bf16.mxu0 0
      %5017 = vmatpush1.bf16.msra.mxu0 %v4997
      %5018 = vmatprep.subr.bf16.mxu0 0
      %5019 = vmatpush1.bf16.msra.mxu0 %v4998
      %5020 = vmatprep.subr.bf16.mxu0 0
      %5021 = vmatpush1.bf16.msra.mxu0 %v4999
      %5022 = vmatprep.subr.bf16.mxu0 0
      %5023 = vmatpush1.bf16.msra.mxu0 %v5000
      %5024 = vmatprep.subr.bf16.mxu0 0
      %5025 = vmatpush1.bf16.msra.mxu0 %v5001
      %5026 = vmatprep.subr.bf16.mxu0 0
      %5027 = vmatpush1.bf16.msra.mxu0 0
      %5028 = vmatprep.subr.bf16.mxu0 0
      %5029 = vmatpush1.bf16.msra.mxu0 0
      %5030 = vmatprep.subr.bf16.mxu0 0
      %5031 = vmatpush1.bf16.msra.mxu0 0
      %5032 = vmatprep.subr.bf16.mxu0 0
      %5033 = vmatpush1.bf16.msra.mxu0 0
      %5034 = vmatprep.subr.bf16.mxu0 0
      %5035 = vmatpush1.bf16.msra.mxu0 0
      %5036 = vmatprep.subr.bf16.mxu0 0
      %5037 = vmatpush1.bf16.msra.mxu0 0
      %5038 = vmatprep.subr.bf16.mxu0 0
      %5039 = vmatpush1.bf16.msra.mxu0 0
      %5040 = vmatprep.subr.bf16.mxu0 0
      %5041 = vmatpush1.bf16.msra.mxu0 0
      %5042 = vmatprep.mubr.bf16.mxu0 0
      %5043 = vmatmul.mubr.bf16.gmra.mrb[0].mxu0 %v4926
      %v5044 = vpop.f32.mrb[0].mxu0
      %v5045 = vadd.f32 0.0, %v5044
      %v5046 = vpop.f32.mrb[0].mxu0
      %v5047 = vpop.f32.mrb[0].mxu0
      %v5048 = vadd.f32 0.0, %v5047
      %v5049 = vpop.f32.mrb[0].mxu0
      %5050 = vmatprep.mubr.bf16.mxu0 0
      %5051 = vmatmul.mubr.bf16.gmra.mrb[0].mxu0 %v4927
      %v5052 = vpop.f32.mrb[0].mxu0
      %v5053 = vadd.f32 0.0, %v5052
      %v5054 = vpop.f32.mrb[0].mxu0
      %v5055 = vpop.f32.mrb[0].mxu0
      %v5056 = vadd.f32 0.0, %v5055
      %v5057 = vpop.f32.mrb[0].mxu0
      %5058 = vmatprep.mubr.bf16.mxu0 0
      %5059 = vmatmul.mubr.bf16.gmra.mrb[0].mxu0 %v4928
      %v5060 = vpop.f32.mrb[0].mxu0
      %v5061 = vadd.f32 0.0, %v5060
      %v5062 = vpop.f32.mrb[0].mxu0
      %v5063 = vpop.f32.mrb[0].mxu0
      %v5064 = vadd.f32 0.0, %v5063
      %v5065 = vpop.f32.mrb[0].mxu0
      %5066 = vmatprep.mubr.bf16.mxu0 0
      %5067 = vmatmul.mubr.bf16.gmra.mrb[0].mxu0 %v4929
      %v5068 = vpop.f32.mrb[0].mxu0
      %v5069 = vadd.f32 0.0, %v5068
      %v5070 = vpop.f32.mrb[0].mxu0
      %v5071 = vpop.f32.mrb[0].mxu0
      %v5072 = vadd.f32 0.0, %v5071
      %v5073 = vpop.f32.mrb[0].mxu0
      %5074 = vmatprep.mubr.bf16.mxu0 0
      %5075 = vmatmul.mubr.bf16.gmra.mrb[0].mxu0 %v4930
      %v5076 = vpop.f32.mrb[0].mxu0
      %v5077 = vadd.f32 0.0, %v5076
      %v5078 = vpop.f32.mrb[0].mxu0
      %v5079 = vpop.f32.mrb[0].mxu0
      %v5080 = vadd.f32 0.0, %v5079
      %v5081 = vpop.f32.mrb[0].mxu0
      %5082 = vmatprep.mubr.bf16.mxu0 0
      %5083 = vmatmul.mubr.bf16.gmra.mrb[0].mxu0 %v4931
      %v5084 = vpop.f32.mrb[0].mxu0
      %v5085 = vadd.f32 0.0, %v5084
      %v5086 = vpop.f32.mrb[0].mxu0
      %v5087 = vpop.f32.mrb[0].mxu0
      %v5088 = vadd.f32 0.0, %v5087
      %v5089 = vpop.f32.mrb[0].mxu0
      %5090 = vmatprep.mubr.bf16.mxu0 0
      %5091 = vmatmul.mubr.bf16.gmra.mrb[0].mxu0 %v4932
      %v5092 = vpop.f32.mrb[0].mxu0
      %v5093 = vadd.f32 0.0, %v5092
      %v5094 = vpop.f32.mrb[0].mxu0
      %v5095 = vpop.f32.mrb[0].mxu0
      %v5096 = vadd.f32 0.0, %v5095
      %v5097 = vpop.f32.mrb[0].mxu0
      %5098 = vmatprep.mubr.bf16.mxu0 0
      %5099 = vmatmul.mubr.bf16.gmra.mrb[0].mxu0 %v4933
      %v5100 = vpop.f32.mrb[0].mxu0
      %v5101 = vadd.f32 0.0, %v5100
      %v5102 = vpop.f32.mrb[0].mxu0
      %v5103 = vpop.f32.mrb[0].mxu0
      %v5104 = vadd.f32 0.0, %v5103
      %v5105 = vpop.f32.mrb[0].mxu0
      %5106 = vmatprep.mubr.bf16.mxu0 0
      %5107 = vmatmul.mubr.bf16.gmra.mrb[0].mxu0 %v4934
      %v5108 = vpop.f32.mrb[0].mxu0
      %v5109 = vadd.f32 0.0, %v5108
      %v5110 = vpop.f32.mrb[0].mxu0
      %v5111 = vpop.f32.mrb[0].mxu0
      %v5112 = vadd.f32 0.0, %v5111
      %v5113 = vpop.f32.mrb[0].mxu0
      %5114 = vmatprep.mubr.bf16.mxu0 0
      %5115 = vmatmul.mubr.bf16.gmra.mrb[0].mxu0 %v4935
      %v5116 = vpop.f32.mrb[0].mxu0
      %v5117 = vadd.f32 0.0, %v5116
      %v5118 = vpop.f32.mrb[0].mxu0
      %v5119 = vpop.f32.mrb[0].mxu0
      %v5120 = vadd.f32 0.0, %v5119
      %v5121 = vpop.f32.mrb[0].mxu0
      %5122 = vmatprep.mubr.bf16.mxu0 0
      %5123 = vmatmul.mubr.bf16.gmra.mrb[0].mxu0 %v4936
      %v5124 = vpop.f32.mrb[0].mxu0
      %v5125 = vadd.f32 0.0, %v5124
      %v5126 = vpop.f32.mrb[0].mxu0
      %v5127 = vpop.f32.mrb[0].mxu0
      %v5128 = vadd.f32 0.0, %v5127
      %v5129 = vpop.f32.mrb[0].mxu0
      %5130 = vmatprep.mubr.bf16.mxu0 0
      %5131 = vmatmul.mubr.bf16.gmra.mrb[0].mxu0 %v4937
      %v5132 = vpop.f32.mrb[0].mxu0
      %v5133 = vadd.f32 0.0, %v5132
      %v5134 = vpop.f32.mrb[0].mxu0
      %v5135 = vpop.f32.mrb[0].mxu0
      %v5136 = vadd.f32 0.0, %v5135
      %v5137 = vpop.f32.mrb[0].mxu0
      %5138 = vmatprep.mubr.bf16.mxu0 0
      %5139 = vmatmul.mubr.bf16.gmra.mrb[0].mxu0 %v4938
      %v5140 = vpop.f32.mrb[0].mxu0
      %v5141 = vadd.f32 0.0, %v5140
      %v5142 = vpop.f32.mrb[0].mxu0
      %v5143 = vpop.f32.mrb[0].mxu0
      %v5144 = vadd.f32 0.0, %v5143
      %v5145 = vpop.f32.mrb[0].mxu0
      %5146 = vmatprep.mubr.bf16.mxu0 0
      %5147 = vmatmul.mubr.bf16.gmra.mrb[0].mxu0 %v4939
      %v5148 = vpop.f32.mrb[0].mxu0
      %v5149 = vadd.f32 0.0, %v5148
      %v5150 = vpop.f32.mrb[0].mxu0
      %v5151 = vpop.f32.mrb[0].mxu0
      %v5152 = vadd.f32 0.0, %v5151
      %v5153 = vpop.f32.mrb[0].mxu0
      %5154 = vmatprep.mubr.bf16.mxu0 0
      %5155 = vmatmul.mubr.bf16.gmra.mrb[0].mxu0 %v4940
      %v5156 = vpop.f32.mrb[0].mxu0
      %v5157 = vadd.f32 0.0, %v5156
      %v5158 = vpop.f32.mrb[0].mxu0
      %v5159 = vpop.f32.mrb[0].mxu0
      %v5160 = vadd.f32 0.0, %v5159
      %v5161 = vpop.f32.mrb[0].mxu0
      %5162 = vmatprep.mubr.bf16.mxu0 0
      %5163 = vmatmul.mubr.bf16.gmra.mrb[0].mxu0 %v4941
      %v5164 = vpop.f32.mrb[0].mxu0
      %v5165 = vadd.f32 0.0, %v5164
      %v5166 = vpop.f32.mrb[0].mxu0
      %v5167 = vpop.f32.mrb[0].mxu0
      %v5168 = vadd.f32 0.0, %v5167
      %v5169 = vpop.f32.mrb[0].mxu0
      %5170 = vmatprep.mubr.bf16.mxu0 0
      %5171 = vmatmul.mubr.bf16.gmra.mrb[0].mxu0 %v4942
      %v5172 = vpop.f32.mrb[0].mxu0
      %v5173 = vadd.f32 0.0, %v5172
      %v5174 = vpop.f32.mrb[0].mxu0
      %v5175 = vpop.f32.mrb[0].mxu0
      %v5176 = vadd.f32 0.0, %v5175
      %v5177 = vpop.f32.mrb[0].mxu0
      %5178 = vmatprep.mubr.bf16.mxu0 0
      %5179 = vmatmul.mubr.bf16.gmra.mrb[0].mxu0 %v4943
      %v5180 = vpop.f32.mrb[0].mxu0
      %v5181 = vadd.f32 0.0, %v5180
      %v5182 = vpop.f32.mrb[0].mxu0
      %v5183 = vpop.f32.mrb[0].mxu0
      %v5184 = vadd.f32 0.0, %v5183
      %v5185 = vpop.f32.mrb[0].mxu0
      %5186 = vdwg.mxu0
      %v5224 = vunpack.c.l.b16 %v4764
      %v5225 = vunpack.c.l.b16 %v4765
      %v5226 = vunpack.c.l.b16 %v4766
      %v5227 = vunpack.c.l.b16 %v4767
      %v5228 = vunpack.c.l.b16 %v4768
      %v5229 = vunpack.c.l.b16 %v4769
      %v5230 = vunpack.c.l.b16 %v4770
      %v5231 = vunpack.c.l.b16 %v4771
      %v5232 = vunpack.c.l.b16 %v4772
      %v5233 = vunpack.c.l.b16 %v4773
      %v5234 = vunpack.c.l.b16 %v4774
      %v5235 = vunpack.c.l.b16 %v4775
      %v5236 = vunpack.c.l.b16 %v4776
      %v5237 = vunpack.c.l.b16 %v4777
      %v5238 = vunpack.c.l.b16 %v4778
      %v5239 = vunpack.c.l.b16 %v4779
      %v5240 = vunpack.c.l.b16 %v4780
      %v5241 = vunpack.c.l.b16 %v4781
      %v5242 = vunpack.c.l.b16 %v4782
      %v5243 = vunpack.c.l.b16 %v4783
      %v5244 = vunpack.c.l.b16 %v4784
      %v5245 = vunpack.c.l.b16 %v4785
      %v5246 = vunpack.c.l.b16 %v4786
      %v5247 = vunpack.c.l.b16 %v4787
      %v5248 = vunpack.c.l.b16 %v4788
      %v5249 = vunpack.c.l.b16 %v4789
      %v5250 = vunpack.c.l.b16 %v4790
      %v5251 = vunpack.c.l.b16 %v4791
      %v5252 = vunpack.c.l.b16 %v4792
      %v5253 = vunpack.c.l.b16 %v4793
      %v5254 = vunpack.c.l.b16 %v4794
      %v5255 = vunpack.c.l.b16 %v4795
      %v5256 = vunpack.c.l.b16 %v4796
      %v5257 = vunpack.c.l.b16 %v4797
      %v5258 = vunpack.c.l.b16 %v4798
      %v5259 = vunpack.c.l.b16 %v4799
      %v5260 = vunpack.c.l.b16 %v4800
      %v5261 = vpack.c.b16 %v5225, %v5224
      %v5262 = vpack.c.b16 %v5227, %v5226
      %v5263 = vpack.c.b16 %v5229, %v5228
      %v5264 = vpack.c.b16 %v5231, %v5230
      %v5265 = vpack.c.b16 %v5233, %v5232
      %v5266 = vpack.c.b16 %v5235, %v5234
      %v5267 = vpack.c.b16 %v5237, %v5236
      %v5268 = vpack.c.b16 %v5239, %v5238
      %v5269 = vpack.c.b16 %v5241, %v5240
      %v5270 = vpack.c.b16 %v5243, %v5242
      %v5271 = vpack.c.b16 %v5245, %v5244
      %v5272 = vpack.c.b16 %v5247, %v5246
      %v5273 = vpack.c.b16 %v5249, %v5248
      %v5274 = vpack.c.b16 %v5251, %v5250
      %v5275 = vpack.c.b16 %v5253, %v5252
      %v5276 = vpack.c.b16 %v5255, %v5254
      %v5277 = vpack.c.b16 %v5257, %v5256
      %v5278 = vpack.c.b16 %v5259, %v5258
      %v5279 = vpack.c.b16 %v5260, %v5260
      %v5281 = vshrl.u32 %v5261, 16
      %v5283 = vrot.slane %v5281, 1
      %v5284 = vshll.u32 %v5261, 16
      %v5286 = vrot.slane %v5284, 2
      %v5287 = vor.u32 %v5283, %v5286
      %v5289 = vshrl.u32 %v5262, 16
      %v5291 = vrot.slane %v5289, 1
      %v5292 = vshll.u32 %v5262, 16
      %v5294 = vrot.slane %v5292, 2
      %v5295 = vor.u32 %v5291, %v5294
      %v5296 = vsel %vm1887, %v5287, %v5295
      %v5298 = vshrl.u32 %v5263, 16
      %v5300 = vrot.slane %v5298, 1
      %v5301 = vshll.u32 %v5263, 16
      %v5303 = vrot.slane %v5301, 2
      %v5304 = vor.u32 %v5300, %v5303
      %v5305 = vsel %vm1887, %v5295, %v5304
      %v5307 = vshrl.u32 %v5264, 16
      %v5309 = vrot.slane %v5307, 1
      %v5310 = vshll.u32 %v5264, 16
      %v5312 = vrot.slane %v5310, 2
      %v5313 = vor.u32 %v5309, %v5312
      %v5314 = vsel %vm1887, %v5304, %v5313
      %v5316 = vshrl.u32 %v5265, 16
      %v5318 = vrot.slane %v5316, 1
      %v5319 = vshll.u32 %v5265, 16
      %v5321 = vrot.slane %v5319, 2
      %v5322 = vor.u32 %v5318, %v5321
      %v5323 = vsel %vm1887, %v5313, %v5322
      %v5325 = vshrl.u32 %v5266, 16
      %v5327 = vrot.slane %v5325, 1
      %v5328 = vshll.u32 %v5266, 16
      %v5330 = vrot.slane %v5328, 2
      %v5331 = vor.u32 %v5327, %v5330
      %v5332 = vsel %vm1887, %v5322, %v5331
      %v5334 = vshrl.u32 %v5267, 16
      %v5336 = vrot.slane %v5334, 1
      %v5337 = vshll.u32 %v5267, 16
      %v5339 = vrot.slane %v5337, 2
      %v5340 = vor.u32 %v5336, %v5339
      %v5341 = vsel %vm1887, %v5331, %v5340
      %v5343 = vshrl.u32 %v5268, 16
      %v5345 = vrot.slane %v5343, 1
      %v5346 = vshll.u32 %v5268, 16
      %v5348 = vrot.slane %v5346, 2
      %v5349 = vor.u32 %v5345, %v5348
      %v5350 = vsel %vm1887, %v5340, %v5349
      %v5352 = vshrl.u32 %v5269, 16
      %v5354 = vrot.slane %v5352, 1
      %v5355 = vshll.u32 %v5269, 16
      %v5357 = vrot.slane %v5355, 2
      %v5358 = vor.u32 %v5354, %v5357
      %v5359 = vsel %vm1887, %v5349, %v5358
      %v5361 = vshrl.u32 %v5270, 16
      %v5363 = vrot.slane %v5361, 1
      %v5364 = vshll.u32 %v5270, 16
      %v5366 = vrot.slane %v5364, 2
      %v5367 = vor.u32 %v5363, %v5366
      %v5368 = vsel %vm1887, %v5358, %v5367
      %v5370 = vshrl.u32 %v5271, 16
      %v5372 = vrot.slane %v5370, 1
      %v5373 = vshll.u32 %v5271, 16
      %v5375 = vrot.slane %v5373, 2
      %v5376 = vor.u32 %v5372, %v5375
      %v5377 = vsel %vm1887, %v5367, %v5376
      %v5379 = vshrl.u32 %v5272, 16
      %v5381 = vrot.slane %v5379, 1
      %v5382 = vshll.u32 %v5272, 16
      %v5384 = vrot.slane %v5382, 2
      %v5385 = vor.u32 %v5381, %v5384
      %v5386 = vsel %vm1887, %v5376, %v5385
      %v5388 = vshrl.u32 %v5273, 16
      %v5390 = vrot.slane %v5388, 1
      %v5391 = vshll.u32 %v5273, 16
      %v5393 = vrot.slane %v5391, 2
      %v5394 = vor.u32 %v5390, %v5393
      %v5395 = vsel %vm1887, %v5385, %v5394
      %v5397 = vshrl.u32 %v5274, 16
      %v5399 = vrot.slane %v5397, 1
      %v5400 = vshll.u32 %v5274, 16
      %v5402 = vrot.slane %v5400, 2
      %v5403 = vor.u32 %v5399, %v5402
      %v5404 = vsel %vm1887, %v5394, %v5403
      %v5406 = vshrl.u32 %v5275, 16
      %v5408 = vrot.slane %v5406, 1
      %v5409 = vshll.u32 %v5275, 16
      %v5411 = vrot.slane %v5409, 2
      %v5412 = vor.u32 %v5408, %v5411
      %v5413 = vsel %vm1887, %v5403, %v5412
      %v5415 = vshrl.u32 %v5276, 16
      %v5417 = vrot.slane %v5415, 1
      %v5418 = vshll.u32 %v5276, 16
      %v5420 = vrot.slane %v5418, 2
      %v5421 = vor.u32 %v5417, %v5420
      %v5422 = vsel %vm1887, %v5412, %v5421
      %v5424 = vshrl.u32 %v5277, 16
      %v5426 = vrot.slane %v5424, 1
      %v5427 = vshll.u32 %v5277, 16
      %v5429 = vrot.slane %v5427, 2
      %v5430 = vor.u32 %v5426, %v5429
      %v5431 = vsel %vm1887, %v5421, %v5430
      %v5433 = vshrl.u32 %v5278, 16
      %v5435 = vrot.slane %v5433, 1
      %v5436 = vshll.u32 %v5278, 16
      %v5438 = vrot.slane %v5436, 2
      %v5439 = vor.u32 %v5435, %v5438
      %v5440 = vsel %vm1887, %v5430, %v5439
      %v5442 = vshll.u32 %v5279, 16
      %v5444 = vrot.slane %v5442, 2
      %v5445 = vsel %vm1887, %v5439, %v5444
      %v5447 = vsel %vm554, %v5296, 0
      %v5450 = vsel %vm554, %v5305, 0
      %v5453 = vsel %vm554, %v5314, 0
      %v5456 = vsel %vm554, %v5323, 0
      %v5459 = vsel %vm554, %v5332, 0
      %v5462 = vsel %vm554, %v5341, 0
      %v5465 = vsel %vm554, %v5350, 0
      %v5468 = vsel %vm554, %v5359, 0
      %v5471 = vsel %vm554, %v5368, 0
      %v5474 = vsel %vm554, %v5377, 0
      %v5477 = vsel %vm554, %v5386, 0
      %v5480 = vsel %vm554, %v5395, 0
      %v5483 = vsel %vm554, %v5404, 0
      %v5486 = vsel %vm554, %v5413, 0
      %v5489 = vsel %vm554, %v5422, 0
      %v5492 = vsel %vm554, %v5431, 0
      %v5495 = vsel %vm554, %v5440, 0
      %v5498 = vsel %vm554, %v5445, 0
      %v5501 = vsel %vm609, %v4801, 0
      %5503 = vmatprep.subr.bf16.mxu0 0
      %5504 = vmatpush1.bf16.msra.mxu0 %v5501
      %5505 = vmatprep.subr.bf16.mxu0 0
      %5506 = vmatpush1.bf16.msra.mxu0 0
      %5507 = vmatprep.subr.bf16.mxu0 0
      %5508 = vmatpush1.bf16.msra.mxu0 0
      %5509 = vmatprep.subr.bf16.mxu0 0
      %5510 = vmatpush1.bf16.msra.mxu0 0
      %5511 = vmatprep.subr.bf16.mxu0 0
      %5512 = vmatpush1.bf16.msra.mxu0 0
      %5513 = vmatprep.subr.bf16.mxu0 0
      %5514 = vmatpush1.bf16.msra.mxu0 0
      %5515 = vmatprep.subr.bf16.mxu0 0
      %5516 = vmatpush1.bf16.msra.mxu0 0
      %5517 = vmatprep.subr.bf16.mxu0 0
      %5518 = vmatpush1.bf16.msra.mxu0 0
      %5519 = vmatprep.subr.bf16.mxu0 0
      %5520 = vmatpush1.bf16.msra.mxu0 0
      %5521 = vmatprep.subr.bf16.mxu0 0
      %5522 = vmatpush1.bf16.msra.mxu0 0
      %5523 = vmatprep.subr.bf16.mxu0 0
      %5524 = vmatpush1.bf16.msra.mxu0 0
      %5525 = vmatprep.subr.bf16.mxu0 0
      %5526 = vmatpush1.bf16.msra.mxu0 0
      %5527 = vmatprep.subr.bf16.mxu0 0
      %5528 = vmatpush1.bf16.msra.mxu0 0
      %5529 = vmatprep.subr.bf16.mxu0 0
      %5530 = vmatpush1.bf16.msra.mxu0 0
      %5531 = vmatprep.subr.bf16.mxu0 0
      %5532 = vmatpush1.bf16.msra.mxu0 0
      %5533 = vmatprep.subr.bf16.mxu0 0
      %5534 = vmatpush1.bf16.msra.mxu0 0
      %5535 = vmatprep.mubr.bf16.mxu0 0
      %5536 = vmatmul.mubr.bf16.gmra.mrb[0].mxu0 %v5447
      %v5537 = vpop.f32.mrb[0].mxu0
      %v5538 = vadd.f32 %v5045, %v5537
      %v5539 = vpop.f32.mrb[0].mxu0
      %v5540 = vpop.f32.mrb[0].mxu0
      %v5541 = vadd.f32 %v5048, %v5540
      %v5542 = vpop.f32.mrb[0].mxu0
      %5543 = vmatprep.mubr.bf16.mxu0 0
      %5544 = vmatmul.mubr.bf16.gmra.mrb[0].mxu0 %v5450
      %v5545 = vpop.f32.mrb[0].mxu0
      %v5546 = vadd.f32 %v5053, %v5545
      %v5547 = vpop.f32.mrb[0].mxu0
      %v5548 = vpop.f32.mrb[0].mxu0
      %v5549 = vadd.f32 %v5056, %v5548
      %v5550 = vpop.f32.mrb[0].mxu0
      %5551 = vmatprep.mubr.bf16.mxu0 0
      %5552 = vmatmul.mubr.bf16.gmra.mrb[0].mxu0 %v5453
      %v5553 = vpop.f32.mrb[0].mxu0
      %v5554 = vadd.f32 %v5061, %v5553
      %v5555 = vpop.f32.mrb[0].mxu0
      %v5556 = vpop.f32.mrb[0].mxu0
      %v5557 = vadd.f32 %v5064, %v5556
      %v5558 = vpop.f32.mrb[0].mxu0
      %5559 = vmatprep.mubr.bf16.mxu0 0
      %5560 = vmatmul.mubr.bf16.gmra.mrb[0].mxu0 %v5456
      %v5561 = vpop.f32.mrb[0].mxu0
      %v5562 = vadd.f32 %v5069, %v5561
      %v5563 = vpop.f32.mrb[0].mxu0
      %v5564 = vpop.f32.mrb[0].mxu0
      %v5565 = vadd.f32 %v5072, %v5564
      %v5566 = vpop.f32.mrb[0].mxu0
      %5567 = vmatprep.mubr.bf16.mxu0 0
      %5568 = vmatmul.mubr.bf16.gmra.mrb[0].mxu0 %v5459
      %v5569 = vpop.f32.mrb[0].mxu0
      %v5570 = vadd.f32 %v5077, %v5569
      %v5571 = vpop.f32.mrb[0].mxu0
      %v5572 = vpop.f32.mrb[0].mxu0
      %v5573 = vadd.f32 %v5080, %v5572
      %v5574 = vpop.f32.mrb[0].mxu0
      %5575 = vmatprep.mubr.bf16.mxu0 0
      %5576 = vmatmul.mubr.bf16.gmra.mrb[0].mxu0 %v5462
      %v5577 = vpop.f32.mrb[0].mxu0
      %v5578 = vadd.f32 %v5085, %v5577
      %v5579 = vpop.f32.mrb[0].mxu0
      %v5580 = vpop.f32.mrb[0].mxu0
      %v5581 = vadd.f32 %v5088, %v5580
      %v5582 = vpop.f32.mrb[0].mxu0
      %5583 = vmatprep.mubr.bf16.mxu0 0
      %5584 = vmatmul.mubr.bf16.gmra.mrb[0].mxu0 %v5465
      %v5585 = vpop.f32.mrb[0].mxu0
      %v5586 = vadd.f32 %v5093, %v5585
      %v5587 = vpop.f32.mrb[0].mxu0
      %v5588 = vpop.f32.mrb[0].mxu0
      %v5589 = vadd.f32 %v5096, %v5588
      %v5590 = vpop.f32.mrb[0].mxu0
      %5591 = vmatprep.mubr.bf16.mxu0 0
      %5592 = vmatmul.mubr.bf16.gmra.mrb[0].mxu0 %v5468
      %v5593 = vpop.f32.mrb[0].mxu0
      %v5594 = vadd.f32 %v5101, %v5593
      %v5595 = vpop.f32.mrb[0].mxu0
      %v5596 = vpop.f32.mrb[0].mxu0
      %v5597 = vadd.f32 %v5104, %v5596
      %v5598 = vpop.f32.mrb[0].mxu0
      %5599 = vmatprep.mubr.bf16.mxu0 0
      %5600 = vmatmul.mubr.bf16.gmra.mrb[0].mxu0 %v5471
      %v5601 = vpop.f32.mrb[0].mxu0
      %v5602 = vadd.f32 %v5109, %v5601
      %v5603 = vpop.f32.mrb[0].mxu0
      %v5604 = vpop.f32.mrb[0].mxu0
      %v5605 = vadd.f32 %v5112, %v5604
      %v5606 = vpop.f32.mrb[0].mxu0
      %5607 = vmatprep.mubr.bf16.mxu0 0
      %5608 = vmatmul.mubr.bf16.gmra.mrb[0].mxu0 %v5474
      %v5609 = vpop.f32.mrb[0].mxu0
      %v5610 = vadd.f32 %v5117, %v5609
      %v5611 = vpop.f32.mrb[0].mxu0
      %v5612 = vpop.f32.mrb[0].mxu0
      %v5613 = vadd.f32 %v5120, %v5612
      %v5614 = vpop.f32.mrb[0].mxu0
      %5615 = vmatprep.mubr.bf16.mxu0 0
      %5616 = vmatmul.mubr.bf16.gmra.mrb[0].mxu0 %v5477
      %v5617 = vpop.f32.mrb[0].mxu0
      %v5618 = vadd.f32 %v5125, %v5617
      %v5619 = vpop.f32.mrb[0].mxu0
      %v5620 = vpop.f32.mrb[0].mxu0
      %v5621 = vadd.f32 %v5128, %v5620
      %v5622 = vpop.f32.mrb[0].mxu0
      %5623 = vmatprep.mubr.bf16.mxu0 0
      %5624 = vmatmul.mubr.bf16.gmra.mrb[0].mxu0 %v5480
      %v5625 = vpop.f32.mrb[0].mxu0
      %v5626 = vadd.f32 %v5133, %v5625
      %v5627 = vpop.f32.mrb[0].mxu0
      %v5628 = vpop.f32.mrb[0].mxu0
      %v5629 = vadd.f32 %v5136, %v5628
      %v5630 = vpop.f32.mrb[0].mxu0
      %5631 = vmatprep.mubr.bf16.mxu0 0
      %5632 = vmatmul.mubr.bf16.gmra.mrb[0].mxu0 %v5483
      %v5633 = vpop.f32.mrb[0].mxu0
      %v5634 = vadd.f32 %v5141, %v5633
      %v5635 = vpop.f32.mrb[0].mxu0
      %v5636 = vpop.f32.mrb[0].mxu0
      %v5637 = vadd.f32 %v5144, %v5636
      %v5638 = vpop.f32.mrb[0].mxu0
      %5639 = vmatprep.mubr.bf16.mxu0 0
      %5640 = vmatmul.mubr.bf16.gmra.mrb[0].mxu0 %v5486
      %v5641 = vpop.f32.mrb[0].mxu0
      %v5642 = vadd.f32 %v5149, %v5641
      %v5643 = vpop.f32.mrb[0].mxu0
      %v5644 = vpop.f32.mrb[0].mxu0
      %v5645 = vadd.f32 %v5152, %v5644
      %v5646 = vpop.f32.mrb[0].mxu0
      %5647 = vmatprep.mubr.bf16.mxu0 0
      %5648 = vmatmul.mubr.bf16.gmra.mrb[0].mxu0 %v5489
      %v5649 = vpop.f32.mrb[0].mxu0
      %v5650 = vadd.f32 %v5157, %v5649
      %v5651 = vpop.f32.mrb[0].mxu0
      %v5652 = vpop.f32.mrb[0].mxu0
      %v5653 = vadd.f32 %v5160, %v5652
      %v5654 = vpop.f32.mrb[0].mxu0
      %5655 = vmatprep.mubr.bf16.mxu0 0
      %5656 = vmatmul.mubr.bf16.gmra.mrb[0].mxu0 %v5492
      %v5657 = vpop.f32.mrb[0].mxu0
      %v5658 = vadd.f32 %v5165, %v5657
      %v5659 = vpop.f32.mrb[0].mxu0
      %v5660 = vpop.f32.mrb[0].mxu0
      %v5661 = vadd.f32 %v5168, %v5660
      %v5662 = vpop.f32.mrb[0].mxu0
      %5663 = vmatprep.mubr.bf16.mxu0 0
      %5664 = vmatmul.mubr.bf16.gmra.mrb[0].mxu0 %v5495
      %v5665 = vpop.f32.mrb[0].mxu0
      %v5666 = vadd.f32 %v5173, %v5665
      %v5667 = vpop.f32.mrb[0].mxu0
      %v5668 = vpop.f32.mrb[0].mxu0
      %v5669 = vadd.f32 %v5176, %v5668
      %v5670 = vpop.f32.mrb[0].mxu0
      %5671 = vmatprep.mubr.bf16.mxu0 0
      %5672 = vmatmul.mubr.bf16.gmra.mrb[0].mxu0 %v5498
      %v5673 = vpop.f32.mrb[0].mxu0
      %v5674 = vadd.f32 %v5181, %v5673
      %v5675 = vpop.f32.mrb[0].mxu0
      %v5676 = vpop.f32.mrb[0].mxu0
      %v5677 = vadd.f32 %v5184, %v5676
      %v5678 = vpop.f32.mrb[0].mxu0
      %5679 = vdwg.mxu0
      %v5680 = vld [vmem:[#allocation2 + $0x8c] sm:$0xf]
      %s5681 = scalar_lea.vmem %s4, 64
      %v5682 = vld [vmem:[%s5681] sm:$0xf]
      %v5683 = vld [vmem:[%s5681 + $0x4] sm:$0xf]
      %v5684 = vld [vmem:[%s5681 + $0x8] sm:$0xf]
      %v5685 = vld [vmem:[%s5681 + $0xc] sm:$0xf]
      %v5686 = vld [vmem:[%s5681 + $0x10] sm:$0xf]
      %v5687 = vld [vmem:[%s5681 + $0x14] sm:$0xf]
      %v5688 = vld [vmem:[%s5681 + $0x18] sm:$0xf]
      %v5689 = vld [vmem:[%s5681 + $0x1c] sm:$0xf]
      %v5690 = vld [vmem:[%s5681 + $0x20] sm:$0xf]
      %v5691 = vld [vmem:[%s5681 + $0x24] sm:$0xf]
      %v5692 = vld [vmem:[%s5681 + $0x28] sm:$0xf]
      %v5693 = vld [vmem:[%s5681 + $0x2c] sm:$0xf]
      %v5694 = vld [vmem:[%s5681 + $0x30] sm:$0xf]
      %v5695 = vld [vmem:[%s5681 + $0x34] sm:$0xf]
      %v5696 = vld [vmem:[%s5681 + $0x38] sm:$0xf]
      %v5697 = vld [vmem:[%s5681 + $0x3c] sm:$0xf]
      %v5699 = vunpack.c.l.b16 %v5680
      %v5700 = vpack.c.b16 %v5699, %v4924
      %v5702 = vshrl.u32 %v4926, 16
      %v5704 = vshll.u32 %v4926, 16
      %v5706 = vrot.slane %v5704, 1
      %v5707 = vor.u32 %v5702, %v5706
      %v5709 = vshll.u32 %v4927, 16
      %v5711 = vrot.slane %v5709, 1
      %v5712 = vsel %vm410, %v5707, %v5711
      %v5713 = vshrl.u32 %v4927, 16
      %v5715 = vor.u32 %v5713, %v5711
      %v5717 = vshll.u32 %v4928, 16
      %v5719 = vrot.slane %v5717, 1
      %v5720 = vsel %vm410, %v5715, %v5719
      %v5721 = vshrl.u32 %v4928, 16
      %v5723 = vor.u32 %v5721, %v5719
      %v5725 = vshll.u32 %v4929, 16
      %v5727 = vrot.slane %v5725, 1
      %v5728 = vsel %vm410, %v5723, %v5727
      %v5729 = vshrl.u32 %v4929, 16
      %v5731 = vor.u32 %v5729, %v5727
      %v5733 = vshll.u32 %v4930, 16
      %v5735 = vrot.slane %v5733, 1
      %v5736 = vsel %vm410, %v5731, %v5735
      %v5737 = vshrl.u32 %v4930, 16
      %v5739 = vor.u32 %v5737, %v5735
      %v5741 = vshll.u32 %v4931, 16
      %v5743 = vrot.slane %v5741, 1
      %v5744 = vsel %vm410, %v5739, %v5743
      %v5745 = vshrl.u32 %v4931, 16
      %v5747 = vor.u32 %v5745, %v5743
      %v5749 = vshll.u32 %v4932, 16
      %v5751 = vrot.slane %v5749, 1
      %v5752 = vsel %vm410, %v5747, %v5751
      %v5753 = vshrl.u32 %v4932, 16
      %v5755 = vor.u32 %v5753, %v5751
      %v5757 = vshll.u32 %v4933, 16
      %v5759 = vrot.slane %v5757, 1
      %v5760 = vsel %vm410, %v5755, %v5759
      %v5761 = vshrl.u32 %v4933, 16
      %v5763 = vor.u32 %v5761, %v5759
      %v5765 = vshll.u32 %v4934, 16
      %v5767 = vrot.slane %v5765, 1
      %v5768 = vsel %vm410, %v5763, %v5767
      %v5769 = vshrl.u32 %v4934, 16
      %v5771 = vor.u32 %v5769, %v5767
      %v5773 = vshll.u32 %v4935, 16
      %v5775 = vrot.slane %v5773, 1
      %v5776 = vsel %vm410, %v5771, %v5775
      %v5777 = vshrl.u32 %v4935, 16
      %v5779 = vor.u32 %v5777, %v5775
      %v5781 = vshll.u32 %v4936, 16
      %v5783 = vrot.slane %v5781, 1
      %v5784 = vsel %vm410, %v5779, %v5783
      %v5785 = vshrl.u32 %v4936, 16
      %v5787 = vor.u32 %v5785, %v5783
      %v5789 = vshll.u32 %v4937, 16
      %v5791 = vrot.slane %v5789, 1
      %v5792 = vsel %vm410, %v5787, %v5791
      %v5793 = vshrl.u32 %v4937, 16
      %v5795 = vor.u32 %v5793, %v5791
      %v5797 = vshll.u32 %v4938, 16
      %v5799 = vrot.slane %v5797, 1
      %v5800 = vsel %vm410, %v5795, %v5799
      %v5801 = vshrl.u32 %v4938, 16
      %v5803 = vor.u32 %v5801, %v5799
      %v5805 = vshll.u32 %v4939, 16
      %v5807 = vrot.slane %v5805, 1
      %v5808 = vsel %vm410, %v5803, %v5807
      %v5809 = vshrl.u32 %v4939, 16
      %v5811 = vor.u32 %v5809, %v5807
      %v5813 = vshll.u32 %v4940, 16
      %v5815 = vrot.slane %v5813, 1
      %v5816 = vsel %vm410, %v5811, %v5815
      %v5817 = vshrl.u32 %v4940, 16
      %v5819 = vor.u32 %v5817, %v5815
      %v5821 = vshll.u32 %v4941, 16
      %v5823 = vrot.slane %v5821, 1
      %v5824 = vsel %vm410, %v5819, %v5823
      %v5825 = vshrl.u32 %v4941, 16
      %v5827 = vor.u32 %v5825, %v5823
      %v5829 = vshll.u32 %v4942, 16
      %v5831 = vrot.slane %v5829, 1
      %v5832 = vsel %vm410, %v5827, %v5831
      %v5833 = vshrl.u32 %v4942, 16
      %v5835 = vor.u32 %v5833, %v5831
      %v5837 = vshll.u32 %v5700, 16
      %v5839 = vrot.slane %v5837, 1
      %v5840 = vsel %vm410, %v5835, %v5839
      %v5841 = vshrl.u32 %v5700, 16
      %v5843 = vor.u32 %v5841, %v5839
      %v5878 = vunpack.c.l.b16 %v5682
      %v5879 = vunpack.c.l.b16 %v5683
      %v5880 = vunpack.c.l.b16 %v5684
      %v5881 = vunpack.c.l.b16 %v5685
      %v5882 = vunpack.c.l.b16 %v5686
      %v5883 = vunpack.c.l.b16 %v5687
      %v5884 = vunpack.c.l.b16 %v5688
      %v5885 = vunpack.c.l.b16 %v5689
      %v5886 = vunpack.c.l.b16 %v5690
      %v5887 = vunpack.c.l.b16 %v5691
      %v5888 = vunpack.c.l.b16 %v5692
      %v5889 = vunpack.c.l.b16 %v5693
      %v5890 = vunpack.c.l.b16 %v5694
      %v5891 = vunpack.c.l.b16 %v5695
      %v5892 = vunpack.c.l.b16 %v5696
      %v5893 = vunpack.c.l.b16 %v5697
      %v5894 = vpack.c.b16 %v5879, %v5878
      %v5895 = vpack.c.b16 %v5881, %v5880
      %v5896 = vpack.c.b16 %v5883, %v5882
      %v5897 = vpack.c.b16 %v5885, %v5884
      %v5898 = vpack.c.b16 %v5887, %v5886
      %v5899 = vpack.c.b16 %v5889, %v5888
      %v5900 = vpack.c.b16 %v5891, %v5890
      %v5901 = vpack.c.b16 %v5893, %v5892
      %5910 = vmatprep.subr.bf16.mxu0 0
      %5911 = vmatpush1.bf16.msra.mxu0 %v5894
      %5912 = vmatprep.subr.bf16.mxu0 0
      %5913 = vmatpush1.bf16.msra.mxu0 %v5895
      %5914 = vmatprep.subr.bf16.mxu0 0
      %5915 = vmatpush1.bf16.msra.mxu0 %v5896
      %5916 = vmatprep.subr.bf16.mxu0 0
      %5917 = vmatpush1.bf16.msra.mxu0 %v5897
      %5918 = vmatprep.subr.bf16.mxu0 0
      %5919 = vmatpush1.bf16.msra.mxu0 %v5898
      %5920 = vmatprep.subr.bf16.mxu0 0
      %5921 = vmatpush1.bf16.msra.mxu0 %v5899
      %5922 = vmatprep.subr.bf16.mxu0 0
      %5923 = vmatpush1.bf16.msra.mxu0 %v5900
      %5924 = vmatprep.subr.bf16.mxu0 0
      %5925 = vmatpush1.bf16.msra.mxu0 %v5901
      %5926 = vmatprep.subr.bf16.mxu0 0
      %5927 = vmatpush1.bf16.msra.mxu0 0
      %5928 = vmatprep.subr.bf16.mxu0 0
      %5929 = vmatpush1.bf16.msra.mxu0 0
      %5930 = vmatprep.subr.bf16.mxu0 0
      %5931 = vmatpush1.bf16.msra.mxu0 0
      %5932 = vmatprep.subr.bf16.mxu0 0
      %5933 = vmatpush1.bf16.msra.mxu0 0
      %5934 = vmatprep.subr.bf16.mxu0 0
      %5935 = vmatpush1.bf16.msra.mxu0 0
      %5936 = vmatprep.subr.bf16.mxu0 0
      %5937 = vmatpush1.bf16.msra.mxu0 0
      %5938 = vmatprep.subr.bf16.mxu0 0
      %5939 = vmatpush1.bf16.msra.mxu0 0
      %5940 = vmatprep.subr.bf16.mxu0 0
      %5941 = vmatpush1.bf16.msra.mxu0 0
      %5942 = vmatprep.mubr.bf16.mxu0 0
      %5943 = vmatmul.mubr.bf16.gmra.mrb[0].mxu0 %v5712
      %v5944 = vpop.f32.mrb[0].mxu0
      %v5945 = vadd.f32 0.0, %v5944
      %v5946 = vpop.f32.mrb[0].mxu0
      %v5947 = vpop.f32.mrb[0].mxu0
      %v5948 = vadd.f32 0.0, %v5947
      %v5949 = vpop.f32.mrb[0].mxu0
      %5950 = vmatprep.mubr.bf16.mxu0 0
      %5951 = vmatmul.mubr.bf16.gmra.mrb[0].mxu0 %v5720
      %v5952 = vpop.f32.mrb[0].mxu0
      %v5953 = vadd.f32 0.0, %v5952
      %v5954 = vpop.f32.mrb[0].mxu0
      %v5955 = vpop.f32.mrb[0].mxu0
      %v5956 = vadd.f32 0.0, %v5955
      %v5957 = vpop.f32.mrb[0].mxu0
      %5958 = vmatprep.mubr.bf16.mxu0 0
      %5959 = vmatmul.mubr.bf16.gmra.mrb[0].mxu0 %v5728
      %v5960 = vpop.f32.mrb[0].mxu0
      %v5961 = vadd.f32 0.0, %v5960
      %v5962 = vpop.f32.mrb[0].mxu0
      %v5963 = vpop.f32.mrb[0].mxu0
      %v5964 = vadd.f32 0.0, %v5963
      %v5965 = vpop.f32.mrb[0].mxu0
      %5966 = vmatprep.mubr.bf16.mxu0 0
      %5967 = vmatmul.mubr.bf16.gmra.mrb[0].mxu0 %v5736
      %v5968 = vpop.f32.mrb[0].mxu0
      %v5969 = vadd.f32 0.0, %v5968
      %v5970 = vpop.f32.mrb[0].mxu0
      %v5971 = vpop.f32.mrb[0].mxu0
      %v5972 = vadd.f32 0.0, %v5971
      %v5973 = vpop.f32.mrb[0].mxu0
      %5974 = vmatprep.mubr.bf16.mxu0 0
      %5975 = vmatmul.mubr.bf16.gmra.mrb[0].mxu0 %v5744
      %v5976 = vpop.f32.mrb[0].mxu0
      %v5977 = vadd.f32 0.0, %v5976
      %v5978 = vpop.f32.mrb[0].mxu0
      %v5979 = vpop.f32.mrb[0].mxu0
      %v5980 = vadd.f32 0.0, %v5979
      %v5981 = vpop.f32.mrb[0].mxu0
      %5982 = vmatprep.mubr.bf16.mxu0 0
      %5983 = vmatmul.mubr.bf16.gmra.mrb[0].mxu0 %v5752
      %v5984 = vpop.f32.mrb[0].mxu0
      %v5985 = vadd.f32 0.0, %v5984
      %v5986 = vpop.f32.mrb[0].mxu0
      %v5987 = vpop.f32.mrb[0].mxu0
      %v5988 = vadd.f32 0.0, %v5987
      %v5989 = vpop.f32.mrb[0].mxu0
      %5990 = vmatprep.mubr.bf16.mxu0 0
      %5991 = vmatmul.mubr.bf16.gmra.mrb[0].mxu0 %v5760
      %v5992 = vpop.f32.mrb[0].mxu0
      %v5993 = vadd.f32 0.0, %v5992
      %v5994 = vpop.f32.mrb[0].mxu0
      %v5995 = vpop.f32.mrb[0].mxu0
      %v5996 = vadd.f32 0.0, %v5995
      %v5997 = vpop.f32.mrb[0].mxu0
      %5998 = vmatprep.mubr.bf16.mxu0 0
      %5999 = vmatmul.mubr.bf16.gmra.mrb[0].mxu0 %v5768
      %v6000 = vpop.f32.mrb[0].mxu0
      %v6001 = vadd.f32 0.0, %v6000
      %v6002 = vpop.f32.mrb[0].mxu0
      %v6003 = vpop.f32.mrb[0].mxu0
      %v6004 = vadd.f32 0.0, %v6003
      %v6005 = vpop.f32.mrb[0].mxu0
      %6006 = vmatprep.mubr.bf16.mxu0 0
      %6007 = vmatmul.mubr.bf16.gmra.mrb[0].mxu0 %v5776
      %v6008 = vpop.f32.mrb[0].mxu0
      %v6009 = vadd.f32 0.0, %v6008
      %v6010 = vpop.f32.mrb[0].mxu0
      %v6011 = vpop.f32.mrb[0].mxu0
      %v6012 = vadd.f32 0.0, %v6011
      %v6013 = vpop.f32.mrb[0].mxu0
      %6014 = vmatprep.mubr.bf16.mxu0 0
      %6015 = vmatmul.mubr.bf16.gmra.mrb[0].mxu0 %v5784
      %v6016 = vpop.f32.mrb[0].mxu0
      %v6017 = vadd.f32 0.0, %v6016
      %v6018 = vpop.f32.mrb[0].mxu0
      %v6019 = vpop.f32.mrb[0].mxu0
      %v6020 = vadd.f32 0.0, %v6019
      %v6021 = vpop.f32.mrb[0].mxu0
      %6022 = vmatprep.mubr.bf16.mxu0 0
      %6023 = vmatmul.mubr.bf16.gmra.mrb[0].mxu0 %v5792
      %v6024 = vpop.f32.mrb[0].mxu0
      %v6025 = vadd.f32 0.0, %v6024
      %v6026 = vpop.f32.mrb[0].mxu0
      %v6027 = vpop.f32.mrb[0].mxu0
      %v6028 = vadd.f32 0.0, %v6027
      %v6029 = vpop.f32.mrb[0].mxu0
      %6030 = vmatprep.mubr.bf16.mxu0 0
      %6031 = vmatmul.mubr.bf16.gmra.mrb[0].mxu0 %v5800
      %v6032 = vpop.f32.mrb[0].mxu0
      %v6033 = vadd.f32 0.0, %v6032
      %v6034 = vpop.f32.mrb[0].mxu0
      %v6035 = vpop.f32.mrb[0].mxu0
      %v6036 = vadd.f32 0.0, %v6035
      %v6037 = vpop.f32.mrb[0].mxu0
      %6038 = vmatprep.mubr.bf16.mxu0 0
      %6039 = vmatmul.mubr.bf16.gmra.mrb[0].mxu0 %v5808
      %v6040 = vpop.f32.mrb[0].mxu0
      %v6041 = vadd.f32 0.0, %v6040
      %v6042 = vpop.f32.mrb[0].mxu0
      %v6043 = vpop.f32.mrb[0].mxu0
      %v6044 = vadd.f32 0.0, %v6043
      %v6045 = vpop.f32.mrb[0].mxu0
      %6046 = vmatprep.mubr.bf16.mxu0 0
      %6047 = vmatmul.mubr.bf16.gmra.mrb[0].mxu0 %v5816
      %v6048 = vpop.f32.mrb[0].mxu0
      %v6049 = vadd.f32 0.0, %v6048
      %v6050 = vpop.f32.mrb[0].mxu0
      %v6051 = vpop.f32.mrb[0].mxu0
      %v6052 = vadd.f32 0.0, %v6051
      %v6053 = vpop.f32.mrb[0].mxu0
      %6054 = vmatprep.mubr.bf16.mxu0 0
      %6055 = vmatmul.mubr.bf16.gmra.mrb[0].mxu0 %v5824
      %v6056 = vpop.f32.mrb[0].mxu0
      %v6057 = vadd.f32 0.0, %v6056
      %v6058 = vpop.f32.mrb[0].mxu0
      %v6059 = vpop.f32.mrb[0].mxu0
      %v6060 = vadd.f32 0.0, %v6059
      %v6061 = vpop.f32.mrb[0].mxu0
      %6062 = vmatprep.mubr.bf16.mxu0 0
      %6063 = vmatmul.mubr.bf16.gmra.mrb[0].mxu0 %v5832
      %v6064 = vpop.f32.mrb[0].mxu0
      %v6065 = vadd.f32 0.0, %v6064
      %v6066 = vpop.f32.mrb[0].mxu0
      %v6067 = vpop.f32.mrb[0].mxu0
      %v6068 = vadd.f32 0.0, %v6067
      %v6069 = vpop.f32.mrb[0].mxu0
      %6070 = vmatprep.mubr.bf16.mxu0 0
      %6071 = vmatmul.mubr.bf16.gmra.mrb[0].mxu0 %v5840
      %v6072 = vpop.f32.mrb[0].mxu0
      %v6073 = vadd.f32 0.0, %v6072
      %v6074 = vpop.f32.mrb[0].mxu0
      %v6075 = vpop.f32.mrb[0].mxu0
      %v6076 = vadd.f32 0.0, %v6075
      %v6077 = vpop.f32.mrb[0].mxu0
      %6078 = vmatprep.mubr.bf16.mxu0 0
      %6079 = vmatmul.mubr.bf16.gmra.mrb[0].mxu0 %v5843
      %v6080 = vpop.f32.mrb[0].mxu0
      %v6081 = vadd.f32 0.0, %v6080
      %v6082 = vpop.f32.mrb[0].mxu0
      %v6083 = vpop.f32.mrb[0].mxu0
      %v6084 = vadd.f32 0.0, %v6083
      %v6085 = vpop.f32.mrb[0].mxu0
      %6086 = vdwg.mxu0
      %v6087 = vadd.f32 %v5538, %v5945
      %v6088 = vadd.f32 %v5541, %v5948
      %v6089 = vadd.f32 %v5546, %v5953
      %v6090 = vadd.f32 %v5549, %v5956
      %v6091 = vadd.f32 %v5554, %v5961
      %v6092 = vadd.f32 %v5557, %v5964
      %v6093 = vadd.f32 %v5562, %v5969
      %v6094 = vadd.f32 %v5565, %v5972
      %v6095 = vadd.f32 %v5570, %v5977
      %v6096 = vadd.f32 %v5573, %v5980
      %v6097 = vadd.f32 %v5578, %v5985
      %v6098 = vadd.f32 %v5581, %v5988
      %v6099 = vadd.f32 %v5586, %v5993
      %v6100 = vadd.f32 %v5589, %v5996
      %v6101 = vadd.f32 %v5594, %v6001
      %v6102 = vadd.f32 %v5597, %v6004
      %v6103 = vadd.f32 %v5602, %v6009
      %v6104 = vadd.f32 %v5605, %v6012
      %v6105 = vadd.f32 %v5610, %v6017
      %v6106 = vadd.f32 %v5613, %v6020
      %v6107 = vadd.f32 %v5618, %v6025
      %v6108 = vadd.f32 %v5621, %v6028
      %v6109 = vadd.f32 %v5626, %v6033
      %v6110 = vadd.f32 %v5629, %v6036
      %v6111 = vadd.f32 %v5634, %v6041
      %v6112 = vadd.f32 %v5637, %v6044
      %v6113 = vadd.f32 %v5642, %v6049
      %v6114 = vadd.f32 %v5645, %v6052
      %v6115 = vadd.f32 %v5650, %v6057
      %v6116 = vadd.f32 %v5653, %v6060
      %v6117 = vadd.f32 %v5658, %v6065
      %v6118 = vadd.f32 %v5661, %v6068
      %v6119 = vadd.f32 %v5666, %v6073
      %v6120 = vadd.f32 %v5669, %v6076
      %v6121 = vadd.f32 %v5674, %v6081
      %v6122 = vadd.f32 %v5677, %v6084
      %v6123 = vld [vmem:[#allocation2] sm:$0xe]
      %s6124 = scalar_lea.vmem %s4, 128
      %v6125 = vld [vmem:[%s6124] sm:$0xf]
      %v6126 = vld [vmem:[%s6124 + $0x4] sm:$0xf]
      %v6127 = vld [vmem:[%s6124 + $0x8] sm:$0xf]
      %v6128 = vld [vmem:[%s6124 + $0xc] sm:$0xf]
      %v6129 = vld [vmem:[%s6124 + $0x10] sm:$0xf]
      %v6130 = vld [vmem:[%s6124 + $0x14] sm:$0xf]
      %v6131 = vld [vmem:[%s6124 + $0x18] sm:$0xf]
      %v6132 = vld [vmem:[%s6124 + $0x1c] sm:$0xf]
      %v6133 = vld [vmem:[%s6124 + $0x20] sm:$0xf]
      %v6134 = vld [vmem:[%s6124 + $0x24] sm:$0xf]
      %v6135 = vld [vmem:[%s6124 + $0x28] sm:$0xf]
      %v6136 = vld [vmem:[%s6124 + $0x2c] sm:$0xf]
      %v6137 = vld [vmem:[%s6124 + $0x30] sm:$0xf]
      %v6138 = vld [vmem:[%s6124 + $0x34] sm:$0xf]
      %v6139 = vld [vmem:[%s6124 + $0x38] sm:$0xf]
      %v6140 = vld [vmem:[%s6124 + $0x3c] sm:$0xf]
      %v6142 = vunpack.c.l.b16 %v6123
      %v6143 = vpack.c.b16 %v4891, %v6142
      %v6144 = vrot.slane %v6143, 1
      %v6145 = vrot.slane %v4927, 1
      %v6146 = vsel %vm1016, %v6144, %v6145
      %v6147 = vrot.slane %v4928, 1
      %v6148 = vsel %vm1016, %v6145, %v6147
      %v6149 = vrot.slane %v4929, 1
      %v6150 = vsel %vm1016, %v6147, %v6149
      %v6151 = vrot.slane %v4930, 1
      %v6152 = vsel %vm1016, %v6149, %v6151
      %v6153 = vrot.slane %v4931, 1
      %v6154 = vsel %vm1016, %v6151, %v6153
      %v6155 = vrot.slane %v4932, 1
      %v6156 = vsel %vm1016, %v6153, %v6155
      %v6157 = vrot.slane %v4933, 1
      %v6158 = vsel %vm1016, %v6155, %v6157
      %v6159 = vrot.slane %v4934, 1
      %v6160 = vsel %vm1016, %v6157, %v6159
      %v6161 = vrot.slane %v4935, 1
      %v6162 = vsel %vm1016, %v6159, %v6161
      %v6163 = vrot.slane %v4936, 1
      %v6164 = vsel %vm1016, %v6161, %v6163
      %v6165 = vrot.slane %v4937, 1
      %v6166 = vsel %vm1016, %v6163, %v6165
      %v6167 = vrot.slane %v4938, 1
      %v6168 = vsel %vm1016, %v6165, %v6167
      %v6169 = vrot.slane %v4939, 1
      %v6170 = vsel %vm1016, %v6167, %v6169
      %v6171 = vrot.slane %v4940, 1
      %v6172 = vsel %vm1016, %v6169, %v6171
      %v6173 = vrot.slane %v4941, 1
      %v6174 = vsel %vm1016, %v6171, %v6173
      %v6175 = vrot.slane %v4942, 1
      %v6176 = vsel %vm1016, %v6173, %v6175
      %v6177 = vrot.slane %v5700, 1
      %v6178 = vsel %vm1016, %v6175, %v6177
      %v6213 = vunpack.c.l.b16 %v6125
      %v6214 = vunpack.c.l.b16 %v6126
      %v6215 = vunpack.c.l.b16 %v6127
      %v6216 = vunpack.c.l.b16 %v6128
      %v6217 = vunpack.c.l.b16 %v6129
      %v6218 = vunpack.c.l.b16 %v6130
      %v6219 = vunpack.c.l.b16 %v6131
      %v6220 = vunpack.c.l.b16 %v6132
      %v6221 = vunpack.c.l.b16 %v6133
      %v6222 = vunpack.c.l.b16 %v6134
      %v6223 = vunpack.c.l.b16 %v6135
      %v6224 = vunpack.c.l.b16 %v6136
      %v6225 = vunpack.c.l.b16 %v6137
      %v6226 = vunpack.c.l.b16 %v6138
      %v6227 = vunpack.c.l.b16 %v6139
      %v6228 = vunpack.c.l.b16 %v6140
      %v6229 = vpack.c.b16 %v6214, %v6213
      %v6230 = vpack.c.b16 %v6216, %v6215
      %v6231 = vpack.c.b16 %v6218, %v6217
      %v6232 = vpack.c.b16 %v6220, %v6219
      %v6233 = vpack.c.b16 %v6222, %v6221
      %v6234 = vpack.c.b16 %v6224, %v6223
      %v6235 = vpack.c.b16 %v6226, %v6225
      %v6236 = vpack.c.b16 %v6228, %v6227
      %6245 = vmatprep.subr.bf16.mxu0 0
      %6246 = vmatpush1.bf16.msra.mxu0 %v6229
      %6247 = vmatprep.subr.bf16.mxu0 0
      %6248 = vmatpush1.bf16.msra.mxu0 %v6230
      %6249 = vmatprep.subr.bf16.mxu0 0
      %6250 = vmatpush1.bf16.msra.mxu0 %v6231
      %6251 = vmatprep.subr.bf16.mxu0 0
      %6252 = vmatpush1.bf16.msra.mxu0 %v6232
      %6253 = vmatprep.subr.bf16.mxu0 0
      %6254 = vmatpush1.bf16.msra.mxu0 %v6233
      %6255 = vmatprep.subr.bf16.mxu0 0
      %6256 = vmatpush1.bf16.msra.mxu0 %v6234
      %6257 = vmatprep.subr.bf16.mxu0 0
      %6258 = vmatpush1.bf16.msra.mxu0 %v6235
      %6259 = vmatprep.subr.bf16.mxu0 0
      %6260 = vmatpush1.bf16.msra.mxu0 %v6236
      %6261 = vmatprep.subr.bf16.mxu0 0
      %6262 = vmatpush1.bf16.msra.mxu0 0
      %6263 = vmatprep.subr.bf16.mxu0 0
      %6264 = vmatpush1.bf16.msra.mxu0 0
      %6265 = vmatprep.subr.bf16.mxu0 0
      %6266 = vmatpush1.bf16.msra.mxu0 0
      %6267 = vmatprep.subr.bf16.mxu0 0
      %6268 = vmatpush1.bf16.msra.mxu0 0
      %6269 = vmatprep.subr.bf16.mxu0 0
      %6270 = vmatpush1.bf16.msra.mxu0 0
      %6271 = vmatprep.subr.bf16.mxu0 0
      %6272 = vmatpush1.bf16.msra.mxu0 0
      %6273 = vmatprep.subr.bf16.mxu0 0
      %6274 = vmatpush1.bf16.msra.mxu0 0
      %6275 = vmatprep.subr.bf16.mxu0 0
      %6276 = vmatpush1.bf16.msra.mxu0 0
      %6277 = vmatprep.mubr.bf16.mxu0 0
      %6278 = vmatmul.mubr.bf16.gmra.mrb[0].mxu0 %v6146
      %v6279 = vpop.f32.mrb[0].mxu0
      %v6280 = vadd.f32 0.0, %v6279
      %v6281 = vpop.f32.mrb[0].mxu0
      %v6282 = vpop.f32.mrb[0].mxu0
      %v6283 = vadd.f32 0.0, %v6282
      %v6284 = vpop.f32.mrb[0].mxu0
      %6285 = vmatprep.mubr.bf16.mxu0 0
      %6286 = vmatmul.mubr.bf16.gmra.mrb[0].mxu0 %v6148
      %v6287 = vpop.f32.mrb[0].mxu0
      %v6288 = vadd.f32 0.0, %v6287
      %v6289 = vpop.f32.mrb[0].mxu0
      %v6290 = vpop.f32.mrb[0].mxu0
      %v6291 = vadd.f32 0.0, %v6290
      %v6292 = vpop.f32.mrb[0].mxu0
      %6293 = vmatprep.mubr.bf16.mxu0 0
      %6294 = vmatmul.mubr.bf16.gmra.mrb[0].mxu0 %v6150
      %v6295 = vpop.f32.mrb[0].mxu0
      %v6296 = vadd.f32 0.0, %v6295
      %v6297 = vpop.f32.mrb[0].mxu0
      %v6298 = vpop.f32.mrb[0].mxu0
      %v6299 = vadd.f32 0.0, %v6298
      %v6300 = vpop.f32.mrb[0].mxu0
      %6301 = vmatprep.mubr.bf16.mxu0 0
      %6302 = vmatmul.mubr.bf16.gmra.mrb[0].mxu0 %v6152
      %v6303 = vpop.f32.mrb[0].mxu0
      %v6304 = vadd.f32 0.0, %v6303
      %v6305 = vpop.f32.mrb[0].mxu0
      %v6306 = vpop.f32.mrb[0].mxu0
      %v6307 = vadd.f32 0.0, %v6306
      %v6308 = vpop.f32.mrb[0].mxu0
      %6309 = vmatprep.mubr.bf16.mxu0 0
      %6310 = vmatmul.mubr.bf16.gmra.mrb[0].mxu0 %v6154
      %v6311 = vpop.f32.mrb[0].mxu0
      %v6312 = vadd.f32 0.0, %v6311
      %v6313 = vpop.f32.mrb[0].mxu0
      %v6314 = vpop.f32.mrb[0].mxu0
      %v6315 = vadd.f32 0.0, %v6314
      %v6316 = vpop.f32.mrb[0].mxu0
      %6317 = vmatprep.mubr.bf16.mxu0 0
      %6318 = vmatmul.mubr.bf16.gmra.mrb[0].mxu0 %v6156
      %v6319 = vpop.f32.mrb[0].mxu0
      %v6320 = vadd.f32 0.0, %v6319
      %v6321 = vpop.f32.mrb[0].mxu0
      %v6322 = vpop.f32.mrb[0].mxu0
      %v6323 = vadd.f32 0.0, %v6322
      %v6324 = vpop.f32.mrb[0].mxu0
      %6325 = vmatprep.mubr.bf16.mxu0 0
      %6326 = vmatmul.mubr.bf16.gmra.mrb[0].mxu0 %v6158
      %v6327 = vpop.f32.mrb[0].mxu0
      %v6328 = vadd.f32 0.0, %v6327
      %v6329 = vpop.f32.mrb[0].mxu0
      %v6330 = vpop.f32.mrb[0].mxu0
      %v6331 = vadd.f32 0.0, %v6330
      %v6332 = vpop.f32.mrb[0].mxu0
      %6333 = vmatprep.mubr.bf16.mxu0 0
      %6334 = vmatmul.mubr.bf16.gmra.mrb[0].mxu0 %v6160
      %v6335 = vpop.f32.mrb[0].mxu0
      %v6336 = vadd.f32 0.0, %v6335
      %v6337 = vpop.f32.mrb[0].mxu0
      %v6338 = vpop.f32.mrb[0].mxu0
      %v6339 = vadd.f32 0.0, %v6338
      %v6340 = vpop.f32.mrb[0].mxu0
      %6341 = vmatprep.mubr.bf16.mxu0 0
      %6342 = vmatmul.mubr.bf16.gmra.mrb[0].mxu0 %v6162
      %v6343 = vpop.f32.mrb[0].mxu0
      %v6344 = vadd.f32 0.0, %v6343
      %v6345 = vpop.f32.mrb[0].mxu0
      %v6346 = vpop.f32.mrb[0].mxu0
      %v6347 = vadd.f32 0.0, %v6346
      %v6348 = vpop.f32.mrb[0].mxu0
      %6349 = vmatprep.mubr.bf16.mxu0 0
      %6350 = vmatmul.mubr.bf16.gmra.mrb[0].mxu0 %v6164
      %v6351 = vpop.f32.mrb[0].mxu0
      %v6352 = vadd.f32 0.0, %v6351
      %v6353 = vpop.f32.mrb[0].mxu0
      %v6354 = vpop.f32.mrb[0].mxu0
      %v6355 = vadd.f32 0.0, %v6354
      %v6356 = vpop.f32.mrb[0].mxu0
      %6357 = vmatprep.mubr.bf16.mxu0 0
      %6358 = vmatmul.mubr.bf16.gmra.mrb[0].mxu0 %v6166
      %v6359 = vpop.f32.mrb[0].mxu0
      %v6360 = vadd.f32 0.0, %v6359
      %v6361 = vpop.f32.mrb[0].mxu0
      %v6362 = vpop.f32.mrb[0].mxu0
      %v6363 = vadd.f32 0.0, %v6362
      %v6364 = vpop.f32.mrb[0].mxu0
      %6365 = vmatprep.mubr.bf16.mxu0 0
      %6366 = vmatmul.mubr.bf16.gmra.mrb[0].mxu0 %v6168
      %v6367 = vpop.f32.mrb[0].mxu0
      %v6368 = vadd.f32 0.0, %v6367
      %v6369 = vpop.f32.mrb[0].mxu0
      %v6370 = vpop.f32.mrb[0].mxu0
      %v6371 = vadd.f32 0.0, %v6370
      %v6372 = vpop.f32.mrb[0].mxu0
      %6373 = vmatprep.mubr.bf16.mxu0 0
      %6374 = vmatmul.mubr.bf16.gmra.mrb[0].mxu0 %v6170
      %v6375 = vpop.f32.mrb[0].mxu0
      %v6376 = vadd.f32 0.0, %v6375
      %v6377 = vpop.f32.mrb[0].mxu0
      %v6378 = vpop.f32.mrb[0].mxu0
      %v6379 = vadd.f32 0.0, %v6378
      %v6380 = vpop.f32.mrb[0].mxu0
      %6381 = vmatprep.mubr.bf16.mxu0 0
      %6382 = vmatmul.mubr.bf16.gmra.mrb[0].mxu0 %v6172
      %v6383 = vpop.f32.mrb[0].mxu0
      %v6384 = vadd.f32 0.0, %v6383
      %v6385 = vpop.f32.mrb[0].mxu0
      %v6386 = vpop.f32.mrb[0].mxu0
      %v6387 = vadd.f32 0.0, %v6386
      %v6388 = vpop.f32.mrb[0].mxu0
      %6389 = vmatprep.mubr.bf16.mxu0 0
      %6390 = vmatmul.mubr.bf16.gmra.mrb[0].mxu0 %v6174
      %v6391 = vpop.f32.mrb[0].mxu0
      %v6392 = vadd.f32 0.0, %v6391
      %v6393 = vpop.f32.mrb[0].mxu0
      %v6394 = vpop.f32.mrb[0].mxu0
      %v6395 = vadd.f32 0.0, %v6394
      %v6396 = vpop.f32.mrb[0].mxu0
      %6397 = vmatprep.mubr.bf16.mxu0 0
      %6398 = vmatmul.mubr.bf16.gmra.mrb[0].mxu0 %v6176
      %v6399 = vpop.f32.mrb[0].mxu0
      %v6400 = vadd.f32 0.0, %v6399
      %v6401 = vpop.f32.mrb[0].mxu0
      %v6402 = vpop.f32.mrb[0].mxu0
      %v6403 = vadd.f32 0.0, %v6402
      %v6404 = vpop.f32.mrb[0].mxu0
      %6405 = vmatprep.mubr.bf16.mxu0 0
      %6406 = vmatmul.mubr.bf16.gmra.mrb[0].mxu0 %v6178
      %v6407 = vpop.f32.mrb[0].mxu0
      %v6408 = vadd.f32 0.0, %v6407
      %v6409 = vpop.f32.mrb[0].mxu0
      %v6410 = vpop.f32.mrb[0].mxu0
      %v6411 = vadd.f32 0.0, %v6410
      %v6412 = vpop.f32.mrb[0].mxu0
      %6413 = vmatprep.mubr.bf16.mxu0 0
      %6414 = vmatmul.mubr.bf16.gmra.mrb[0].mxu0 %v6177
      %v6415 = vpop.f32.mrb[0].mxu0
      %v6416 = vadd.f32 0.0, %v6415
      %v6417 = vpop.f32.mrb[0].mxu0
      %v6418 = vpop.f32.mrb[0].mxu0
      %v6419 = vadd.f32 0.0, %v6418
      %v6420 = vpop.f32.mrb[0].mxu0
      %6421 = vdwg.mxu0
      %v6422 = vadd.f32 %v6087, %v6280
      %v6423 = vadd.f32 %v6088, %v6283
      %v6424 = vadd.f32 %v6089, %v6288
      %v6425 = vadd.f32 %v6090, %v6291
      %v6426 = vadd.f32 %v6091, %v6296
      %v6427 = vadd.f32 %v6092, %v6299
      %v6428 = vadd.f32 %v6093, %v6304
      %v6429 = vadd.f32 %v6094, %v6307
      %v6430 = vadd.f32 %v6095, %v6312
      %v6431 = vadd.f32 %v6096, %v6315
      %v6432 = vadd.f32 %v6097, %v6320
      %v6433 = vadd.f32 %v6098, %v6323
      %v6434 = vadd.f32 %v6099, %v6328
      %v6435 = vadd.f32 %v6100, %v6331
      %v6436 = vadd.f32 %v6101, %v6336
      %v6437 = vadd.f32 %v6102, %v6339
      %v6438 = vadd.f32 %v6103, %v6344
      %v6439 = vadd.f32 %v6104, %v6347
      %v6440 = vadd.f32 %v6105, %v6352
      %v6441 = vadd.f32 %v6106, %v6355
      %v6442 = vadd.f32 %v6107, %v6360
      %v6443 = vadd.f32 %v6108, %v6363
      %v6444 = vadd.f32 %v6109, %v6368
      %v6445 = vadd.f32 %v6110, %v6371
      %v6446 = vadd.f32 %v6111, %v6376
      %v6447 = vadd.f32 %v6112, %v6379
      %v6448 = vadd.f32 %v6113, %v6384
      %v6449 = vadd.f32 %v6114, %v6387
      %v6450 = vadd.f32 %v6115, %v6392
      %v6451 = vadd.f32 %v6116, %v6395
      %v6452 = vadd.f32 %v6117, %v6400
      %v6453 = vadd.f32 %v6118, %v6403
      %v6454 = vadd.f32 %v6119, %v6408
      %v6455 = vadd.f32 %v6120, %v6411
      %v6456 = vadd.f32 %v6121, %v6416
      %v6457 = vadd.f32 %v6122, %v6419
      %v6458 = vld [vmem:[#allocation2 + $0x8] sm:$0xe]
      %v6459 = vld [vmem:[#allocation2 + $0xc] sm:$0xf]
      %v6460 = vld [vmem:[#allocation2 + $0x10] sm:$0xf]
      %v6461 = vld [vmem:[#allocation2 + $0x14] sm:$0xf]
      %v6462 = vld [vmem:[#allocation2 + $0x18] sm:$0xf]
      %v6463 = vld [vmem:[#allocation2 + $0x1c] sm:$0xf]
      %v6464 = vld [vmem:[#allocation2 + $0x20] sm:$0xf]
      %v6465 = vld [vmem:[#allocation2 + $0x24] sm:$0xf]
      %v6466 = vld [vmem:[#allocation2 + $0x28] sm:$0xf]
      %v6467 = vld [vmem:[#allocation2 + $0x2c] sm:$0xf]
      %v6468 = vld [vmem:[#allocation2 + $0x30] sm:$0xf]
      %v6469 = vld [vmem:[#allocation2 + $0x34] sm:$0xf]
      %v6470 = vld [vmem:[#allocation2 + $0x38] sm:$0xf]
      %v6471 = vld [vmem:[#allocation2 + $0x3c] sm:$0xf]
      %v6472 = vld [vmem:[#allocation2 + $0x40] sm:$0xf]
      %v6473 = vld [vmem:[#allocation2 + $0x44] sm:$0xf]
      %v6474 = vld [vmem:[#allocation2 + $0x48] sm:$0xf]
      %v6475 = vld [vmem:[#allocation2 + $0x4c] sm:$0xf]
      %v6476 = vld [vmem:[#allocation2 + $0x50] sm:$0xf]
      %v6477 = vld [vmem:[#allocation2 + $0x54] sm:$0xf]
      %v6478 = vld [vmem:[#allocation2 + $0x58] sm:$0xf]
      %v6479 = vld [vmem:[#allocation2 + $0x5c] sm:$0xf]
      %v6480 = vld [vmem:[#allocation2 + $0x60] sm:$0xf]
      %v6481 = vld [vmem:[#allocation2 + $0x64] sm:$0xf]
      %v6482 = vld [vmem:[#allocation2 + $0x68] sm:$0xf]
      %v6483 = vld [vmem:[#allocation2 + $0x6c] sm:$0xf]
      %v6484 = vld [vmem:[#allocation2 + $0x70] sm:$0xf]
      %v6485 = vld [vmem:[#allocation2 + $0x74] sm:$0xf]
      %v6486 = vld [vmem:[#allocation2 + $0x78] sm:$0xf]
      %v6487 = vld [vmem:[#allocation2 + $0x7c] sm:$0xf]
      %v6488 = vld [vmem:[#allocation2 + $0x80] sm:$0xf]
      %v6489 = vld [vmem:[#allocation2 + $0x84] sm:$0xf]
      %v6490 = vld [vmem:[#allocation2 + $0x88] sm:$0xf]
      %v6491 = vld [vmem:[#allocation2 + $0x8c] sm:$0xf]
      %v6492 = vld [vmem:[#allocation2 + $0x90] sm:$0xf]
      %v6493 = vld [vmem:[#allocation2 + $0x94] sm:$0xf]
      %s6494 = scalar_lea.vmem %s4, 192
      %v6495 = vld [vmem:[%s6494] sm:$0xf]
      %v6496 = vld [vmem:[%s6494 + $0x4] sm:$0xf]
      %v6497 = vld [vmem:[%s6494 + $0x8] sm:$0xf]
      %v6498 = vld [vmem:[%s6494 + $0xc] sm:$0xf]
      %v6499 = vld [vmem:[%s6494 + $0x10] sm:$0xf]
      %v6500 = vld [vmem:[%s6494 + $0x14] sm:$0xf]
      %v6501 = vld [vmem:[%s6494 + $0x18] sm:$0xf]
      %v6502 = vld [vmem:[%s6494 + $0x1c] sm:$0xf]
      %v6503 = vld [vmem:[%s6494 + $0x20] sm:$0xf]
      %v6504 = vld [vmem:[%s6494 + $0x24] sm:$0xf]
      %v6505 = vld [vmem:[%s6494 + $0x28] sm:$0xf]
      %v6506 = vld [vmem:[%s6494 + $0x2c] sm:$0xf]
      %v6507 = vld [vmem:[%s6494 + $0x30] sm:$0xf]
      %v6508 = vld [vmem:[%s6494 + $0x34] sm:$0xf]
      %v6509 = vld [vmem:[%s6494 + $0x38] sm:$0xf]
      %v6510 = vld [vmem:[%s6494 + $0x3c] sm:$0xf]
      %v6547 = vunpack.c.l.b16 %v6458
      %v6548 = vunpack.c.l.b16 %v6459
      %v6549 = vunpack.c.l.b16 %v6460
      %v6550 = vunpack.c.l.b16 %v6461
      %v6551 = vunpack.c.l.b16 %v6462
      %v6552 = vunpack.c.l.b16 %v6463
      %v6553 = vunpack.c.l.b16 %v6464
      %v6554 = vunpack.c.l.b16 %v6465
      %v6555 = vunpack.c.l.b16 %v6466
      %v6556 = vunpack.c.l.b16 %v6467
      %v6557 = vunpack.c.l.b16 %v6468
      %v6558 = vunpack.c.l.b16 %v6469
      %v6559 = vunpack.c.l.b16 %v6470
      %v6560 = vunpack.c.l.b16 %v6471
      %v6561 = vunpack.c.l.b16 %v6472
      %v6562 = vunpack.c.l.b16 %v6473
      %v6563 = vunpack.c.l.b16 %v6474
      %v6564 = vunpack.c.l.b16 %v6475
      %v6565 = vunpack.c.l.b16 %v6476
      %v6566 = vunpack.c.l.b16 %v6477
      %v6567 = vunpack.c.l.b16 %v6478
      %v6568 = vunpack.c.l.b16 %v6479
      %v6569 = vunpack.c.l.b16 %v6480
      %v6570 = vunpack.c.l.b16 %v6481
      %v6571 = vunpack.c.l.b16 %v6482
      %v6572 = vunpack.c.l.b16 %v6483
      %v6573 = vunpack.c.l.b16 %v6484
      %v6574 = vunpack.c.l.b16 %v6485
      %v6575 = vunpack.c.l.b16 %v6486
      %v6576 = vunpack.c.l.b16 %v6487
      %v6577 = vunpack.c.l.b16 %v6488
      %v6578 = vunpack.c.l.b16 %v6489
      %v6579 = vunpack.c.l.b16 %v6490
      %v6580 = vunpack.c.l.b16 %v6491
      %v6581 = vunpack.c.l.b16 %v6492
      %v6582 = vunpack.c.l.b16 %v6493
      %v6583 = vpack.c.b16 %v6548, %v6547
      %v6584 = vpack.c.b16 %v6550, %v6549
      %v6585 = vpack.c.b16 %v6552, %v6551
      %v6586 = vpack.c.b16 %v6554, %v6553
      %v6587 = vpack.c.b16 %v6556, %v6555
      %v6588 = vpack.c.b16 %v6558, %v6557
      %v6589 = vpack.c.b16 %v6560, %v6559
      %v6590 = vpack.c.b16 %v6562, %v6561
      %v6591 = vpack.c.b16 %v6564, %v6563
      %v6592 = vpack.c.b16 %v6566, %v6565
      %v6593 = vpack.c.b16 %v6568, %v6567
      %v6594 = vpack.c.b16 %v6570, %v6569
      %v6595 = vpack.c.b16 %v6572, %v6571
      %v6596 = vpack.c.b16 %v6574, %v6573
      %v6597 = vpack.c.b16 %v6576, %v6575
      %v6598 = vpack.c.b16 %v6578, %v6577
      %v6599 = vpack.c.b16 %v6580, %v6579
      %v6600 = vpack.c.b16 %v6582, %v6581
      %v6601 = vrot.slane %v6583, 1
      %v6602 = vrot.slane %v6584, 1
      %v6603 = vsel %vm1016, %v6601, %v6602
      %v6604 = vrot.slane %v6585, 1
      %v6605 = vsel %vm1016, %v6602, %v6604
      %v6606 = vrot.slane %v6586, 1
      %v6607 = vsel %vm1016, %v6604, %v6606
      %v6608 = vrot.slane %v6587, 1
      %v6609 = vsel %vm1016, %v6606, %v6608
      %v6610 = vrot.slane %v6588, 1
      %v6611 = vsel %vm1016, %v6608, %v6610
      %v6612 = vrot.slane %v6589, 1
      %v6613 = vsel %vm1016, %v6610, %v6612
      %v6614 = vrot.slane %v6590, 1
      %v6615 = vsel %vm1016, %v6612, %v6614
      %v6616 = vrot.slane %v6591, 1
      %v6617 = vsel %vm1016, %v6614, %v6616
      %v6618 = vrot.slane %v6592, 1
      %v6619 = vsel %vm1016, %v6616, %v6618
      %v6620 = vrot.slane %v6593, 1
      %v6621 = vsel %vm1016, %v6618, %v6620
      %v6622 = vrot.slane %v6594, 1
      %v6623 = vsel %vm1016, %v6620, %v6622
      %v6624 = vrot.slane %v6595, 1
      %v6625 = vsel %vm1016, %v6622, %v6624
      %v6626 = vrot.slane %v6596, 1
      %v6627 = vsel %vm1016, %v6624, %v6626
      %v6628 = vrot.slane %v6597, 1
      %v6629 = vsel %vm1016, %v6626, %v6628
      %v6630 = vrot.slane %v6598, 1
      %v6631 = vsel %vm1016, %v6628, %v6630
      %v6632 = vrot.slane %v6599, 1
      %v6633 = vsel %vm1016, %v6630, %v6632
      %v6634 = vrot.slane %v6600, 1
      %v6635 = vsel %vm1016, %v6632, %v6634
      %v6670 = vunpack.c.l.b16 %v6495
      %v6671 = vunpack.c.l.b16 %v6496
      %v6672 = vunpack.c.l.b16 %v6497
      %v6673 = vunpack.c.l.b16 %v6498
      %v6674 = vunpack.c.l.b16 %v6499
      %v6675 = vunpack.c.l.b16 %v6500
      %v6676 = vunpack.c.l.b16 %v6501
      %v6677 = vunpack.c.l.b16 %v6502
      %v6678 = vunpack.c.l.b16 %v6503
      %v6679 = vunpack.c.l.b16 %v6504
      %v6680 = vunpack.c.l.b16 %v6505
      %v6681 = vunpack.c.l.b16 %v6506
      %v6682 = vunpack.c.l.b16 %v6507
      %v6683 = vunpack.c.l.b16 %v6508
      %v6684 = vunpack.c.l.b16 %v6509
      %v6685 = vunpack.c.l.b16 %v6510
      %v6686 = vpack.c.b16 %v6671, %v6670
      %v6687 = vpack.c.b16 %v6673, %v6672
      %v6688 = vpack.c.b16 %v6675, %v6674
      %v6689 = vpack.c.b16 %v6677, %v6676
      %v6690 = vpack.c.b16 %v6679, %v6678
      %v6691 = vpack.c.b16 %v6681, %v6680
      %v6692 = vpack.c.b16 %v6683, %v6682
      %v6693 = vpack.c.b16 %v6685, %v6684
      %6702 = vmatprep.subr.bf16.mxu0 0
      %6703 = vmatpush1.bf16.msra.mxu0 %v6686
      %6704 = vmatprep.subr.bf16.mxu0 0
      %6705 = vmatpush1.bf16.msra.mxu0 %v6687
      %6706 = vmatprep.subr.bf16.mxu0 0
      %6707 = vmatpush1.bf16.msra.mxu0 %v6688
      %6708 = vmatprep.subr.bf16.mxu0 0
      %6709 = vmatpush1.bf16.msra.mxu0 %v6689
      %6710 = vmatprep.subr.bf16.mxu0 0
      %6711 = vmatpush1.bf16.msra.mxu0 %v6690
      %6712 = vmatprep.subr.bf16.mxu0 0
      %6713 = vmatpush1.bf16.msra.mxu0 %v6691
      %6714 = vmatprep.subr.bf16.mxu0 0
      %6715 = vmatpush1.bf16.msra.mxu0 %v6692
      %6716 = vmatprep.subr.bf16.mxu0 0
      %6717 = vmatpush1.bf16.msra.mxu0 %v6693
      %6718 = vmatprep.subr.bf16.mxu0 0
      %6719 = vmatpush1.bf16.msra.mxu0 0
      %6720 = vmatprep.subr.bf16.mxu0 0
      %6721 = vmatpush1.bf16.msra.mxu0 0
      %6722 = vmatprep.subr.bf16.mxu0 0
      %6723 = vmatpush1.bf16.msra.mxu0 0
      %6724 = vmatprep.subr.bf16.mxu0 0
      %6725 = vmatpush1.bf16.msra.mxu0 0
      %6726 = vmatprep.subr.bf16.mxu0 0
      %6727 = vmatpush1.bf16.msra.mxu0 0
      %6728 = vmatprep.subr.bf16.mxu0 0
      %6729 = vmatpush1.bf16.msra.mxu0 0
      %6730 = vmatprep.subr.bf16.mxu0 0
      %6731 = vmatpush1.bf16.msra.mxu0 0
      %6732 = vmatprep.subr.bf16.mxu0 0
      %6733 = vmatpush1.bf16.msra.mxu0 0
      %6734 = vmatprep.mubr.bf16.mxu0 0
      %6735 = vmatmul.mubr.bf16.gmra.mrb[0].mxu0 %v6603
      %v6736 = vpop.f32.mrb[0].mxu0
      %v6737 = vadd.f32 0.0, %v6736
      %v6738 = vpop.f32.mrb[0].mxu0
      %v6739 = vpop.f32.mrb[0].mxu0
      %v6740 = vadd.f32 0.0, %v6739
      %v6741 = vpop.f32.mrb[0].mxu0
      %6742 = vmatprep.mubr.bf16.mxu0 0
      %6743 = vmatmul.mubr.bf16.gmra.mrb[0].mxu0 %v6605
      %v6744 = vpop.f32.mrb[0].mxu0
      %v6745 = vadd.f32 0.0, %v6744
      %v6746 = vpop.f32.mrb[0].mxu0
      %v6747 = vpop.f32.mrb[0].mxu0
      %v6748 = vadd.f32 0.0, %v6747
      %v6749 = vpop.f32.mrb[0].mxu0
      %6750 = vmatprep.mubr.bf16.mxu0 0
      %6751 = vmatmul.mubr.bf16.gmra.mrb[0].mxu0 %v6607
      %v6752 = vpop.f32.mrb[0].mxu0
      %v6753 = vadd.f32 0.0, %v6752
      %v6754 = vpop.f32.mrb[0].mxu0
      %v6755 = vpop.f32.mrb[0].mxu0
      %v6756 = vadd.f32 0.0, %v6755
      %v6757 = vpop.f32.mrb[0].mxu0
      %6758 = vmatprep.mubr.bf16.mxu0 0
      %6759 = vmatmul.mubr.bf16.gmra.mrb[0].mxu0 %v6609
      %v6760 = vpop.f32.mrb[0].mxu0
      %v6761 = vadd.f32 0.0, %v6760
      %v6762 = vpop.f32.mrb[0].mxu0
      %v6763 = vpop.f32.mrb[0].mxu0
      %v6764 = vadd.f32 0.0, %v6763
      %v6765 = vpop.f32.mrb[0].mxu0
      %6766 = vmatprep.mubr.bf16.mxu0 0
      %6767 = vmatmul.mubr.bf16.gmra.mrb[0].mxu0 %v6611
      %v6768 = vpop.f32.mrb[0].mxu0
      %v6769 = vadd.f32 0.0, %v6768
      %v6770 = vpop.f32.mrb[0].mxu0
      %v6771 = vpop.f32.mrb[0].mxu0
      %v6772 = vadd.f32 0.0, %v6771
      %v6773 = vpop.f32.mrb[0].mxu0
      %6774 = vmatprep.mubr.bf16.mxu0 0
      %6775 = vmatmul.mubr.bf16.gmra.mrb[0].mxu0 %v6613
      %v6776 = vpop.f32.mrb[0].mxu0
      %v6777 = vadd.f32 0.0, %v6776
      %v6778 = vpop.f32.mrb[0].mxu0
      %v6779 = vpop.f32.mrb[0].mxu0
      %v6780 = vadd.f32 0.0, %v6779
      %v6781 = vpop.f32.mrb[0].mxu0
      %6782 = vmatprep.mubr.bf16.mxu0 0
      %6783 = vmatmul.mubr.bf16.gmra.mrb[0].mxu0 %v6615
      %v6784 = vpop.f32.mrb[0].mxu0
      %v6785 = vadd.f32 0.0, %v6784
      %v6786 = vpop.f32.mrb[0].mxu0
      %v6787 = vpop.f32.mrb[0].mxu0
      %v6788 = vadd.f32 0.0, %v6787
      %v6789 = vpop.f32.mrb[0].mxu0
      %6790 = vmatprep.mubr.bf16.mxu0 0
      %6791 = vmatmul.mubr.bf16.gmra.mrb[0].mxu0 %v6617
      %v6792 = vpop.f32.mrb[0].mxu0
      %v6793 = vadd.f32 0.0, %v6792
      %v6794 = vpop.f32.mrb[0].mxu0
      %v6795 = vpop.f32.mrb[0].mxu0
      %v6796 = vadd.f32 0.0, %v6795
      %v6797 = vpop.f32.mrb[0].mxu0
      %6798 = vmatprep.mubr.bf16.mxu0 0
      %6799 = vmatmul.mubr.bf16.gmra.mrb[0].mxu0 %v6619
      %v6800 = vpop.f32.mrb[0].mxu0
      %v6801 = vadd.f32 0.0, %v6800
      %v6802 = vpop.f32.mrb[0].mxu0
      %v6803 = vpop.f32.mrb[0].mxu0
      %v6804 = vadd.f32 0.0, %v6803
      %v6805 = vpop.f32.mrb[0].mxu0
      %6806 = vmatprep.mubr.bf16.mxu0 0
      %6807 = vmatmul.mubr.bf16.gmra.mrb[0].mxu0 %v6621
      %v6808 = vpop.f32.mrb[0].mxu0
      %v6809 = vadd.f32 0.0, %v6808
      %v6810 = vpop.f32.mrb[0].mxu0
      %v6811 = vpop.f32.mrb[0].mxu0
      %v6812 = vadd.f32 0.0, %v6811
      %v6813 = vpop.f32.mrb[0].mxu0
      %6814 = vmatprep.mubr.bf16.mxu0 0
      %6815 = vmatmul.mubr.bf16.gmra.mrb[0].mxu0 %v6623
      %v6816 = vpop.f32.mrb[0].mxu0
      %v6817 = vadd.f32 0.0, %v6816
      %v6818 = vpop.f32.mrb[0].mxu0
      %v6819 = vpop.f32.mrb[0].mxu0
      %v6820 = vadd.f32 0.0, %v6819
      %v6821 = vpop.f32.mrb[0].mxu0
      %6822 = vmatprep.mubr.bf16.mxu0 0
      %6823 = vmatmul.mubr.bf16.gmra.mrb[0].mxu0 %v6625
      %v6824 = vpop.f32.mrb[0].mxu0
      %v6825 = vadd.f32 0.0, %v6824
      %v6826 = vpop.f32.mrb[0].mxu0
      %v6827 = vpop.f32.mrb[0].mxu0
      %v6828 = vadd.f32 0.0, %v6827
      %v6829 = vpop.f32.mrb[0].mxu0
      %6830 = vmatprep.mubr.bf16.mxu0 0
      %6831 = vmatmul.mubr.bf16.gmra.mrb[0].mxu0 %v6627
      %v6832 = vpop.f32.mrb[0].mxu0
      %v6833 = vadd.f32 0.0, %v6832
      %v6834 = vpop.f32.mrb[0].mxu0
      %v6835 = vpop.f32.mrb[0].mxu0
      %v6836 = vadd.f32 0.0, %v6835
      %v6837 = vpop.f32.mrb[0].mxu0
      %6838 = vmatprep.mubr.bf16.mxu0 0
      %6839 = vmatmul.mubr.bf16.gmra.mrb[0].mxu0 %v6629
      %v6840 = vpop.f32.mrb[0].mxu0
      %v6841 = vadd.f32 0.0, %v6840
      %v6842 = vpop.f32.mrb[0].mxu0
      %v6843 = vpop.f32.mrb[0].mxu0
      %v6844 = vadd.f32 0.0, %v6843
      %v6845 = vpop.f32.mrb[0].mxu0
      %6846 = vmatprep.mubr.bf16.mxu0 0
      %6847 = vmatmul.mubr.bf16.gmra.mrb[0].mxu0 %v6631
      %v6848 = vpop.f32.mrb[0].mxu0
      %v6849 = vadd.f32 0.0, %v6848
      %v6850 = vpop.f32.mrb[0].mxu0
      %v6851 = vpop.f32.mrb[0].mxu0
      %v6852 = vadd.f32 0.0, %v6851
      %v6853 = vpop.f32.mrb[0].mxu0
      %6854 = vmatprep.mubr.bf16.mxu0 0
      %6855 = vmatmul.mubr.bf16.gmra.mrb[0].mxu0 %v6633
      %v6856 = vpop.f32.mrb[0].mxu0
      %v6857 = vadd.f32 0.0, %v6856
      %v6858 = vpop.f32.mrb[0].mxu0
      %v6859 = vpop.f32.mrb[0].mxu0
      %v6860 = vadd.f32 0.0, %v6859
      %v6861 = vpop.f32.mrb[0].mxu0
      %6862 = vmatprep.mubr.bf16.mxu0 0
      %6863 = vmatmul.mubr.bf16.gmra.mrb[0].mxu0 %v6635
      %v6864 = vpop.f32.mrb[0].mxu0
      %v6865 = vadd.f32 0.0, %v6864
      %v6866 = vpop.f32.mrb[0].mxu0
      %v6867 = vpop.f32.mrb[0].mxu0
      %v6868 = vadd.f32 0.0, %v6867
      %v6869 = vpop.f32.mrb[0].mxu0
      %6870 = vmatprep.mubr.bf16.mxu0 0
      %6871 = vmatmul.mubr.bf16.gmra.mrb[0].mxu0 %v6634
      %v6872 = vpop.f32.mrb[0].mxu0
      %v6873 = vadd.f32 0.0, %v6872
      %v6874 = vpop.f32.mrb[0].mxu0
      %v6875 = vpop.f32.mrb[0].mxu0
      %v6876 = vadd.f32 0.0, %v6875
      %v6877 = vpop.f32.mrb[0].mxu0
      %6878 = vdwg.mxu0
      %v6879 = vadd.f32 %v6422, %v6737
      %v6880 = vadd.f32 %v6423, %v6740
      %v6881 = vadd.f32 %v6424, %v6745
      %v6882 = vadd.f32 %v6425, %v6748
      %v6883 = vadd.f32 %v6426, %v6753
      %v6884 = vadd.f32 %v6427, %v6756
      %v6885 = vadd.f32 %v6428, %v6761
      %v6886 = vadd.f32 %v6429, %v6764
      %v6887 = vadd.f32 %v6430, %v6769
      %v6888 = vadd.f32 %v6431, %v6772
      %v6889 = vadd.f32 %v6432, %v6777
      %v6890 = vadd.f32 %v6433, %v6780
      %v6891 = vadd.f32 %v6434, %v6785
      %v6892 = vadd.f32 %v6435, %v6788
      %v6893 = vadd.f32 %v6436, %v6793
      %v6894 = vadd.f32 %v6437, %v6796
      %v6895 = vadd.f32 %v6438, %v6801
      %v6896 = vadd.f32 %v6439, %v6804
      %v6897 = vadd.f32 %v6440, %v6809
      %v6898 = vadd.f32 %v6441, %v6812
      %v6899 = vadd.f32 %v6442, %v6817
      %v6900 = vadd.f32 %v6443, %v6820
      %v6901 = vadd.f32 %v6444, %v6825
      %v6902 = vadd.f32 %v6445, %v6828
      %v6903 = vadd.f32 %v6446, %v6833
      %v6904 = vadd.f32 %v6447, %v6836
      %v6905 = vadd.f32 %v6448, %v6841
      %v6906 = vadd.f32 %v6449, %v6844
      %v6907 = vadd.f32 %v6450, %v6849
      %v6908 = vadd.f32 %v6451, %v6852
      %v6909 = vadd.f32 %v6452, %v6857
      %v6910 = vadd.f32 %v6453, %v6860
      %v6911 = vadd.f32 %v6454, %v6865
      %v6912 = vadd.f32 %v6455, %v6868
      %v6913 = vadd.f32 %v6456, %v6873
      %v6914 = vadd.f32 %v6457, %v6876
      %v6915 = vld [vmem:[#allocation2 + $0x8] sm:$0xe]
      %v6916 = vld [vmem:[#allocation2 + $0xc] sm:$0xf]
      %v6917 = vld [vmem:[#allocation2 + $0x10] sm:$0xf]
      %v6918 = vld [vmem:[#allocation2 + $0x14] sm:$0xf]
      %v6919 = vld [vmem:[#allocation2 + $0x18] sm:$0xf]
      %v6920 = vld [vmem:[#allocation2 + $0x1c] sm:$0xf]
      %v6921 = vld [vmem:[#allocation2 + $0x20] sm:$0xf]
      %v6922 = vld [vmem:[#allocation2 + $0x24] sm:$0xf]
      %v6923 = vld [vmem:[#allocation2 + $0x28] sm:$0xf]
      %v6924 = vld [vmem:[#allocation2 + $0x2c] sm:$0xf]
      %v6925 = vld [vmem:[#allocation2 + $0x30] sm:$0xf]
      %v6926 = vld [vmem:[#allocation2 + $0x34] sm:$0xf]
      %v6927 = vld [vmem:[#allocation2 + $0x38] sm:$0xf]
      %v6928 = vld [vmem:[#allocation2 + $0x3c] sm:$0xf]
      %v6929 = vld [vmem:[#allocation2 + $0x40] sm:$0xf]
      %v6930 = vld [vmem:[#allocation2 + $0x44] sm:$0xf]
      %v6931 = vld [vmem:[#allocation2 + $0x48] sm:$0xf]
      %v6932 = vld [vmem:[#allocation2 + $0x4c] sm:$0xf]
      %v6933 = vld [vmem:[#allocation2 + $0x50] sm:$0xf]
      %v6934 = vld [vmem:[#allocation2 + $0x54] sm:$0xf]
      %v6935 = vld [vmem:[#allocation2 + $0x58] sm:$0xf]
      %v6936 = vld [vmem:[#allocation2 + $0x5c] sm:$0xf]
      %v6937 = vld [vmem:[#allocation2 + $0x60] sm:$0xf]
      %v6938 = vld [vmem:[#allocation2 + $0x64] sm:$0xf]
      %v6939 = vld [vmem:[#allocation2 + $0x68] sm:$0xf]
      %v6940 = vld [vmem:[#allocation2 + $0x6c] sm:$0xf]
      %v6941 = vld [vmem:[#allocation2 + $0x70] sm:$0xf]
      %v6942 = vld [vmem:[#allocation2 + $0x74] sm:$0xf]
      %v6943 = vld [vmem:[#allocation2 + $0x78] sm:$0xf]
      %v6944 = vld [vmem:[#allocation2 + $0x7c] sm:$0xf]
      %v6945 = vld [vmem:[#allocation2 + $0x80] sm:$0xf]
      %v6946 = vld [vmem:[#allocation2 + $0x84] sm:$0xf]
      %v6947 = vld [vmem:[#allocation2 + $0x88] sm:$0xf]
      %v6948 = vld [vmem:[#allocation2 + $0x8c] sm:$0xf]
      %v6949 = vld [vmem:[#allocation2 + $0x90] sm:$0xf]
      %v6950 = vld [vmem:[#allocation2 + $0x94] sm:$0xf]
      %v6951 = vld [vmem:[#allocation2 + $0x98] sm:$0x1]
      %s6952 = scalar_lea.vmem %s4, 256
      %v6953 = vld [vmem:[%s6952] sm:$0xf]
      %v6954 = vld [vmem:[%s6952 + $0x4] sm:$0xf]
      %v6955 = vld [vmem:[%s6952 + $0x8] sm:$0xf]
      %v6956 = vld [vmem:[%s6952 + $0xc] sm:$0xf]
      %v6957 = vld [vmem:[%s6952 + $0x10] sm:$0xf]
      %v6958 = vld [vmem:[%s6952 + $0x14] sm:$0xf]
      %v6959 = vld [vmem:[%s6952 + $0x18] sm:$0xf]
      %v6960 = vld [vmem:[%s6952 + $0x1c] sm:$0xf]
      %v6961 = vld [vmem:[%s6952 + $0x20] sm:$0xf]
      %v6962 = vld [vmem:[%s6952 + $0x24] sm:$0xf]
      %v6963 = vld [vmem:[%s6952 + $0x28] sm:$0xf]
      %v6964 = vld [vmem:[%s6952 + $0x2c] sm:$0xf]
      %v6965 = vld [vmem:[%s6952 + $0x30] sm:$0xf]
      %v6966 = vld [vmem:[%s6952 + $0x34] sm:$0xf]
      %v6967 = vld [vmem:[%s6952 + $0x38] sm:$0xf]
      %v6968 = vld [vmem:[%s6952 + $0x3c] sm:$0xf]
      %v7006 = vunpack.c.l.b16 %v6915
      %v7007 = vunpack.c.l.b16 %v6916
      %v7008 = vunpack.c.l.b16 %v6917
      %v7009 = vunpack.c.l.b16 %v6918
      %v7010 = vunpack.c.l.b16 %v6919
      %v7011 = vunpack.c.l.b16 %v6920
      %v7012 = vunpack.c.l.b16 %v6921
      %v7013 = vunpack.c.l.b16 %v6922
      %v7014 = vunpack.c.l.b16 %v6923
      %v7015 = vunpack.c.l.b16 %v6924
      %v7016 = vunpack.c.l.b16 %v6925
      %v7017 = vunpack.c.l.b16 %v6926
      %v7018 = vunpack.c.l.b16 %v6927
      %v7019 = vunpack.c.l.b16 %v6928
      %v7020 = vunpack.c.l.b16 %v6929
      %v7021 = vunpack.c.l.b16 %v6930
      %v7022 = vunpack.c.l.b16 %v6931
      %v7023 = vunpack.c.l.b16 %v6932
      %v7024 = vunpack.c.l.b16 %v6933
      %v7025 = vunpack.c.l.b16 %v6934
      %v7026 = vunpack.c.l.b16 %v6935
      %v7027 = vunpack.c.l.b16 %v6936
      %v7028 = vunpack.c.l.b16 %v6937
      %v7029 = vunpack.c.l.b16 %v6938
      %v7030 = vunpack.c.l.b16 %v6939
      %v7031 = vunpack.c.l.b16 %v6940
      %v7032 = vunpack.c.l.b16 %v6941
      %v7033 = vunpack.c.l.b16 %v6942
      %v7034 = vunpack.c.l.b16 %v6943
      %v7035 = vunpack.c.l.b16 %v6944
      %v7036 = vunpack.c.l.b16 %v6945
      %v7037 = vunpack.c.l.b16 %v6946
      %v7038 = vunpack.c.l.b16 %v6947
      %v7039 = vunpack.c.l.b16 %v6948
      %v7040 = vunpack.c.l.b16 %v6949
      %v7041 = vunpack.c.l.b16 %v6950
      %v7042 = vunpack.c.l.b16 %v6951
      %v7043 = vpack.c.b16 %v7007, %v7006
      %v7044 = vpack.c.b16 %v7009, %v7008
      %v7045 = vpack.c.b16 %v7011, %v7010
      %v7046 = vpack.c.b16 %v7013, %v7012
      %v7047 = vpack.c.b16 %v7015, %v7014
      %v7048 = vpack.c.b16 %v7017, %v7016
      %v7049 = vpack.c.b16 %v7019, %v7018
      %v7050 = vpack.c.b16 %v7021, %v7020
      %v7051 = vpack.c.b16 %v7023, %v7022
      %v7052 = vpack.c.b16 %v7025, %v7024
      %v7053 = vpack.c.b16 %v7027, %v7026
      %v7054 = vpack.c.b16 %v7029, %v7028
      %v7055 = vpack.c.b16 %v7031, %v7030
      %v7056 = vpack.c.b16 %v7033, %v7032
      %v7057 = vpack.c.b16 %v7035, %v7034
      %v7058 = vpack.c.b16 %v7037, %v7036
      %v7059 = vpack.c.b16 %v7039, %v7038
      %v7060 = vpack.c.b16 %v7041, %v7040
      %v7061 = vpack.c.b16 %v7042, %v7042
      %v7063 = vshrl.u32 %v7043, 16
      %v7065 = vrot.slane %v7063, 1
      %v7066 = vshll.u32 %v7043, 16
      %v7068 = vrot.slane %v7066, 2
      %v7069 = vor.u32 %v7065, %v7068
      %v7071 = vshrl.u32 %v7044, 16
      %v7073 = vrot.slane %v7071, 1
      %v7074 = vshll.u32 %v7044, 16
      %v7076 = vrot.slane %v7074, 2
      %v7077 = vor.u32 %v7073, %v7076
      %v7078 = vsel %vm1887, %v7069, %v7077
      %v7080 = vshrl.u32 %v7045, 16
      %v7082 = vrot.slane %v7080, 1
      %v7083 = vshll.u32 %v7045, 16
      %v7085 = vrot.slane %v7083, 2
      %v7086 = vor.u32 %v7082, %v7085
      %v7087 = vsel %vm1887, %v7077, %v7086
      %v7089 = vshrl.u32 %v7046, 16
      %v7091 = vrot.slane %v7089, 1
      %v7092 = vshll.u32 %v7046, 16
      %v7094 = vrot.slane %v7092, 2
      %v7095 = vor.u32 %v7091, %v7094
      %v7096 = vsel %vm1887, %v7086, %v7095
      %v7098 = vshrl.u32 %v7047, 16
      %v7100 = vrot.slane %v7098, 1
      %v7101 = vshll.u32 %v7047, 16
      %v7103 = vrot.slane %v7101, 2
      %v7104 = vor.u32 %v7100, %v7103
      %v7105 = vsel %vm1887, %v7095, %v7104
      %v7107 = vshrl.u32 %v7048, 16
      %v7109 = vrot.slane %v7107, 1
      %v7110 = vshll.u32 %v7048, 16
      %v7112 = vrot.slane %v7110, 2
      %v7113 = vor.u32 %v7109, %v7112
      %v7114 = vsel %vm1887, %v7104, %v7113
      %v7116 = vshrl.u32 %v7049, 16
      %v7118 = vrot.slane %v7116, 1
      %v7119 = vshll.u32 %v7049, 16
      %v7121 = vrot.slane %v7119, 2
      %v7122 = vor.u32 %v7118, %v7121
      %v7123 = vsel %vm1887, %v7113, %v7122
      %v7125 = vshrl.u32 %v7050, 16
      %v7127 = vrot.slane %v7125, 1
      %v7128 = vshll.u32 %v7050, 16
      %v7130 = vrot.slane %v7128, 2
      %v7131 = vor.u32 %v7127, %v7130
      %v7132 = vsel %vm1887, %v7122, %v7131
      %v7134 = vshrl.u32 %v7051, 16
      %v7136 = vrot.slane %v7134, 1
      %v7137 = vshll.u32 %v7051, 16
      %v7139 = vrot.slane %v7137, 2
      %v7140 = vor.u32 %v7136, %v7139
      %v7141 = vsel %vm1887, %v7131, %v7140
      %v7143 = vshrl.u32 %v7052, 16
      %v7145 = vrot.slane %v7143, 1
      %v7146 = vshll.u32 %v7052, 16
      %v7148 = vrot.slane %v7146, 2
      %v7149 = vor.u32 %v7145, %v7148
      %v7150 = vsel %vm1887, %v7140, %v7149
      %v7152 = vshrl.u32 %v7053, 16
      %v7154 = vrot.slane %v7152, 1
      %v7155 = vshll.u32 %v7053, 16
      %v7157 = vrot.slane %v7155, 2
      %v7158 = vor.u32 %v7154, %v7157
      %v7159 = vsel %vm1887, %v7149, %v7158
      %v7161 = vshrl.u32 %v7054, 16
      %v7163 = vrot.slane %v7161, 1
      %v7164 = vshll.u32 %v7054, 16
      %v7166 = vrot.slane %v7164, 2
      %v7167 = vor.u32 %v7163, %v7166
      %v7168 = vsel %vm1887, %v7158, %v7167
      %v7170 = vshrl.u32 %v7055, 16
      %v7172 = vrot.slane %v7170, 1
      %v7173 = vshll.u32 %v7055, 16
      %v7175 = vrot.slane %v7173, 2
      %v7176 = vor.u32 %v7172, %v7175
      %v7177 = vsel %vm1887, %v7167, %v7176
      %v7179 = vshrl.u32 %v7056, 16
      %v7181 = vrot.slane %v7179, 1
      %v7182 = vshll.u32 %v7056, 16
      %v7184 = vrot.slane %v7182, 2
      %v7185 = vor.u32 %v7181, %v7184
      %v7186 = vsel %vm1887, %v7176, %v7185
      %v7188 = vshrl.u32 %v7057, 16
      %v7190 = vrot.slane %v7188, 1
      %v7191 = vshll.u32 %v7057, 16
      %v7193 = vrot.slane %v7191, 2
      %v7194 = vor.u32 %v7190, %v7193
      %v7195 = vsel %vm1887, %v7185, %v7194
      %v7197 = vshrl.u32 %v7058, 16
      %v7199 = vrot.slane %v7197, 1
      %v7200 = vshll.u32 %v7058, 16
      %v7202 = vrot.slane %v7200, 2
      %v7203 = vor.u32 %v7199, %v7202
      %v7204 = vsel %vm1887, %v7194, %v7203
      %v7206 = vshrl.u32 %v7059, 16
      %v7208 = vrot.slane %v7206, 1
      %v7209 = vshll.u32 %v7059, 16
      %v7211 = vrot.slane %v7209, 2
      %v7212 = vor.u32 %v7208, %v7211
      %v7213 = vsel %vm1887, %v7203, %v7212
      %v7215 = vshrl.u32 %v7060, 16
      %v7217 = vrot.slane %v7215, 1
      %v7218 = vshll.u32 %v7060, 16
      %v7220 = vrot.slane %v7218, 2
      %v7221 = vor.u32 %v7217, %v7220
      %v7222 = vsel %vm1887, %v7212, %v7221
      %v7224 = vshll.u32 %v7061, 16
      %v7226 = vrot.slane %v7224, 2
      %v7227 = vsel %vm1887, %v7221, %v7226
      %v7262 = vunpack.c.l.b16 %v6953
      %v7263 = vunpack.c.l.b16 %v6954
      %v7264 = vunpack.c.l.b16 %v6955
      %v7265 = vunpack.c.l.b16 %v6956
      %v7266 = vunpack.c.l.b16 %v6957
      %v7267 = vunpack.c.l.b16 %v6958
      %v7268 = vunpack.c.l.b16 %v6959
      %v7269 = vunpack.c.l.b16 %v6960
      %v7270 = vunpack.c.l.b16 %v6961
      %v7271 = vunpack.c.l.b16 %v6962
      %v7272 = vunpack.c.l.b16 %v6963
      %v7273 = vunpack.c.l.b16 %v6964
      %v7274 = vunpack.c.l.b16 %v6965
      %v7275 = vunpack.c.l.b16 %v6966
      %v7276 = vunpack.c.l.b16 %v6967
      %v7277 = vunpack.c.l.b16 %v6968
      %v7278 = vpack.c.b16 %v7263, %v7262
      %v7279 = vpack.c.b16 %v7265, %v7264
      %v7280 = vpack.c.b16 %v7267, %v7266
      %v7281 = vpack.c.b16 %v7269, %v7268
      %v7282 = vpack.c.b16 %v7271, %v7270
      %v7283 = vpack.c.b16 %v7273, %v7272
      %v7284 = vpack.c.b16 %v7275, %v7274
      %v7285 = vpack.c.b16 %v7277, %v7276
      %7294 = vmatprep.subr.bf16.mxu0 0
      %7295 = vmatpush1.bf16.msra.mxu0 %v7278
      %7296 = vmatprep.subr.bf16.mxu0 0
      %7297 = vmatpush1.bf16.msra.mxu0 %v7279
      %7298 = vmatprep.subr.bf16.mxu0 0
      %7299 = vmatpush1.bf16.msra.mxu0 %v7280
      %7300 = vmatprep.subr.bf16.mxu0 0
      %7301 = vmatpush1.bf16.msra.mxu0 %v7281
      %7302 = vmatprep.subr.bf16.mxu0 0
      %7303 = vmatpush1.bf16.msra.mxu0 %v7282
      %7304 = vmatprep.subr.bf16.mxu0 0
      %7305 = vmatpush1.bf16.msra.mxu0 %v7283
      %7306 = vmatprep.subr.bf16.mxu0 0
      %7307 = vmatpush1.bf16.msra.mxu0 %v7284
      %7308 = vmatprep.subr.bf16.mxu0 0
      %7309 = vmatpush1.bf16.msra.mxu0 %v7285
      %7310 = vmatprep.subr.bf16.mxu0 0
      %7311 = vmatpush1.bf16.msra.mxu0 0
      %7312 = vmatprep.subr.bf16.mxu0 0
      %7313 = vmatpush1.bf16.msra.mxu0 0
      %7314 = vmatprep.subr.bf16.mxu0 0
      %7315 = vmatpush1.bf16.msra.mxu0 0
      %7316 = vmatprep.subr.bf16.mxu0 0
      %7317 = vmatpush1.bf16.msra.mxu0 0
      %7318 = vmatprep.subr.bf16.mxu0 0
      %7319 = vmatpush1.bf16.msra.mxu0 0
      %7320 = vmatprep.subr.bf16.mxu0 0
      %7321 = vmatpush1.bf16.msra.mxu0 0
      %7322 = vmatprep.subr.bf16.mxu0 0
      %7323 = vmatpush1.bf16.msra.mxu0 0
      %7324 = vmatprep.subr.bf16.mxu0 0
      %7325 = vmatpush1.bf16.msra.mxu0 0
      %7326 = vmatprep.mubr.bf16.mxu0 0
      %7327 = vmatmul.mubr.bf16.gmra.mrb[0].mxu0 %v7078
      %v7328 = vpop.f32.mrb[0].mxu0
      %v7329 = vadd.f32 0.0, %v7328
      %v7330 = vpop.f32.mrb[0].mxu0
      %v7331 = vpop.f32.mrb[0].mxu0
      %v7332 = vadd.f32 0.0, %v7331
      %v7333 = vpop.f32.mrb[0].mxu0
      %7334 = vmatprep.mubr.bf16.mxu0 0
      %7335 = vmatmul.mubr.bf16.gmra.mrb[0].mxu0 %v7087
      %v7336 = vpop.f32.mrb[0].mxu0
      %v7337 = vadd.f32 0.0, %v7336
      %v7338 = vpop.f32.mrb[0].mxu0
      %v7339 = vpop.f32.mrb[0].mxu0
      %v7340 = vadd.f32 0.0, %v7339
      %v7341 = vpop.f32.mrb[0].mxu0
      %7342 = vmatprep.mubr.bf16.mxu0 0
      %7343 = vmatmul.mubr.bf16.gmra.mrb[0].mxu0 %v7096
      %v7344 = vpop.f32.mrb[0].mxu0
      %v7345 = vadd.f32 0.0, %v7344
      %v7346 = vpop.f32.mrb[0].mxu0
      %v7347 = vpop.f32.mrb[0].mxu0
      %v7348 = vadd.f32 0.0, %v7347
      %v7349 = vpop.f32.mrb[0].mxu0
      %7350 = vmatprep.mubr.bf16.mxu0 0
      %7351 = vmatmul.mubr.bf16.gmra.mrb[0].mxu0 %v7105
      %v7352 = vpop.f32.mrb[0].mxu0
      %v7353 = vadd.f32 0.0, %v7352
      %v7354 = vpop.f32.mrb[0].mxu0
      %v7355 = vpop.f32.mrb[0].mxu0
      %v7356 = vadd.f32 0.0, %v7355
      %v7357 = vpop.f32.mrb[0].mxu0
      %7358 = vmatprep.mubr.bf16.mxu0 0
      %7359 = vmatmul.mubr.bf16.gmra.mrb[0].mxu0 %v7114
      %v7360 = vpop.f32.mrb[0].mxu0
      %v7361 = vadd.f32 0.0, %v7360
      %v7362 = vpop.f32.mrb[0].mxu0
      %v7363 = vpop.f32.mrb[0].mxu0
      %v7364 = vadd.f32 0.0, %v7363
      %v7365 = vpop.f32.mrb[0].mxu0
      %7366 = vmatprep.mubr.bf16.mxu0 0
      %7367 = vmatmul.mubr.bf16.gmra.mrb[0].mxu0 %v7123
      %v7368 = vpop.f32.mrb[0].mxu0
      %v7369 = vadd.f32 0.0, %v7368
      %v7370 = vpop.f32.mrb[0].mxu0
      %v7371 = vpop.f32.mrb[0].mxu0
      %v7372 = vadd.f32 0.0, %v7371
      %v7373 = vpop.f32.mrb[0].mxu0
      %7374 = vmatprep.mubr.bf16.mxu0 0
      %7375 = vmatmul.mubr.bf16.gmra.mrb[0].mxu0 %v7132
      %v7376 = vpop.f32.mrb[0].mxu0
      %v7377 = vadd.f32 0.0, %v7376
      %v7378 = vpop.f32.mrb[0].mxu0
      %v7379 = vpop.f32.mrb[0].mxu0
      %v7380 = vadd.f32 0.0, %v7379
      %v7381 = vpop.f32.mrb[0].mxu0
      %7382 = vmatprep.mubr.bf16.mxu0 0
      %7383 = vmatmul.mubr.bf16.gmra.mrb[0].mxu0 %v7141
      %v7384 = vpop.f32.mrb[0].mxu0
      %v7385 = vadd.f32 0.0, %v7384
      %v7386 = vpop.f32.mrb[0].mxu0
      %v7387 = vpop.f32.mrb[0].mxu0
      %v7388 = vadd.f32 0.0, %v7387
      %v7389 = vpop.f32.mrb[0].mxu0
      %7390 = vmatprep.mubr.bf16.mxu0 0
      %7391 = vmatmul.mubr.bf16.gmra.mrb[0].mxu0 %v7150
      %v7392 = vpop.f32.mrb[0].mxu0
      %v7393 = vadd.f32 0.0, %v7392
      %v7394 = vpop.f32.mrb[0].mxu0
      %v7395 = vpop.f32.mrb[0].mxu0
      %v7396 = vadd.f32 0.0, %v7395
      %v7397 = vpop.f32.mrb[0].mxu0
      %7398 = vmatprep.mubr.bf16.mxu0 0
      %7399 = vmatmul.mubr.bf16.gmra.mrb[0].mxu0 %v7159
      %v7400 = vpop.f32.mrb[0].mxu0
      %v7401 = vadd.f32 0.0, %v7400
      %v7402 = vpop.f32.mrb[0].mxu0
      %v7403 = vpop.f32.mrb[0].mxu0
      %v7404 = vadd.f32 0.0, %v7403
      %v7405 = vpop.f32.mrb[0].mxu0
      %7406 = vmatprep.mubr.bf16.mxu0 0
      %7407 = vmatmul.mubr.bf16.gmra.mrb[0].mxu0 %v7168
      %v7408 = vpop.f32.mrb[0].mxu0
      %v7409 = vadd.f32 0.0, %v7408
      %v7410 = vpop.f32.mrb[0].mxu0
      %v7411 = vpop.f32.mrb[0].mxu0
      %v7412 = vadd.f32 0.0, %v7411
      %v7413 = vpop.f32.mrb[0].mxu0
      %7414 = vmatprep.mubr.bf16.mxu0 0
      %7415 = vmatmul.mubr.bf16.gmra.mrb[0].mxu0 %v7177
      %v7416 = vpop.f32.mrb[0].mxu0
      %v7417 = vadd.f32 0.0, %v7416
      %v7418 = vpop.f32.mrb[0].mxu0
      %v7419 = vpop.f32.mrb[0].mxu0
      %v7420 = vadd.f32 0.0, %v7419
      %v7421 = vpop.f32.mrb[0].mxu0
      %7422 = vmatprep.mubr.bf16.mxu0 0
      %7423 = vmatmul.mubr.bf16.gmra.mrb[0].mxu0 %v7186
      %v7424 = vpop.f32.mrb[0].mxu0
      %v7425 = vadd.f32 0.0, %v7424
      %v7426 = vpop.f32.mrb[0].mxu0
      %v7427 = vpop.f32.mrb[0].mxu0
      %v7428 = vadd.f32 0.0, %v7427
      %v7429 = vpop.f32.mrb[0].mxu0
      %7430 = vmatprep.mubr.bf16.mxu0 0
      %7431 = vmatmul.mubr.bf16.gmra.mrb[0].mxu0 %v7195
      %v7432 = vpop.f32.mrb[0].mxu0
      %v7433 = vadd.f32 0.0, %v7432
      %v7434 = vpop.f32.mrb[0].mxu0
      %v7435 = vpop.f32.mrb[0].mxu0
      %v7436 = vadd.f32 0.0, %v7435
      %v7437 = vpop.f32.mrb[0].mxu0
      %7438 = vmatprep.mubr.bf16.mxu0 0
      %7439 = vmatmul.mubr.bf16.gmra.mrb[0].mxu0 %v7204
      %v7440 = vpop.f32.mrb[0].mxu0
      %v7441 = vadd.f32 0.0, %v7440
      %v7442 = vpop.f32.mrb[0].mxu0
      %v7443 = vpop.f32.mrb[0].mxu0
      %v7444 = vadd.f32 0.0, %v7443
      %v7445 = vpop.f32.mrb[0].mxu0
      %7446 = vmatprep.mubr.bf16.mxu0 0
      %7447 = vmatmul.mubr.bf16.gmra.mrb[0].mxu0 %v7213
      %v7448 = vpop.f32.mrb[0].mxu0
      %v7449 = vadd.f32 0.0, %v7448
      %v7450 = vpop.f32.mrb[0].mxu0
      %v7451 = vpop.f32.mrb[0].mxu0
      %v7452 = vadd.f32 0.0, %v7451
      %v7453 = vpop.f32.mrb[0].mxu0
      %7454 = vmatprep.mubr.bf16.mxu0 0
      %7455 = vmatmul.mubr.bf16.gmra.mrb[0].mxu0 %v7222
      %v7456 = vpop.f32.mrb[0].mxu0
      %v7457 = vadd.f32 0.0, %v7456
      %v7458 = vpop.f32.mrb[0].mxu0
      %v7459 = vpop.f32.mrb[0].mxu0
      %v7460 = vadd.f32 0.0, %v7459
      %v7461 = vpop.f32.mrb[0].mxu0
      %7462 = vmatprep.mubr.bf16.mxu0 0
      %7463 = vmatmul.mubr.bf16.gmra.mrb[0].mxu0 %v7227
      %v7464 = vpop.f32.mrb[0].mxu0
      %v7465 = vadd.f32 0.0, %v7464
      %v7466 = vpop.f32.mrb[0].mxu0
      %v7467 = vpop.f32.mrb[0].mxu0
      %v7468 = vadd.f32 0.0, %v7467
      %v7469 = vpop.f32.mrb[0].mxu0
      %7470 = vdwg.mxu0
      %v7471 = vadd.f32 %v6879, %v7329
      %v7472 = vadd.f32 %v6880, %v7332
      %v7473 = vadd.f32 %v6881, %v7337
      %v7474 = vadd.f32 %v6882, %v7340
      %v7475 = vadd.f32 %v6883, %v7345
      %v7476 = vadd.f32 %v6884, %v7348
      %v7477 = vadd.f32 %v6885, %v7353
      %v7478 = vadd.f32 %v6886, %v7356
      %v7479 = vadd.f32 %v6887, %v7361
      %v7480 = vadd.f32 %v6888, %v7364
      %v7481 = vadd.f32 %v6889, %v7369
      %v7482 = vadd.f32 %v6890, %v7372
      %v7483 = vadd.f32 %v6891, %v7377
      %v7484 = vadd.f32 %v6892, %v7380
      %v7485 = vadd.f32 %v6893, %v7385
      %v7486 = vadd.f32 %v6894, %v7388
      %v7487 = vadd.f32 %v6895, %v7393
      %v7488 = vadd.f32 %v6896, %v7396
      %v7489 = vadd.f32 %v6897, %v7401
      %v7490 = vadd.f32 %v6898, %v7404
      %v7491 = vadd.f32 %v6899, %v7409
      %v7492 = vadd.f32 %v6900, %v7412
      %v7493 = vadd.f32 %v6901, %v7417
      %v7494 = vadd.f32 %v6902, %v7420
      %v7495 = vadd.f32 %v6903, %v7425
      %v7496 = vadd.f32 %v6904, %v7428
      %v7497 = vadd.f32 %v6905, %v7433
      %v7498 = vadd.f32 %v6906, %v7436
      %v7499 = vadd.f32 %v6907, %v7441
      %v7500 = vadd.f32 %v6908, %v7444
      %v7501 = vadd.f32 %v6909, %v7449
      %v7502 = vadd.f32 %v6910, %v7452
      %v7503 = vadd.f32 %v6911, %v7457
      %v7504 = vadd.f32 %v6912, %v7460
      %v7505 = vadd.f32 %v6913, %v7465
      %v7506 = vadd.f32 %v6914, %v7468
      %v7507 = vld [vmem:[#allocation2 + $0x8] sm:$0xc]
      %s7508 = scalar_lea.vmem %s4, 320
      %v7509 = vld [vmem:[%s7508] sm:$0xf]
      %v7510 = vld [vmem:[%s7508 + $0x4] sm:$0xf]
      %v7511 = vld [vmem:[%s7508 + $0x8] sm:$0xf]
      %v7512 = vld [vmem:[%s7508 + $0xc] sm:$0xf]
      %v7513 = vld [vmem:[%s7508 + $0x10] sm:$0xf]
      %v7514 = vld [vmem:[%s7508 + $0x14] sm:$0xf]
      %v7515 = vld [vmem:[%s7508 + $0x18] sm:$0xf]
      %v7516 = vld [vmem:[%s7508 + $0x1c] sm:$0xf]
      %v7517 = vld [vmem:[%s7508 + $0x20] sm:$0xf]
      %v7518 = vld [vmem:[%s7508 + $0x24] sm:$0xf]
      %v7519 = vld [vmem:[%s7508 + $0x28] sm:$0xf]
      %v7520 = vld [vmem:[%s7508 + $0x2c] sm:$0xf]
      %v7521 = vld [vmem:[%s7508 + $0x30] sm:$0xf]
      %v7522 = vld [vmem:[%s7508 + $0x34] sm:$0xf]
      %v7523 = vld [vmem:[%s7508 + $0x38] sm:$0xf]
      %v7524 = vld [vmem:[%s7508 + $0x3c] sm:$0xf]
      %v7526 = vunpack.c.l.b16 %v7507
      %v7527 = vpack.c.b16 %v7007, %v7526
      %v7528 = vrot.slane %v7527, 2
      %v7529 = vrot.slane %v7044, 2
      %v7530 = vsel %vm2330, %v7528, %v7529
      %v7531 = vrot.slane %v7045, 2
      %v7532 = vsel %vm2330, %v7529, %v7531
      %v7533 = vrot.slane %v7046, 2
      %v7534 = vsel %vm2330, %v7531, %v7533
      %v7535 = vrot.slane %v7047, 2
      %v7536 = vsel %vm2330, %v7533, %v7535
      %v7537 = vrot.slane %v7048, 2
      %v7538 = vsel %vm2330, %v7535, %v7537
      %v7539 = vrot.slane %v7049, 2
      %v7540 = vsel %vm2330, %v7537, %v7539
      %v7541 = vrot.slane %v7050, 2
      %v7542 = vsel %vm2330, %v7539, %v7541
      %v7543 = vrot.slane %v7051, 2
      %v7544 = vsel %vm2330, %v7541, %v7543
      %v7545 = vrot.slane %v7052, 2
      %v7546 = vsel %vm2330, %v7543, %v7545
      %v7547 = vrot.slane %v7053, 2
      %v7548 = vsel %vm2330, %v7545, %v7547
      %v7549 = vrot.slane %v7054, 2
      %v7550 = vsel %vm2330, %v7547, %v7549
      %v7551 = vrot.slane %v7055, 2
      %v7552 = vsel %vm2330, %v7549, %v7551
      %v7553 = vrot.slane %v7056, 2
      %v7554 = vsel %vm2330, %v7551, %v7553
      %v7555 = vrot.slane %v7057, 2
      %v7556 = vsel %vm2330, %v7553, %v7555
      %v7557 = vrot.slane %v7058, 2
      %v7558 = vsel %vm2330, %v7555, %v7557
      %v7559 = vrot.slane %v7059, 2
      %v7560 = vsel %vm2330, %v7557, %v7559
      %v7561 = vrot.slane %v7060, 2
      %v7562 = vsel %vm2330, %v7559, %v7561
      %v7563 = vrot.slane %v7061, 2
      %v7564 = vsel %vm2330, %v7561, %v7563
      %v7599 = vunpack.c.l.b16 %v7509
      %v7600 = vunpack.c.l.b16 %v7510
      %v7601 = vunpack.c.l.b16 %v7511
      %v7602 = vunpack.c.l.b16 %v7512
      %v7603 = vunpack.c.l.b16 %v7513
      %v7604 = vunpack.c.l.b16 %v7514
      %v7605 = vunpack.c.l.b16 %v7515
      %v7606 = vunpack.c.l.b16 %v7516
      %v7607 = vunpack.c.l.b16 %v7517
      %v7608 = vunpack.c.l.b16 %v7518
      %v7609 = vunpack.c.l.b16 %v7519
      %v7610 = vunpack.c.l.b16 %v7520
      %v7611 = vunpack.c.l.b16 %v7521
      %v7612 = vunpack.c.l.b16 %v7522
      %v7613 = vunpack.c.l.b16 %v7523
      %v7614 = vunpack.c.l.b16 %v7524
      %v7615 = vpack.c.b16 %v7600, %v7599
      %v7616 = vpack.c.b16 %v7602, %v7601
      %v7617 = vpack.c.b16 %v7604, %v7603
      %v7618 = vpack.c.b16 %v7606, %v7605
      %v7619 = vpack.c.b16 %v7608, %v7607
      %v7620 = vpack.c.b16 %v7610, %v7609
      %v7621 = vpack.c.b16 %v7612, %v7611
      %v7622 = vpack.c.b16 %v7614, %v7613
      %7631 = vmatprep.subr.bf16.mxu0 0
      %7632 = vmatpush1.bf16.msra.mxu0 %v7615
      %7633 = vmatprep.subr.bf16.mxu0 0
      %7634 = vmatpush1.bf16.msra.mxu0 %v7616
      %7635 = vmatprep.subr.bf16.mxu0 0
      %7636 = vmatpush1.bf16.msra.mxu0 %v7617
      %7637 = vmatprep.subr.bf16.mxu0 0
      %7638 = vmatpush1.bf16.msra.mxu0 %v7618
      %7639 = vmatprep.subr.bf16.mxu0 0
      %7640 = vmatpush1.bf16.msra.mxu0 %v7619
      %7641 = vmatprep.subr.bf16.mxu0 0
      %7642 = vmatpush1.bf16.msra.mxu0 %v7620
      %7643 = vmatprep.subr.bf16.mxu0 0
      %7644 = vmatpush1.bf16.msra.mxu0 %v7621
      %7645 = vmatprep.subr.bf16.mxu0 0
      %7646 = vmatpush1.bf16.msra.mxu0 %v7622
      %7647 = vmatprep.subr.bf16.mxu0 0
      %7648 = vmatpush1.bf16.msra.mxu0 0
      %7649 = vmatprep.subr.bf16.mxu0 0
      %7650 = vmatpush1.bf16.msra.mxu0 0
      %7651 = vmatprep.subr.bf16.mxu0 0
      %7652 = vmatpush1.bf16.msra.mxu0 0
      %7653 = vmatprep.subr.bf16.mxu0 0
      %7654 = vmatpush1.bf16.msra.mxu0 0
      %7655 = vmatprep.subr.bf16.mxu0 0
      %7656 = vmatpush1.bf16.msra.mxu0 0
      %7657 = vmatprep.subr.bf16.mxu0 0
      %7658 = vmatpush1.bf16.msra.mxu0 0
      %7659 = vmatprep.subr.bf16.mxu0 0
      %7660 = vmatpush1.bf16.msra.mxu0 0
      %7661 = vmatprep.subr.bf16.mxu0 0
      %7662 = vmatpush1.bf16.msra.mxu0 0
      %7663 = vmatprep.mubr.bf16.mxu0 0
      %7664 = vmatmul.mubr.bf16.gmra.mrb[0].mxu0 %v7530
      %v7665 = vpop.f32.mrb[0].mxu0
      %v7666 = vadd.f32 0.0, %v7665
      %v7667 = vpop.f32.mrb[0].mxu0
      %v7668 = vpop.f32.mrb[0].mxu0
      %v7669 = vadd.f32 0.0, %v7668
      %v7670 = vpop.f32.mrb[0].mxu0
      %7671 = vmatprep.mubr.bf16.mxu0 0
      %7672 = vmatmul.mubr.bf16.gmra.mrb[0].mxu0 %v7532
      %v7673 = vpop.f32.mrb[0].mxu0
      %v7674 = vadd.f32 0.0, %v7673
      %v7675 = vpop.f32.mrb[0].mxu0
      %v7676 = vpop.f32.mrb[0].mxu0
      %v7677 = vadd.f32 0.0, %v7676
      %v7678 = vpop.f32.mrb[0].mxu0
      %7679 = vmatprep.mubr.bf16.mxu0 0
      %7680 = vmatmul.mubr.bf16.gmra.mrb[0].mxu0 %v7534
      %v7681 = vpop.f32.mrb[0].mxu0
      %v7682 = vadd.f32 0.0, %v7681
      %v7683 = vpop.f32.mrb[0].mxu0
      %v7684 = vpop.f32.mrb[0].mxu0
      %v7685 = vadd.f32 0.0, %v7684
      %v7686 = vpop.f32.mrb[0].mxu0
      %7687 = vmatprep.mubr.bf16.mxu0 0
      %7688 = vmatmul.mubr.bf16.gmra.mrb[0].mxu0 %v7536
      %v7689 = vpop.f32.mrb[0].mxu0
      %v7690 = vadd.f32 0.0, %v7689
      %v7691 = vpop.f32.mrb[0].mxu0
      %v7692 = vpop.f32.mrb[0].mxu0
      %v7693 = vadd.f32 0.0, %v7692
      %v7694 = vpop.f32.mrb[0].mxu0
      %7695 = vmatprep.mubr.bf16.mxu0 0
      %7696 = vmatmul.mubr.bf16.gmra.mrb[0].mxu0 %v7538
      %v7697 = vpop.f32.mrb[0].mxu0
      %v7698 = vadd.f32 0.0, %v7697
      %v7699 = vpop.f32.mrb[0].mxu0
      %v7700 = vpop.f32.mrb[0].mxu0
      %v7701 = vadd.f32 0.0, %v7700
      %v7702 = vpop.f32.mrb[0].mxu0
      %7703 = vmatprep.mubr.bf16.mxu0 0
      %7704 = vmatmul.mubr.bf16.gmra.mrb[0].mxu0 %v7540
      %v7705 = vpop.f32.mrb[0].mxu0
      %v7706 = vadd.f32 0.0, %v7705
      %v7707 = vpop.f32.mrb[0].mxu0
      %v7708 = vpop.f32.mrb[0].mxu0
      %v7709 = vadd.f32 0.0, %v7708
      %v7710 = vpop.f32.mrb[0].mxu0
      %7711 = vmatprep.mubr.bf16.mxu0 0
      %7712 = vmatmul.mubr.bf16.gmra.mrb[0].mxu0 %v7542
      %v7713 = vpop.f32.mrb[0].mxu0
      %v7714 = vadd.f32 0.0, %v7713
      %v7715 = vpop.f32.mrb[0].mxu0
      %v7716 = vpop.f32.mrb[0].mxu0
      %v7717 = vadd.f32 0.0, %v7716
      %v7718 = vpop.f32.mrb[0].mxu0
      %7719 = vmatprep.mubr.bf16.mxu0 0
      %7720 = vmatmul.mubr.bf16.gmra.mrb[0].mxu0 %v7544
      %v7721 = vpop.f32.mrb[0].mxu0
      %v7722 = vadd.f32 0.0, %v7721
      %v7723 = vpop.f32.mrb[0].mxu0
      %v7724 = vpop.f32.mrb[0].mxu0
      %v7725 = vadd.f32 0.0, %v7724
      %v7726 = vpop.f32.mrb[0].mxu0
      %7727 = vmatprep.mubr.bf16.mxu0 0
      %7728 = vmatmul.mubr.bf16.gmra.mrb[0].mxu0 %v7546
      %v7729 = vpop.f32.mrb[0].mxu0
      %v7730 = vadd.f32 0.0, %v7729
      %v7731 = vpop.f32.mrb[0].mxu0
      %v7732 = vpop.f32.mrb[0].mxu0
      %v7733 = vadd.f32 0.0, %v7732
      %v7734 = vpop.f32.mrb[0].mxu0
      %7735 = vmatprep.mubr.bf16.mxu0 0
      %7736 = vmatmul.mubr.bf16.gmra.mrb[0].mxu0 %v7548
      %v7737 = vpop.f32.mrb[0].mxu0
      %v7738 = vadd.f32 0.0, %v7737
      %v7739 = vpop.f32.mrb[0].mxu0
      %v7740 = vpop.f32.mrb[0].mxu0
      %v7741 = vadd.f32 0.0, %v7740
      %v7742 = vpop.f32.mrb[0].mxu0
      %7743 = vmatprep.mubr.bf16.mxu0 0
      %7744 = vmatmul.mubr.bf16.gmra.mrb[0].mxu0 %v7550
      %v7745 = vpop.f32.mrb[0].mxu0
      %v7746 = vadd.f32 0.0, %v7745
      %v7747 = vpop.f32.mrb[0].mxu0
      %v7748 = vpop.f32.mrb[0].mxu0
      %v7749 = vadd.f32 0.0, %v7748
      %v7750 = vpop.f32.mrb[0].mxu0
      %7751 = vmatprep.mubr.bf16.mxu0 0
      %7752 = vmatmul.mubr.bf16.gmra.mrb[0].mxu0 %v7552
      %v7753 = vpop.f32.mrb[0].mxu0
      %v7754 = vadd.f32 0.0, %v7753
      %v7755 = vpop.f32.mrb[0].mxu0
      %v7756 = vpop.f32.mrb[0].mxu0
      %v7757 = vadd.f32 0.0, %v7756
      %v7758 = vpop.f32.mrb[0].mxu0
      %7759 = vmatprep.mubr.bf16.mxu0 0
      %7760 = vmatmul.mubr.bf16.gmra.mrb[0].mxu0 %v7554
      %v7761 = vpop.f32.mrb[0].mxu0
      %v7762 = vadd.f32 0.0, %v7761
      %v7763 = vpop.f32.mrb[0].mxu0
      %v7764 = vpop.f32.mrb[0].mxu0
      %v7765 = vadd.f32 0.0, %v7764
      %v7766 = vpop.f32.mrb[0].mxu0
      %7767 = vmatprep.mubr.bf16.mxu0 0
      %7768 = vmatmul.mubr.bf16.gmra.mrb[0].mxu0 %v7556
      %v7769 = vpop.f32.mrb[0].mxu0
      %v7770 = vadd.f32 0.0, %v7769
      %v7771 = vpop.f32.mrb[0].mxu0
      %v7772 = vpop.f32.mrb[0].mxu0
      %v7773 = vadd.f32 0.0, %v7772
      %v7774 = vpop.f32.mrb[0].mxu0
      %7775 = vmatprep.mubr.bf16.mxu0 0
      %7776 = vmatmul.mubr.bf16.gmra.mrb[0].mxu0 %v7558
      %v7777 = vpop.f32.mrb[0].mxu0
      %v7778 = vadd.f32 0.0, %v7777
      %v7779 = vpop.f32.mrb[0].mxu0
      %v7780 = vpop.f32.mrb[0].mxu0
      %v7781 = vadd.f32 0.0, %v7780
      %v7782 = vpop.f32.mrb[0].mxu0
      %7783 = vmatprep.mubr.bf16.mxu0 0
      %7784 = vmatmul.mubr.bf16.gmra.mrb[0].mxu0 %v7560
      %v7785 = vpop.f32.mrb[0].mxu0
      %v7786 = vadd.f32 0.0, %v7785
      %v7787 = vpop.f32.mrb[0].mxu0
      %v7788 = vpop.f32.mrb[0].mxu0
      %v7789 = vadd.f32 0.0, %v7788
      %v7790 = vpop.f32.mrb[0].mxu0
      %7791 = vmatprep.mubr.bf16.mxu0 0
      %7792 = vmatmul.mubr.bf16.gmra.mrb[0].mxu0 %v7562
      %v7793 = vpop.f32.mrb[0].mxu0
      %v7794 = vadd.f32 0.0, %v7793
      %v7795 = vpop.f32.mrb[0].mxu0
      %v7796 = vpop.f32.mrb[0].mxu0
      %v7797 = vadd.f32 0.0, %v7796
      %v7798 = vpop.f32.mrb[0].mxu0
      %7799 = vmatprep.mubr.bf16.mxu0 0
      %7800 = vmatmul.mubr.bf16.gmra.mrb[0].mxu0 %v7564
      %v7801 = vpop.f32.mrb[0].mxu0
      %v7802 = vadd.f32 0.0, %v7801
      %v7803 = vpop.f32.mrb[0].mxu0
      %v7804 = vpop.f32.mrb[0].mxu0
      %v7805 = vadd.f32 0.0, %v7804
      %v7806 = vpop.f32.mrb[0].mxu0
      %7807 = vdwg.mxu0
      %v7808 = vadd.f32 %v7471, %v7666
      %v7809 = vadd.f32 %v7472, %v7669
      %v7810 = vadd.f32 %v7473, %v7674
      %v7811 = vadd.f32 %v7474, %v7677
      %v7812 = vadd.f32 %v7475, %v7682
      %v7813 = vadd.f32 %v7476, %v7685
      %v7814 = vadd.f32 %v7477, %v7690
      %v7815 = vadd.f32 %v7478, %v7693
      %v7816 = vadd.f32 %v7479, %v7698
      %v7817 = vadd.f32 %v7480, %v7701
      %v7818 = vadd.f32 %v7481, %v7706
      %v7819 = vadd.f32 %v7482, %v7709
      %v7820 = vadd.f32 %v7483, %v7714
      %v7821 = vadd.f32 %v7484, %v7717
      %v7822 = vadd.f32 %v7485, %v7722
      %v7823 = vadd.f32 %v7486, %v7725
      %v7824 = vadd.f32 %v7487, %v7730
      %v7825 = vadd.f32 %v7488, %v7733
      %v7826 = vadd.f32 %v7489, %v7738
      %v7827 = vadd.f32 %v7490, %v7741
      %v7828 = vadd.f32 %v7491, %v7746
      %v7829 = vadd.f32 %v7492, %v7749
      %v7830 = vadd.f32 %v7493, %v7754
      %v7831 = vadd.f32 %v7494, %v7757
      %v7832 = vadd.f32 %v7495, %v7762
      %v7833 = vadd.f32 %v7496, %v7765
      %v7834 = vadd.f32 %v7497, %v7770
      %v7835 = vadd.f32 %v7498, %v7773
      %v7836 = vadd.f32 %v7499, %v7778
      %v7837 = vadd.f32 %v7500, %v7781
      %v7838 = vadd.f32 %v7501, %v7786
      %v7839 = vadd.f32 %v7502, %v7789
      %v7840 = vadd.f32 %v7503, %v7794
      %v7841 = vadd.f32 %v7504, %v7797
      %v7842 = vadd.f32 %v7505, %v7802
      %v7843 = vadd.f32 %v7506, %v7805
      %v7844 = vld [vmem:[#allocation2 + $0x10] sm:$0xc]
      %v7845 = vld [vmem:[#allocation2 + $0x14] sm:$0xf]
      %v7846 = vld [vmem:[#allocation2 + $0x18] sm:$0xf]
      %v7847 = vld [vmem:[#allocation2 + $0x1c] sm:$0xf]
      %v7848 = vld [vmem:[#allocation2 + $0x20] sm:$0xf]
      %v7849 = vld [vmem:[#allocation2 + $0x24] sm:$0xf]
      %v7850 = vld [vmem:[#allocation2 + $0x28] sm:$0xf]
      %v7851 = vld [vmem:[#allocation2 + $0x2c] sm:$0xf]
      %v7852 = vld [vmem:[#allocation2 + $0x30] sm:$0xf]
      %v7853 = vld [vmem:[#allocation2 + $0x34] sm:$0xf]
      %v7854 = vld [vmem:[#allocation2 + $0x38] sm:$0xf]
      %v7855 = vld [vmem:[#allocation2 + $0x3c] sm:$0xf]
      %v7856 = vld [vmem:[#allocation2 + $0x40] sm:$0xf]
      %v7857 = vld [vmem:[#allocation2 + $0x44] sm:$0xf]
      %v7858 = vld [vmem:[#allocation2 + $0x48] sm:$0xf]
      %v7859 = vld [vmem:[#allocation2 + $0x4c] sm:$0xf]
      %v7860 = vld [vmem:[#allocation2 + $0x50] sm:$0xf]
      %v7861 = vld [vmem:[#allocation2 + $0x54] sm:$0xf]
      %v7862 = vld [vmem:[#allocation2 + $0x58] sm:$0xf]
      %v7863 = vld [vmem:[#allocation2 + $0x5c] sm:$0xf]
      %v7864 = vld [vmem:[#allocation2 + $0x60] sm:$0xf]
      %v7865 = vld [vmem:[#allocation2 + $0x64] sm:$0xf]
      %v7866 = vld [vmem:[#allocation2 + $0x68] sm:$0xf]
      %v7867 = vld [vmem:[#allocation2 + $0x6c] sm:$0xf]
      %v7868 = vld [vmem:[#allocation2 + $0x70] sm:$0xf]
      %v7869 = vld [vmem:[#allocation2 + $0x74] sm:$0xf]
      %v7870 = vld [vmem:[#allocation2 + $0x78] sm:$0xf]
      %v7871 = vld [vmem:[#allocation2 + $0x7c] sm:$0xf]
      %v7872 = vld [vmem:[#allocation2 + $0x80] sm:$0xf]
      %v7873 = vld [vmem:[#allocation2 + $0x84] sm:$0xf]
      %v7874 = vld [vmem:[#allocation2 + $0x88] sm:$0xf]
      %v7875 = vld [vmem:[#allocation2 + $0x8c] sm:$0xf]
      %v7876 = vld [vmem:[#allocation2 + $0x90] sm:$0xf]
      %v7877 = vld [vmem:[#allocation2 + $0x94] sm:$0xf]
      %v7878 = vld [vmem:[#allocation2 + $0x98] sm:$0xf]
      %v7879 = vld [vmem:[#allocation2 + $0x9c] sm:$0xf]
      %v7880 = vld [vmem:[#allocation2 + $0xa0] sm:$0x1]
      %s7881 = scalar_lea.vmem %s4, 384
      %v7882 = vld [vmem:[%s7881] sm:$0xf]
      %v7883 = vld [vmem:[%s7881 + $0x4] sm:$0xf]
      %v7884 = vld [vmem:[%s7881 + $0x8] sm:$0xf]
      %v7885 = vld [vmem:[%s7881 + $0xc] sm:$0xf]
      %v7886 = vld [vmem:[%s7881 + $0x10] sm:$0xf]
      %v7887 = vld [vmem:[%s7881 + $0x14] sm:$0xf]
      %v7888 = vld [vmem:[%s7881 + $0x18] sm:$0xf]
      %v7889 = vld [vmem:[%s7881 + $0x1c] sm:$0xf]
      %v7890 = vld [vmem:[%s7881 + $0x20] sm:$0xf]
      %v7891 = vld [vmem:[%s7881 + $0x24] sm:$0xf]
      %v7892 = vld [vmem:[%s7881 + $0x28] sm:$0xf]
      %v7893 = vld [vmem:[%s7881 + $0x2c] sm:$0xf]
      %v7894 = vld [vmem:[%s7881 + $0x30] sm:$0xf]
      %v7895 = vld [vmem:[%s7881 + $0x34] sm:$0xf]
      %v7896 = vld [vmem:[%s7881 + $0x38] sm:$0xf]
      %v7897 = vld [vmem:[%s7881 + $0x3c] sm:$0xf]
      %v7935 = vunpack.c.l.b16 %v7844
      %v7936 = vunpack.c.l.b16 %v7845
      %v7937 = vunpack.c.l.b16 %v7846
      %v7938 = vunpack.c.l.b16 %v7847
      %v7939 = vunpack.c.l.b16 %v7848
      %v7940 = vunpack.c.l.b16 %v7849
      %v7941 = vunpack.c.l.b16 %v7850
      %v7942 = vunpack.c.l.b16 %v7851
      %v7943 = vunpack.c.l.b16 %v7852
      %v7944 = vunpack.c.l.b16 %v7853
      %v7945 = vunpack.c.l.b16 %v7854
      %v7946 = vunpack.c.l.b16 %v7855
      %v7947 = vunpack.c.l.b16 %v7856
      %v7948 = vunpack.c.l.b16 %v7857
      %v7949 = vunpack.c.l.b16 %v7858
      %v7950 = vunpack.c.l.b16 %v7859
      %v7951 = vunpack.c.l.b16 %v7860
      %v7952 = vunpack.c.l.b16 %v7861
      %v7953 = vunpack.c.l.b16 %v7862
      %v7954 = vunpack.c.l.b16 %v7863
      %v7955 = vunpack.c.l.b16 %v7864
      %v7956 = vunpack.c.l.b16 %v7865
      %v7957 = vunpack.c.l.b16 %v7866
      %v7958 = vunpack.c.l.b16 %v7867
      %v7959 = vunpack.c.l.b16 %v7868
      %v7960 = vunpack.c.l.b16 %v7869
      %v7961 = vunpack.c.l.b16 %v7870
      %v7962 = vunpack.c.l.b16 %v7871
      %v7963 = vunpack.c.l.b16 %v7872
      %v7964 = vunpack.c.l.b16 %v7873
      %v7965 = vunpack.c.l.b16 %v7874
      %v7966 = vunpack.c.l.b16 %v7875
      %v7967 = vunpack.c.l.b16 %v7876
      %v7968 = vunpack.c.l.b16 %v7877
      %v7969 = vunpack.c.l.b16 %v7878
      %v7970 = vunpack.c.l.b16 %v7879
      %v7971 = vunpack.c.l.b16 %v7880
      %v7972 = vpack.c.b16 %v7936, %v7935
      %v7973 = vpack.c.b16 %v7938, %v7937
      %v7974 = vpack.c.b16 %v7940, %v7939
      %v7975 = vpack.c.b16 %v7942, %v7941
      %v7976 = vpack.c.b16 %v7944, %v7943
      %v7977 = vpack.c.b16 %v7946, %v7945
      %v7978 = vpack.c.b16 %v7948, %v7947
      %v7979 = vpack.c.b16 %v7950, %v7949
      %v7980 = vpack.c.b16 %v7952, %v7951
      %v7981 = vpack.c.b16 %v7954, %v7953
      %v7982 = vpack.c.b16 %v7956, %v7955
      %v7983 = vpack.c.b16 %v7958, %v7957
      %v7984 = vpack.c.b16 %v7960, %v7959
      %v7985 = vpack.c.b16 %v7962, %v7961
      %v7986 = vpack.c.b16 %v7964, %v7963
      %v7987 = vpack.c.b16 %v7966, %v7965
      %v7988 = vpack.c.b16 %v7968, %v7967
      %v7989 = vpack.c.b16 %v7970, %v7969
      %v7990 = vpack.c.b16 %v7971, %v7971
      %v7991 = vrot.slane %v7972, 2
      %v7992 = vrot.slane %v7973, 2
      %v7993 = vsel %vm2330, %v7991, %v7992
      %v7994 = vrot.slane %v7974, 2
      %v7995 = vsel %vm2330, %v7992, %v7994
      %v7996 = vrot.slane %v7975, 2
      %v7997 = vsel %vm2330, %v7994, %v7996
      %v7998 = vrot.slane %v7976, 2
      %v7999 = vsel %vm2330, %v7996, %v7998
      %v8000 = vrot.slane %v7977, 2
      %v8001 = vsel %vm2330, %v7998, %v8000
      %v8002 = vrot.slane %v7978, 2
      %v8003 = vsel %vm2330, %v8000, %v8002
      %v8004 = vrot.slane %v7979, 2
      %v8005 = vsel %vm2330, %v8002, %v8004
      %v8006 = vrot.slane %v7980, 2
      %v8007 = vsel %vm2330, %v8004, %v8006
      %v8008 = vrot.slane %v7981, 2
      %v8009 = vsel %vm2330, %v8006, %v8008
      %v8010 = vrot.slane %v7982, 2
      %v8011 = vsel %vm2330, %v8008, %v8010
      %v8012 = vrot.slane %v7983, 2
      %v8013 = vsel %vm2330, %v8010, %v8012
      %v8014 = vrot.slane %v7984, 2
      %v8015 = vsel %vm2330, %v8012, %v8014
      %v8016 = vrot.slane %v7985, 2
      %v8017 = vsel %vm2330, %v8014, %v8016
      %v8018 = vrot.slane %v7986, 2
      %v8019 = vsel %vm2330, %v8016, %v8018
      %v8020 = vrot.slane %v7987, 2
      %v8021 = vsel %vm2330, %v8018, %v8020
      %v8022 = vrot.slane %v7988, 2
      %v8023 = vsel %vm2330, %v8020, %v8022
      %v8024 = vrot.slane %v7989, 2
      %v8025 = vsel %vm2330, %v8022, %v8024
      %v8026 = vrot.slane %v7990, 2
      %v8027 = vsel %vm2330, %v8024, %v8026
      %v8062 = vunpack.c.l.b16 %v7882
      %v8063 = vunpack.c.l.b16 %v7883
      %v8064 = vunpack.c.l.b16 %v7884
      %v8065 = vunpack.c.l.b16 %v7885
      %v8066 = vunpack.c.l.b16 %v7886
      %v8067 = vunpack.c.l.b16 %v7887
      %v8068 = vunpack.c.l.b16 %v7888
      %v8069 = vunpack.c.l.b16 %v7889
      %v8070 = vunpack.c.l.b16 %v7890
      %v8071 = vunpack.c.l.b16 %v7891
      %v8072 = vunpack.c.l.b16 %v7892
      %v8073 = vunpack.c.l.b16 %v7893
      %v8074 = vunpack.c.l.b16 %v7894
      %v8075 = vunpack.c.l.b16 %v7895
      %v8076 = vunpack.c.l.b16 %v7896
      %v8077 = vunpack.c.l.b16 %v7897
      %v8078 = vpack.c.b16 %v8063, %v8062
      %v8079 = vpack.c.b16 %v8065, %v8064
      %v8080 = vpack.c.b16 %v8067, %v8066
      %v8081 = vpack.c.b16 %v8069, %v8068
      %v8082 = vpack.c.b16 %v8071, %v8070
      %v8083 = vpack.c.b16 %v8073, %v8072
      %v8084 = vpack.c.b16 %v8075, %v8074
      %v8085 = vpack.c.b16 %v8077, %v8076
      %8094 = vmatprep.subr.bf16.mxu0 0
      %8095 = vmatpush1.bf16.msra.mxu0 %v8078
      %8096 = vmatprep.subr.bf16.mxu0 0
      %8097 = vmatpush1.bf16.msra.mxu0 %v8079
      %8098 = vmatprep.subr.bf16.mxu0 0
      %8099 = vmatpush1.bf16.msra.mxu0 %v8080
      %8100 = vmatprep.subr.bf16.mxu0 0
      %8101 = vmatpush1.bf16.msra.mxu0 %v8081
      %8102 = vmatprep.subr.bf16.mxu0 0
      %8103 = vmatpush1.bf16.msra.mxu0 %v8082
      %8104 = vmatprep.subr.bf16.mxu0 0
      %8105 = vmatpush1.bf16.msra.mxu0 %v8083
      %8106 = vmatprep.subr.bf16.mxu0 0
      %8107 = vmatpush1.bf16.msra.mxu0 %v8084
      %8108 = vmatprep.subr.bf16.mxu0 0
      %8109 = vmatpush1.bf16.msra.mxu0 %v8085
      %8110 = vmatprep.subr.bf16.mxu0 0
      %8111 = vmatpush1.bf16.msra.mxu0 0
      %8112 = vmatprep.subr.bf16.mxu0 0
      %8113 = vmatpush1.bf16.msra.mxu0 0
      %8114 = vmatprep.subr.bf16.mxu0 0
      %8115 = vmatpush1.bf16.msra.mxu0 0
      %8116 = vmatprep.subr.bf16.mxu0 0
      %8117 = vmatpush1.bf16.msra.mxu0 0
      %8118 = vmatprep.subr.bf16.mxu0 0
      %8119 = vmatpush1.bf16.msra.mxu0 0
      %8120 = vmatprep.subr.bf16.mxu0 0
      %8121 = vmatpush1.bf16.msra.mxu0 0
      %8122 = vmatprep.subr.bf16.mxu0 0
      %8123 = vmatpush1.bf16.msra.mxu0 0
      %8124 = vmatprep.subr.bf16.mxu0 0
      %8125 = vmatpush1.bf16.msra.mxu0 0
      %8126 = vmatprep.mubr.bf16.mxu0 0
      %8127 = vmatmul.mubr.bf16.gmra.mrb[0].mxu0 %v7993
      %v8128 = vpop.f32.mrb[0].mxu0
      %v8129 = vadd.f32 0.0, %v8128
      %v8130 = vpop.f32.mrb[0].mxu0
      %v8131 = vpop.f32.mrb[0].mxu0
      %v8132 = vadd.f32 0.0, %v8131
      %v8133 = vpop.f32.mrb[0].mxu0
      %8134 = vmatprep.mubr.bf16.mxu0 0
      %8135 = vmatmul.mubr.bf16.gmra.mrb[0].mxu0 %v7995
      %v8136 = vpop.f32.mrb[0].mxu0
      %v8137 = vadd.f32 0.0, %v8136
      %v8138 = vpop.f32.mrb[0].mxu0
      %v8139 = vpop.f32.mrb[0].mxu0
      %v8140 = vadd.f32 0.0, %v8139
      %v8141 = vpop.f32.mrb[0].mxu0
      %8142 = vmatprep.mubr.bf16.mxu0 0
      %8143 = vmatmul.mubr.bf16.gmra.mrb[0].mxu0 %v7997
      %v8144 = vpop.f32.mrb[0].mxu0
      %v8145 = vadd.f32 0.0, %v8144
      %v8146 = vpop.f32.mrb[0].mxu0
      %v8147 = vpop.f32.mrb[0].mxu0
      %v8148 = vadd.f32 0.0, %v8147
      %v8149 = vpop.f32.mrb[0].mxu0
      %8150 = vmatprep.mubr.bf16.mxu0 0
      %8151 = vmatmul.mubr.bf16.gmra.mrb[0].mxu0 %v7999
      %v8152 = vpop.f32.mrb[0].mxu0
      %v8153 = vadd.f32 0.0, %v8152
      %v8154 = vpop.f32.mrb[0].mxu0
      %v8155 = vpop.f32.mrb[0].mxu0
      %v8156 = vadd.f32 0.0, %v8155
      %v8157 = vpop.f32.mrb[0].mxu0
      %8158 = vmatprep.mubr.bf16.mxu0 0
      %8159 = vmatmul.mubr.bf16.gmra.mrb[0].mxu0 %v8001
      %v8160 = vpop.f32.mrb[0].mxu0
      %v8161 = vadd.f32 0.0, %v8160
      %v8162 = vpop.f32.mrb[0].mxu0
      %v8163 = vpop.f32.mrb[0].mxu0
      %v8164 = vadd.f32 0.0, %v8163
      %v8165 = vpop.f32.mrb[0].mxu0
      %8166 = vmatprep.mubr.bf16.mxu0 0
      %8167 = vmatmul.mubr.bf16.gmra.mrb[0].mxu0 %v8003
      %v8168 = vpop.f32.mrb[0].mxu0
      %v8169 = vadd.f32 0.0, %v8168
      %v8170 = vpop.f32.mrb[0].mxu0
      %v8171 = vpop.f32.mrb[0].mxu0
      %v8172 = vadd.f32 0.0, %v8171
      %v8173 = vpop.f32.mrb[0].mxu0
      %8174 = vmatprep.mubr.bf16.mxu0 0
      %8175 = vmatmul.mubr.bf16.gmra.mrb[0].mxu0 %v8005
      %v8176 = vpop.f32.mrb[0].mxu0
      %v8177 = vadd.f32 0.0, %v8176
      %v8178 = vpop.f32.mrb[0].mxu0
      %v8179 = vpop.f32.mrb[0].mxu0
      %v8180 = vadd.f32 0.0, %v8179
      %v8181 = vpop.f32.mrb[0].mxu0
      %8182 = vmatprep.mubr.bf16.mxu0 0
      %8183 = vmatmul.mubr.bf16.gmra.mrb[0].mxu0 %v8007
      %v8184 = vpop.f32.mrb[0].mxu0
      %v8185 = vadd.f32 0.0, %v8184
      %v8186 = vpop.f32.mrb[0].mxu0
      %v8187 = vpop.f32.mrb[0].mxu0
      %v8188 = vadd.f32 0.0, %v8187
      %v8189 = vpop.f32.mrb[0].mxu0
      %8190 = vmatprep.mubr.bf16.mxu0 0
      %8191 = vmatmul.mubr.bf16.gmra.mrb[0].mxu0 %v8009
      %v8192 = vpop.f32.mrb[0].mxu0
      %v8193 = vadd.f32 0.0, %v8192
      %v8194 = vpop.f32.mrb[0].mxu0
      %v8195 = vpop.f32.mrb[0].mxu0
      %v8196 = vadd.f32 0.0, %v8195
      %v8197 = vpop.f32.mrb[0].mxu0
      %8198 = vmatprep.mubr.bf16.mxu0 0
      %8199 = vmatmul.mubr.bf16.gmra.mrb[0].mxu0 %v8011
      %v8200 = vpop.f32.mrb[0].mxu0
      %v8201 = vadd.f32 0.0, %v8200
      %v8202 = vpop.f32.mrb[0].mxu0
      %v8203 = vpop.f32.mrb[0].mxu0
      %v8204 = vadd.f32 0.0, %v8203
      %v8205 = vpop.f32.mrb[0].mxu0
      %8206 = vmatprep.mubr.bf16.mxu0 0
      %8207 = vmatmul.mubr.bf16.gmra.mrb[0].mxu0 %v8013
      %v8208 = vpop.f32.mrb[0].mxu0
      %v8209 = vadd.f32 0.0, %v8208
      %v8210 = vpop.f32.mrb[0].mxu0
      %v8211 = vpop.f32.mrb[0].mxu0
      %v8212 = vadd.f32 0.0, %v8211
      %v8213 = vpop.f32.mrb[0].mxu0
      %8214 = vmatprep.mubr.bf16.mxu0 0
      %8215 = vmatmul.mubr.bf16.gmra.mrb[0].mxu0 %v8015
      %v8216 = vpop.f32.mrb[0].mxu0
      %v8217 = vadd.f32 0.0, %v8216
      %v8218 = vpop.f32.mrb[0].mxu0
      %v8219 = vpop.f32.mrb[0].mxu0
      %v8220 = vadd.f32 0.0, %v8219
      %v8221 = vpop.f32.mrb[0].mxu0
      %8222 = vmatprep.mubr.bf16.mxu0 0
      %8223 = vmatmul.mubr.bf16.gmra.mrb[0].mxu0 %v8017
      %v8224 = vpop.f32.mrb[0].mxu0
      %v8225 = vadd.f32 0.0, %v8224
      %v8226 = vpop.f32.mrb[0].mxu0
      %v8227 = vpop.f32.mrb[0].mxu0
      %v8228 = vadd.f32 0.0, %v8227
      %v8229 = vpop.f32.mrb[0].mxu0
      %8230 = vmatprep.mubr.bf16.mxu0 0
      %8231 = vmatmul.mubr.bf16.gmra.mrb[0].mxu0 %v8019
      %v8232 = vpop.f32.mrb[0].mxu0
      %v8233 = vadd.f32 0.0, %v8232
      %v8234 = vpop.f32.mrb[0].mxu0
      %v8235 = vpop.f32.mrb[0].mxu0
      %v8236 = vadd.f32 0.0, %v8235
      %v8237 = vpop.f32.mrb[0].mxu0
      %8238 = vmatprep.mubr.bf16.mxu0 0
      %8239 = vmatmul.mubr.bf16.gmra.mrb[0].mxu0 %v8021
      %v8240 = vpop.f32.mrb[0].mxu0
      %v8241 = vadd.f32 0.0, %v8240
      %v8242 = vpop.f32.mrb[0].mxu0
      %v8243 = vpop.f32.mrb[0].mxu0
      %v8244 = vadd.f32 0.0, %v8243
      %v8245 = vpop.f32.mrb[0].mxu0
      %8246 = vmatprep.mubr.bf16.mxu0 0
      %8247 = vmatmul.mubr.bf16.gmra.mrb[0].mxu0 %v8023
      %v8248 = vpop.f32.mrb[0].mxu0
      %v8249 = vadd.f32 0.0, %v8248
      %v8250 = vpop.f32.mrb[0].mxu0
      %v8251 = vpop.f32.mrb[0].mxu0
      %v8252 = vadd.f32 0.0, %v8251
      %v8253 = vpop.f32.mrb[0].mxu0
      %8254 = vmatprep.mubr.bf16.mxu0 0
      %8255 = vmatmul.mubr.bf16.gmra.mrb[0].mxu0 %v8025
      %v8256 = vpop.f32.mrb[0].mxu0
      %v8257 = vadd.f32 0.0, %v8256
      %v8258 = vpop.f32.mrb[0].mxu0
      %v8259 = vpop.f32.mrb[0].mxu0
      %v8260 = vadd.f32 0.0, %v8259
      %v8261 = vpop.f32.mrb[0].mxu0
      %8262 = vmatprep.mubr.bf16.mxu0 0
      %8263 = vmatmul.mubr.bf16.gmra.mrb[0].mxu0 %v8027
      %v8264 = vpop.f32.mrb[0].mxu0
      %v8265 = vadd.f32 0.0, %v8264
      %v8266 = vpop.f32.mrb[0].mxu0
      %v8267 = vpop.f32.mrb[0].mxu0
      %v8268 = vadd.f32 0.0, %v8267
      %v8269 = vpop.f32.mrb[0].mxu0
      %8270 = vdwg.mxu0
      %v8271 = vadd.f32 %v7808, %v8129
      %v8272 = vadd.f32 %v7809, %v8132
      %v8273 = vadd.f32 %v7810, %v8137
      %v8274 = vadd.f32 %v7811, %v8140
      %v8275 = vadd.f32 %v7812, %v8145
      %v8276 = vadd.f32 %v7813, %v8148
      %v8277 = vadd.f32 %v7814, %v8153
      %v8278 = vadd.f32 %v7815, %v8156
      %v8279 = vadd.f32 %v7816, %v8161
      %v8280 = vadd.f32 %v7817, %v8164
      %v8281 = vadd.f32 %v7818, %v8169
      %v8282 = vadd.f32 %v7819, %v8172
      %v8283 = vadd.f32 %v7820, %v8177
      %v8284 = vadd.f32 %v7821, %v8180
      %v8285 = vadd.f32 %v7822, %v8185
      %v8286 = vadd.f32 %v7823, %v8188
      %v8287 = vadd.f32 %v7824, %v8193
      %v8288 = vadd.f32 %v7825, %v8196
      %v8289 = vadd.f32 %v7826, %v8201
      %v8290 = vadd.f32 %v7827, %v8204
      %v8291 = vadd.f32 %v7828, %v8209
      %v8292 = vadd.f32 %v7829, %v8212
      %v8293 = vadd.f32 %v7830, %v8217
      %v8294 = vadd.f32 %v7831, %v8220
      %v8295 = vadd.f32 %v7832, %v8225
      %v8296 = vadd.f32 %v7833, %v8228
      %v8297 = vadd.f32 %v7834, %v8233
      %v8298 = vadd.f32 %v7835, %v8236
      %v8299 = vadd.f32 %v7836, %v8241
      %v8300 = vadd.f32 %v7837, %v8244
      %v8301 = vadd.f32 %v7838, %v8249
      %v8302 = vadd.f32 %v7839, %v8252
      %v8303 = vadd.f32 %v7840, %v8257
      %v8304 = vadd.f32 %v7841, %v8260
      %v8305 = vadd.f32 %v7842, %v8265
      %v8306 = vadd.f32 %v7843, %v8268
      %v8307 = vld [vmem:[#allocation2 + $0xa0] sm:$0x3]
      %s8308 = scalar_lea.vmem %s4, 448
      %v8309 = vld [vmem:[%s8308] sm:$0xf]
      %v8310 = vld [vmem:[%s8308 + $0x4] sm:$0xf]
      %v8311 = vld [vmem:[%s8308 + $0x8] sm:$0xf]
      %v8312 = vld [vmem:[%s8308 + $0xc] sm:$0xf]
      %v8313 = vld [vmem:[%s8308 + $0x10] sm:$0xf]
      %v8314 = vld [vmem:[%s8308 + $0x14] sm:$0xf]
      %v8315 = vld [vmem:[%s8308 + $0x18] sm:$0xf]
      %v8316 = vld [vmem:[%s8308 + $0x1c] sm:$0xf]
      %v8317 = vld [vmem:[%s8308 + $0x20] sm:$0xf]
      %v8318 = vld [vmem:[%s8308 + $0x24] sm:$0xf]
      %v8319 = vld [vmem:[%s8308 + $0x28] sm:$0xf]
      %v8320 = vld [vmem:[%s8308 + $0x2c] sm:$0xf]
      %v8321 = vld [vmem:[%s8308 + $0x30] sm:$0xf]
      %v8322 = vld [vmem:[%s8308 + $0x34] sm:$0xf]
      %v8323 = vld [vmem:[%s8308 + $0x38] sm:$0xf]
      %v8324 = vld [vmem:[%s8308 + $0x3c] sm:$0xf]
      %v8326 = vunpack.c.l.b16 %v8307
      %v8327 = vpack.c.b16 %v8326, %v8326
      %v8329 = vshrl.u32 %v7972, 16
      %v8331 = vrot.slane %v8329, 2
      %v8332 = vshll.u32 %v7972, 16
      %v8334 = vrot.slane %v8332, 3
      %v8335 = vor.u32 %v8331, %v8334
      %v8337 = vshrl.u32 %v7973, 16
      %v8339 = vrot.slane %v8337, 2
      %v8340 = vshll.u32 %v7973, 16
      %v8342 = vrot.slane %v8340, 3
      %v8343 = vor.u32 %v8339, %v8342
      %v8344 = vsel %vm3083, %v8335, %v8343
      %v8346 = vshrl.u32 %v7974, 16
      %v8348 = vrot.slane %v8346, 2
      %v8349 = vshll.u32 %v7974, 16
      %v8351 = vrot.slane %v8349, 3
      %v8352 = vor.u32 %v8348, %v8351
      %v8353 = vsel %vm3083, %v8343, %v8352
      %v8355 = vshrl.u32 %v7975, 16
      %v8357 = vrot.slane %v8355, 2
      %v8358 = vshll.u32 %v7975, 16
      %v8360 = vrot.slane %v8358, 3
      %v8361 = vor.u32 %v8357, %v8360
      %v8362 = vsel %vm3083, %v8352, %v8361
      %v8364 = vshrl.u32 %v7976, 16
      %v8366 = vrot.slane %v8364, 2
      %v8367 = vshll.u32 %v7976, 16
      %v8369 = vrot.slane %v8367, 3
      %v8370 = vor.u32 %v8366, %v8369
      %v8371 = vsel %vm3083, %v8361, %v8370
      %v8373 = vshrl.u32 %v7977, 16
      %v8375 = vrot.slane %v8373, 2
      %v8376 = vshll.u32 %v7977, 16
      %v8378 = vrot.slane %v8376, 3
      %v8379 = vor.u32 %v8375, %v8378
      %v8380 = vsel %vm3083, %v8370, %v8379
      %v8382 = vshrl.u32 %v7978, 16
      %v8384 = vrot.slane %v8382, 2
      %v8385 = vshll.u32 %v7978, 16
      %v8387 = vrot.slane %v8385, 3
      %v8388 = vor.u32 %v8384, %v8387
      %v8389 = vsel %vm3083, %v8379, %v8388
      %v8391 = vshrl.u32 %v7979, 16
      %v8393 = vrot.slane %v8391, 2
      %v8394 = vshll.u32 %v7979, 16
      %v8396 = vrot.slane %v8394, 3
      %v8397 = vor.u32 %v8393, %v8396
      %v8398 = vsel %vm3083, %v8388, %v8397
      %v8400 = vshrl.u32 %v7980, 16
      %v8402 = vrot.slane %v8400, 2
      %v8403 = vshll.u32 %v7980, 16
      %v8405 = vrot.slane %v8403, 3
      %v8406 = vor.u32 %v8402, %v8405
      %v8407 = vsel %vm3083, %v8397, %v8406
      %v8409 = vshrl.u32 %v7981, 16
      %v8411 = vrot.slane %v8409, 2
      %v8412 = vshll.u32 %v7981, 16
      %v8414 = vrot.slane %v8412, 3
      %v8415 = vor.u32 %v8411, %v8414
      %v8416 = vsel %vm3083, %v8406, %v8415
      %v8418 = vshrl.u32 %v7982, 16
      %v8420 = vrot.slane %v8418, 2
      %v8421 = vshll.u32 %v7982, 16
      %v8423 = vrot.slane %v8421, 3
      %v8424 = vor.u32 %v8420, %v8423
      %v8425 = vsel %vm3083, %v8415, %v8424
      %v8427 = vshrl.u32 %v7983, 16
      %v8429 = vrot.slane %v8427, 2
      %v8430 = vshll.u32 %v7983, 16
      %v8432 = vrot.slane %v8430, 3
      %v8433 = vor.u32 %v8429, %v8432
      %v8434 = vsel %vm3083, %v8424, %v8433
      %v8436 = vshrl.u32 %v7984, 16
      %v8438 = vrot.slane %v8436, 2
      %v8439 = vshll.u32 %v7984, 16
      %v8441 = vrot.slane %v8439, 3
      %v8442 = vor.u32 %v8438, %v8441
      %v8443 = vsel %vm3083, %v8433, %v8442
      %v8445 = vshrl.u32 %v7985, 16
      %v8447 = vrot.slane %v8445, 2
      %v8448 = vshll.u32 %v7985, 16
      %v8450 = vrot.slane %v8448, 3
      %v8451 = vor.u32 %v8447, %v8450
      %v8452 = vsel %vm3083, %v8442, %v8451
      %v8454 = vshrl.u32 %v7986, 16
      %v8456 = vrot.slane %v8454, 2
      %v8457 = vshll.u32 %v7986, 16
      %v8459 = vrot.slane %v8457, 3
      %v8460 = vor.u32 %v8456, %v8459
      %v8461 = vsel %vm3083, %v8451, %v8460
      %v8463 = vshrl.u32 %v7987, 16
      %v8465 = vrot.slane %v8463, 2
      %v8466 = vshll.u32 %v7987, 16
      %v8468 = vrot.slane %v8466, 3
      %v8469 = vor.u32 %v8465, %v8468
      %v8470 = vsel %vm3083, %v8460, %v8469
      %v8472 = vshrl.u32 %v7988, 16
      %v8474 = vrot.slane %v8472, 2
      %v8475 = vshll.u32 %v7988, 16
      %v8477 = vrot.slane %v8475, 3
      %v8478 = vor.u32 %v8474, %v8477
      %v8479 = vsel %vm3083, %v8469, %v8478
      %v8481 = vshrl.u32 %v7989, 16
      %v8483 = vrot.slane %v8481, 2
      %v8484 = vshll.u32 %v7989, 16
      %v8486 = vrot.slane %v8484, 3
      %v8487 = vor.u32 %v8483, %v8486
      %v8488 = vsel %vm3083, %v8478, %v8487
      %v8490 = vshrl.u32 %v8327, 16
      %v8492 = vrot.slane %v8490, 2
      %v8493 = vshll.u32 %v8327, 16
      %v8495 = vrot.slane %v8493, 3
      %v8496 = vor.u32 %v8492, %v8495
      %v8497 = vsel %vm3083, %v8487, %v8496
      %v8532 = vunpack.c.l.b16 %v8309
      %v8533 = vunpack.c.l.b16 %v8310
      %v8534 = vunpack.c.l.b16 %v8311
      %v8535 = vunpack.c.l.b16 %v8312
      %v8536 = vunpack.c.l.b16 %v8313
      %v8537 = vunpack.c.l.b16 %v8314
      %v8538 = vunpack.c.l.b16 %v8315
      %v8539 = vunpack.c.l.b16 %v8316
      %v8540 = vunpack.c.l.b16 %v8317
      %v8541 = vunpack.c.l.b16 %v8318
      %v8542 = vunpack.c.l.b16 %v8319
      %v8543 = vunpack.c.l.b16 %v8320
      %v8544 = vunpack.c.l.b16 %v8321
      %v8545 = vunpack.c.l.b16 %v8322
      %v8546 = vunpack.c.l.b16 %v8323
      %v8547 = vunpack.c.l.b16 %v8324
      %v8548 = vpack.c.b16 %v8533, %v8532
      %v8549 = vpack.c.b16 %v8535, %v8534
      %v8550 = vpack.c.b16 %v8537, %v8536
      %v8551 = vpack.c.b16 %v8539, %v8538
      %v8552 = vpack.c.b16 %v8541, %v8540
      %v8553 = vpack.c.b16 %v8543, %v8542
      %v8554 = vpack.c.b16 %v8545, %v8544
      %v8555 = vpack.c.b16 %v8547, %v8546
      %8564 = vmatprep.subr.bf16.mxu0 0
      %8565 = vmatpush1.bf16.msra.mxu0 %v8548
      %8566 = vmatprep.subr.bf16.mxu0 0
      %8567 = vmatpush1.bf16.msra.mxu0 %v8549
      %8568 = vmatprep.subr.bf16.mxu0 0
      %8569 = vmatpush1.bf16.msra.mxu0 %v8550
      %8570 = vmatprep.subr.bf16.mxu0 0
      %8571 = vmatpush1.bf16.msra.mxu0 %v8551
      %8572 = vmatprep.subr.bf16.mxu0 0
      %8573 = vmatpush1.bf16.msra.mxu0 %v8552
      %8574 = vmatprep.subr.bf16.mxu0 0
      %8575 = vmatpush1.bf16.msra.mxu0 %v8553
      %8576 = vmatprep.subr.bf16.mxu0 0
      %8577 = vmatpush1.bf16.msra.mxu0 %v8554
      %8578 = vmatprep.subr.bf16.mxu0 0
      %8579 = vmatpush1.bf16.msra.mxu0 %v8555
      %8580 = vmatprep.subr.bf16.mxu0 0
      %8581 = vmatpush1.bf16.msra.mxu0 0
      %8582 = vmatprep.subr.bf16.mxu0 0
      %8583 = vmatpush1.bf16.msra.mxu0 0
      %8584 = vmatprep.subr.bf16.mxu0 0
      %8585 = vmatpush1.bf16.msra.mxu0 0
      %8586 = vmatprep.subr.bf16.mxu0 0
      %8587 = vmatpush1.bf16.msra.mxu0 0
      %8588 = vmatprep.subr.bf16.mxu0 0
      %8589 = vmatpush1.bf16.msra.mxu0 0
      %8590 = vmatprep.subr.bf16.mxu0 0
      %8591 = vmatpush1.bf16.msra.mxu0 0
      %8592 = vmatprep.subr.bf16.mxu0 0
      %8593 = vmatpush1.bf16.msra.mxu0 0
      %8594 = vmatprep.subr.bf16.mxu0 0
      %8595 = vmatpush1.bf16.msra.mxu0 0
      %8596 = vmatprep.mubr.bf16.mxu0 0
      %8597 = vmatmul.mubr.bf16.gmra.mrb[0].mxu0 %v8344
      %v8598 = vpop.f32.mrb[0].mxu0
      %v8599 = vadd.f32 0.0, %v8598
      %v8600 = vpop.f32.mrb[0].mxu0
      %v8601 = vpop.f32.mrb[0].mxu0
      %v8602 = vadd.f32 0.0, %v8601
      %v8603 = vpop.f32.mrb[0].mxu0
      %8604 = vmatprep.mubr.bf16.mxu0 0
      %8605 = vmatmul.mubr.bf16.gmra.mrb[0].mxu0 %v8353
      %v8606 = vpop.f32.mrb[0].mxu0
      %v8607 = vadd.f32 0.0, %v8606
      %v8608 = vpop.f32.mrb[0].mxu0
      %v8609 = vpop.f32.mrb[0].mxu0
      %v8610 = vadd.f32 0.0, %v8609
      %v8611 = vpop.f32.mrb[0].mxu0
      %8612 = vmatprep.mubr.bf16.mxu0 0
      %8613 = vmatmul.mubr.bf16.gmra.mrb[0].mxu0 %v8362
      %v8614 = vpop.f32.mrb[0].mxu0
      %v8615 = vadd.f32 0.0, %v8614
      %v8616 = vpop.f32.mrb[0].mxu0
      %v8617 = vpop.f32.mrb[0].mxu0
      %v8618 = vadd.f32 0.0, %v8617
      %v8619 = vpop.f32.mrb[0].mxu0
      %8620 = vmatprep.mubr.bf16.mxu0 0
      %8621 = vmatmul.mubr.bf16.gmra.mrb[0].mxu0 %v8371
      %v8622 = vpop.f32.mrb[0].mxu0
      %v8623 = vadd.f32 0.0, %v8622
      %v8624 = vpop.f32.mrb[0].mxu0
      %v8625 = vpop.f32.mrb[0].mxu0
      %v8626 = vadd.f32 0.0, %v8625
      %v8627 = vpop.f32.mrb[0].mxu0
      %8628 = vmatprep.mubr.bf16.mxu0 0
      %8629 = vmatmul.mubr.bf16.gmra.mrb[0].mxu0 %v8380
      %v8630 = vpop.f32.mrb[0].mxu0
      %v8631 = vadd.f32 0.0, %v8630
      %v8632 = vpop.f32.mrb[0].mxu0
      %v8633 = vpop.f32.mrb[0].mxu0
      %v8634 = vadd.f32 0.0, %v8633
      %v8635 = vpop.f32.mrb[0].mxu0
      %8636 = vmatprep.mubr.bf16.mxu0 0
      %8637 = vmatmul.mubr.bf16.gmra.mrb[0].mxu0 %v8389
      %v8638 = vpop.f32.mrb[0].mxu0
      %v8639 = vadd.f32 0.0, %v8638
      %v8640 = vpop.f32.mrb[0].mxu0
      %v8641 = vpop.f32.mrb[0].mxu0
      %v8642 = vadd.f32 0.0, %v8641
      %v8643 = vpop.f32.mrb[0].mxu0
      %8644 = vmatprep.mubr.bf16.mxu0 0
      %8645 = vmatmul.mubr.bf16.gmra.mrb[0].mxu0 %v8398
      %v8646 = vpop.f32.mrb[0].mxu0
      %v8647 = vadd.f32 0.0, %v8646
      %v8648 = vpop.f32.mrb[0].mxu0
      %v8649 = vpop.f32.mrb[0].mxu0
      %v8650 = vadd.f32 0.0, %v8649
      %v8651 = vpop.f32.mrb[0].mxu0
      %8652 = vmatprep.mubr.bf16.mxu0 0
      %8653 = vmatmul.mubr.bf16.gmra.mrb[0].mxu0 %v8407
      %v8654 = vpop.f32.mrb[0].mxu0
      %v8655 = vadd.f32 0.0, %v8654
      %v8656 = vpop.f32.mrb[0].mxu0
      %v8657 = vpop.f32.mrb[0].mxu0
      %v8658 = vadd.f32 0.0, %v8657
      %v8659 = vpop.f32.mrb[0].mxu0
      %8660 = vmatprep.mubr.bf16.mxu0 0
      %8661 = vmatmul.mubr.bf16.gmra.mrb[0].mxu0 %v8416
      %v8662 = vpop.f32.mrb[0].mxu0
      %v8663 = vadd.f32 0.0, %v8662
      %v8664 = vpop.f32.mrb[0].mxu0
      %v8665 = vpop.f32.mrb[0].mxu0
      %v8666 = vadd.f32 0.0, %v8665
      %v8667 = vpop.f32.mrb[0].mxu0
      %8668 = vmatprep.mubr.bf16.mxu0 0
      %8669 = vmatmul.mubr.bf16.gmra.mrb[0].mxu0 %v8425
      %v8670 = vpop.f32.mrb[0].mxu0
      %v8671 = vadd.f32 0.0, %v8670
      %v8672 = vpop.f32.mrb[0].mxu0
      %v8673 = vpop.f32.mrb[0].mxu0
      %v8674 = vadd.f32 0.0, %v8673
      %v8675 = vpop.f32.mrb[0].mxu0
      %8676 = vmatprep.mubr.bf16.mxu0 0
      %8677 = vmatmul.mubr.bf16.gmra.mrb[0].mxu0 %v8434
      %v8678 = vpop.f32.mrb[0].mxu0
      %v8679 = vadd.f32 0.0, %v8678
      %v8680 = vpop.f32.mrb[0].mxu0
      %v8681 = vpop.f32.mrb[0].mxu0
      %v8682 = vadd.f32 0.0, %v8681
      %v8683 = vpop.f32.mrb[0].mxu0
      %8684 = vmatprep.mubr.bf16.mxu0 0
      %8685 = vmatmul.mubr.bf16.gmra.mrb[0].mxu0 %v8443
      %v8686 = vpop.f32.mrb[0].mxu0
      %v8687 = vadd.f32 0.0, %v8686
      %v8688 = vpop.f32.mrb[0].mxu0
      %v8689 = vpop.f32.mrb[0].mxu0
      %v8690 = vadd.f32 0.0, %v8689
      %v8691 = vpop.f32.mrb[0].mxu0
      %8692 = vmatprep.mubr.bf16.mxu0 0
      %8693 = vmatmul.mubr.bf16.gmra.mrb[0].mxu0 %v8452
      %v8694 = vpop.f32.mrb[0].mxu0
      %v8695 = vadd.f32 0.0, %v8694
      %v8696 = vpop.f32.mrb[0].mxu0
      %v8697 = vpop.f32.mrb[0].mxu0
      %v8698 = vadd.f32 0.0, %v8697
      %v8699 = vpop.f32.mrb[0].mxu0
      %8700 = vmatprep.mubr.bf16.mxu0 0
      %8701 = vmatmul.mubr.bf16.gmra.mrb[0].mxu0 %v8461
      %v8702 = vpop.f32.mrb[0].mxu0
      %v8703 = vadd.f32 0.0, %v8702
      %v8704 = vpop.f32.mrb[0].mxu0
      %v8705 = vpop.f32.mrb[0].mxu0
      %v8706 = vadd.f32 0.0, %v8705
      %v8707 = vpop.f32.mrb[0].mxu0
      %8708 = vmatprep.mubr.bf16.mxu0 0
      %8709 = vmatmul.mubr.bf16.gmra.mrb[0].mxu0 %v8470
      %v8710 = vpop.f32.mrb[0].mxu0
      %v8711 = vadd.f32 0.0, %v8710
      %v8712 = vpop.f32.mrb[0].mxu0
      %v8713 = vpop.f32.mrb[0].mxu0
      %v8714 = vadd.f32 0.0, %v8713
      %v8715 = vpop.f32.mrb[0].mxu0
      %8716 = vmatprep.mubr.bf16.mxu0 0
      %8717 = vmatmul.mubr.bf16.gmra.mrb[0].mxu0 %v8479
      %v8718 = vpop.f32.mrb[0].mxu0
      %v8719 = vadd.f32 0.0, %v8718
      %v8720 = vpop.f32.mrb[0].mxu0
      %v8721 = vpop.f32.mrb[0].mxu0
      %v8722 = vadd.f32 0.0, %v8721
      %v8723 = vpop.f32.mrb[0].mxu0
      %8724 = vmatprep.mubr.bf16.mxu0 0
      %8725 = vmatmul.mubr.bf16.gmra.mrb[0].mxu0 %v8488
      %v8726 = vpop.f32.mrb[0].mxu0
      %v8727 = vadd.f32 0.0, %v8726
      %v8728 = vpop.f32.mrb[0].mxu0
      %v8729 = vpop.f32.mrb[0].mxu0
      %v8730 = vadd.f32 0.0, %v8729
      %v8731 = vpop.f32.mrb[0].mxu0
      %8732 = vmatprep.mubr.bf16.mxu0 0
      %8733 = vmatmul.mubr.bf16.gmra.mrb[0].mxu0 %v8497
      %v8734 = vpop.f32.mrb[0].mxu0
      %v8735 = vadd.f32 0.0, %v8734
      %v8736 = vpop.f32.mrb[0].mxu0
      %v8737 = vpop.f32.mrb[0].mxu0
      %v8738 = vadd.f32 0.0, %v8737
      %v8739 = vpop.f32.mrb[0].mxu0
      %8740 = vdwg.mxu0
      %v8741 = vadd.f32 %v8271, %v8599
      %v8742 = vadd.f32 %v8272, %v8602
      %v8743 = vadd.f32 %v8273, %v8607
      %v8744 = vadd.f32 %v8274, %v8610
      %v8745 = vadd.f32 %v8275, %v8615
      %v8746 = vadd.f32 %v8276, %v8618
      %v8747 = vadd.f32 %v8277, %v8623
      %v8748 = vadd.f32 %v8278, %v8626
      %v8749 = vadd.f32 %v8279, %v8631
      %v8750 = vadd.f32 %v8280, %v8634
      %v8751 = vadd.f32 %v8281, %v8639
      %v8752 = vadd.f32 %v8282, %v8642
      %v8753 = vadd.f32 %v8283, %v8647
      %v8754 = vadd.f32 %v8284, %v8650
      %v8755 = vadd.f32 %v8285, %v8655
      %v8756 = vadd.f32 %v8286, %v8658
      %v8757 = vadd.f32 %v8287, %v8663
      %v8758 = vadd.f32 %v8288, %v8666
      %v8759 = vadd.f32 %v8289, %v8671
      %v8760 = vadd.f32 %v8290, %v8674
      %v8761 = vadd.f32 %v8291, %v8679
      %v8762 = vadd.f32 %v8292, %v8682
      %v8763 = vadd.f32 %v8293, %v8687
      %v8764 = vadd.f32 %v8294, %v8690
      %v8765 = vadd.f32 %v8295, %v8695
      %v8766 = vadd.f32 %v8296, %v8698
      %v8767 = vadd.f32 %v8297, %v8703
      %v8768 = vadd.f32 %v8298, %v8706
      %v8769 = vadd.f32 %v8299, %v8711
      %v8770 = vadd.f32 %v8300, %v8714
      %v8771 = vadd.f32 %v8301, %v8719
      %v8772 = vadd.f32 %v8302, %v8722
      %v8773 = vadd.f32 %v8303, %v8727
      %v8774 = vadd.f32 %v8304, %v8730
      %v8775 = vadd.f32 %v8305, %v8735
      %v8776 = vadd.f32 %v8306, %v8738
      %v8777 = vld [vmem:[#allocation2 + $0x10] sm:$0x8]
      %s8778 = scalar_lea.vmem %s4, 512
      %v8779 = vld [vmem:[%s8778] sm:$0xf]
      %v8780 = vld [vmem:[%s8778 + $0x4] sm:$0xf]
      %v8781 = vld [vmem:[%s8778 + $0x8] sm:$0xf]
      %v8782 = vld [vmem:[%s8778 + $0xc] sm:$0xf]
      %v8783 = vld [vmem:[%s8778 + $0x10] sm:$0xf]
      %v8784 = vld [vmem:[%s8778 + $0x14] sm:$0xf]
      %v8785 = vld [vmem:[%s8778 + $0x18] sm:$0xf]
      %v8786 = vld [vmem:[%s8778 + $0x1c] sm:$0xf]
      %v8787 = vld [vmem:[%s8778 + $0x20] sm:$0xf]
      %v8788 = vld [vmem:[%s8778 + $0x24] sm:$0xf]
      %v8789 = vld [vmem:[%s8778 + $0x28] sm:$0xf]
      %v8790 = vld [vmem:[%s8778 + $0x2c] sm:$0xf]
      %v8791 = vld [vmem:[%s8778 + $0x30] sm:$0xf]
      %v8792 = vld [vmem:[%s8778 + $0x34] sm:$0xf]
      %v8793 = vld [vmem:[%s8778 + $0x38] sm:$0xf]
      %v8794 = vld [vmem:[%s8778 + $0x3c] sm:$0xf]
      %v8796 = vunpack.c.l.b16 %v8777
      %v8797 = vpack.c.b16 %v7936, %v8796
      %v8798 = vrot.slane %v8797, 3
      %v8799 = vrot.slane %v7973, 3
      %v8800 = vsel %vm3530, %v8798, %v8799
      %v8801 = vrot.slane %v7974, 3
      %v8802 = vsel %vm3530, %v8799, %v8801
      %v8803 = vrot.slane %v7975, 3
      %v8804 = vsel %vm3530, %v8801, %v8803
      %v8805 = vrot.slane %v7976, 3
      %v8806 = vsel %vm3530, %v8803, %v8805
      %v8807 = vrot.slane %v7977, 3
      %v8808 = vsel %vm3530, %v8805, %v8807
      %v8809 = vrot.slane %v7978, 3
      %v8810 = vsel %vm3530, %v8807, %v8809
      %v8811 = vrot.slane %v7979, 3
      %v8812 = vsel %vm3530, %v8809, %v8811
      %v8813 = vrot.slane %v7980, 3
      %v8814 = vsel %vm3530, %v8811, %v8813
      %v8815 = vrot.slane %v7981, 3
      %v8816 = vsel %vm3530, %v8813, %v8815
      %v8817 = vrot.slane %v7982, 3
      %v8818 = vsel %vm3530, %v8815, %v8817
      %v8819 = vrot.slane %v7983, 3
      %v8820 = vsel %vm3530, %v8817, %v8819
      %v8821 = vrot.slane %v7984, 3
      %v8822 = vsel %vm3530, %v8819, %v8821
      %v8823 = vrot.slane %v7985, 3
      %v8824 = vsel %vm3530, %v8821, %v8823
      %v8825 = vrot.slane %v7986, 3
      %v8826 = vsel %vm3530, %v8823, %v8825
      %v8827 = vrot.slane %v7987, 3
      %v8828 = vsel %vm3530, %v8825, %v8827
      %v8829 = vrot.slane %v7988, 3
      %v8830 = vsel %vm3530, %v8827, %v8829
      %v8831 = vrot.slane %v7989, 3
      %v8832 = vsel %vm3530, %v8829, %v8831
      %v8833 = vrot.slane %v8327, 3
      %v8834 = vsel %vm3530, %v8831, %v8833
      %v8869 = vunpack.c.l.b16 %v8779
      %v8870 = vunpack.c.l.b16 %v8780
      %v8871 = vunpack.c.l.b16 %v8781
      %v8872 = vunpack.c.l.b16 %v8782
      %v8873 = vunpack.c.l.b16 %v8783
      %v8874 = vunpack.c.l.b16 %v8784
      %v8875 = vunpack.c.l.b16 %v8785
      %v8876 = vunpack.c.l.b16 %v8786
      %v8877 = vunpack.c.l.b16 %v8787
      %v8878 = vunpack.c.l.b16 %v8788
      %v8879 = vunpack.c.l.b16 %v8789
      %v8880 = vunpack.c.l.b16 %v8790
      %v8881 = vunpack.c.l.b16 %v8791
      %v8882 = vunpack.c.l.b16 %v8792
      %v8883 = vunpack.c.l.b16 %v8793
      %v8884 = vunpack.c.l.b16 %v8794
      %v8885 = vpack.c.b16 %v8870, %v8869
      %v8886 = vpack.c.b16 %v8872, %v8871
      %v8887 = vpack.c.b16 %v8874, %v8873
      %v8888 = vpack.c.b16 %v8876, %v8875
      %v8889 = vpack.c.b16 %v8878, %v8877
      %v8890 = vpack.c.b16 %v8880, %v8879
      %v8891 = vpack.c.b16 %v8882, %v8881
      %v8892 = vpack.c.b16 %v8884, %v8883
      %8901 = vmatprep.subr.bf16.mxu0 0
      %8902 = vmatpush1.bf16.msra.mxu0 %v8885
      %8903 = vmatprep.subr.bf16.mxu0 0
      %8904 = vmatpush1.bf16.msra.mxu0 %v8886
      %8905 = vmatprep.subr.bf16.mxu0 0
      %8906 = vmatpush1.bf16.msra.mxu0 %v8887
      %8907 = vmatprep.subr.bf16.mxu0 0
      %8908 = vmatpush1.bf16.msra.mxu0 %v8888
      %8909 = vmatprep.subr.bf16.mxu0 0
      %8910 = vmatpush1.bf16.msra.mxu0 %v8889
      %8911 = vmatprep.subr.bf16.mxu0 0
      %8912 = vmatpush1.bf16.msra.mxu0 %v8890
      %8913 = vmatprep.subr.bf16.mxu0 0
      %8914 = vmatpush1.bf16.msra.mxu0 %v8891
      %8915 = vmatprep.subr.bf16.mxu0 0
      %8916 = vmatpush1.bf16.msra.mxu0 %v8892
      %8917 = vmatprep.subr.bf16.mxu0 0
      %8918 = vmatpush1.bf16.msra.mxu0 0
      %8919 = vmatprep.subr.bf16.mxu0 0
      %8920 = vmatpush1.bf16.msra.mxu0 0
      %8921 = vmatprep.subr.bf16.mxu0 0
      %8922 = vmatpush1.bf16.msra.mxu0 0
      %8923 = vmatprep.subr.bf16.mxu0 0
      %8924 = vmatpush1.bf16.msra.mxu0 0
      %8925 = vmatprep.subr.bf16.mxu0 0
      %8926 = vmatpush1.bf16.msra.mxu0 0
      %8927 = vmatprep.subr.bf16.mxu0 0
      %8928 = vmatpush1.bf16.msra.mxu0 0
      %8929 = vmatprep.subr.bf16.mxu0 0
      %8930 = vmatpush1.bf16.msra.mxu0 0
      %8931 = vmatprep.subr.bf16.mxu0 0
      %8932 = vmatpush1.bf16.msra.mxu0 0
      %8933 = vmatprep.mubr.bf16.mxu0 0
      %8934 = vmatmul.mubr.bf16.gmra.mrb[0].mxu0 %v8800
      %v8935 = vpop.f32.mrb[0].mxu0
      %v8936 = vadd.f32 0.0, %v8935
      %v8937 = vpop.f32.mrb[0].mxu0
      %v8938 = vpop.f32.mrb[0].mxu0
      %v8939 = vadd.f32 0.0, %v8938
      %v8940 = vpop.f32.mrb[0].mxu0
      %8941 = vmatprep.mubr.bf16.mxu0 0
      %8942 = vmatmul.mubr.bf16.gmra.mrb[0].mxu0 %v8802
      %v8943 = vpop.f32.mrb[0].mxu0
      %v8944 = vadd.f32 0.0, %v8943
      %v8945 = vpop.f32.mrb[0].mxu0
      %v8946 = vpop.f32.mrb[0].mxu0
      %v8947 = vadd.f32 0.0, %v8946
      %v8948 = vpop.f32.mrb[0].mxu0
      %8949 = vmatprep.mubr.bf16.mxu0 0
      %8950 = vmatmul.mubr.bf16.gmra.mrb[0].mxu0 %v8804
      %v8951 = vpop.f32.mrb[0].mxu0
      %v8952 = vadd.f32 0.0, %v8951
      %v8953 = vpop.f32.mrb[0].mxu0
      %v8954 = vpop.f32.mrb[0].mxu0
      %v8955 = vadd.f32 0.0, %v8954
      %v8956 = vpop.f32.mrb[0].mxu0
      %8957 = vmatprep.mubr.bf16.mxu0 0
      %8958 = vmatmul.mubr.bf16.gmra.mrb[0].mxu0 %v8806
      %v8959 = vpop.f32.mrb[0].mxu0
      %v8960 = vadd.f32 0.0, %v8959
      %v8961 = vpop.f32.mrb[0].mxu0
      %v8962 = vpop.f32.mrb[0].mxu0
      %v8963 = vadd.f32 0.0, %v8962
      %v8964 = vpop.f32.mrb[0].mxu0
      %8965 = vmatprep.mubr.bf16.mxu0 0
      %8966 = vmatmul.mubr.bf16.gmra.mrb[0].mxu0 %v8808
      %v8967 = vpop.f32.mrb[0].mxu0
      %v8968 = vadd.f32 0.0, %v8967
      %v8969 = vpop.f32.mrb[0].mxu0
      %v8970 = vpop.f32.mrb[0].mxu0
      %v8971 = vadd.f32 0.0, %v8970
      %v8972 = vpop.f32.mrb[0].mxu0
      %8973 = vmatprep.mubr.bf16.mxu0 0
      %8974 = vmatmul.mubr.bf16.gmra.mrb[0].mxu0 %v8810
      %v8975 = vpop.f32.mrb[0].mxu0
      %v8976 = vadd.f32 0.0, %v8975
      %v8977 = vpop.f32.mrb[0].mxu0
      %v8978 = vpop.f32.mrb[0].mxu0
      %v8979 = vadd.f32 0.0, %v8978
      %v8980 = vpop.f32.mrb[0].mxu0
      %8981 = vmatprep.mubr.bf16.mxu0 0
      %8982 = vmatmul.mubr.bf16.gmra.mrb[0].mxu0 %v8812
      %v8983 = vpop.f32.mrb[0].mxu0
      %v8984 = vadd.f32 0.0, %v8983
      %v8985 = vpop.f32.mrb[0].mxu0
      %v8986 = vpop.f32.mrb[0].mxu0
      %v8987 = vadd.f32 0.0, %v8986
      %v8988 = vpop.f32.mrb[0].mxu0
      %8989 = vmatprep.mubr.bf16.mxu0 0
      %8990 = vmatmul.mubr.bf16.gmra.mrb[0].mxu0 %v8814
      %v8991 = vpop.f32.mrb[0].mxu0
      %v8992 = vadd.f32 0.0, %v8991
      %v8993 = vpop.f32.mrb[0].mxu0
      %v8994 = vpop.f32.mrb[0].mxu0
      %v8995 = vadd.f32 0.0, %v8994
      %v8996 = vpop.f32.mrb[0].mxu0
      %8997 = vmatprep.mubr.bf16.mxu0 0
      %8998 = vmatmul.mubr.bf16.gmra.mrb[0].mxu0 %v8816
      %v8999 = vpop.f32.mrb[0].mxu0
      %v9000 = vadd.f32 0.0, %v8999
      %v9001 = vpop.f32.mrb[0].mxu0
      %v9002 = vpop.f32.mrb[0].mxu0
      %v9003 = vadd.f32 0.0, %v9002
      %v9004 = vpop.f32.mrb[0].mxu0
      %9005 = vmatprep.mubr.bf16.mxu0 0
      %9006 = vmatmul.mubr.bf16.gmra.mrb[0].mxu0 %v8818
      %v9007 = vpop.f32.mrb[0].mxu0
      %v9008 = vadd.f32 0.0, %v9007
      %v9009 = vpop.f32.mrb[0].mxu0
      %v9010 = vpop.f32.mrb[0].mxu0
      %v9011 = vadd.f32 0.0, %v9010
      %v9012 = vpop.f32.mrb[0].mxu0
      %9013 = vmatprep.mubr.bf16.mxu0 0
      %9014 = vmatmul.mubr.bf16.gmra.mrb[0].mxu0 %v8820
      %v9015 = vpop.f32.mrb[0].mxu0
      %v9016 = vadd.f32 0.0, %v9015
      %v9017 = vpop.f32.mrb[0].mxu0
      %v9018 = vpop.f32.mrb[0].mxu0
      %v9019 = vadd.f32 0.0, %v9018
      %v9020 = vpop.f32.mrb[0].mxu0
      %9021 = vmatprep.mubr.bf16.mxu0 0
      %9022 = vmatmul.mubr.bf16.gmra.mrb[0].mxu0 %v8822
      %v9023 = vpop.f32.mrb[0].mxu0
      %v9024 = vadd.f32 0.0, %v9023
      %v9025 = vpop.f32.mrb[0].mxu0
      %v9026 = vpop.f32.mrb[0].mxu0
      %v9027 = vadd.f32 0.0, %v9026
      %v9028 = vpop.f32.mrb[0].mxu0
      %9029 = vmatprep.mubr.bf16.mxu0 0
      %9030 = vmatmul.mubr.bf16.gmra.mrb[0].mxu0 %v8824
      %v9031 = vpop.f32.mrb[0].mxu0
      %v9032 = vadd.f32 0.0, %v9031
      %v9033 = vpop.f32.mrb[0].mxu0
      %v9034 = vpop.f32.mrb[0].mxu0
      %v9035 = vadd.f32 0.0, %v9034
      %v9036 = vpop.f32.mrb[0].mxu0
      %9037 = vmatprep.mubr.bf16.mxu0 0
      %9038 = vmatmul.mubr.bf16.gmra.mrb[0].mxu0 %v8826
      %v9039 = vpop.f32.mrb[0].mxu0
      %v9040 = vadd.f32 0.0, %v9039
      %v9041 = vpop.f32.mrb[0].mxu0
      %v9042 = vpop.f32.mrb[0].mxu0
      %v9043 = vadd.f32 0.0, %v9042
      %v9044 = vpop.f32.mrb[0].mxu0
      %9045 = vmatprep.mubr.bf16.mxu0 0
      %9046 = vmatmul.mubr.bf16.gmra.mrb[0].mxu0 %v8828
      %v9047 = vpop.f32.mrb[0].mxu0
      %v9048 = vadd.f32 0.0, %v9047
      %v9049 = vpop.f32.mrb[0].mxu0
      %v9050 = vpop.f32.mrb[0].mxu0
      %v9051 = vadd.f32 0.0, %v9050
      %v9052 = vpop.f32.mrb[0].mxu0
      %9053 = vmatprep.mubr.bf16.mxu0 0
      %9054 = vmatmul.mubr.bf16.gmra.mrb[0].mxu0 %v8830
      %v9055 = vpop.f32.mrb[0].mxu0
      %v9056 = vadd.f32 0.0, %v9055
      %v9057 = vpop.f32.mrb[0].mxu0
      %v9058 = vpop.f32.mrb[0].mxu0
      %v9059 = vadd.f32 0.0, %v9058
      %v9060 = vpop.f32.mrb[0].mxu0
      %9061 = vmatprep.mubr.bf16.mxu0 0
      %9062 = vmatmul.mubr.bf16.gmra.mrb[0].mxu0 %v8832
      %v9063 = vpop.f32.mrb[0].mxu0
      %v9064 = vadd.f32 0.0, %v9063
      %v9065 = vpop.f32.mrb[0].mxu0
      %v9066 = vpop.f32.mrb[0].mxu0
      %v9067 = vadd.f32 0.0, %v9066
      %v9068 = vpop.f32.mrb[0].mxu0
      %9069 = vmatprep.mubr.bf16.mxu0 0
      %9070 = vmatmul.mubr.bf16.gmra.mrb[0].mxu0 %v8834
      %v9071 = vpop.f32.mrb[0].mxu0
      %v9072 = vadd.f32 0.0, %v9071
      %v9073 = vpop.f32.mrb[0].mxu0
      %v9074 = vpop.f32.mrb[0].mxu0
      %v9075 = vadd.f32 0.0, %v9074
      %v9076 = vpop.f32.mrb[0].mxu0
      %9077 = vdwg.mxu0
      %v9078 = vadd.f32 %v8741, %v8936
      %v9079 = vadd.f32 %v8742, %v8939
      %v9080 = vadd.f32 %v8743, %v8944
      %v9081 = vadd.f32 %v8744, %v8947
      %v9082 = vadd.f32 %v8745, %v8952
      %v9083 = vadd.f32 %v8746, %v8955
      %v9084 = vadd.f32 %v8747, %v8960
      %v9085 = vadd.f32 %v8748, %v8963
      %v9086 = vadd.f32 %v8749, %v8968
      %v9087 = vadd.f32 %v8750, %v8971
      %v9088 = vadd.f32 %v8751, %v8976
      %v9089 = vadd.f32 %v8752, %v8979
      %v9090 = vadd.f32 %v8753, %v8984
      %v9091 = vadd.f32 %v8754, %v8987
      %v9092 = vadd.f32 %v8755, %v8992
      %v9093 = vadd.f32 %v8756, %v8995
      %v9094 = vadd.f32 %v8757, %v9000
      %v9095 = vadd.f32 %v8758, %v9003
      %v9096 = vadd.f32 %v8759, %v9008
      %v9097 = vadd.f32 %v8760, %v9011
      %v9098 = vadd.f32 %v8761, %v9016
      %v9099 = vadd.f32 %v8762, %v9019
      %v9100 = vadd.f32 %v8763, %v9024
      %v9101 = vadd.f32 %v8764, %v9027
      %v9102 = vadd.f32 %v8765, %v9032
      %v9103 = vadd.f32 %v8766, %v9035
      %v9104 = vadd.f32 %v8767, %v9040
      %v9105 = vadd.f32 %v8768, %v9043
      %v9106 = vadd.f32 %v8769, %v9048
      %v9107 = vadd.f32 %v8770, %v9051
      %v9108 = vadd.f32 %v8771, %v9056
      %v9109 = vadd.f32 %v8772, %v9059
      %v9110 = vadd.f32 %v8773, %v9064
      %v9111 = vadd.f32 %v8774, %v9067
      %v9112 = vadd.f32 %v8775, %v9072
      %v9113 = vadd.f32 %v8776, %v9075
      %v9114 = vld [vmem:[%s5] sm:$0x1]
      %v9116 = vlaneseq
      %v9117 = vshrl.u32 %v9116, 7
      %v9118 = vsub.s32 0, %v9117
      %v9119 = vrot.slane %v9114, %v9118
      %v9121 = vadd.f32 %v9078, %v9119
      %v9122 = vadd.f32 %v9079, %v9119
      %v9123 = vadd.f32 %v9080, %v9119
      %v9124 = vadd.f32 %v9081, %v9119
      %v9125 = vadd.f32 %v9082, %v9119
      %v9126 = vadd.f32 %v9083, %v9119
      %v9127 = vadd.f32 %v9084, %v9119
      %v9128 = vadd.f32 %v9085, %v9119
      %v9129 = vadd.f32 %v9086, %v9119
      %v9130 = vadd.f32 %v9087, %v9119
      %v9131 = vadd.f32 %v9088, %v9119
      %v9132 = vadd.f32 %v9089, %v9119
      %v9133 = vadd.f32 %v9090, %v9119
      %v9134 = vadd.f32 %v9091, %v9119
      %v9135 = vadd.f32 %v9092, %v9119
      %v9136 = vadd.f32 %v9093, %v9119
      %v9137 = vadd.f32 %v9094, %v9119
      %v9138 = vadd.f32 %v9095, %v9119
      %v9139 = vadd.f32 %v9096, %v9119
      %v9140 = vadd.f32 %v9097, %v9119
      %v9141 = vadd.f32 %v9098, %v9119
      %v9142 = vadd.f32 %v9099, %v9119
      %v9143 = vadd.f32 %v9100, %v9119
      %v9144 = vadd.f32 %v9101, %v9119
      %v9145 = vadd.f32 %v9102, %v9119
      %v9146 = vadd.f32 %v9103, %v9119
      %v9147 = vadd.f32 %v9104, %v9119
      %v9148 = vadd.f32 %v9105, %v9119
      %v9149 = vadd.f32 %v9106, %v9119
      %v9150 = vadd.f32 %v9107, %v9119
      %v9151 = vadd.f32 %v9108, %v9119
      %v9152 = vadd.f32 %v9109, %v9119
      %v9153 = vadd.f32 %v9110, %v9119
      %v9154 = vadd.f32 %v9111, %v9119
      %v9155 = vadd.f32 %v9112, %v9119
      %v9156 = vadd.f32 %v9113, %v9119
      %v9157 = vmax.f32 %v9121, 0.0
      %v9158 = vmax.f32 %v9122, 0.0
      %v9159 = vmax.f32 %v9123, 0.0
      %v9160 = vmax.f32 %v9124, 0.0
      %v9161 = vmax.f32 %v9125, 0.0
      %v9162 = vmax.f32 %v9126, 0.0
      %v9163 = vmax.f32 %v9127, 0.0
      %v9164 = vmax.f32 %v9128, 0.0
      %v9165 = vmax.f32 %v9129, 0.0
      %v9166 = vmax.f32 %v9130, 0.0
      %v9167 = vmax.f32 %v9131, 0.0
      %v9168 = vmax.f32 %v9132, 0.0
      %v9169 = vmax.f32 %v9133, 0.0
      %v9170 = vmax.f32 %v9134, 0.0
      %v9171 = vmax.f32 %v9135, 0.0
      %v9172 = vmax.f32 %v9136, 0.0
      %v9173 = vmax.f32 %v9137, 0.0
      %v9174 = vmax.f32 %v9138, 0.0
      %v9175 = vmax.f32 %v9139, 0.0
      %v9176 = vmax.f32 %v9140, 0.0
      %v9177 = vmax.f32 %v9141, 0.0
      %v9178 = vmax.f32 %v9142, 0.0
      %v9179 = vmax.f32 %v9143, 0.0
      %v9180 = vmax.f32 %v9144, 0.0
      %v9181 = vmax.f32 %v9145, 0.0
      %v9182 = vmax.f32 %v9146, 0.0
      %v9183 = vmax.f32 %v9147, 0.0
      %v9184 = vmax.f32 %v9148, 0.0
      %v9185 = vmax.f32 %v9149, 0.0
      %v9186 = vmax.f32 %v9150, 0.0
      %v9187 = vmax.f32 %v9151, 0.0
      %v9188 = vmax.f32 %v9152, 0.0
      %v9189 = vmax.f32 %v9153, 0.0
      %v9190 = vmax.f32 %v9154, 0.0
      %v9191 = vmax.f32 %v9155, 0.0
      %v9192 = vmax.f32 %v9156, 0.0
      %9193 = vst [vmem:[%s278] sm:$0xff] %v9157
      %9194 = vst [vmem:[%s278 + $0x8] sm:$0xff] %v9158
      %9195 = vst [vmem:[%s278 + $0x10] sm:$0xff] %v9159
      %9196 = vst [vmem:[%s278 + $0x18] sm:$0xff] %v9160
      %9197 = vst [vmem:[%s278 + $0x20] sm:$0xff] %v9161
      %9198 = vst [vmem:[%s278 + $0x28] sm:$0xff] %v9162
      %9199 = vst [vmem:[%s278 + $0x30] sm:$0xff] %v9163
      %9200 = vst [vmem:[%s278 + $0x38] sm:$0xff] %v9164
      %9201 = vst [vmem:[%s278 + $0x40] sm:$0xff] %v9165
      %9202 = vst [vmem:[%s278 + $0x48] sm:$0xff] %v9166
      %9203 = vst [vmem:[%s278 + $0x50] sm:$0xff] %v9167
      %9204 = vst [vmem:[%s278 + $0x58] sm:$0xff] %v9168
      %9205 = vst [vmem:[%s278 + $0x60] sm:$0xff] %v9169
      %9206 = vst [vmem:[%s278 + $0x68] sm:$0xff] %v9170
      %9207 = vst [vmem:[%s278 + $0x70] sm:$0xff] %v9171
      %9208 = vst [vmem:[%s278 + $0x78] sm:$0xff] %v9172
      %9209 = vst [vmem:[%s278 + $0x80] sm:$0xff] %v9173
      %9210 = vst [vmem:[%s278 + $0x88] sm:$0xff] %v9174
      %9211 = vst [vmem:[%s278 + $0x90] sm:$0xff] %v9175
      %9212 = vst [vmem:[%s278 + $0x98] sm:$0xff] %v9176
      %9213 = vst [vmem:[%s278 + $0xa0] sm:$0xff] %v9177
      %9214 = vst [vmem:[%s278 + $0xa8] sm:$0xff] %v9178
      %9215 = vst [vmem:[%s278 + $0xb0] sm:$0xff] %v9179
      %9216 = vst [vmem:[%s278 + $0xb8] sm:$0xff] %v9180
      %9217 = vst [vmem:[%s278 + $0xc0] sm:$0xff] %v9181
      %9218 = vst [vmem:[%s278 + $0xc8] sm:$0xff] %v9182
      %9219 = vst [vmem:[%s278 + $0xd0] sm:$0xff] %v9183
      %9220 = vst [vmem:[%s278 + $0xd8] sm:$0xff] %v9184
      %9221 = vst [vmem:[%s278 + $0xe0] sm:$0xff] %v9185
      %9222 = vst [vmem:[%s278 + $0xe8] sm:$0xff] %v9186
      %9223 = vst [vmem:[%s278 + $0xf0] sm:$0xff] %v9187
      %9224 = vst [vmem:[%s278 + $0xf8] sm:$0xff] %v9188
      %9225 = vst [vmem:[%s278 + $0x100] sm:$0xff] %v9189
      %9226 = vst [vmem:[%s278 + $0x108] sm:$0xff] %v9190
      %9227 = vst [vmem:[%s278 + $0x110] sm:$0xff] %v9191
      %9228 = vst [vmem:[%s278 + $0x118] sm:$0x3f] %v9192
      %p9229 = scmp.lt.s32.totalorder %s18, 1
      %s9230 = scalar_select %p9229, %s18, 1
      %s9231 = smul.addr %s9230, 36
      %s9232 = smul.addr %s9231, 8
      %s9233 = scalar_lea.vmem %s7, %s9232
      // Predicated region
      $region49: #{tpu_custom_call.1} parent=47 // pred_check
        %p9234 = pneg %p188
      $region50: #{tpu_custom_call.1} parent=47 // pred_check_branch
        %9236 = sbr.rel (%p9234) target = $region52
      $region51: #{tpu_custom_call.1} parent=47 // pred_region
        _
      $region52: #{tpu_custom_call.1} parent=47 // pred_fallthru
        _
    $region48: #{tpu_custom_call.1} parent=5 // pred_fallthru
      _
    %p9237 = scmp.le.s32.totalorder 2, %s13
    // Predicated region
    $region53: #{tpu_custom_call.1} parent=5 // pred_check
      %p9238 = pneg %p9237
    $region54: #{tpu_custom_call.1} parent=5 // pred_check_branch
      %9240 = sbr.rel (%p9238) target = $region56
    $region55: #{tpu_custom_call.1} parent=5 // pred_region
      %s9241 = ssub.s32 %s13, 2
      // Predicated region
      $region57: #{tpu_custom_call.1} parent=55 // pred_check
        %p9242 = pneg %p194
      $region58: #{tpu_custom_call.1} parent=55 // pred_check_branch
        %9244 = sbr.rel (%p9242) target = $region60
      $region59: #{tpu_custom_call.1} parent=55 // pred_region
        %p9245 = scmp.lt.s32.totalorder %s19, 1
        %s9246 = scalar_select %p9245, %s19, 1
        %s9247 = smul.addr %s9246, 36
        %s9248 = smul.addr %s9247, 8
        %s9249 = scalar_lea.vmem %s7, %s9248
      $region60: #{tpu_custom_call.1} parent=55 // pred_fallthru
        _
    $region56: #{tpu_custom_call.1} parent=5 // pred_fallthru
      _
  $region6: #{tpu_custom_call.1} parent=0 // loop_footer
    %s17 = sadd.s32 1, %s13
  $region7: #{tpu_custom_call.1} parent=0 // loop_footer_branch
    %12 = sbr.rel target = $region3
  $region8: #{tpu_custom_call.1} parent=0 // loop_exit
    _

</llo_original>
